<compile_context>
chip_gen: v7x
topology: tpu7x:2x2x1
jax: 0.10.0
libtpu: 0.0.40
codegen_flags: <defaults>
</compile_context>

<pallas_src>
import functools

import jax
import jax.numpy as jnp
from jax.experimental import pallas as pl
from jax.experimental.pallas import tpu as pltpu


def _round_up(x, m):
    return ((x + m - 1) // m) * m


def _pick_tk(kp, tk_max):
    """Largest multiple of 128 <= tk_max that divides kp (kp is a 128-multiple)."""
    t = max(128, (min(kp, tk_max) // 128) * 128)
    while kp % t:
        t -= 128
    return t


# ---------------------------------------------------------------------------
# Pallas kernel: tiled matmul, bf16 operands, f32 accumulation, fused bias.
# ---------------------------------------------------------------------------
def _matmul_kernel(a_ref, b_ref, bias_ref, o_ref, acc_ref):
    k = pl.program_id(2)

    @pl.when(k == 0)
    def _():
        acc_ref[...] = jnp.zeros_like(acc_ref)

    acc_ref[...] += jnp.dot(a_ref[...], b_ref[...],
                            preferred_element_type=jnp.float32)

    @pl.when(k == pl.num_programs(2) - 1)
    def _():
        o_ref[...] = (acc_ref[...] + bias_ref[...]).astype(o_ref.dtype)


@jax.tree_util.register_pytree_node_class
class PreppedLinear:
    """Weight pre-folded / transposed / padded / cast-to-bf16 once, with static tiling."""

    def __init__(self, w, b, n, k, tn, tk):
        self.w, self.b = w, b
        self.n, self.k, self.tn, self.tk = n, k, tn, tk

    def tree_flatten(self):
        return (self.w, self.b), (self.n, self.k, self.tn, self.tk)

    @classmethod
    def tree_unflatten(cls, aux, children):
        w, b = children
        return cls(w, b, *aux)


def prep_linear(w, b=None, *, tn_max=512, tk_max=1024):
    """w: (K, N) f32, b: (N,) f32 -> PreppedLinear (padded bf16 weight, f32 bias)."""
    K, N = w.shape
    if b is None:
        b = jnp.zeros((N,), jnp.float32)
    kp = _round_up(K, 128)
    np0 = _round_up(N, 128)
    tn = min(tn_max, np0)                    # both multiples of 128
    npad = _round_up(np0, tn)
    tk = _pick_tk(kp, tk_max)
    w_p = jnp.pad(w.astype(jnp.float32),
                  ((0, kp - K), (0, npad - N))).astype(jnp.bfloat16)
    b_p = jnp.pad(b.astype(jnp.float32), (0, npad - N)).reshape(1, npad)
    return PreppedLinear(w_p, b_p, N, K, tn, tk)


def matmul_prepped(a, wp, *, tm_max=256):
    """a:(M,K) @ prepped (K,N) + bias via the Pallas matmul kernel."""
    M, K = a.shape
    assert K == wp.k, (K, wp.k)
    kp, npad = wp.w.shape
    mp = _round_up(M, 8)
    tm = min(tm_max, mp)
    mp = _round_up(mp, tm)
    a_p = jnp.pad(a.astype(jnp.bfloat16), ((0, mp - M), (0, kp - K)))

    tn, tk = wp.tn, wp.tk
    grid = (mp // tm, npad // tn, kp // tk)
    out = pl.pallas_call(
        _matmul_kernel,
        out_shape=jax.ShapeDtypeStruct((mp, npad), jnp.float32),
        grid_spec=pltpu.PrefetchScalarGridSpec(
            num_scalar_prefetch=0,
            grid=grid,
            in_specs=[
                pl.BlockSpec((tm, tk), lambda i, j, k: (i, k)),
                pl.BlockSpec((tk, tn), lambda i, j, k: (k, j)),
                pl.BlockSpec((1, tn), lambda i, j, k: (0, j)),
            ],
            out_specs=pl.BlockSpec((tm, tn), lambda i, j, k: (i, j)),
            scratch_shapes=[pltpu.VMEM((tm, tn), jnp.float32)],
        ),
        compiler_params=pltpu.CompilerParams(
            dimension_semantics=("parallel", "parallel", "arbitrary")),
    )(a_p, wp.w, wp.b)
    return out[:M, :wp.n]


# ---------------------------------------------------------------------------
# Plain-JAX glue (cheap data movement / elementwise; tensors are tiny).
# ---------------------------------------------------------------------------
def conv1d_nlc(x, wp, *, stride, padding, kernel):
    """x: (B, L, Cin) channels-last; BN already folded into wp. -> (B, Lout, Cout)."""
    B, L, Cin = x.shape
    if padding:
        x = jnp.pad(x, ((0, 0), (padding, padding), (0, 0)))
    Lp = L + 2 * padding
    Lout = (Lp - kernel) // stride + 1
    idx = jnp.arange(Lout)[:, None] * stride + jnp.arange(kernel)[None, :]
    patches = x[:, idx, :]                               # (B, Lout, K, Cin)
    a = patches.reshape(B * Lout, kernel * Cin)          # already matmul layout
    out = matmul_prepped(a, wp)
    return out.reshape(B, Lout, wp.n)


def maxpool1d_nlc(x, *, kernel, stride, padding):
    """PyTorch MaxPool1d semantics (padding counts as -inf, ceil_mode=False)."""
    B, L, C = x.shape
    xp = jnp.pad(x, ((0, 0), (padding, padding), (0, 0)),
                 constant_values=-jnp.inf)
    Lp = L + 2 * padding
    Lout = (Lp - kernel) // stride + 1
    idx = jnp.arange(Lout)[:, None] * stride + jnp.arange(kernel)[None, :]
    return jnp.max(xp[:, idx, :], axis=2)


def _gelu(x):
    # Exact (erf) GELU matching torch F.gelu; kept as an XLA elementwise op so we
    # do not rely on erf lowering inside Mosaic.
    return jax.nn.gelu(x, approximate=False)


def se_basic_block_nlc(x, p):
    """SEBasicBlock(128->30), channels-last.  K=1 convs + SE bottleneck are
    degenerate shapes -> plain jnp (routing them through Pallas costs more than
    the flops).  BN already folded into the weights/biases."""
    out = jax.nn.relu(jnp.einsum("bsc,cd->bsd", x, p["c1_w"]) + p["c1_b"])
    out = jnp.einsum("bsc,cd->bsd", out, p["c2_w"]) + p["c2_b"]
    # SE gate
    y = jnp.mean(out, axis=1)                      # (B, 30)  adaptive avg-pool(1)
    y = jax.nn.relu(y @ p["se_w1"])                # (B, 1)
    y = jax.nn.sigmoid(y @ p["se_w2"])             # (B, 30)
    out = out * y[:, None, :]
    residual = jnp.einsum("bsc,cd->bsd", x, p["down_w"]) + p["down_b"]
    return jax.nn.relu(out + residual)


def mrcnn_forward(pp, x):
    """MRCNN forward.  x: (B, 1, L) torch NCL layout -> (B, 30, 80) NCL layout."""
    x_nlc = x.transpose(0, 2, 1)                         # channels-last once

    # --- features1 (short-kernel branch) --- Dropout = identity (eval mode)
    h1 = _gelu(conv1d_nlc(x_nlc, pp["f1_c1"], stride=6, padding=24, kernel=50))
    h1 = maxpool1d_nlc(h1, kernel=8, stride=2, padding=4)
    h1 = _gelu(conv1d_nlc(h1, pp["f1_c2"], stride=1, padding=4, kernel=8))
    h1 = _gelu(conv1d_nlc(h1, pp["f1_c3"], stride=1, padding=4, kernel=8))
    h1 = maxpool1d_nlc(h1, kernel=4, stride=4, padding=2)       # (B, 64, 128)

    # --- features2 (long-kernel branch) ---
    h2 = _gelu(conv1d_nlc(x_nlc, pp["f2_c1"], stride=50, padding=200, kernel=400))
    h2 = maxpool1d_nlc(h2, kernel=4, stride=2, padding=2)
    h2 = _gelu(conv1d_nlc(h2, pp["f2_c2"], stride=1, padding=3, kernel=7))
    h2 = _gelu(conv1d_nlc(h2, pp["f2_c3"], stride=1, padding=3, kernel=7))
    h2 = maxpool1d_nlc(h2, kernel=2, stride=2, padding=1)       # (B, 16, 128)

    # torch.cat(..., dim=2) concatenates along time -> axis=1 in NLC layout.
    hc = jnp.concatenate([h1, h2], axis=1)                      # (B, 80, 128)
    # Dropout -> identity (eval mode)
    out = se_basic_block_nlc(hc, pp["afr"])                     # (B, 80, 30)
    return out.transpose(0, 2, 1)                               # (B, 30, 80) NCL


# ---------------------------------------------------------------------------
# Parameter prep: fold BN, transpose to matmul layout, pad & cast bf16 ONCE.
# ---------------------------------------------------------------------------
def prepare_params(p, eps=1e-5):
    def bn_scale_shift(bn):
        s = bn["g"] / jnp.sqrt(bn["v"] + eps)
        return s, bn["b"] - bn["m"] * s

    def conv_prepped(w, bn):
        # conv (bias=False) + BN folded; weight -> (K*Cin, Cout) bf16 padded
        s, sh = bn_scale_shift(bn)
        wf = w * s[:, None, None]
        Cout, Cin, K = w.shape
        w2 = wf.transpose(2, 1, 0).reshape(K * Cin, Cout)
        return prep_linear(w2, sh)

    def k1_conv_folded(w, bn, conv_b=None):
        # K=1 conv (+optional bias) + BN folded -> plain (Cin, Cout) / (Cout,)
        s, sh = bn_scale_shift(bn)
        wf = (w[:, :, 0] * s[:, None]).T
        bf = sh if conv_b is None else conv_b * s + sh
        return wf, bf

    afr = p["afr"]
    c1_w, c1_b = k1_conv_folded(afr["conv1_w"], afr["bn1"], afr["conv1_b"])
    c2_w, c2_b = k1_conv_folded(afr["conv2_w"], afr["bn2"], afr["conv2_b"])
    dn_w, dn_b = k1_conv_folded(afr["down_w"], afr["down_bn"])

    return dict(
        f1_c1=conv_prepped(p["f1_c1"], p["f1_bn1"]),
        f1_c2=conv_prepped(p["f1_c2"], p["f1_bn2"]),
        f1_c3=conv_prepped(p["f1_c3"], p["f1_bn3"]),
        f2_c1=conv_prepped(p["f2_c1"], p["f2_bn1"]),
        f2_c2=conv_prepped(p["f2_c2"], p["f2_bn2"]),
        f2_c3=conv_prepped(p["f2_c3"], p["f2_bn3"]),
        afr=dict(c1_w=c1_w, c1_b=c1_b, c2_w=c2_w, c2_b=c2_b,
                 down_w=dn_w, down_b=dn_b,
                 se_w1=afr["se_w1"], se_w2=afr["se_w2"]),
    )


# ---------------------------------------------------------------------------
# Deterministic synthetic parameter init (shapes follow the torch __init__,
# afr_reduced_cnn_size = 30 as used by AttnSleep).
# ---------------------------------------------------------------------------
def init_params(key):
    keys = iter(jax.random.split(key, 32))

    def nrm(shape, scale=0.05):
        return scale * jax.random.normal(next(keys), shape, dtype=jnp.float32)

    def bn(c):  # PyTorch fresh-init BatchNorm (eval mode running stats)
        return dict(g=jnp.ones((c,), jnp.float32), b=jnp.zeros((c,), jnp.float32),
                    m=jnp.zeros((c,), jnp.float32), v=jnp.ones((c,), jnp.float32))

    return dict(
        f1_c1=nrm((64, 1, 50)), f1_bn1=bn(64),
        f1_c2=nrm((128, 64, 8)), f1_bn2=bn(128),
        f1_c3=nrm((128, 128, 8)), f1_bn3=bn(128),
        f2_c1=nrm((64, 1, 400)), f2_bn1=bn(64),
        f2_c2=nrm((128, 64, 7)), f2_bn2=bn(128),
        f2_c3=nrm((128, 128, 7)), f2_bn3=bn(128),
        afr=dict(
            conv1_w=nrm((30, 128, 1)), conv1_b=nrm((30,)), bn1=bn(30),
            conv2_w=nrm((30, 30, 1)), conv2_b=nrm((30,)), bn2=bn(30),
            se_w1=nrm((30, 1)), se_w2=nrm((1, 30)),   # SE reduction 16 -> width 1
            down_w=nrm((30, 128, 1)), down_bn=bn(30),
        ),
    )


if __name__ == "__main__":
    key = jax.random.PRNGKey(0)
    pkey, xkey = jax.random.split(key)
    raw = init_params(pkey)
    params = prepare_params(raw)      # one-time: BN fold, transpose, pad, bf16 cast

    # EEG-epoch input as in AttnSleep: (B, 1, 3000); the two branches yield
    # 64 + 16 = 80 time steps with 128 channels before the SE block.
    B, L = 2, 3000
    x = jax.random.normal(xkey, (B, 1, L), dtype=jnp.float32)

    fwd = jax.jit(mrcnn_forward)
    out = fwd(params, x)
    jax.block_until_ready(out)

    assert out.shape == (B, 30, 80), out.shape
    assert bool(jnp.all(jnp.isfinite(out)))
    print("KERNEL_OK")
</pallas_src>

<mosaic_0001>
module attributes {stable_mosaic.version = 11 : i64} {
  func.func @_matmul_kernel(%arg0: i32, %arg1: i32, %arg2: i32, %arg3: memref<128x512xbf16, #tpu.memory_space<vmem>>, %arg4: memref<512x128xbf16, #tpu.memory_space<vmem>>, %arg5: memref<1x128xf32, #tpu.memory_space<vmem>>, %arg6: memref<128x128xf32, #tpu.memory_space<vmem>>, %arg7: memref<128x128xf32, #tpu.memory_space<vmem>>) attributes {dimension_semantics = [#tpu.dimension_semantics<parallel>, #tpu.dimension_semantics<parallel>, #tpu.dimension_semantics<arbitrary>], iteration_bounds = array<i64: 1, 1, 1>, scalar_prefetch = 0 : i64, scratch_operands = 1 : i64, tpu.core_type = #tpu.core_type<tc>, window_params = [{transform_indices = @transform_0, window_bounds = array<i64: 128, 512>}, {transform_indices = @transform_1, window_bounds = array<i64: 512, 128>}, {transform_indices = @transform_2, window_bounds = array<i64: 1, 128>}, {transform_indices = @transform_3, window_bounds = array<i64: 128, 128>}]} {
    %c0_i32 = arith.constant 0 : i32
    %0 = arith.cmpi eq, %arg2, %c0_i32 : i32
    %1 = arith.extui %0 : i1 to i32
    %c0_i32_0 = arith.constant 0 : i32
    %2 = arith.cmpi ne, %1, %c0_i32_0 : i32
    scf.if %2 {
      %cst_10 = arith.constant 0.000000e+00 : f32
      %12 = vector.broadcast %cst_10 : f32 to vector<128x128xf32>
      %c0_11 = arith.constant 0 : index
      %c0_12 = arith.constant 0 : index
      %13 = vector.load %arg7[%c0_11, %c0_12] : memref<128x128xf32, #tpu.memory_space<vmem>>, vector<128x128xf32>
      tpu.vector_store %arg7[%c0_11, %c0_12], %12 {strides = array<i32>} : memref<128x128xf32, #tpu.memory_space<vmem>>, vector<128x128xf32>,
    } else {
    }
    %c0 = arith.constant 0 : index
    %c0_1 = arith.constant 0 : index
    %3 = vector.load %arg7[%c0, %c0_1] : memref<128x128xf32, #tpu.memory_space<vmem>>, vector<128x128xf32>
    %c0_2 = arith.constant 0 : index
    %c0_3 = arith.constant 0 : index
    %4 = vector.load %arg3[%c0_2, %c0_3] : memref<128x512xbf16, #tpu.memory_space<vmem>>, vector<128x512xbf16>
    %c0_4 = arith.constant 0 : index
    %c0_5 = arith.constant 0 : index
    %5 = vector.load %arg4[%c0_4, %c0_5] : memref<512x128xbf16, #tpu.memory_space<vmem>>, vector<512x128xbf16>
    %cst = arith.constant dense<0.000000e+00> : vector<128x128xf32>
    %6 = tpu.matmul %4, %5, %cst {dimension_numbers = #tpu.dot_dimension_numbers<[1], [0], [0], [1], [0, 0, 1, 1], [], []>} : vector<128x512xbf16>, vector<512x128xbf16>, vector<128x128xf32> -> vector<128x128xf32>
    %7 = arith.addf %3, %6 : vector<128x128xf32>
    %c0_6 = arith.constant 0 : index
    %c0_7 = arith.constant 0 : index
    %8 = vector.load %arg7[%c0_6, %c0_7] : memref<128x128xf32, #tpu.memory_space<vmem>>, vector<128x128xf32>
    tpu.vector_store %arg7[%c0_6, %c0_7], %7 {strides = array<i32>} : memref<128x128xf32, #tpu.memory_space<vmem>>, vector<128x128xf32>,
    %c0_i32_8 = arith.constant 0 : i32
    %9 = arith.cmpi eq, %arg2, %c0_i32_8 : i32
    %10 = arith.extui %9 : i1 to i32
    %c0_i32_9 = arith.constant 0 : i32
    %11 = arith.cmpi ne, %10, %c0_i32_9 : i32
    scf.if %11 {
      %c0_10 = arith.constant 0 : index
      %c0_11 = arith.constant 0 : index
      %12 = vector.load %arg7[%c0_10, %c0_11] : memref<128x128xf32, #tpu.memory_space<vmem>>, vector<128x128xf32>
      %c0_12 = arith.constant 0 : index
      %c0_13 = arith.constant 0 : index
      %13 = vector.load %arg5[%c0_12, %c0_13] : memref<1x128xf32, #tpu.memory_space<vmem>>, vector<1x128xf32>
      %14 = vector.broadcast %13 : vector<1x128xf32> to vector<128x128xf32>
      %15 = arith.addf %12, %14 : vector<128x128xf32>
      %c0_14 = arith.constant 0 : index
      %c0_15 = arith.constant 0 : index
      %16 = vector.load %arg6[%c0_14, %c0_15] : memref<128x128xf32, #tpu.memory_space<vmem>>, vector<128x128xf32>
      tpu.vector_store %arg6[%c0_14, %c0_15], %15 {strides = array<i32>} : memref<128x128xf32, #tpu.memory_space<vmem>>, vector<128x128xf32>,
    } else {
    }
    return
  }
  func.func @transform_0(%arg0: i32, %arg1: i32, %arg2: i32) -> (i32, i32) {
    %c0_i32 = arith.constant 0 : i32
    return %arg0, %arg2 : i32, i32
  }
  func.func @transform_1(%arg0: i32, %arg1: i32, %arg2: i32) -> (i32, i32) {
    %c0_i32 = arith.constant 0 : i32
    return %arg2, %arg1 : i32, i32
  }
  func.func @transform_2(%arg0: i32, %arg1: i32, %arg2: i32) -> (i32, i32) {
    %c0_i32 = arith.constant 0 : i32
    %c0_i32_0 = arith.constant 0 : i32
    return %c0_i32, %arg1 : i32, i32
  }
  func.func @transform_3(%arg0: i32, %arg1: i32, %arg2: i32) -> (i32, i32) {
    %c0_i32 = arith.constant 0 : i32
    return %arg0, %arg1 : i32, i32
  }
}

module attributes {stable_mosaic.version = 11 : i64} {
  func.func @_matmul_kernel(%arg0: i32, %arg1: i32, %arg2: i32, %arg3: memref<64x512xbf16, #tpu.memory_space<vmem>>, %arg4: memref<512x128xbf16, #tpu.memory_space<vmem>>, %arg5: memref<1x128xf32, #tpu.memory_space<vmem>>, %arg6: memref<64x128xf32, #tpu.memory_space<vmem>>, %arg7: memref<64x128xf32, #tpu.memory_space<vmem>>) attributes {dimension_semantics = [#tpu.dimension_semantics<parallel>, #tpu.dimension_semantics<parallel>, #tpu.dimension_semantics<arbitrary>], iteration_bounds = array<i64: 1, 1, 1>, scalar_prefetch = 0 : i64, scratch_operands = 1 : i64, tpu.core_type = #tpu.core_type<tc>, window_params = [{transform_indices = @transform_0, window_bounds = array<i64: 64, 512>}, {transform_indices = @transform_1, window_bounds = array<i64: 512, 128>}, {transform_indices = @transform_2, window_bounds = array<i64: 1, 128>}, {transform_indices = @transform_3, window_bounds = array<i64: 64, 128>}]} {
    %c0_i32 = arith.constant 0 : i32
    %0 = arith.cmpi eq, %arg2, %c0_i32 : i32
    %1 = arith.extui %0 : i1 to i32
    %c0_i32_0 = arith.constant 0 : i32
    %2 = arith.cmpi ne, %1, %c0_i32_0 : i32
    scf.if %2 {
      %cst_10 = arith.constant 0.000000e+00 : f32
      %12 = vector.broadcast %cst_10 : f32 to vector<64x128xf32>
      %c0_11 = arith.constant 0 : index
      %c0_12 = arith.constant 0 : index
      %13 = vector.load %arg7[%c0_11, %c0_12] : memref<64x128xf32, #tpu.memory_space<vmem>>, vector<64x128xf32>
      tpu.vector_store %arg7[%c0_11, %c0_12], %12 {strides = array<i32>} : memref<64x128xf32, #tpu.memory_space<vmem>>, vector<64x128xf32>,
    } else {
    }
    %c0 = arith.constant 0 : index
    %c0_1 = arith.constant 0 : index
    %3 = vector.load %arg7[%c0, %c0_1] : memref<64x128xf32, #tpu.memory_space<vmem>>, vector<64x128xf32>
    %c0_2 = arith.constant 0 : index
    %c0_3 = arith.constant 0 : index
    %4 = vector.load %arg3[%c0_2, %c0_3] : memref<64x512xbf16, #tpu.memory_space<vmem>>, vector<64x512xbf16>
    %c0_4 = arith.constant 0 : index
    %c0_5 = arith.constant 0 : index
    %5 = vector.load %arg4[%c0_4, %c0_5] : memref<512x128xbf16, #tpu.memory_space<vmem>>, vector<512x128xbf16>
    %cst = arith.constant dense<0.000000e+00> : vector<64x128xf32>
    %6 = tpu.matmul %4, %5, %cst {dimension_numbers = #tpu.dot_dimension_numbers<[1], [0], [0], [1], [0, 0, 1, 1], [], []>} : vector<64x512xbf16>, vector<512x128xbf16>, vector<64x128xf32> -> vector<64x128xf32>
    %7 = arith.addf %3, %6 : vector<64x128xf32>
    %c0_6 = arith.constant 0 : index
    %c0_7 = arith.constant 0 : index
    %8 = vector.load %arg7[%c0_6, %c0_7] : memref<64x128xf32, #tpu.memory_space<vmem>>, vector<64x128xf32>
    tpu.vector_store %arg7[%c0_6, %c0_7], %7 {strides = array<i32>} : memref<64x128xf32, #tpu.memory_space<vmem>>, vector<64x128xf32>,
    %c0_i32_8 = arith.constant 0 : i32
    %9 = arith.cmpi eq, %arg2, %c0_i32_8 : i32
    %10 = arith.extui %9 : i1 to i32
    %c0_i32_9 = arith.constant 0 : i32
    %11 = arith.cmpi ne, %10, %c0_i32_9 : i32
    scf.if %11 {
      %c0_10 = arith.constant 0 : index
      %c0_11 = arith.constant 0 : index
      %12 = vector.load %arg7[%c0_10, %c0_11] : memref<64x128xf32, #tpu.memory_space<vmem>>, vector<64x128xf32>
      %c0_12 = arith.constant 0 : index
      %c0_13 = arith.constant 0 : index
      %13 = vector.load %arg5[%c0_12, %c0_13] : memref<1x128xf32, #tpu.memory_space<vmem>>, vector<1x128xf32>
      %14 = vector.broadcast %13 : vector<1x128xf32> to vector<64x128xf32>
      %15 = arith.addf %12, %14 : vector<64x128xf32>
      %c0_14 = arith.constant 0 : index
      %c0_15 = arith.constant 0 : index
      %16 = vector.load %arg6[%c0_14, %c0_15] : memref<64x128xf32, #tpu.memory_space<vmem>>, vector<64x128xf32>
      tpu.vector_store %arg6[%c0_14, %c0_15], %15 {strides = array<i32>} : memref<64x128xf32, #tpu.memory_space<vmem>>, vector<64x128xf32>,
    } else {
    }
    return
  }
  func.func @transform_0(%arg0: i32, %arg1: i32, %arg2: i32) -> (i32, i32) {
    %c0_i32 = arith.constant 0 : i32
    return %arg0, %arg2 : i32, i32
  }
  func.func @transform_1(%arg0: i32, %arg1: i32, %arg2: i32) -> (i32, i32) {
    %c0_i32 = arith.constant 0 : i32
    return %arg2, %arg1 : i32, i32
  }
  func.func @transform_2(%arg0: i32, %arg1: i32, %arg2: i32) -> (i32, i32) {
    %c0_i32 = arith.constant 0 : i32
    %c0_i32_0 = arith.constant 0 : i32
    return %c0_i32, %arg1 : i32, i32
  }
  func.func @transform_3(%arg0: i32, %arg1: i32, %arg2: i32) -> (i32, i32) {
    %c0_i32 = arith.constant 0 : i32
    return %arg0, %arg1 : i32, i32
  }
}

module attributes {stable_mosaic.version = 11 : i64} {
  func.func @_matmul_kernel(%arg0: i32, %arg1: i32, %arg2: i32, %arg3: memref<64x896xbf16, #tpu.memory_space<vmem>>, %arg4: memref<896x128xbf16, #tpu.memory_space<vmem>>, %arg5: memref<1x128xf32, #tpu.memory_space<vmem>>, %arg6: memref<64x128xf32, #tpu.memory_space<vmem>>, %arg7: memref<64x128xf32, #tpu.memory_space<vmem>>) attributes {dimension_semantics = [#tpu.dimension_semantics<parallel>, #tpu.dimension_semantics<parallel>, #tpu.dimension_semantics<arbitrary>], iteration_bounds = array<i64: 1, 1, 1>, scalar_prefetch = 0 : i64, scratch_operands = 1 : i64, tpu.core_type = #tpu.core_type<tc>, window_params = [{transform_indices = @transform_0, window_bounds = array<i64: 64, 896>}, {transform_indices = @transform_1, window_bounds = array<i64: 896, 128>}, {transform_indices = @transform_2, window_bounds = array<i64: 1, 128>}, {transform_indices = @transform_3, window_bounds = array<i64: 64, 128>}]} {
    %c0_i32 = arith.constant 0 : i32
    %0 = arith.cmpi eq, %arg2, %c0_i32 : i32
    %1 = arith.extui %0 : i1 to i32
    %c0_i32_0 = arith.constant 0 : i32
    %2 = arith.cmpi ne, %1, %c0_i32_0 : i32
    scf.if %2 {
      %cst_10 = arith.constant 0.000000e+00 : f32
      %12 = vector.broadcast %cst_10 : f32 to vector<64x128xf32>
      %c0_11 = arith.constant 0 : index
      %c0_12 = arith.constant 0 : index
      %13 = vector.load %arg7[%c0_11, %c0_12] : memref<64x128xf32, #tpu.memory_space<vmem>>, vector<64x128xf32>
      tpu.vector_store %arg7[%c0_11, %c0_12], %12 {strides = array<i32>} : memref<64x128xf32, #tpu.memory_space<vmem>>, vector<64x128xf32>,
    } else {
    }
    %c0 = arith.constant 0 : index
    %c0_1 = arith.constant 0 : index
    %3 = vector.load %arg7[%c0, %c0_1] : memref<64x128xf32, #tpu.memory_space<vmem>>, vector<64x128xf32>
    %c0_2 = arith.constant 0 : index
    %c0_3 = arith.constant 0 : index
    %4 = vector.load %arg3[%c0_2, %c0_3] : memref<64x896xbf16, #tpu.memory_space<vmem>>, vector<64x896xbf16>
    %c0_4 = arith.constant 0 : index
    %c0_5 = arith.constant 0 : index
    %5 = vector.load %arg4[%c0_4, %c0_5] : memref<896x128xbf16, #tpu.memory_space<vmem>>, vector<896x128xbf16>
    %cst = arith.constant dense<0.000000e+00> : vector<64x128xf32>
    %6 = tpu.matmul %4, %5, %cst {dimension_numbers = #tpu.dot_dimension_numbers<[1], [0], [0], [1], [0, 0, 1, 1], [], []>} : vector<64x896xbf16>, vector<896x128xbf16>, vector<64x128xf32> -> vector<64x128xf32>
    %7 = arith.addf %3, %6 : vector<64x128xf32>
    %c0_6 = arith.constant 0 : index
    %c0_7 = arith.constant 0 : index
    %8 = vector.load %arg7[%c0_6, %c0_7] : memref<64x128xf32, #tpu.memory_space<vmem>>, vector<64x128xf32>
    tpu.vector_store %arg7[%c0_6, %c0_7], %7 {strides = array<i32>} : memref<64x128xf32, #tpu.memory_space<vmem>>, vector<64x128xf32>,
    %c0_i32_8 = arith.constant 0 : i32
    %9 = arith.cmpi eq, %arg2, %c0_i32_8 : i32
    %10 = arith.extui %9 : i1 to i32
    %c0_i32_9 = arith.constant 0 : i32
    %11 = arith.cmpi ne, %10, %c0_i32_9 : i32
    scf.if %11 {
      %c0_10 = arith.constant 0 : index
      %c0_11 = arith.constant 0 : index
      %12 = vector.load %arg7[%c0_10, %c0_11] : memref<64x128xf32, #tpu.memory_space<vmem>>, vector<64x128xf32>
      %c0_12 = arith.constant 0 : index
      %c0_13 = arith.constant 0 : index
      %13 = vector.load %arg5[%c0_12, %c0_13] : memref<1x128xf32, #tpu.memory_space<vmem>>, vector<1x128xf32>
      %14 = vector.broadcast %13 : vector<1x128xf32> to vector<64x128xf32>
      %15 = arith.addf %12, %14 : vector<64x128xf32>
      %c0_14 = arith.constant 0 : index
      %c0_15 = arith.constant 0 : index
      %16 = vector.load %arg6[%c0_14, %c0_15] : memref<64x128xf32, #tpu.memory_space<vmem>>, vector<64x128xf32>
      tpu.vector_store %arg6[%c0_14, %c0_15], %15 {strides = array<i32>} : memref<64x128xf32, #tpu.memory_space<vmem>>, vector<64x128xf32>,
    } else {
    }
    return
  }
  func.func @transform_0(%arg0: i32, %arg1: i32, %arg2: i32) -> (i32, i32) {
    %c0_i32 = arith.constant 0 : i32
    return %arg0, %arg2 : i32, i32
  }
  func.func @transform_1(%arg0: i32, %arg1: i32, %arg2: i32) -> (i32, i32) {
    %c0_i32 = arith.constant 0 : i32
    return %arg2, %arg1 : i32, i32
  }
  func.func @transform_2(%arg0: i32, %arg1: i32, %arg2: i32) -> (i32, i32) {
    %c0_i32 = arith.constant 0 : i32
    %c0_i32_0 = arith.constant 0 : i32
    return %c0_i32, %arg1 : i32, i32
  }
  func.func @transform_3(%arg0: i32, %arg1: i32, %arg2: i32) -> (i32, i32) {
    %c0_i32 = arith.constant 0 : i32
    return %arg0, %arg1 : i32, i32
  }
}

module attributes {stable_mosaic.version = 11 : i64} {
  func.func @_matmul_kernel(%arg0: i32, %arg1: i32, %arg2: i32, %arg3: memref<256x128xbf16, #tpu.memory_space<vmem>>, %arg4: memref<128x128xbf16, #tpu.memory_space<vmem>>, %arg5: memref<1x128xf32, #tpu.memory_space<vmem>>, %arg6: memref<256x128xf32, #tpu.memory_space<vmem>>, %arg7: memref<256x128xf32, #tpu.memory_space<vmem>>) attributes {dimension_semantics = [#tpu.dimension_semantics<parallel>, #tpu.dimension_semantics<parallel>, #tpu.dimension_semantics<arbitrary>], iteration_bounds = array<i64: 4, 1, 1>, scalar_prefetch = 0 : i64, scratch_operands = 1 : i64, tpu.core_type = #tpu.core_type<tc>, window_params = [{transform_indices = @transform_0, window_bounds = array<i64: 256, 128>}, {transform_indices = @transform_1, window_bounds = array<i64: 128, 128>}, {transform_indices = @transform_2, window_bounds = array<i64: 1, 128>}, {transform_indices = @transform_3, window_bounds = array<i64: 256, 128>}]} {
    %c0_i32 = arith.constant 0 : i32
    %0 = arith.cmpi eq, %arg2, %c0_i32 : i32
    %1 = arith.extui %0 : i1 to i32
    %c0_i32_0 = arith.constant 0 : i32
    %2 = arith.cmpi ne, %1, %c0_i32_0 : i32
    scf.if %2 {
      %cst_10 = arith.constant 0.000000e+00 : f32
      %12 = vector.broadcast %cst_10 : f32 to vector<256x128xf32>
      %c0_11 = arith.constant 0 : index
      %c0_12 = arith.constant 0 : index
      %13 = vector.load %arg7[%c0_11, %c0_12] : memref<256x128xf32, #tpu.memory_space<vmem>>, vector<256x128xf32>
      tpu.vector_store %arg7[%c0_11, %c0_12], %12 {strides = array<i32>} : memref<256x128xf32, #tpu.memory_space<vmem>>, vector<256x128xf32>,
    } else {
    }
    %c0 = arith.constant 0 : index
    %c0_1 = arith.constant 0 : index
    %3 = vector.load %arg7[%c0, %c0_1] : memref<256x128xf32, #tpu.memory_space<vmem>>, vector<256x128xf32>
    %c0_2 = arith.constant 0 : index
    %c0_3 = arith.constant 0 : index
    %4 = vector.load %arg3[%c0_2, %c0_3] : memref<256x128xbf16, #tpu.memory_space<vmem>>, vector<256x128xbf16>
    %c0_4 = arith.constant 0 : index
    %c0_5 = arith.constant 0 : index
    %5 = vector.load %arg4[%c0_4, %c0_5] : memref<128x128xbf16, #tpu.memory_space<vmem>>, vector<128x128xbf16>
    %cst = arith.constant dense<0.000000e+00> : vector<256x128xf32>
    %6 = tpu.matmul %4, %5, %cst {dimension_numbers = #tpu.dot_dimension_numbers<[1], [0], [0], [1], [0, 0, 1, 1], [], []>} : vector<256x128xbf16>, vector<128x128xbf16>, vector<256x128xf32> -> vector<256x128xf32>
    %7 = arith.addf %3, %6 : vector<256x128xf32>
    %c0_6 = arith.constant 0 : index
    %c0_7 = arith.constant 0 : index
    %8 = vector.load %arg7[%c0_6, %c0_7] : memref<256x128xf32, #tpu.memory_space<vmem>>, vector<256x128xf32>
    tpu.vector_store %arg7[%c0_6, %c0_7], %7 {strides = array<i32>} : memref<256x128xf32, #tpu.memory_space<vmem>>, vector<256x128xf32>,
    %c0_i32_8 = arith.constant 0 : i32
    %9 = arith.cmpi eq, %arg2, %c0_i32_8 : i32
    %10 = arith.extui %9 : i1 to i32
    %c0_i32_9 = arith.constant 0 : i32
    %11 = arith.cmpi ne, %10, %c0_i32_9 : i32
    scf.if %11 {
      %c0_10 = arith.constant 0 : index
      %c0_11 = arith.constant 0 : index
      %12 = vector.load %arg7[%c0_10, %c0_11] : memref<256x128xf32, #tpu.memory_space<vmem>>, vector<256x128xf32>
      %c0_12 = arith.constant 0 : index
      %c0_13 = arith.constant 0 : index
      %13 = vector.load %arg5[%c0_12, %c0_13] : memref<1x128xf32, #tpu.memory_space<vmem>>, vector<1x128xf32>
      %14 = vector.broadcast %13 : vector<1x128xf32> to vector<256x128xf32>
      %15 = arith.addf %12, %14 : vector<256x128xf32>
      %c0_14 = arith.constant 0 : index
      %c0_15 = arith.constant 0 : index
      %16 = vector.load %arg6[%c0_14, %c0_15] : memref<256x128xf32, #tpu.memory_space<vmem>>, vector<256x128xf32>
      tpu.vector_store %arg6[%c0_14, %c0_15], %15 {strides = array<i32>} : memref<256x128xf32, #tpu.memory_space<vmem>>, vector<256x128xf32>,
    } else {
    }
    return
  }
  func.func @transform_0(%arg0: i32, %arg1: i32, %arg2: i32) -> (i32, i32) {
    %c0_i32 = arith.constant 0 : i32
    return %arg0, %arg2 : i32, i32
  }
  func.func @transform_1(%arg0: i32, %arg1: i32, %arg2: i32) -> (i32, i32) {
    %c0_i32 = arith.constant 0 : i32
    return %arg2, %arg1 : i32, i32
  }
  func.func @transform_2(%arg0: i32, %arg1: i32, %arg2: i32) -> (i32, i32) {
    %c0_i32 = arith.constant 0 : i32
    %c0_i32_0 = arith.constant 0 : i32
    return %c0_i32, %arg1 : i32, i32
  }
  func.func @transform_3(%arg0: i32, %arg1: i32, %arg2: i32) -> (i32, i32) {
    %c0_i32 = arith.constant 0 : i32
    return %arg0, %arg1 : i32, i32
  }
}

module attributes {stable_mosaic.version = 11 : i64} {
  func.func @_matmul_kernel(%arg0: i32, %arg1: i32, %arg2: i32, %arg3: memref<256x512xbf16, #tpu.memory_space<vmem>>, %arg4: memref<512x128xbf16, #tpu.memory_space<vmem>>, %arg5: memref<1x128xf32, #tpu.memory_space<vmem>>, %arg6: memref<256x128xf32, #tpu.memory_space<vmem>>, %arg7: memref<256x128xf32, #tpu.memory_space<vmem>>) attributes {dimension_semantics = [#tpu.dimension_semantics<parallel>, #tpu.dimension_semantics<parallel>, #tpu.dimension_semantics<arbitrary>], iteration_bounds = array<i64: 2, 1, 1>, scalar_prefetch = 0 : i64, scratch_operands = 1 : i64, tpu.core_type = #tpu.core_type<tc>, window_params = [{transform_indices = @transform_0, window_bounds = array<i64: 256, 512>}, {transform_indices = @transform_1, window_bounds = array<i64: 512, 128>}, {transform_indices = @transform_2, window_bounds = array<i64: 1, 128>}, {transform_indices = @transform_3, window_bounds = array<i64: 256, 128>}]} {
    %c0_i32 = arith.constant 0 : i32
    %0 = arith.cmpi eq, %arg2, %c0_i32 : i32
    %1 = arith.extui %0 : i1 to i32
    %c0_i32_0 = arith.constant 0 : i32
    %2 = arith.cmpi ne, %1, %c0_i32_0 : i32
    scf.if %2 {
      %cst_10 = arith.constant 0.000000e+00 : f32
      %12 = vector.broadcast %cst_10 : f32 to vector<256x128xf32>
      %c0_11 = arith.constant 0 : index
      %c0_12 = arith.constant 0 : index
      %13 = vector.load %arg7[%c0_11, %c0_12] : memref<256x128xf32, #tpu.memory_space<vmem>>, vector<256x128xf32>
      tpu.vector_store %arg7[%c0_11, %c0_12], %12 {strides = array<i32>} : memref<256x128xf32, #tpu.memory_space<vmem>>, vector<256x128xf32>,
    } else {
    }
    %c0 = arith.constant 0 : index
    %c0_1 = arith.constant 0 : index
    %3 = vector.load %arg7[%c0, %c0_1] : memref<256x128xf32, #tpu.memory_space<vmem>>, vector<256x128xf32>
    %c0_2 = arith.constant 0 : index
    %c0_3 = arith.constant 0 : index
    %4 = vector.load %arg3[%c0_2, %c0_3] : memref<256x512xbf16, #tpu.memory_space<vmem>>, vector<256x512xbf16>
    %c0_4 = arith.constant 0 : index
    %c0_5 = arith.constant 0 : index
    %5 = vector.load %arg4[%c0_4, %c0_5] : memref<512x128xbf16, #tpu.memory_space<vmem>>, vector<512x128xbf16>
    %cst = arith.constant dense<0.000000e+00> : vector<256x128xf32>
    %6 = tpu.matmul %4, %5, %cst {dimension_numbers = #tpu.dot_dimension_numbers<[1], [0], [0], [1], [0, 0, 1, 1], [], []>} : vector<256x512xbf16>, vector<512x128xbf16>, vector<256x128xf32> -> vector<256x128xf32>
    %7 = arith.addf %3, %6 : vector<256x128xf32>
    %c0_6 = arith.constant 0 : index
    %c0_7 = arith.constant 0 : index
    %8 = vector.load %arg7[%c0_6, %c0_7] : memref<256x128xf32, #tpu.memory_space<vmem>>, vector<256x128xf32>
    tpu.vector_store %arg7[%c0_6, %c0_7], %7 {strides = array<i32>} : memref<256x128xf32, #tpu.memory_space<vmem>>, vector<256x128xf32>,
    %c0_i32_8 = arith.constant 0 : i32
    %9 = arith.cmpi eq, %arg2, %c0_i32_8 : i32
    %10 = arith.extui %9 : i1 to i32
    %c0_i32_9 = arith.constant 0 : i32
    %11 = arith.cmpi ne, %10, %c0_i32_9 : i32
    scf.if %11 {
      %c0_10 = arith.constant 0 : index
      %c0_11 = arith.constant 0 : index
      %12 = vector.load %arg7[%c0_10, %c0_11] : memref<256x128xf32, #tpu.memory_space<vmem>>, vector<256x128xf32>
      %c0_12 = arith.constant 0 : index
      %c0_13 = arith.constant 0 : index
      %13 = vector.load %arg5[%c0_12, %c0_13] : memref<1x128xf32, #tpu.memory_space<vmem>>, vector<1x128xf32>
      %14 = vector.broadcast %13 : vector<1x128xf32> to vector<256x128xf32>
      %15 = arith.addf %12, %14 : vector<256x128xf32>
      %c0_14 = arith.constant 0 : index
      %c0_15 = arith.constant 0 : index
      %16 = vector.load %arg6[%c0_14, %c0_15] : memref<256x128xf32, #tpu.memory_space<vmem>>, vector<256x128xf32>
      tpu.vector_store %arg6[%c0_14, %c0_15], %15 {strides = array<i32>} : memref<256x128xf32, #tpu.memory_space<vmem>>, vector<256x128xf32>,
    } else {
    }
    return
  }
  func.func @transform_0(%arg0: i32, %arg1: i32, %arg2: i32) -> (i32, i32) {
    %c0_i32 = arith.constant 0 : i32
    return %arg0, %arg2 : i32, i32
  }
  func.func @transform_1(%arg0: i32, %arg1: i32, %arg2: i32) -> (i32, i32) {
    %c0_i32 = arith.constant 0 : i32
    return %arg2, %arg1 : i32, i32
  }
  func.func @transform_2(%arg0: i32, %arg1: i32, %arg2: i32) -> (i32, i32) {
    %c0_i32 = arith.constant 0 : i32
    %c0_i32_0 = arith.constant 0 : i32
    return %c0_i32, %arg1 : i32, i32
  }
  func.func @transform_3(%arg0: i32, %arg1: i32, %arg2: i32) -> (i32, i32) {
    %c0_i32 = arith.constant 0 : i32
    return %arg0, %arg1 : i32, i32
  }
}

module attributes {stable_mosaic.version = 11 : i64} {
  func.func @_matmul_kernel(%arg0: i32, %arg1: i32, %arg2: i32, %arg3: memref<256x1024xbf16, #tpu.memory_space<vmem>>, %arg4: memref<1024x128xbf16, #tpu.memory_space<vmem>>, %arg5: memref<1x128xf32, #tpu.memory_space<vmem>>, %arg6: memref<256x128xf32, #tpu.memory_space<vmem>>, %arg7: memref<256x128xf32, #tpu.memory_space<vmem>>) attributes {dimension_semantics = [#tpu.dimension_semantics<parallel>, #tpu.dimension_semantics<parallel>, #tpu.dimension_semantics<arbitrary>], iteration_bounds = array<i64: 2, 1, 1>, scalar_prefetch = 0 : i64, scratch_operands = 1 : i64, tpu.core_type = #tpu.core_type<tc>, window_params = [{transform_indices = @transform_0, window_bounds = array<i64: 256, 1024>}, {transform_indices = @transform_1, window_bounds = array<i64: 1024, 128>}, {transform_indices = @transform_2, window_bounds = array<i64: 1, 128>}, {transform_indices = @transform_3, window_bounds = array<i64: 256, 128>}]} {
    %c0_i32 = arith.constant 0 : i32
    %0 = arith.cmpi eq, %arg2, %c0_i32 : i32
    %1 = arith.extui %0 : i1 to i32
    %c0_i32_0 = arith.constant 0 : i32
    %2 = arith.cmpi ne, %1, %c0_i32_0 : i32
    scf.if %2 {
      %cst_10 = arith.constant 0.000000e+00 : f32
      %12 = vector.broadcast %cst_10 : f32 to vector<256x128xf32>
      %c0_11 = arith.constant 0 : index
      %c0_12 = arith.constant 0 : index
      %13 = vector.load %arg7[%c0_11, %c0_12] : memref<256x128xf32, #tpu.memory_space<vmem>>, vector<256x128xf32>
      tpu.vector_store %arg7[%c0_11, %c0_12], %12 {strides = array<i32>} : memref<256x128xf32, #tpu.memory_space<vmem>>, vector<256x128xf32>,
    } else {
    }
    %c0 = arith.constant 0 : index
    %c0_1 = arith.constant 0 : index
    %3 = vector.load %arg7[%c0, %c0_1] : memref<256x128xf32, #tpu.memory_space<vmem>>, vector<256x128xf32>
    %c0_2 = arith.constant 0 : index
    %c0_3 = arith.constant 0 : index
    %4 = vector.load %arg3[%c0_2, %c0_3] : memref<256x1024xbf16, #tpu.memory_space<vmem>>, vector<256x1024xbf16>
    %c0_4 = arith.constant 0 : index
    %c0_5 = arith.constant 0 : index
    %5 = vector.load %arg4[%c0_4, %c0_5] : memref<1024x128xbf16, #tpu.memory_space<vmem>>, vector<1024x128xbf16>
    %cst = arith.constant dense<0.000000e+00> : vector<256x128xf32>
    %6 = tpu.matmul %4, %5, %cst {dimension_numbers = #tpu.dot_dimension_numbers<[1], [0], [0], [1], [0, 0, 1, 1], [], []>} : vector<256x1024xbf16>, vector<1024x128xbf16>, vector<256x128xf32> -> vector<256x128xf32>
    %7 = arith.addf %3, %6 : vector<256x128xf32>
    %c0_6 = arith.constant 0 : index
    %c0_7 = arith.constant 0 : index
    %8 = vector.load %arg7[%c0_6, %c0_7] : memref<256x128xf32, #tpu.memory_space<vmem>>, vector<256x128xf32>
    tpu.vector_store %arg7[%c0_6, %c0_7], %7 {strides = array<i32>} : memref<256x128xf32, #tpu.memory_space<vmem>>, vector<256x128xf32>,
    %c0_i32_8 = arith.constant 0 : i32
    %9 = arith.cmpi eq, %arg2, %c0_i32_8 : i32
    %10 = arith.extui %9 : i1 to i32
    %c0_i32_9 = arith.constant 0 : i32
    %11 = arith.cmpi ne, %10, %c0_i32_9 : i32
    scf.if %11 {
      %c0_10 = arith.constant 0 : index
      %c0_11 = arith.constant 0 : index
      %12 = vector.load %arg7[%c0_10, %c0_11] : memref<256x128xf32, #tpu.memory_space<vmem>>, vector<256x128xf32>
      %c0_12 = arith.constant 0 : index
      %c0_13 = arith.constant 0 : index
      %13 = vector.load %arg5[%c0_12, %c0_13] : memref<1x128xf32, #tpu.memory_space<vmem>>, vector<1x128xf32>
      %14 = vector.broadcast %13 : vector<1x128xf32> to vector<256x128xf32>
      %15 = arith.addf %12, %14 : vector<256x128xf32>
      %c0_14 = arith.constant 0 : index
      %c0_15 = arith.constant 0 : index
      %16 = vector.load %arg6[%c0_14, %c0_15] : memref<256x128xf32, #tpu.memory_space<vmem>>, vector<256x128xf32>
      tpu.vector_store %arg6[%c0_14, %c0_15], %15 {strides = array<i32>} : memref<256x128xf32, #tpu.memory_space<vmem>>, vector<256x128xf32>,
    } else {
    }
    return
  }
  func.func @transform_0(%arg0: i32, %arg1: i32, %arg2: i32) -> (i32, i32) {
    %c0_i32 = arith.constant 0 : i32
    return %arg0, %arg2 : i32, i32
  }
  func.func @transform_1(%arg0: i32, %arg1: i32, %arg2: i32) -> (i32, i32) {
    %c0_i32 = arith.constant 0 : i32
    return %arg2, %arg1 : i32, i32
  }
  func.func @transform_2(%arg0: i32, %arg1: i32, %arg2: i32) -> (i32, i32) {
    %c0_i32 = arith.constant 0 : i32
    %c0_i32_0 = arith.constant 0 : i32
    return %c0_i32, %arg1 : i32, i32
  }
  func.func @transform_3(%arg0: i32, %arg1: i32, %arg2: i32) -> (i32, i32) {
    %c0_i32 = arith.constant 0 : i32
    return %arg0, %arg1 : i32, i32
  }
}

</mosaic_0001>

<llo_original>
// kernel: mrcnn_forward.9
$region0: #{mrcnn_forward.9}
  #allocation0 [shape = 'u32[]', space=smem, size = 0x4, offset = 0x4, fixed_abs, tag = 'smem constant byte address 0x4 - core index']
  #allocation1 [shape = 'u32[144,128]{1,0:T(1,128)}', space=vmem, size = 0x12000, scoped, tag = 'internal scratch']
  #allocation2 [shape = 'f32[128,128]{1,0:T(8,128)}', space=vmem, size = 0x10000, scoped, tag = 'scratch operand']
  %s0 = inlined_call_operand.vmem [shape: bf16[128,512], index: 0, kind: input, shape index: {}]
  %s1 = inlined_call_operand.vmem [shape: bf16[512,128], index: 1, kind: input, shape index: {}]
  %s2 = inlined_call_operand.vmem [shape: f32[1,128], index: 2, kind: input, shape index: {}]
  %s3 = inlined_call_operand.vmem [shape: f32[128,128], index: 3, kind: output, shape index: {}]
  %s4 = sld [smem:[#allocation0]]
  $region30: #{mrcnn_forward.9} parent=0
    _
  %s6 = ssub.s32 1, %s4
  %s7 = scalar_select 0, %s6, %s4
  // Predicated region
  $region2: #{mrcnn_forward.9} parent=0 // pred_check
    _
  $region3: #{mrcnn_forward.9} parent=0 // pred_check_branch
    %9 = sbr.rel (0) target = $region5
  $region4: #{mrcnn_forward.9} parent=0 // pred_region
    _
  $region5: #{mrcnn_forward.9} parent=0 // pred_fallthru
    _
  // Predicated region
  $region6: #{mrcnn_forward.9} parent=0 // pred_check
    _
  $region7: #{mrcnn_forward.9} parent=0 // pred_check_branch
    %11 = sbr.rel (0) target = $region9
  $region8: #{mrcnn_forward.9} parent=0 // pred_region
    _
  $region9: #{mrcnn_forward.9} parent=0 // pred_fallthru
    _
  // Predicated region
  $region10: #{mrcnn_forward.9} parent=0 // pred_check
    _
  $region11: #{mrcnn_forward.9} parent=0 // pred_check_branch
    %13 = sbr.rel (0) target = $region13
  $region12: #{mrcnn_forward.9} parent=0 // pred_region
    _
  $region13: #{mrcnn_forward.9} parent=0 // pred_fallthru
    _
  %p15 = scmp.eq.s32.totalorder 0, 0
  // Predicated region
  $region14: #{mrcnn_forward.9} parent=0 // pred_check
    %p16 = pneg %p15
  $region15: #{mrcnn_forward.9} parent=0 // pred_check_branch
    %18 = sbr.rel (%p16) target = $region17
  $region16: #{mrcnn_forward.9} parent=0 // pred_region
    %19 = vst [vmem:[#allocation2] sm:$0xff] 0.0
    %20 = vst [vmem:[#allocation2 + $0x8] sm:$0xff] 0.0
    %21 = vst [vmem:[#allocation2 + $0x10] sm:$0xff] 0.0
    %22 = vst [vmem:[#allocation2 + $0x18] sm:$0xff] 0.0
    %23 = vst [vmem:[#allocation2 + $0x20] sm:$0xff] 0.0
    %24 = vst [vmem:[#allocation2 + $0x28] sm:$0xff] 0.0
    %25 = vst [vmem:[#allocation2 + $0x30] sm:$0xff] 0.0
    %26 = vst [vmem:[#allocation2 + $0x38] sm:$0xff] 0.0
    %27 = vst [vmem:[#allocation2 + $0x40] sm:$0xff] 0.0
    %28 = vst [vmem:[#allocation2 + $0x48] sm:$0xff] 0.0
    %29 = vst [vmem:[#allocation2 + $0x50] sm:$0xff] 0.0
    %30 = vst [vmem:[#allocation2 + $0x58] sm:$0xff] 0.0
    %31 = vst [vmem:[#allocation2 + $0x60] sm:$0xff] 0.0
    %32 = vst [vmem:[#allocation2 + $0x68] sm:$0xff] 0.0
    %33 = vst [vmem:[#allocation2 + $0x70] sm:$0xff] 0.0
    %34 = vst [vmem:[#allocation2 + $0x78] sm:$0xff] 0.0
  $region17: #{mrcnn_forward.9} parent=0 // pred_fallthru
    _
  %v35 = vld [vmem:[#allocation2] sm:$0xff]
  %v36 = vld [vmem:[#allocation2 + $0x8] sm:$0xff]
  %v37 = vld [vmem:[#allocation2 + $0x10] sm:$0xff]
  %v38 = vld [vmem:[#allocation2 + $0x18] sm:$0xff]
  %v39 = vld [vmem:[#allocation2 + $0x20] sm:$0xff]
  %v40 = vld [vmem:[#allocation2 + $0x28] sm:$0xff]
  %v41 = vld [vmem:[#allocation2 + $0x30] sm:$0xff]
  %v42 = vld [vmem:[#allocation2 + $0x38] sm:$0xff]
  %v43 = vld [vmem:[#allocation2 + $0x40] sm:$0xff]
  %v44 = vld [vmem:[#allocation2 + $0x48] sm:$0xff]
  %v45 = vld [vmem:[#allocation2 + $0x50] sm:$0xff]
  %v46 = vld [vmem:[#allocation2 + $0x58] sm:$0xff]
  %v47 = vld [vmem:[#allocation2 + $0x60] sm:$0xff]
  %v48 = vld [vmem:[#allocation2 + $0x68] sm:$0xff]
  %v49 = vld [vmem:[#allocation2 + $0x70] sm:$0xff]
  %v50 = vld [vmem:[#allocation2 + $0x78] sm:$0xff]
  %v51 = vld [vmem:[%s0] sm:$0xff]
  %v52 = vld [vmem:[%s0 + $0x8] sm:$0xff]
  %v53 = vld [vmem:[%s0 + $0x10] sm:$0xff]
  %v54 = vld [vmem:[%s0 + $0x18] sm:$0xff]
  %v55 = vld [vmem:[%s0 + $0x20] sm:$0xff]
  %v56 = vld [vmem:[%s0 + $0x28] sm:$0xff]
  %v57 = vld [vmem:[%s0 + $0x30] sm:$0xff]
  %v58 = vld [vmem:[%s0 + $0x38] sm:$0xff]
  %v59 = vld [vmem:[%s0 + $0x40] sm:$0xff]
  %v60 = vld [vmem:[%s0 + $0x48] sm:$0xff]
  %v61 = vld [vmem:[%s0 + $0x50] sm:$0xff]
  %v62 = vld [vmem:[%s0 + $0x58] sm:$0xff]
  %v63 = vld [vmem:[%s0 + $0x60] sm:$0xff]
  %v64 = vld [vmem:[%s0 + $0x68] sm:$0xff]
  %v65 = vld [vmem:[%s0 + $0x70] sm:$0xff]
  %v66 = vld [vmem:[%s0 + $0x78] sm:$0xff]
  %v67 = vld [vmem:[%s0 + $0x80] sm:$0xff]
  %v68 = vld [vmem:[%s0 + $0x88] sm:$0xff]
  %v69 = vld [vmem:[%s0 + $0x90] sm:$0xff]
  %v70 = vld [vmem:[%s0 + $0x98] sm:$0xff]
  %v71 = vld [vmem:[%s0 + $0xa0] sm:$0xff]
  %v72 = vld [vmem:[%s0 + $0xa8] sm:$0xff]
  %v73 = vld [vmem:[%s0 + $0xb0] sm:$0xff]
  %v74 = vld [vmem:[%s0 + $0xb8] sm:$0xff]
  %v75 = vld [vmem:[%s0 + $0xc0] sm:$0xff]
  %v76 = vld [vmem:[%s0 + $0xc8] sm:$0xff]
  %v77 = vld [vmem:[%s0 + $0xd0] sm:$0xff]
  %v78 = vld [vmem:[%s0 + $0xd8] sm:$0xff]
  %v79 = vld [vmem:[%s0 + $0xe0] sm:$0xff]
  %v80 = vld [vmem:[%s0 + $0xe8] sm:$0xff]
  %v81 = vld [vmem:[%s0 + $0xf0] sm:$0xff]
  %v82 = vld [vmem:[%s0 + $0xf8] sm:$0xff]
  %v83 = vld [vmem:[%s1] sm:$0xf]
  %v84 = vld [vmem:[%s1 + $0x4] sm:$0xf]
  %v85 = vld [vmem:[%s1 + $0x8] sm:$0xf]
  %v86 = vld [vmem:[%s1 + $0xc] sm:$0xf]
  %v87 = vld [vmem:[%s1 + $0x10] sm:$0xf]
  %v88 = vld [vmem:[%s1 + $0x14] sm:$0xf]
  %v89 = vld [vmem:[%s1 + $0x18] sm:$0xf]
  %v90 = vld [vmem:[%s1 + $0x1c] sm:$0xf]
  %v91 = vld [vmem:[%s1 + $0x20] sm:$0xf]
  %v92 = vld [vmem:[%s1 + $0x24] sm:$0xf]
  %v93 = vld [vmem:[%s1 + $0x28] sm:$0xf]
  %v94 = vld [vmem:[%s1 + $0x2c] sm:$0xf]
  %v95 = vld [vmem:[%s1 + $0x30] sm:$0xf]
  %v96 = vld [vmem:[%s1 + $0x34] sm:$0xf]
  %v97 = vld [vmem:[%s1 + $0x38] sm:$0xf]
  %v98 = vld [vmem:[%s1 + $0x3c] sm:$0xf]
  %v99 = vld [vmem:[%s1 + $0x40] sm:$0xf]
  %v100 = vld [vmem:[%s1 + $0x44] sm:$0xf]
  %v101 = vld [vmem:[%s1 + $0x48] sm:$0xf]
  %v102 = vld [vmem:[%s1 + $0x4c] sm:$0xf]
  %v103 = vld [vmem:[%s1 + $0x50] sm:$0xf]
  %v104 = vld [vmem:[%s1 + $0x54] sm:$0xf]
  %v105 = vld [vmem:[%s1 + $0x58] sm:$0xf]
  %v106 = vld [vmem:[%s1 + $0x5c] sm:$0xf]
  %v107 = vld [vmem:[%s1 + $0x60] sm:$0xf]
  %v108 = vld [vmem:[%s1 + $0x64] sm:$0xf]
  %v109 = vld [vmem:[%s1 + $0x68] sm:$0xf]
  %v110 = vld [vmem:[%s1 + $0x6c] sm:$0xf]
  %v111 = vld [vmem:[%s1 + $0x70] sm:$0xf]
  %v112 = vld [vmem:[%s1 + $0x74] sm:$0xf]
  %v113 = vld [vmem:[%s1 + $0x78] sm:$0xf]
  %v114 = vld [vmem:[%s1 + $0x7c] sm:$0xf]
  %v115 = vld [vmem:[%s1 + $0x80] sm:$0xf]
  %v116 = vld [vmem:[%s1 + $0x84] sm:$0xf]
  %v117 = vld [vmem:[%s1 + $0x88] sm:$0xf]
  %v118 = vld [vmem:[%s1 + $0x8c] sm:$0xf]
  %v119 = vld [vmem:[%s1 + $0x90] sm:$0xf]
  %v120 = vld [vmem:[%s1 + $0x94] sm:$0xf]
  %v121 = vld [vmem:[%s1 + $0x98] sm:$0xf]
  %v122 = vld [vmem:[%s1 + $0x9c] sm:$0xf]
  %v123 = vld [vmem:[%s1 + $0xa0] sm:$0xf]
  %v124 = vld [vmem:[%s1 + $0xa4] sm:$0xf]
  %v125 = vld [vmem:[%s1 + $0xa8] sm:$0xf]
  %v126 = vld [vmem:[%s1 + $0xac] sm:$0xf]
  %v127 = vld [vmem:[%s1 + $0xb0] sm:$0xf]
  %v128 = vld [vmem:[%s1 + $0xb4] sm:$0xf]
  %v129 = vld [vmem:[%s1 + $0xb8] sm:$0xf]
  %v130 = vld [vmem:[%s1 + $0xbc] sm:$0xf]
  %v131 = vld [vmem:[%s1 + $0xc0] sm:$0xf]
  %v132 = vld [vmem:[%s1 + $0xc4] sm:$0xf]
  %v133 = vld [vmem:[%s1 + $0xc8] sm:$0xf]
  %v134 = vld [vmem:[%s1 + $0xcc] sm:$0xf]
  %v135 = vld [vmem:[%s1 + $0xd0] sm:$0xf]
  %v136 = vld [vmem:[%s1 + $0xd4] sm:$0xf]
  %v137 = vld [vmem:[%s1 + $0xd8] sm:$0xf]
  %v138 = vld [vmem:[%s1 + $0xdc] sm:$0xf]
  %v139 = vld [vmem:[%s1 + $0xe0] sm:$0xf]
  %v140 = vld [vmem:[%s1 + $0xe4] sm:$0xf]
  %v141 = vld [vmem:[%s1 + $0xe8] sm:$0xf]
  %v142 = vld [vmem:[%s1 + $0xec] sm:$0xf]
  %v143 = vld [vmem:[%s1 + $0xf0] sm:$0xf]
  %v144 = vld [vmem:[%s1 + $0xf4] sm:$0xf]
  %v145 = vld [vmem:[%s1 + $0xf8] sm:$0xf]
  %v146 = vld [vmem:[%s1 + $0xfc] sm:$0xf]
  %v179 = vunpack.c.l.b16 %v51
  %v180 = vunpack.c.h.b16 %v51
  %v181 = vunpack.c.l.b16 %v52
  %v182 = vunpack.c.h.b16 %v52
  %v183 = vunpack.c.l.b16 %v53
  %v184 = vunpack.c.h.b16 %v53
  %v185 = vunpack.c.l.b16 %v54
  %v186 = vunpack.c.h.b16 %v54
  %v187 = vunpack.c.l.b16 %v55
  %v188 = vunpack.c.h.b16 %v55
  %v189 = vunpack.c.l.b16 %v56
  %v190 = vunpack.c.h.b16 %v56
  %v191 = vunpack.c.l.b16 %v57
  %v192 = vunpack.c.h.b16 %v57
  %v193 = vunpack.c.l.b16 %v58
  %v194 = vunpack.c.h.b16 %v58
  %v195 = vunpack.c.l.b16 %v59
  %v196 = vunpack.c.h.b16 %v59
  %v197 = vunpack.c.l.b16 %v60
  %v198 = vunpack.c.h.b16 %v60
  %v199 = vunpack.c.l.b16 %v61
  %v200 = vunpack.c.h.b16 %v61
  %v201 = vunpack.c.l.b16 %v62
  %v202 = vunpack.c.h.b16 %v62
  %v203 = vunpack.c.l.b16 %v63
  %v204 = vunpack.c.h.b16 %v63
  %v205 = vunpack.c.l.b16 %v64
  %v206 = vunpack.c.h.b16 %v64
  %v207 = vunpack.c.l.b16 %v65
  %v208 = vunpack.c.h.b16 %v65
  %v209 = vunpack.c.l.b16 %v66
  %v210 = vunpack.c.h.b16 %v66
  %v211 = vunpack.c.l.b16 %v67
  %v212 = vunpack.c.h.b16 %v67
  %v213 = vunpack.c.l.b16 %v68
  %v214 = vunpack.c.h.b16 %v68
  %v215 = vunpack.c.l.b16 %v69
  %v216 = vunpack.c.h.b16 %v69
  %v217 = vunpack.c.l.b16 %v70
  %v218 = vunpack.c.h.b16 %v70
  %v219 = vunpack.c.l.b16 %v71
  %v220 = vunpack.c.h.b16 %v71
  %v221 = vunpack.c.l.b16 %v72
  %v222 = vunpack.c.h.b16 %v72
  %v223 = vunpack.c.l.b16 %v73
  %v224 = vunpack.c.h.b16 %v73
  %v225 = vunpack.c.l.b16 %v74
  %v226 = vunpack.c.h.b16 %v74
  %v227 = vunpack.c.l.b16 %v75
  %v228 = vunpack.c.h.b16 %v75
  %v229 = vunpack.c.l.b16 %v76
  %v230 = vunpack.c.h.b16 %v76
  %v231 = vunpack.c.l.b16 %v77
  %v232 = vunpack.c.h.b16 %v77
  %v233 = vunpack.c.l.b16 %v78
  %v234 = vunpack.c.h.b16 %v78
  %v235 = vunpack.c.l.b16 %v79
  %v236 = vunpack.c.h.b16 %v79
  %v237 = vunpack.c.l.b16 %v80
  %v238 = vunpack.c.h.b16 %v80
  %v239 = vunpack.c.l.b16 %v81
  %v240 = vunpack.c.h.b16 %v81
  %v241 = vunpack.c.l.b16 %v82
  %v242 = vunpack.c.h.b16 %v82
  %v243 = vpack.c.b16 %v183, %v179
  %v244 = vpack.c.b16 %v184, %v180
  %v245 = vpack.c.b16 %v185, %v181
  %v246 = vpack.c.b16 %v186, %v182
  %v247 = vpack.c.b16 %v191, %v187
  %v248 = vpack.c.b16 %v192, %v188
  %v249 = vpack.c.b16 %v193, %v189
  %v250 = vpack.c.b16 %v194, %v190
  %v251 = vpack.c.b16 %v199, %v195
  %v252 = vpack.c.b16 %v200, %v196
  %v253 = vpack.c.b16 %v201, %v197
  %v254 = vpack.c.b16 %v202, %v198
  %v255 = vpack.c.b16 %v207, %v203
  %v256 = vpack.c.b16 %v208, %v204
  %v257 = vpack.c.b16 %v209, %v205
  %v258 = vpack.c.b16 %v210, %v206
  %v259 = vpack.c.b16 %v215, %v211
  %v260 = vpack.c.b16 %v216, %v212
  %v261 = vpack.c.b16 %v217, %v213
  %v262 = vpack.c.b16 %v218, %v214
  %v263 = vpack.c.b16 %v223, %v219
  %v264 = vpack.c.b16 %v224, %v220
  %v265 = vpack.c.b16 %v225, %v221
  %v266 = vpack.c.b16 %v226, %v222
  %v267 = vpack.c.b16 %v231, %v227
  %v268 = vpack.c.b16 %v232, %v228
  %v269 = vpack.c.b16 %v233, %v229
  %v270 = vpack.c.b16 %v234, %v230
  %v271 = vpack.c.b16 %v239, %v235
  %v272 = vpack.c.b16 %v240, %v236
  %v273 = vpack.c.b16 %v241, %v237
  %v274 = vpack.c.b16 %v242, %v238
  %v371 = vunpack.c.l.b16 %v83
  %v372 = vunpack.c.l.b16 %v84
  %v373 = vunpack.c.l.b16 %v85
  %v374 = vunpack.c.l.b16 %v86
  %v375 = vunpack.c.l.b16 %v87
  %v376 = vunpack.c.l.b16 %v88
  %v377 = vunpack.c.l.b16 %v89
  %v378 = vunpack.c.l.b16 %v90
  %v379 = vunpack.c.l.b16 %v91
  %v380 = vunpack.c.l.b16 %v92
  %v381 = vunpack.c.l.b16 %v93
  %v382 = vunpack.c.l.b16 %v94
  %v383 = vunpack.c.l.b16 %v95
  %v384 = vunpack.c.l.b16 %v96
  %v385 = vunpack.c.l.b16 %v97
  %v386 = vunpack.c.l.b16 %v98
  %v387 = vunpack.c.l.b16 %v99
  %v388 = vunpack.c.l.b16 %v100
  %v389 = vunpack.c.l.b16 %v101
  %v390 = vunpack.c.l.b16 %v102
  %v391 = vunpack.c.l.b16 %v103
  %v392 = vunpack.c.l.b16 %v104
  %v393 = vunpack.c.l.b16 %v105
  %v394 = vunpack.c.l.b16 %v106
  %v395 = vunpack.c.l.b16 %v107
  %v396 = vunpack.c.l.b16 %v108
  %v397 = vunpack.c.l.b16 %v109
  %v398 = vunpack.c.l.b16 %v110
  %v399 = vunpack.c.l.b16 %v111
  %v400 = vunpack.c.l.b16 %v112
  %v401 = vunpack.c.l.b16 %v113
  %v402 = vunpack.c.l.b16 %v114
  %v403 = vunpack.c.l.b16 %v115
  %v404 = vunpack.c.l.b16 %v116
  %v405 = vunpack.c.l.b16 %v117
  %v406 = vunpack.c.l.b16 %v118
  %v407 = vunpack.c.l.b16 %v119
  %v408 = vunpack.c.l.b16 %v120
  %v409 = vunpack.c.l.b16 %v121
  %v410 = vunpack.c.l.b16 %v122
  %v411 = vunpack.c.l.b16 %v123
  %v412 = vunpack.c.l.b16 %v124
  %v413 = vunpack.c.l.b16 %v125
  %v414 = vunpack.c.l.b16 %v126
  %v415 = vunpack.c.l.b16 %v127
  %v416 = vunpack.c.l.b16 %v128
  %v417 = vunpack.c.l.b16 %v129
  %v418 = vunpack.c.l.b16 %v130
  %v419 = vunpack.c.l.b16 %v131
  %v420 = vunpack.c.l.b16 %v132
  %v421 = vunpack.c.l.b16 %v133
  %v422 = vunpack.c.l.b16 %v134
  %v423 = vunpack.c.l.b16 %v135
  %v424 = vunpack.c.l.b16 %v136
  %v425 = vunpack.c.l.b16 %v137
  %v426 = vunpack.c.l.b16 %v138
  %v427 = vunpack.c.l.b16 %v139
  %v428 = vunpack.c.l.b16 %v140
  %v429 = vunpack.c.l.b16 %v141
  %v430 = vunpack.c.l.b16 %v142
  %v431 = vunpack.c.l.b16 %v143
  %v432 = vunpack.c.l.b16 %v144
  %v433 = vunpack.c.l.b16 %v145
  %v434 = vunpack.c.l.b16 %v146
  %v435 = vpack.c.b16 %v372, %v371
  %v436 = vpack.c.b16 %v374, %v373
  %v437 = vpack.c.b16 %v376, %v375
  %v438 = vpack.c.b16 %v378, %v377
  %v439 = vpack.c.b16 %v380, %v379
  %v440 = vpack.c.b16 %v382, %v381
  %v441 = vpack.c.b16 %v384, %v383
  %v442 = vpack.c.b16 %v386, %v385
  %v443 = vpack.c.b16 %v388, %v387
  %v444 = vpack.c.b16 %v390, %v389
  %v445 = vpack.c.b16 %v392, %v391
  %v446 = vpack.c.b16 %v394, %v393
  %v447 = vpack.c.b16 %v396, %v395
  %v448 = vpack.c.b16 %v398, %v397
  %v449 = vpack.c.b16 %v400, %v399
  %v450 = vpack.c.b16 %v402, %v401
  %v451 = vpack.c.b16 %v404, %v403
  %v452 = vpack.c.b16 %v406, %v405
  %v453 = vpack.c.b16 %v408, %v407
  %v454 = vpack.c.b16 %v410, %v409
  %v455 = vpack.c.b16 %v412, %v411
  %v456 = vpack.c.b16 %v414, %v413
  %v457 = vpack.c.b16 %v416, %v415
  %v458 = vpack.c.b16 %v418, %v417
  %v459 = vpack.c.b16 %v420, %v419
  %v460 = vpack.c.b16 %v422, %v421
  %v461 = vpack.c.b16 %v424, %v423
  %v462 = vpack.c.b16 %v426, %v425
  %v463 = vpack.c.b16 %v428, %v427
  %v464 = vpack.c.b16 %v430, %v429
  %v465 = vpack.c.b16 %v432, %v431
  %v466 = vpack.c.b16 %v434, %v433
  %499 = vmatprep.subr.bf16.mxu0 0
  %500 = vmatpush1.bf16.msra.mxu0 %v435
  %501 = vmatprep.subr.bf16.mxu0 0
  %502 = vmatpush1.bf16.msra.mxu0 %v436
  %503 = vmatprep.subr.bf16.mxu0 0
  %504 = vmatpush1.bf16.msra.mxu0 %v437
  %505 = vmatprep.subr.bf16.mxu0 0
  %506 = vmatpush1.bf16.msra.mxu0 %v438
  %507 = vmatprep.subr.bf16.mxu0 0
  %508 = vmatpush1.bf16.msra.mxu0 %v439
  %509 = vmatprep.subr.bf16.mxu0 0
  %510 = vmatpush1.bf16.msra.mxu0 %v440
  %511 = vmatprep.subr.bf16.mxu0 0
  %512 = vmatpush1.bf16.msra.mxu0 %v441
  %513 = vmatprep.subr.bf16.mxu0 0
  %514 = vmatpush1.bf16.msra.mxu0 %v442
  %515 = vmatprep.subr.bf16.mxu0 0
  %516 = vmatpush1.bf16.msra.mxu0 %v443
  %517 = vmatprep.subr.bf16.mxu0 0
  %518 = vmatpush1.bf16.msra.mxu0 %v444
  %519 = vmatprep.subr.bf16.mxu0 0
  %520 = vmatpush1.bf16.msra.mxu0 %v445
  %521 = vmatprep.subr.bf16.mxu0 0
  %522 = vmatpush1.bf16.msra.mxu0 %v446
  %523 = vmatprep.subr.bf16.mxu0 0
  %524 = vmatpush1.bf16.msra.mxu0 %v447
  %525 = vmatprep.subr.bf16.mxu0 0
  %526 = vmatpush1.bf16.msra.mxu0 %v448
  %527 = vmatprep.subr.bf16.mxu0 0
  %528 = vmatpush1.bf16.msra.mxu0 %v449
  %529 = vmatprep.subr.bf16.mxu0 0
  %530 = vmatpush1.bf16.msra.mxu0 %v450
  %531 = vmatprep.mubr.bf16.mxu0 %v244
  %532 = vmatmul.mubr.bf16.gmra.mrb[0].mxu0 %v243
  %v533 = vpop.f32.mrb[0].mxu0
  %v534 = vadd.f32 0.0, %v533
  %v535 = vpop.f32.mrb[0].mxu0
  %v536 = vpop.f32.mrb[0].mxu0
  %v537 = vadd.f32 0.0, %v536
  %v538 = vpop.f32.mrb[0].mxu0
  %539 = vmatprep.mubr.bf16.mxu0 %v248
  %540 = vmatmul.mubr.bf16.gmra.mrb[0].mxu0 %v247
  %v541 = vpop.f32.mrb[0].mxu0
  %v542 = vadd.f32 0.0, %v541
  %v543 = vpop.f32.mrb[0].mxu0
  %v544 = vpop.f32.mrb[0].mxu0
  %v545 = vadd.f32 0.0, %v544
  %v546 = vpop.f32.mrb[0].mxu0
  %547 = vmatprep.mubr.bf16.mxu0 %v252
  %548 = vmatmul.mubr.bf16.gmra.mrb[0].mxu0 %v251
  %v549 = vpop.f32.mrb[0].mxu0
  %v550 = vadd.f32 0.0, %v549
  %v551 = vpop.f32.mrb[0].mxu0
  %v552 = vpop.f32.mrb[0].mxu0
  %v553 = vadd.f32 0.0, %v552
  %v554 = vpop.f32.mrb[0].mxu0
  %555 = vmatprep.mubr.bf16.mxu0 %v256
  %556 = vmatmul.mubr.bf16.gmra.mrb[0].mxu0 %v255
  %v557 = vpop.f32.mrb[0].mxu0
  %v558 = vadd.f32 0.0, %v557
  %v559 = vpop.f32.mrb[0].mxu0
  %v560 = vpop.f32.mrb[0].mxu0
  %v561 = vadd.f32 0.0, %v560
  %v562 = vpop.f32.mrb[0].mxu0
  %563 = vmatprep.mubr.bf16.mxu0 %v260
  %564 = vmatmul.mubr.bf16.gmra.mrb[0].mxu0 %v259
  %v565 = vpop.f32.mrb[0].mxu0
  %v566 = vadd.f32 0.0, %v565
  %v567 = vpop.f32.mrb[0].mxu0
  %v568 = vpop.f32.mrb[0].mxu0
  %v569 = vadd.f32 0.0, %v568
  %v570 = vpop.f32.mrb[0].mxu0
  %571 = vmatprep.mubr.bf16.mxu0 %v264
  %572 = vmatmul.mubr.bf16.gmra.mrb[0].mxu0 %v263
  %v573 = vpop.f32.mrb[0].mxu0
  %v574 = vadd.f32 0.0, %v573
  %v575 = vpop.f32.mrb[0].mxu0
  %v576 = vpop.f32.mrb[0].mxu0
  %v577 = vadd.f32 0.0, %v576
  %v578 = vpop.f32.mrb[0].mxu0
  %579 = vmatprep.mubr.bf16.mxu0 %v268
  %580 = vmatmul.mubr.bf16.gmra.mrb[0].mxu0 %v267
  %v581 = vpop.f32.mrb[0].mxu0
  %v582 = vadd.f32 0.0, %v581
  %v583 = vpop.f32.mrb[0].mxu0
  %v584 = vpop.f32.mrb[0].mxu0
  %v585 = vadd.f32 0.0, %v584
  %v586 = vpop.f32.mrb[0].mxu0
  %587 = vmatprep.mubr.bf16.mxu0 %v272
  %588 = vmatmul.mubr.bf16.gmra.mrb[0].mxu0 %v271
  %v589 = vpop.f32.mrb[0].mxu0
  %v590 = vadd.f32 0.0, %v589
  %v591 = vpop.f32.mrb[0].mxu0
  %v592 = vpop.f32.mrb[0].mxu0
  %v593 = vadd.f32 0.0, %v592
  %v594 = vpop.f32.mrb[0].mxu0
  %595 = vdwg.mxu0
  %596 = vmatprep.subr.bf16.mxu0 0
  %597 = vmatpush1.bf16.msra.mxu0 %v451
  %598 = vmatprep.subr.bf16.mxu0 0
  %599 = vmatpush1.bf16.msra.mxu0 %v452
  %600 = vmatprep.subr.bf16.mxu0 0
  %601 = vmatpush1.bf16.msra.mxu0 %v453
  %602 = vmatprep.subr.bf16.mxu0 0
  %603 = vmatpush1.bf16.msra.mxu0 %v454
  %604 = vmatprep.subr.bf16.mxu0 0
  %605 = vmatpush1.bf16.msra.mxu0 %v455
  %606 = vmatprep.subr.bf16.mxu0 0
  %607 = vmatpush1.bf16.msra.mxu0 %v456
  %608 = vmatprep.subr.bf16.mxu0 0
  %609 = vmatpush1.bf16.msra.mxu0 %v457
  %610 = vmatprep.subr.bf16.mxu0 0
  %611 = vmatpush1.bf16.msra.mxu0 %v458
  %612 = vmatprep.subr.bf16.mxu0 0
  %613 = vmatpush1.bf16.msra.mxu0 %v459
  %614 = vmatprep.subr.bf16.mxu0 0
  %615 = vmatpush1.bf16.msra.mxu0 %v460
  %616 = vmatprep.subr.bf16.mxu0 0
  %617 = vmatpush1.bf16.msra.mxu0 %v461
  %618 = vmatprep.subr.bf16.mxu0 0
  %619 = vmatpush1.bf16.msra.mxu0 %v462
  %620 = vmatprep.subr.bf16.mxu0 0
  %621 = vmatpush1.bf16.msra.mxu0 %v463
  %622 = vmatprep.subr.bf16.mxu0 0
  %623 = vmatpush1.bf16.msra.mxu0 %v464
  %624 = vmatprep.subr.bf16.mxu0 0
  %625 = vmatpush1.bf16.msra.mxu0 %v465
  %626 = vmatprep.subr.bf16.mxu0 0
  %627 = vmatpush1.bf16.msra.mxu0 %v466
  %628 = vmatprep.mubr.bf16.mxu0 %v246
  %629 = vmatmul.mubr.bf16.gmra.mrb[0].mxu0 %v245
  %v630 = vpop.f32.mrb[0].mxu0
  %v631 = vadd.f32 %v534, %v630
  %v632 = vpop.f32.mrb[0].mxu0
  %v633 = vpop.f32.mrb[0].mxu0
  %v634 = vadd.f32 %v537, %v633
  %v635 = vpop.f32.mrb[0].mxu0
  %636 = vmatprep.mubr.bf16.mxu0 %v250
  %637 = vmatmul.mubr.bf16.gmra.mrb[0].mxu0 %v249
  %v638 = vpop.f32.mrb[0].mxu0
  %v639 = vadd.f32 %v542, %v638
  %v640 = vpop.f32.mrb[0].mxu0
  %v641 = vpop.f32.mrb[0].mxu0
  %v642 = vadd.f32 %v545, %v641
  %v643 = vpop.f32.mrb[0].mxu0
  %644 = vmatprep.mubr.bf16.mxu0 %v254
  %645 = vmatmul.mubr.bf16.gmra.mrb[0].mxu0 %v253
  %v646 = vpop.f32.mrb[0].mxu0
  %v647 = vadd.f32 %v550, %v646
  %v648 = vpop.f32.mrb[0].mxu0
  %v649 = vpop.f32.mrb[0].mxu0
  %v650 = vadd.f32 %v553, %v649
  %v651 = vpop.f32.mrb[0].mxu0
  %652 = vmatprep.mubr.bf16.mxu0 %v258
  %653 = vmatmul.mubr.bf16.gmra.mrb[0].mxu0 %v257
  %v654 = vpop.f32.mrb[0].mxu0
  %v655 = vadd.f32 %v558, %v654
  %v656 = vpop.f32.mrb[0].mxu0
  %v657 = vpop.f32.mrb[0].mxu0
  %v658 = vadd.f32 %v561, %v657
  %v659 = vpop.f32.mrb[0].mxu0
  %660 = vmatprep.mubr.bf16.mxu0 %v262
  %661 = vmatmul.mubr.bf16.gmra.mrb[0].mxu0 %v261
  %v662 = vpop.f32.mrb[0].mxu0
  %v663 = vadd.f32 %v566, %v662
  %v664 = vpop.f32.mrb[0].mxu0
  %v665 = vpop.f32.mrb[0].mxu0
  %v666 = vadd.f32 %v569, %v665
  %v667 = vpop.f32.mrb[0].mxu0
  %668 = vmatprep.mubr.bf16.mxu0 %v266
  %669 = vmatmul.mubr.bf16.gmra.mrb[0].mxu0 %v265
  %v670 = vpop.f32.mrb[0].mxu0
  %v671 = vadd.f32 %v574, %v670
  %v672 = vpop.f32.mrb[0].mxu0
  %v673 = vpop.f32.mrb[0].mxu0
  %v674 = vadd.f32 %v577, %v673
  %v675 = vpop.f32.mrb[0].mxu0
  %676 = vmatprep.mubr.bf16.mxu0 %v270
  %677 = vmatmul.mubr.bf16.gmra.mrb[0].mxu0 %v269
  %v678 = vpop.f32.mrb[0].mxu0
  %v679 = vadd.f32 %v582, %v678
  %v680 = vpop.f32.mrb[0].mxu0
  %v681 = vpop.f32.mrb[0].mxu0
  %v682 = vadd.f32 %v585, %v681
  %v683 = vpop.f32.mrb[0].mxu0
  %684 = vmatprep.mubr.bf16.mxu0 %v274
  %685 = vmatmul.mubr.bf16.gmra.mrb[0].mxu0 %v273
  %v686 = vpop.f32.mrb[0].mxu0
  %v687 = vadd.f32 %v590, %v686
  %v688 = vpop.f32.mrb[0].mxu0
  %v689 = vpop.f32.mrb[0].mxu0
  %v690 = vadd.f32 %v593, %v689
  %v691 = vpop.f32.mrb[0].mxu0
  %692 = vdwg.mxu0
  %v693 = vadd.f32 %v35, %v631
  %v694 = vadd.f32 %v36, %v634
  %v695 = vadd.f32 %v37, %v639
  %v696 = vadd.f32 %v38, %v642
  %v697 = vadd.f32 %v39, %v647
  %v698 = vadd.f32 %v40, %v650
  %v699 = vadd.f32 %v41, %v655
  %v700 = vadd.f32 %v42, %v658
  %v701 = vadd.f32 %v43, %v663
  %v702 = vadd.f32 %v44, %v666
  %v703 = vadd.f32 %v45, %v671
  %v704 = vadd.f32 %v46, %v674
  %v705 = vadd.f32 %v47, %v679
  %v706 = vadd.f32 %v48, %v682
  %v707 = vadd.f32 %v49, %v687
  %v708 = vadd.f32 %v50, %v690
  %709 = vst [vmem:[#allocation2] sm:$0xff] %v693
  %710 = vst [vmem:[#allocation2 + $0x8] sm:$0xff] %v694
  %711 = vst [vmem:[#allocation2 + $0x10] sm:$0xff] %v695
  %712 = vst [vmem:[#allocation2 + $0x18] sm:$0xff] %v696
  %713 = vst [vmem:[#allocation2 + $0x20] sm:$0xff] %v697
  %714 = vst [vmem:[#allocation2 + $0x28] sm:$0xff] %v698
  %715 = vst [vmem:[#allocation2 + $0x30] sm:$0xff] %v699
  %716 = vst [vmem:[#allocation2 + $0x38] sm:$0xff] %v700
  %717 = vst [vmem:[#allocation2 + $0x40] sm:$0xff] %v701
  %718 = vst [vmem:[#allocation2 + $0x48] sm:$0xff] %v702
  %719 = vst [vmem:[#allocation2 + $0x50] sm:$0xff] %v703
  %720 = vst [vmem:[#allocation2 + $0x58] sm:$0xff] %v704
  %721 = vst [vmem:[#allocation2 + $0x60] sm:$0xff] %v705
  %722 = vst [vmem:[#allocation2 + $0x68] sm:$0xff] %v706
  %723 = vst [vmem:[#allocation2 + $0x70] sm:$0xff] %v707
  %724 = vst [vmem:[#allocation2 + $0x78] sm:$0xff] %v708
  // Predicated region
  $region18: #{mrcnn_forward.9} parent=0 // pred_check
    %p725 = pneg %p15
  $region19: #{mrcnn_forward.9} parent=0 // pred_check_branch
    %727 = sbr.rel (%p725) target = $region21
  $region20: #{mrcnn_forward.9} parent=0 // pred_region
    %v728 = vld [vmem:[#allocation2] sm:$0xff]
    %v729 = vld [vmem:[#allocation2 + $0x8] sm:$0xff]
    %v730 = vld [vmem:[#allocation2 + $0x10] sm:$0xff]
    %v731 = vld [vmem:[#allocation2 + $0x18] sm:$0xff]
    %v732 = vld [vmem:[#allocation2 + $0x20] sm:$0xff]
    %v733 = vld [vmem:[#allocation2 + $0x28] sm:$0xff]
    %v734 = vld [vmem:[#allocation2 + $0x30] sm:$0xff]
    %v735 = vld [vmem:[#allocation2 + $0x38] sm:$0xff]
    %v736 = vld [vmem:[#allocation2 + $0x40] sm:$0xff]
    %v737 = vld [vmem:[#allocation2 + $0x48] sm:$0xff]
    %v738 = vld [vmem:[#allocation2 + $0x50] sm:$0xff]
    %v739 = vld [vmem:[#allocation2 + $0x58] sm:$0xff]
    %v740 = vld [vmem:[#allocation2 + $0x60] sm:$0xff]
    %v741 = vld [vmem:[#allocation2 + $0x68] sm:$0xff]
    %v742 = vld [vmem:[#allocation2 + $0x70] sm:$0xff]
    %v743 = vld [vmem:[#allocation2 + $0x78] sm:$0xff]
    %v744 = vld [vmem:[%s2] sm:$0x1]
    %v746 = vlaneseq
    %v747 = vshrl.u32 %v746, 7
    %v748 = vsub.s32 0, %v747
    %v749 = vrot.slane %v744, %v748
    %v751 = vadd.f32 %v728, %v749
    %v752 = vadd.f32 %v729, %v749
    %v753 = vadd.f32 %v730, %v749
    %v754 = vadd.f32 %v731, %v749
    %v755 = vadd.f32 %v732, %v749
    %v756 = vadd.f32 %v733, %v749
    %v757 = vadd.f32 %v734, %v749
    %v758 = vadd.f32 %v735, %v749
    %v759 = vadd.f32 %v736, %v749
    %v760 = vadd.f32 %v737, %v749
    %v761 = vadd.f32 %v738, %v749
    %v762 = vadd.f32 %v739, %v749
    %v763 = vadd.f32 %v740, %v749
    %v764 = vadd.f32 %v741, %v749
    %v765 = vadd.f32 %v742, %v749
    %v766 = vadd.f32 %v743, %v749
    %767 = vst [vmem:[%s3] sm:$0xff] %v751
    %768 = vst [vmem:[%s3 + $0x8] sm:$0xff] %v752
    %769 = vst [vmem:[%s3 + $0x10] sm:$0xff] %v753
    %770 = vst [vmem:[%s3 + $0x18] sm:$0xff] %v754
    %771 = vst [vmem:[%s3 + $0x20] sm:$0xff] %v755
    %772 = vst [vmem:[%s3 + $0x28] sm:$0xff] %v756
    %773 = vst [vmem:[%s3 + $0x30] sm:$0xff] %v757
    %774 = vst [vmem:[%s3 + $0x38] sm:$0xff] %v758
    %775 = vst [vmem:[%s3 + $0x40] sm:$0xff] %v759
    %776 = vst [vmem:[%s3 + $0x48] sm:$0xff] %v760
    %777 = vst [vmem:[%s3 + $0x50] sm:$0xff] %v761
    %778 = vst [vmem:[%s3 + $0x58] sm:$0xff] %v762
    %779 = vst [vmem:[%s3 + $0x60] sm:$0xff] %v763
    %780 = vst [vmem:[%s3 + $0x68] sm:$0xff] %v764
    %781 = vst [vmem:[%s3 + $0x70] sm:$0xff] %v765
    %782 = vst [vmem:[%s3 + $0x78] sm:$0xff] %v766
  $region21: #{mrcnn_forward.9} parent=0 // pred_fallthru
    _
  // Predicated region
  $region22: #{mrcnn_forward.9} parent=0 // pred_check
    _
  $region23: #{mrcnn_forward.9} parent=0 // pred_check_branch
    %784 = sbr.rel (0) target = $region25
  $region24: #{mrcnn_forward.9} parent=0 // pred_region
    _
  $region25: #{mrcnn_forward.9} parent=0 // pred_fallthru
    _
  // Predicated region
  $region26: #{mrcnn_forward.9} parent=0 // pred_check
    _
  $region27: #{mrcnn_forward.9} parent=0 // pred_check_branch
    %786 = sbr.rel (0) target = $region29
  $region28: #{mrcnn_forward.9} parent=0 // pred_region
    _
  $region29: #{mrcnn_forward.9} parent=0 // pred_fallthru
    _

// kernel: mrcnn_forward.10
$region0: #{mrcnn_forward.10}
  #allocation0 [shape = 'u32[]', space=smem, size = 0x4, offset = 0x4, fixed_abs, tag = 'smem constant byte address 0x4 - core index']
  #allocation1 [shape = 'u32[144,128]{1,0:T(1,128)}', space=vmem, size = 0x12000, scoped, tag = 'internal scratch']
  #allocation2 [shape = 'f32[64,128]{1,0:T(8,128)}', space=vmem, size = 0x8000, scoped, tag = 'scratch operand']
  %s0 = inlined_call_operand.vmem [shape: bf16[64,512], index: 0, kind: input, shape index: {}]
  %s1 = inlined_call_operand.vmem [shape: bf16[512,128], index: 1, kind: input, shape index: {}]
  %s2 = inlined_call_operand.vmem [shape: f32[1,128], index: 2, kind: input, shape index: {}]
  %s3 = inlined_call_operand.vmem [shape: f32[64,128], index: 3, kind: output, shape index: {}]
  %s4 = sld [smem:[#allocation0]]
  $region30: #{mrcnn_forward.10} parent=0
    _
  %s6 = ssub.s32 1, %s4
  %s7 = scalar_select 0, %s6, %s4
  // Predicated region
  $region2: #{mrcnn_forward.10} parent=0 // pred_check
    _
  $region3: #{mrcnn_forward.10} parent=0 // pred_check_branch
    %9 = sbr.rel (0) target = $region5
  $region4: #{mrcnn_forward.10} parent=0 // pred_region
    _
  $region5: #{mrcnn_forward.10} parent=0 // pred_fallthru
    _
  // Predicated region
  $region6: #{mrcnn_forward.10} parent=0 // pred_check
    _
  $region7: #{mrcnn_forward.10} parent=0 // pred_check_branch
    %11 = sbr.rel (0) target = $region9
  $region8: #{mrcnn_forward.10} parent=0 // pred_region
    _
  $region9: #{mrcnn_forward.10} parent=0 // pred_fallthru
    _
  // Predicated region
  $region10: #{mrcnn_forward.10} parent=0 // pred_check
    _
  $region11: #{mrcnn_forward.10} parent=0 // pred_check_branch
    %13 = sbr.rel (0) target = $region13
  $region12: #{mrcnn_forward.10} parent=0 // pred_region
    _
  $region13: #{mrcnn_forward.10} parent=0 // pred_fallthru
    _
  %p15 = scmp.eq.s32.totalorder 0, 0
  // Predicated region
  $region14: #{mrcnn_forward.10} parent=0 // pred_check
    %p16 = pneg %p15
  $region15: #{mrcnn_forward.10} parent=0 // pred_check_branch
    %18 = sbr.rel (%p16) target = $region17
  $region16: #{mrcnn_forward.10} parent=0 // pred_region
    %19 = vst [vmem:[#allocation2] sm:$0xff] 0.0
    %20 = vst [vmem:[#allocation2 + $0x8] sm:$0xff] 0.0
    %21 = vst [vmem:[#allocation2 + $0x10] sm:$0xff] 0.0
    %22 = vst [vmem:[#allocation2 + $0x18] sm:$0xff] 0.0
    %23 = vst [vmem:[#allocation2 + $0x20] sm:$0xff] 0.0
    %24 = vst [vmem:[#allocation2 + $0x28] sm:$0xff] 0.0
    %25 = vst [vmem:[#allocation2 + $0x30] sm:$0xff] 0.0
    %26 = vst [vmem:[#allocation2 + $0x38] sm:$0xff] 0.0
  $region17: #{mrcnn_forward.10} parent=0 // pred_fallthru
    _
  %v27 = vld [vmem:[#allocation2] sm:$0xff]
  %v28 = vld [vmem:[#allocation2 + $0x8] sm:$0xff]
  %v29 = vld [vmem:[#allocation2 + $0x10] sm:$0xff]
  %v30 = vld [vmem:[#allocation2 + $0x18] sm:$0xff]
  %v31 = vld [vmem:[#allocation2 + $0x20] sm:$0xff]
  %v32 = vld [vmem:[#allocation2 + $0x28] sm:$0xff]
  %v33 = vld [vmem:[#allocation2 + $0x30] sm:$0xff]
  %v34 = vld [vmem:[#allocation2 + $0x38] sm:$0xff]
  %v35 = vld [vmem:[%s0] sm:$0xff]
  %v36 = vld [vmem:[%s0 + $0x8] sm:$0xff]
  %v37 = vld [vmem:[%s0 + $0x10] sm:$0xff]
  %v38 = vld [vmem:[%s0 + $0x18] sm:$0xff]
  %v39 = vld [vmem:[%s0 + $0x20] sm:$0xff]
  %v40 = vld [vmem:[%s0 + $0x28] sm:$0xff]
  %v41 = vld [vmem:[%s0 + $0x30] sm:$0xff]
  %v42 = vld [vmem:[%s0 + $0x38] sm:$0xff]
  %v43 = vld [vmem:[%s0 + $0x40] sm:$0xff]
  %v44 = vld [vmem:[%s0 + $0x48] sm:$0xff]
  %v45 = vld [vmem:[%s0 + $0x50] sm:$0xff]
  %v46 = vld [vmem:[%s0 + $0x58] sm:$0xff]
  %v47 = vld [vmem:[%s0 + $0x60] sm:$0xff]
  %v48 = vld [vmem:[%s0 + $0x68] sm:$0xff]
  %v49 = vld [vmem:[%s0 + $0x70] sm:$0xff]
  %v50 = vld [vmem:[%s0 + $0x78] sm:$0xff]
  %v51 = vld [vmem:[%s1] sm:$0xf]
  %v52 = vld [vmem:[%s1 + $0x4] sm:$0xf]
  %v53 = vld [vmem:[%s1 + $0x8] sm:$0xf]
  %v54 = vld [vmem:[%s1 + $0xc] sm:$0xf]
  %v55 = vld [vmem:[%s1 + $0x10] sm:$0xf]
  %v56 = vld [vmem:[%s1 + $0x14] sm:$0xf]
  %v57 = vld [vmem:[%s1 + $0x18] sm:$0xf]
  %v58 = vld [vmem:[%s1 + $0x1c] sm:$0xf]
  %v59 = vld [vmem:[%s1 + $0x20] sm:$0xf]
  %v60 = vld [vmem:[%s1 + $0x24] sm:$0xf]
  %v61 = vld [vmem:[%s1 + $0x28] sm:$0xf]
  %v62 = vld [vmem:[%s1 + $0x2c] sm:$0xf]
  %v63 = vld [vmem:[%s1 + $0x30] sm:$0xf]
  %v64 = vld [vmem:[%s1 + $0x34] sm:$0xf]
  %v65 = vld [vmem:[%s1 + $0x38] sm:$0xf]
  %v66 = vld [vmem:[%s1 + $0x3c] sm:$0xf]
  %v67 = vld [vmem:[%s1 + $0x40] sm:$0xf]
  %v68 = vld [vmem:[%s1 + $0x44] sm:$0xf]
  %v69 = vld [vmem:[%s1 + $0x48] sm:$0xf]
  %v70 = vld [vmem:[%s1 + $0x4c] sm:$0xf]
  %v71 = vld [vmem:[%s1 + $0x50] sm:$0xf]
  %v72 = vld [vmem:[%s1 + $0x54] sm:$0xf]
  %v73 = vld [vmem:[%s1 + $0x58] sm:$0xf]
  %v74 = vld [vmem:[%s1 + $0x5c] sm:$0xf]
  %v75 = vld [vmem:[%s1 + $0x60] sm:$0xf]
  %v76 = vld [vmem:[%s1 + $0x64] sm:$0xf]
  %v77 = vld [vmem:[%s1 + $0x68] sm:$0xf]
  %v78 = vld [vmem:[%s1 + $0x6c] sm:$0xf]
  %v79 = vld [vmem:[%s1 + $0x70] sm:$0xf]
  %v80 = vld [vmem:[%s1 + $0x74] sm:$0xf]
  %v81 = vld [vmem:[%s1 + $0x78] sm:$0xf]
  %v82 = vld [vmem:[%s1 + $0x7c] sm:$0xf]
  %v83 = vld [vmem:[%s1 + $0x80] sm:$0xf]
  %v84 = vld [vmem:[%s1 + $0x84] sm:$0xf]
  %v85 = vld [vmem:[%s1 + $0x88] sm:$0xf]
  %v86 = vld [vmem:[%s1 + $0x8c] sm:$0xf]
  %v87 = vld [vmem:[%s1 + $0x90] sm:$0xf]
  %v88 = vld [vmem:[%s1 + $0x94] sm:$0xf]
  %v89 = vld [vmem:[%s1 + $0x98] sm:$0xf]
  %v90 = vld [vmem:[%s1 + $0x9c] sm:$0xf]
  %v91 = vld [vmem:[%s1 + $0xa0] sm:$0xf]
  %v92 = vld [vmem:[%s1 + $0xa4] sm:$0xf]
  %v93 = vld [vmem:[%s1 + $0xa8] sm:$0xf]
  %v94 = vld [vmem:[%s1 + $0xac] sm:$0xf]
  %v95 = vld [vmem:[%s1 + $0xb0] sm:$0xf]
  %v96 = vld [vmem:[%s1 + $0xb4] sm:$0xf]
  %v97 = vld [vmem:[%s1 + $0xb8] sm:$0xf]
  %v98 = vld [vmem:[%s1 + $0xbc] sm:$0xf]
  %v99 = vld [vmem:[%s1 + $0xc0] sm:$0xf]
  %v100 = vld [vmem:[%s1 + $0xc4] sm:$0xf]
  %v101 = vld [vmem:[%s1 + $0xc8] sm:$0xf]
  %v102 = vld [vmem:[%s1 + $0xcc] sm:$0xf]
  %v103 = vld [vmem:[%s1 + $0xd0] sm:$0xf]
  %v104 = vld [vmem:[%s1 + $0xd4] sm:$0xf]
  %v105 = vld [vmem:[%s1 + $0xd8] sm:$0xf]
  %v106 = vld [vmem:[%s1 + $0xdc] sm:$0xf]
  %v107 = vld [vmem:[%s1 + $0xe0] sm:$0xf]
  %v108 = vld [vmem:[%s1 + $0xe4] sm:$0xf]
  %v109 = vld [vmem:[%s1 + $0xe8] sm:$0xf]
  %v110 = vld [vmem:[%s1 + $0xec] sm:$0xf]
  %v111 = vld [vmem:[%s1 + $0xf0] sm:$0xf]
  %v112 = vld [vmem:[%s1 + $0xf4] sm:$0xf]
  %v113 = vld [vmem:[%s1 + $0xf8] sm:$0xf]
  %v114 = vld [vmem:[%s1 + $0xfc] sm:$0xf]
  %v131 = vunpack.c.l.b16 %v35
  %v132 = vunpack.c.h.b16 %v35
  %v133 = vunpack.c.l.b16 %v36
  %v134 = vunpack.c.h.b16 %v36
  %v135 = vunpack.c.l.b16 %v37
  %v136 = vunpack.c.h.b16 %v37
  %v137 = vunpack.c.l.b16 %v38
  %v138 = vunpack.c.h.b16 %v38
  %v139 = vunpack.c.l.b16 %v39
  %v140 = vunpack.c.h.b16 %v39
  %v141 = vunpack.c.l.b16 %v40
  %v142 = vunpack.c.h.b16 %v40
  %v143 = vunpack.c.l.b16 %v41
  %v144 = vunpack.c.h.b16 %v41
  %v145 = vunpack.c.l.b16 %v42
  %v146 = vunpack.c.h.b16 %v42
  %v147 = vunpack.c.l.b16 %v43
  %v148 = vunpack.c.h.b16 %v43
  %v149 = vunpack.c.l.b16 %v44
  %v150 = vunpack.c.h.b16 %v44
  %v151 = vunpack.c.l.b16 %v45
  %v152 = vunpack.c.h.b16 %v45
  %v153 = vunpack.c.l.b16 %v46
  %v154 = vunpack.c.h.b16 %v46
  %v155 = vunpack.c.l.b16 %v47
  %v156 = vunpack.c.h.b16 %v47
  %v157 = vunpack.c.l.b16 %v48
  %v158 = vunpack.c.h.b16 %v48
  %v159 = vunpack.c.l.b16 %v49
  %v160 = vunpack.c.h.b16 %v49
  %v161 = vunpack.c.l.b16 %v50
  %v162 = vunpack.c.h.b16 %v50
  %v163 = vpack.c.b16 %v135, %v131
  %v164 = vpack.c.b16 %v136, %v132
  %v165 = vpack.c.b16 %v137, %v133
  %v166 = vpack.c.b16 %v138, %v134
  %v167 = vpack.c.b16 %v143, %v139
  %v168 = vpack.c.b16 %v144, %v140
  %v169 = vpack.c.b16 %v145, %v141
  %v170 = vpack.c.b16 %v146, %v142
  %v171 = vpack.c.b16 %v151, %v147
  %v172 = vpack.c.b16 %v152, %v148
  %v173 = vpack.c.b16 %v153, %v149
  %v174 = vpack.c.b16 %v154, %v150
  %v175 = vpack.c.b16 %v159, %v155
  %v176 = vpack.c.b16 %v160, %v156
  %v177 = vpack.c.b16 %v161, %v157
  %v178 = vpack.c.b16 %v162, %v158
  %v259 = vunpack.c.l.b16 %v51
  %v260 = vunpack.c.l.b16 %v52
  %v261 = vunpack.c.l.b16 %v53
  %v262 = vunpack.c.l.b16 %v54
  %v263 = vunpack.c.l.b16 %v55
  %v264 = vunpack.c.l.b16 %v56
  %v265 = vunpack.c.l.b16 %v57
  %v266 = vunpack.c.l.b16 %v58
  %v267 = vunpack.c.l.b16 %v59
  %v268 = vunpack.c.l.b16 %v60
  %v269 = vunpack.c.l.b16 %v61
  %v270 = vunpack.c.l.b16 %v62
  %v271 = vunpack.c.l.b16 %v63
  %v272 = vunpack.c.l.b16 %v64
  %v273 = vunpack.c.l.b16 %v65
  %v274 = vunpack.c.l.b16 %v66
  %v275 = vunpack.c.l.b16 %v67
  %v276 = vunpack.c.l.b16 %v68
  %v277 = vunpack.c.l.b16 %v69
  %v278 = vunpack.c.l.b16 %v70
  %v279 = vunpack.c.l.b16 %v71
  %v280 = vunpack.c.l.b16 %v72
  %v281 = vunpack.c.l.b16 %v73
  %v282 = vunpack.c.l.b16 %v74
  %v283 = vunpack.c.l.b16 %v75
  %v284 = vunpack.c.l.b16 %v76
  %v285 = vunpack.c.l.b16 %v77
  %v286 = vunpack.c.l.b16 %v78
  %v287 = vunpack.c.l.b16 %v79
  %v288 = vunpack.c.l.b16 %v80
  %v289 = vunpack.c.l.b16 %v81
  %v290 = vunpack.c.l.b16 %v82
  %v291 = vunpack.c.l.b16 %v83
  %v292 = vunpack.c.l.b16 %v84
  %v293 = vunpack.c.l.b16 %v85
  %v294 = vunpack.c.l.b16 %v86
  %v295 = vunpack.c.l.b16 %v87
  %v296 = vunpack.c.l.b16 %v88
  %v297 = vunpack.c.l.b16 %v89
  %v298 = vunpack.c.l.b16 %v90
  %v299 = vunpack.c.l.b16 %v91
  %v300 = vunpack.c.l.b16 %v92
  %v301 = vunpack.c.l.b16 %v93
  %v302 = vunpack.c.l.b16 %v94
  %v303 = vunpack.c.l.b16 %v95
  %v304 = vunpack.c.l.b16 %v96
  %v305 = vunpack.c.l.b16 %v97
  %v306 = vunpack.c.l.b16 %v98
  %v307 = vunpack.c.l.b16 %v99
  %v308 = vunpack.c.l.b16 %v100
  %v309 = vunpack.c.l.b16 %v101
  %v310 = vunpack.c.l.b16 %v102
  %v311 = vunpack.c.l.b16 %v103
  %v312 = vunpack.c.l.b16 %v104
  %v313 = vunpack.c.l.b16 %v105
  %v314 = vunpack.c.l.b16 %v106
  %v315 = vunpack.c.l.b16 %v107
  %v316 = vunpack.c.l.b16 %v108
  %v317 = vunpack.c.l.b16 %v109
  %v318 = vunpack.c.l.b16 %v110
  %v319 = vunpack.c.l.b16 %v111
  %v320 = vunpack.c.l.b16 %v112
  %v321 = vunpack.c.l.b16 %v113
  %v322 = vunpack.c.l.b16 %v114
  %v323 = vpack.c.b16 %v260, %v259
  %v324 = vpack.c.b16 %v262, %v261
  %v325 = vpack.c.b16 %v264, %v263
  %v326 = vpack.c.b16 %v266, %v265
  %v327 = vpack.c.b16 %v268, %v267
  %v328 = vpack.c.b16 %v270, %v269
  %v329 = vpack.c.b16 %v272, %v271
  %v330 = vpack.c.b16 %v274, %v273
  %v331 = vpack.c.b16 %v276, %v275
  %v332 = vpack.c.b16 %v278, %v277
  %v333 = vpack.c.b16 %v280, %v279
  %v334 = vpack.c.b16 %v282, %v281
  %v335 = vpack.c.b16 %v284, %v283
  %v336 = vpack.c.b16 %v286, %v285
  %v337 = vpack.c.b16 %v288, %v287
  %v338 = vpack.c.b16 %v290, %v289
  %v339 = vpack.c.b16 %v292, %v291
  %v340 = vpack.c.b16 %v294, %v293
  %v341 = vpack.c.b16 %v296, %v295
  %v342 = vpack.c.b16 %v298, %v297
  %v343 = vpack.c.b16 %v300, %v299
  %v344 = vpack.c.b16 %v302, %v301
  %v345 = vpack.c.b16 %v304, %v303
  %v346 = vpack.c.b16 %v306, %v305
  %v347 = vpack.c.b16 %v308, %v307
  %v348 = vpack.c.b16 %v310, %v309
  %v349 = vpack.c.b16 %v312, %v311
  %v350 = vpack.c.b16 %v314, %v313
  %v351 = vpack.c.b16 %v316, %v315
  %v352 = vpack.c.b16 %v318, %v317
  %v353 = vpack.c.b16 %v320, %v319
  %v354 = vpack.c.b16 %v322, %v321
  %387 = vmatprep.subr.bf16.mxu0 0
  %388 = vmatpush1.bf16.msra.mxu0 %v323
  %389 = vmatprep.subr.bf16.mxu0 0
  %390 = vmatpush1.bf16.msra.mxu0 %v324
  %391 = vmatprep.subr.bf16.mxu0 0
  %392 = vmatpush1.bf16.msra.mxu0 %v325
  %393 = vmatprep.subr.bf16.mxu0 0
  %394 = vmatpush1.bf16.msra.mxu0 %v326
  %395 = vmatprep.subr.bf16.mxu0 0
  %396 = vmatpush1.bf16.msra.mxu0 %v327
  %397 = vmatprep.subr.bf16.mxu0 0
  %398 = vmatpush1.bf16.msra.mxu0 %v328
  %399 = vmatprep.subr.bf16.mxu0 0
  %400 = vmatpush1.bf16.msra.mxu0 %v329
  %401 = vmatprep.subr.bf16.mxu0 0
  %402 = vmatpush1.bf16.msra.mxu0 %v330
  %403 = vmatprep.subr.bf16.mxu0 0
  %404 = vmatpush1.bf16.msra.mxu0 %v331
  %405 = vmatprep.subr.bf16.mxu0 0
  %406 = vmatpush1.bf16.msra.mxu0 %v332
  %407 = vmatprep.subr.bf16.mxu0 0
  %408 = vmatpush1.bf16.msra.mxu0 %v333
  %409 = vmatprep.subr.bf16.mxu0 0
  %410 = vmatpush1.bf16.msra.mxu0 %v334
  %411 = vmatprep.subr.bf16.mxu0 0
  %412 = vmatpush1.bf16.msra.mxu0 %v335
  %413 = vmatprep.subr.bf16.mxu0 0
  %414 = vmatpush1.bf16.msra.mxu0 %v336
  %415 = vmatprep.subr.bf16.mxu0 0
  %416 = vmatpush1.bf16.msra.mxu0 %v337
  %417 = vmatprep.subr.bf16.mxu0 0
  %418 = vmatpush1.bf16.msra.mxu0 %v338
  %419 = vmatprep.mubr.bf16.mxu0 %v164
  %420 = vmatmul.mubr.bf16.gmra.mrb[0].mxu0 %v163
  %v421 = vpop.f32.mrb[0].mxu0
  %v422 = vadd.f32 0.0, %v421
  %v423 = vpop.f32.mrb[0].mxu0
  %v424 = vpop.f32.mrb[0].mxu0
  %v425 = vadd.f32 0.0, %v424
  %v426 = vpop.f32.mrb[0].mxu0
  %427 = vmatprep.mubr.bf16.mxu0 %v168
  %428 = vmatmul.mubr.bf16.gmra.mrb[0].mxu0 %v167
  %v429 = vpop.f32.mrb[0].mxu0
  %v430 = vadd.f32 0.0, %v429
  %v431 = vpop.f32.mrb[0].mxu0
  %v432 = vpop.f32.mrb[0].mxu0
  %v433 = vadd.f32 0.0, %v432
  %v434 = vpop.f32.mrb[0].mxu0
  %435 = vmatprep.mubr.bf16.mxu0 %v172
  %436 = vmatmul.mubr.bf16.gmra.mrb[0].mxu0 %v171
  %v437 = vpop.f32.mrb[0].mxu0
  %v438 = vadd.f32 0.0, %v437
  %v439 = vpop.f32.mrb[0].mxu0
  %v440 = vpop.f32.mrb[0].mxu0
  %v441 = vadd.f32 0.0, %v440
  %v442 = vpop.f32.mrb[0].mxu0
  %443 = vmatprep.mubr.bf16.mxu0 %v176
  %444 = vmatmul.mubr.bf16.gmra.mrb[0].mxu0 %v175
  %v445 = vpop.f32.mrb[0].mxu0
  %v446 = vadd.f32 0.0, %v445
  %v447 = vpop.f32.mrb[0].mxu0
  %v448 = vpop.f32.mrb[0].mxu0
  %v449 = vadd.f32 0.0, %v448
  %v450 = vpop.f32.mrb[0].mxu0
  %451 = vdwg.mxu0
  %452 = vmatprep.subr.bf16.mxu0 0
  %453 = vmatpush1.bf16.msra.mxu0 %v339
  %454 = vmatprep.subr.bf16.mxu0 0
  %455 = vmatpush1.bf16.msra.mxu0 %v340
  %456 = vmatprep.subr.bf16.mxu0 0
  %457 = vmatpush1.bf16.msra.mxu0 %v341
  %458 = vmatprep.subr.bf16.mxu0 0
  %459 = vmatpush1.bf16.msra.mxu0 %v342
  %460 = vmatprep.subr.bf16.mxu0 0
  %461 = vmatpush1.bf16.msra.mxu0 %v343
  %462 = vmatprep.subr.bf16.mxu0 0
  %463 = vmatpush1.bf16.msra.mxu0 %v344
  %464 = vmatprep.subr.bf16.mxu0 0
  %465 = vmatpush1.bf16.msra.mxu0 %v345
  %466 = vmatprep.subr.bf16.mxu0 0
  %467 = vmatpush1.bf16.msra.mxu0 %v346
  %468 = vmatprep.subr.bf16.mxu0 0
  %469 = vmatpush1.bf16.msra.mxu0 %v347
  %470 = vmatprep.subr.bf16.mxu0 0
  %471 = vmatpush1.bf16.msra.mxu0 %v348
  %472 = vmatprep.subr.bf16.mxu0 0
  %473 = vmatpush1.bf16.msra.mxu0 %v349
  %474 = vmatprep.subr.bf16.mxu0 0
  %475 = vmatpush1.bf16.msra.mxu0 %v350
  %476 = vmatprep.subr.bf16.mxu0 0
  %477 = vmatpush1.bf16.msra.mxu0 %v351
  %478 = vmatprep.subr.bf16.mxu0 0
  %479 = vmatpush1.bf16.msra.mxu0 %v352
  %480 = vmatprep.subr.bf16.mxu0 0
  %481 = vmatpush1.bf16.msra.mxu0 %v353
  %482 = vmatprep.subr.bf16.mxu0 0
  %483 = vmatpush1.bf16.msra.mxu0 %v354
  %484 = vmatprep.mubr.bf16.mxu0 %v166
  %485 = vmatmul.mubr.bf16.gmra.mrb[0].mxu0 %v165
  %v486 = vpop.f32.mrb[0].mxu0
  %v487 = vadd.f32 %v422, %v486
  %v488 = vpop.f32.mrb[0].mxu0
  %v489 = vpop.f32.mrb[0].mxu0
  %v490 = vadd.f32 %v425, %v489
  %v491 = vpop.f32.mrb[0].mxu0
  %492 = vmatprep.mubr.bf16.mxu0 %v170
  %493 = vmatmul.mubr.bf16.gmra.mrb[0].mxu0 %v169
  %v494 = vpop.f32.mrb[0].mxu0
  %v495 = vadd.f32 %v430, %v494
  %v496 = vpop.f32.mrb[0].mxu0
  %v497 = vpop.f32.mrb[0].mxu0
  %v498 = vadd.f32 %v433, %v497
  %v499 = vpop.f32.mrb[0].mxu0
  %500 = vmatprep.mubr.bf16.mxu0 %v174
  %501 = vmatmul.mubr.bf16.gmra.mrb[0].mxu0 %v173
  %v502 = vpop.f32.mrb[0].mxu0
  %v503 = vadd.f32 %v438, %v502
  %v504 = vpop.f32.mrb[0].mxu0
  %v505 = vpop.f32.mrb[0].mxu0
  %v506 = vadd.f32 %v441, %v505
  %v507 = vpop.f32.mrb[0].mxu0
  %508 = vmatprep.mubr.bf16.mxu0 %v178
  %509 = vmatmul.mubr.bf16.gmra.mrb[0].mxu0 %v177
  %v510 = vpop.f32.mrb[0].mxu0
  %v511 = vadd.f32 %v446, %v510
  %v512 = vpop.f32.mrb[0].mxu0
  %v513 = vpop.f32.mrb[0].mxu0
  %v514 = vadd.f32 %v449, %v513
  %v515 = vpop.f32.mrb[0].mxu0
  %516 = vdwg.mxu0
  %v517 = vadd.f32 %v27, %v487
  %v518 = vadd.f32 %v28, %v490
  %v519 = vadd.f32 %v29, %v495
  %v520 = vadd.f32 %v30, %v498
  %v521 = vadd.f32 %v31, %v503
  %v522 = vadd.f32 %v32, %v506
  %v523 = vadd.f32 %v33, %v511
  %v524 = vadd.f32 %v34, %v514
  %525 = vst [vmem:[#allocation2] sm:$0xff] %v517
  %526 = vst [vmem:[#allocation2 + $0x8] sm:$0xff] %v518
  %527 = vst [vmem:[#allocation2 + $0x10] sm:$0xff] %v519
  %528 = vst [vmem:[#allocation2 + $0x18] sm:$0xff] %v520
  %529 = vst [vmem:[#allocation2 + $0x20] sm:$0xff] %v521
  %530 = vst [vmem:[#allocation2 + $0x28] sm:$0xff] %v522
  %531 = vst [vmem:[#allocation2 + $0x30] sm:$0xff] %v523
  %532 = vst [vmem:[#allocation2 + $0x38] sm:$0xff] %v524
  // Predicated region
  $region18: #{mrcnn_forward.10} parent=0 // pred_check
    %p533 = pneg %p15
  $region19: #{mrcnn_forward.10} parent=0 // pred_check_branch
    %535 = sbr.rel (%p533) target = $region21
  $region20: #{mrcnn_forward.10} parent=0 // pred_region
    %v536 = vld [vmem:[#allocation2] sm:$0xff]
    %v537 = vld [vmem:[#allocation2 + $0x8] sm:$0xff]
    %v538 = vld [vmem:[#allocation2 + $0x10] sm:$0xff]
    %v539 = vld [vmem:[#allocation2 + $0x18] sm:$0xff]
    %v540 = vld [vmem:[#allocation2 + $0x20] sm:$0xff]
    %v541 = vld [vmem:[#allocation2 + $0x28] sm:$0xff]
    %v542 = vld [vmem:[#allocation2 + $0x30] sm:$0xff]
    %v543 = vld [vmem:[#allocation2 + $0x38] sm:$0xff]
    %v544 = vld [vmem:[%s2] sm:$0x1]
    %v546 = vlaneseq
    %v547 = vshrl.u32 %v546, 7
    %v548 = vsub.s32 0, %v547
    %v549 = vrot.slane %v544, %v548
    %v551 = vadd.f32 %v536, %v549
    %v552 = vadd.f32 %v537, %v549
    %v553 = vadd.f32 %v538, %v549
    %v554 = vadd.f32 %v539, %v549
    %v555 = vadd.f32 %v540, %v549
    %v556 = vadd.f32 %v541, %v549
    %v557 = vadd.f32 %v542, %v549
    %v558 = vadd.f32 %v543, %v549
    %559 = vst [vmem:[%s3] sm:$0xff] %v551
    %560 = vst [vmem:[%s3 + $0x8] sm:$0xff] %v552
    %561 = vst [vmem:[%s3 + $0x10] sm:$0xff] %v553
    %562 = vst [vmem:[%s3 + $0x18] sm:$0xff] %v554
    %563 = vst [vmem:[%s3 + $0x20] sm:$0xff] %v555
    %564 = vst [vmem:[%s3 + $0x28] sm:$0xff] %v556
    %565 = vst [vmem:[%s3 + $0x30] sm:$0xff] %v557
    %566 = vst [vmem:[%s3 + $0x38] sm:$0xff] %v558
  $region21: #{mrcnn_forward.10} parent=0 // pred_fallthru
    _
  // Predicated region
  $region22: #{mrcnn_forward.10} parent=0 // pred_check
    _
  $region23: #{mrcnn_forward.10} parent=0 // pred_check_branch
    %568 = sbr.rel (0) target = $region25
  $region24: #{mrcnn_forward.10} parent=0 // pred_region
    _
  $region25: #{mrcnn_forward.10} parent=0 // pred_fallthru
    _
  // Predicated region
  $region26: #{mrcnn_forward.10} parent=0 // pred_check
    _
  $region27: #{mrcnn_forward.10} parent=0 // pred_check_branch
    %570 = sbr.rel (0) target = $region29
  $region28: #{mrcnn_forward.10} parent=0 // pred_region
    _
  $region29: #{mrcnn_forward.10} parent=0 // pred_fallthru
    _

// kernel: mrcnn_forward.11
$region0: #{mrcnn_forward.11}
  #allocation0 [shape = 'u32[]', space=smem, size = 0x4, offset = 0x4, fixed_abs, tag = 'smem constant byte address 0x4 - core index']
  #allocation1 [shape = 'u32[144,128]{1,0:T(1,128)}', space=vmem, size = 0x12000, scoped, tag = 'internal scratch']
  #allocation2 [shape = 'f32[64,128]{1,0:T(8,128)}', space=vmem, size = 0x8000, scoped, tag = 'scratch operand']
  %s0 = inlined_call_operand.vmem [shape: bf16[64,896], index: 0, kind: input, shape index: {}]
  %s1 = inlined_call_operand.vmem [shape: bf16[896,128], index: 1, kind: input, shape index: {}]
  %s2 = inlined_call_operand.vmem [shape: f32[1,128], index: 2, kind: input, shape index: {}]
  %s3 = inlined_call_operand.vmem [shape: f32[64,128], index: 3, kind: output, shape index: {}]
  %s4 = sld [smem:[#allocation0]]
  $region30: #{mrcnn_forward.11} parent=0
    _
  %s6 = ssub.s32 1, %s4
  %s7 = scalar_select 0, %s6, %s4
  // Predicated region
  $region2: #{mrcnn_forward.11} parent=0 // pred_check
    _
  $region3: #{mrcnn_forward.11} parent=0 // pred_check_branch
    %9 = sbr.rel (0) target = $region5
  $region4: #{mrcnn_forward.11} parent=0 // pred_region
    _
  $region5: #{mrcnn_forward.11} parent=0 // pred_fallthru
    _
  // Predicated region
  $region6: #{mrcnn_forward.11} parent=0 // pred_check
    _
  $region7: #{mrcnn_forward.11} parent=0 // pred_check_branch
    %11 = sbr.rel (0) target = $region9
  $region8: #{mrcnn_forward.11} parent=0 // pred_region
    _
  $region9: #{mrcnn_forward.11} parent=0 // pred_fallthru
    _
  // Predicated region
  $region10: #{mrcnn_forward.11} parent=0 // pred_check
    _
  $region11: #{mrcnn_forward.11} parent=0 // pred_check_branch
    %13 = sbr.rel (0) target = $region13
  $region12: #{mrcnn_forward.11} parent=0 // pred_region
    _
  $region13: #{mrcnn_forward.11} parent=0 // pred_fallthru
    _
  %p15 = scmp.eq.s32.totalorder 0, 0
  // Predicated region
  $region14: #{mrcnn_forward.11} parent=0 // pred_check
    %p16 = pneg %p15
  $region15: #{mrcnn_forward.11} parent=0 // pred_check_branch
    %18 = sbr.rel (%p16) target = $region17
  $region16: #{mrcnn_forward.11} parent=0 // pred_region
    %19 = vst [vmem:[#allocation2] sm:$0xff] 0.0
    %20 = vst [vmem:[#allocation2 + $0x8] sm:$0xff] 0.0
    %21 = vst [vmem:[#allocation2 + $0x10] sm:$0xff] 0.0
    %22 = vst [vmem:[#allocation2 + $0x18] sm:$0xff] 0.0
    %23 = vst [vmem:[#allocation2 + $0x20] sm:$0xff] 0.0
    %24 = vst [vmem:[#allocation2 + $0x28] sm:$0xff] 0.0
    %25 = vst [vmem:[#allocation2 + $0x30] sm:$0xff] 0.0
    %26 = vst [vmem:[#allocation2 + $0x38] sm:$0xff] 0.0
  $region17: #{mrcnn_forward.11} parent=0 // pred_fallthru
    _
  %v27 = vld [vmem:[#allocation2] sm:$0xff]
  %v28 = vld [vmem:[#allocation2 + $0x8] sm:$0xff]
  %v29 = vld [vmem:[#allocation2 + $0x10] sm:$0xff]
  %v30 = vld [vmem:[#allocation2 + $0x18] sm:$0xff]
  %v31 = vld [vmem:[#allocation2 + $0x20] sm:$0xff]
  %v32 = vld [vmem:[#allocation2 + $0x28] sm:$0xff]
  %v33 = vld [vmem:[#allocation2 + $0x30] sm:$0xff]
  %v34 = vld [vmem:[#allocation2 + $0x38] sm:$0xff]
  %v35 = vld [vmem:[%s0] sm:$0xff]
  %v36 = vld [vmem:[%s0 + $0x8] sm:$0xff]
  %v37 = vld [vmem:[%s0 + $0x10] sm:$0xff]
  %v38 = vld [vmem:[%s0 + $0x18] sm:$0xf]
  %v39 = vld [vmem:[%s0 + $0x1c] sm:$0xff]
  %v40 = vld [vmem:[%s0 + $0x24] sm:$0xff]
  %v41 = vld [vmem:[%s0 + $0x2c] sm:$0xff]
  %v42 = vld [vmem:[%s0 + $0x34] sm:$0xf]
  %v43 = vld [vmem:[%s0 + $0x38] sm:$0xff]
  %v44 = vld [vmem:[%s0 + $0x40] sm:$0xff]
  %v45 = vld [vmem:[%s0 + $0x48] sm:$0xff]
  %v46 = vld [vmem:[%s0 + $0x50] sm:$0xf]
  %v47 = vld [vmem:[%s0 + $0x54] sm:$0xff]
  %v48 = vld [vmem:[%s0 + $0x5c] sm:$0xff]
  %v49 = vld [vmem:[%s0 + $0x64] sm:$0xff]
  %v50 = vld [vmem:[%s0 + $0x6c] sm:$0xf]
  %v51 = vld [vmem:[%s0 + $0x70] sm:$0xff]
  %v52 = vld [vmem:[%s0 + $0x78] sm:$0xff]
  %v53 = vld [vmem:[%s0 + $0x80] sm:$0xff]
  %v54 = vld [vmem:[%s0 + $0x88] sm:$0xf]
  %v55 = vld [vmem:[%s0 + $0x8c] sm:$0xff]
  %v56 = vld [vmem:[%s0 + $0x94] sm:$0xff]
  %v57 = vld [vmem:[%s0 + $0x9c] sm:$0xff]
  %v58 = vld [vmem:[%s0 + $0xa4] sm:$0xf]
  %v59 = vld [vmem:[%s0 + $0xa8] sm:$0xff]
  %v60 = vld [vmem:[%s0 + $0xb0] sm:$0xff]
  %v61 = vld [vmem:[%s0 + $0xb8] sm:$0xff]
  %v62 = vld [vmem:[%s0 + $0xc0] sm:$0xf]
  %v63 = vld [vmem:[%s0 + $0xc4] sm:$0xff]
  %v64 = vld [vmem:[%s0 + $0xcc] sm:$0xff]
  %v65 = vld [vmem:[%s0 + $0xd4] sm:$0xff]
  %v66 = vld [vmem:[%s0 + $0xdc] sm:$0xf]
  %v67 = vld [vmem:[%s1] sm:$0xf]
  %v68 = vld [vmem:[%s1 + $0x4] sm:$0xf]
  %v69 = vld [vmem:[%s1 + $0x8] sm:$0xf]
  %v70 = vld [vmem:[%s1 + $0xc] sm:$0xf]
  %v71 = vld [vmem:[%s1 + $0x10] sm:$0xf]
  %v72 = vld [vmem:[%s1 + $0x14] sm:$0xf]
  %v73 = vld [vmem:[%s1 + $0x18] sm:$0xf]
  %v74 = vld [vmem:[%s1 + $0x1c] sm:$0xf]
  %v75 = vld [vmem:[%s1 + $0x20] sm:$0xf]
  %v76 = vld [vmem:[%s1 + $0x24] sm:$0xf]
  %v77 = vld [vmem:[%s1 + $0x28] sm:$0xf]
  %v78 = vld [vmem:[%s1 + $0x2c] sm:$0xf]
  %v79 = vld [vmem:[%s1 + $0x30] sm:$0xf]
  %v80 = vld [vmem:[%s1 + $0x34] sm:$0xf]
  %v81 = vld [vmem:[%s1 + $0x38] sm:$0xf]
  %v82 = vld [vmem:[%s1 + $0x3c] sm:$0xf]
  %v83 = vld [vmem:[%s1 + $0x40] sm:$0xf]
  %v84 = vld [vmem:[%s1 + $0x44] sm:$0xf]
  %v85 = vld [vmem:[%s1 + $0x48] sm:$0xf]
  %v86 = vld [vmem:[%s1 + $0x4c] sm:$0xf]
  %v87 = vld [vmem:[%s1 + $0x50] sm:$0xf]
  %v88 = vld [vmem:[%s1 + $0x54] sm:$0xf]
  %v89 = vld [vmem:[%s1 + $0x58] sm:$0xf]
  %v90 = vld [vmem:[%s1 + $0x5c] sm:$0xf]
  %v91 = vld [vmem:[%s1 + $0x60] sm:$0xf]
  %v92 = vld [vmem:[%s1 + $0x64] sm:$0xf]
  %v93 = vld [vmem:[%s1 + $0x68] sm:$0xf]
  %v94 = vld [vmem:[%s1 + $0x6c] sm:$0xf]
  %v95 = vld [vmem:[%s1 + $0x70] sm:$0xf]
  %v96 = vld [vmem:[%s1 + $0x74] sm:$0xf]
  %v97 = vld [vmem:[%s1 + $0x78] sm:$0xf]
  %v98 = vld [vmem:[%s1 + $0x7c] sm:$0xf]
  %v99 = vld [vmem:[%s1 + $0x80] sm:$0xf]
  %v100 = vld [vmem:[%s1 + $0x84] sm:$0xf]
  %v101 = vld [vmem:[%s1 + $0x88] sm:$0xf]
  %v102 = vld [vmem:[%s1 + $0x8c] sm:$0xf]
  %v103 = vld [vmem:[%s1 + $0x90] sm:$0xf]
  %v104 = vld [vmem:[%s1 + $0x94] sm:$0xf]
  %v105 = vld [vmem:[%s1 + $0x98] sm:$0xf]
  %v106 = vld [vmem:[%s1 + $0x9c] sm:$0xf]
  %v107 = vld [vmem:[%s1 + $0xa0] sm:$0xf]
  %v108 = vld [vmem:[%s1 + $0xa4] sm:$0xf]
  %v109 = vld [vmem:[%s1 + $0xa8] sm:$0xf]
  %v110 = vld [vmem:[%s1 + $0xac] sm:$0xf]
  %v111 = vld [vmem:[%s1 + $0xb0] sm:$0xf]
  %v112 = vld [vmem:[%s1 + $0xb4] sm:$0xf]
  %v113 = vld [vmem:[%s1 + $0xb8] sm:$0xf]
  %v114 = vld [vmem:[%s1 + $0xbc] sm:$0xf]
  %v115 = vld [vmem:[%s1 + $0xc0] sm:$0xf]
  %v116 = vld [vmem:[%s1 + $0xc4] sm:$0xf]
  %v117 = vld [vmem:[%s1 + $0xc8] sm:$0xf]
  %v118 = vld [vmem:[%s1 + $0xcc] sm:$0xf]
  %v119 = vld [vmem:[%s1 + $0xd0] sm:$0xf]
  %v120 = vld [vmem:[%s1 + $0xd4] sm:$0xf]
  %v121 = vld [vmem:[%s1 + $0xd8] sm:$0xf]
  %v122 = vld [vmem:[%s1 + $0xdc] sm:$0xf]
  %v123 = vld [vmem:[%s1 + $0xe0] sm:$0xf]
  %v124 = vld [vmem:[%s1 + $0xe4] sm:$0xf]
  %v125 = vld [vmem:[%s1 + $0xe8] sm:$0xf]
  %v126 = vld [vmem:[%s1 + $0xec] sm:$0xf]
  %v127 = vld [vmem:[%s1 + $0xf0] sm:$0xf]
  %v128 = vld [vmem:[%s1 + $0xf4] sm:$0xf]
  %v129 = vld [vmem:[%s1 + $0xf8] sm:$0xf]
  %v130 = vld [vmem:[%s1 + $0xfc] sm:$0xf]
  %v131 = vld [vmem:[%s1 + $0x100] sm:$0xf]
  %v132 = vld [vmem:[%s1 + $0x104] sm:$0xf]
  %v133 = vld [vmem:[%s1 + $0x108] sm:$0xf]
  %v134 = vld [vmem:[%s1 + $0x10c] sm:$0xf]
  %v135 = vld [vmem:[%s1 + $0x110] sm:$0xf]
  %v136 = vld [vmem:[%s1 + $0x114] sm:$0xf]
  %v137 = vld [vmem:[%s1 + $0x118] sm:$0xf]
  %v138 = vld [vmem:[%s1 + $0x11c] sm:$0xf]
  %v139 = vld [vmem:[%s1 + $0x120] sm:$0xf]
  %v140 = vld [vmem:[%s1 + $0x124] sm:$0xf]
  %v141 = vld [vmem:[%s1 + $0x128] sm:$0xf]
  %v142 = vld [vmem:[%s1 + $0x12c] sm:$0xf]
  %v143 = vld [vmem:[%s1 + $0x130] sm:$0xf]
  %v144 = vld [vmem:[%s1 + $0x134] sm:$0xf]
  %v145 = vld [vmem:[%s1 + $0x138] sm:$0xf]
  %v146 = vld [vmem:[%s1 + $0x13c] sm:$0xf]
  %v147 = vld [vmem:[%s1 + $0x140] sm:$0xf]
  %v148 = vld [vmem:[%s1 + $0x144] sm:$0xf]
  %v149 = vld [vmem:[%s1 + $0x148] sm:$0xf]
  %v150 = vld [vmem:[%s1 + $0x14c] sm:$0xf]
  %v151 = vld [vmem:[%s1 + $0x150] sm:$0xf]
  %v152 = vld [vmem:[%s1 + $0x154] sm:$0xf]
  %v153 = vld [vmem:[%s1 + $0x158] sm:$0xf]
  %v154 = vld [vmem:[%s1 + $0x15c] sm:$0xf]
  %v155 = vld [vmem:[%s1 + $0x160] sm:$0xf]
  %v156 = vld [vmem:[%s1 + $0x164] sm:$0xf]
  %v157 = vld [vmem:[%s1 + $0x168] sm:$0xf]
  %v158 = vld [vmem:[%s1 + $0x16c] sm:$0xf]
  %v159 = vld [vmem:[%s1 + $0x170] sm:$0xf]
  %v160 = vld [vmem:[%s1 + $0x174] sm:$0xf]
  %v161 = vld [vmem:[%s1 + $0x178] sm:$0xf]
  %v162 = vld [vmem:[%s1 + $0x17c] sm:$0xf]
  %v163 = vld [vmem:[%s1 + $0x180] sm:$0xf]
  %v164 = vld [vmem:[%s1 + $0x184] sm:$0xf]
  %v165 = vld [vmem:[%s1 + $0x188] sm:$0xf]
  %v166 = vld [vmem:[%s1 + $0x18c] sm:$0xf]
  %v167 = vld [vmem:[%s1 + $0x190] sm:$0xf]
  %v168 = vld [vmem:[%s1 + $0x194] sm:$0xf]
  %v169 = vld [vmem:[%s1 + $0x198] sm:$0xf]
  %v170 = vld [vmem:[%s1 + $0x19c] sm:$0xf]
  %v171 = vld [vmem:[%s1 + $0x1a0] sm:$0xf]
  %v172 = vld [vmem:[%s1 + $0x1a4] sm:$0xf]
  %v173 = vld [vmem:[%s1 + $0x1a8] sm:$0xf]
  %v174 = vld [vmem:[%s1 + $0x1ac] sm:$0xf]
  %v175 = vld [vmem:[%s1 + $0x1b0] sm:$0xf]
  %v176 = vld [vmem:[%s1 + $0x1b4] sm:$0xf]
  %v177 = vld [vmem:[%s1 + $0x1b8] sm:$0xf]
  %v178 = vld [vmem:[%s1 + $0x1bc] sm:$0xf]
  %v211 = vunpack.c.l.b16 %v35
  %v212 = vunpack.c.h.b16 %v35
  %v213 = vunpack.c.l.b16 %v36
  %v214 = vunpack.c.h.b16 %v36
  %v215 = vunpack.c.l.b16 %v37
  %v216 = vunpack.c.h.b16 %v37
  %v217 = vunpack.c.l.b16 %v38
  %v218 = vunpack.c.l.b16 %v39
  %v219 = vunpack.c.h.b16 %v39
  %v220 = vunpack.c.l.b16 %v40
  %v221 = vunpack.c.h.b16 %v40
  %v222 = vunpack.c.l.b16 %v41
  %v223 = vunpack.c.h.b16 %v41
  %v224 = vunpack.c.l.b16 %v42
  %v225 = vunpack.c.l.b16 %v43
  %v226 = vunpack.c.h.b16 %v43
  %v227 = vunpack.c.l.b16 %v44
  %v228 = vunpack.c.h.b16 %v44
  %v229 = vunpack.c.l.b16 %v45
  %v230 = vunpack.c.h.b16 %v45
  %v231 = vunpack.c.l.b16 %v46
  %v232 = vunpack.c.l.b16 %v47
  %v233 = vunpack.c.h.b16 %v47
  %v234 = vunpack.c.l.b16 %v48
  %v235 = vunpack.c.h.b16 %v48
  %v236 = vunpack.c.l.b16 %v49
  %v237 = vunpack.c.h.b16 %v49
  %v238 = vunpack.c.l.b16 %v50
  %v239 = vunpack.c.l.b16 %v51
  %v240 = vunpack.c.h.b16 %v51
  %v241 = vunpack.c.l.b16 %v52
  %v242 = vunpack.c.h.b16 %v52
  %v243 = vunpack.c.l.b16 %v53
  %v244 = vunpack.c.h.b16 %v53
  %v245 = vunpack.c.l.b16 %v54
  %v246 = vunpack.c.l.b16 %v55
  %v247 = vunpack.c.h.b16 %v55
  %v248 = vunpack.c.l.b16 %v56
  %v249 = vunpack.c.h.b16 %v56
  %v250 = vunpack.c.l.b16 %v57
  %v251 = vunpack.c.h.b16 %v57
  %v252 = vunpack.c.l.b16 %v58
  %v253 = vunpack.c.l.b16 %v59
  %v254 = vunpack.c.h.b16 %v59
  %v255 = vunpack.c.l.b16 %v60
  %v256 = vunpack.c.h.b16 %v60
  %v257 = vunpack.c.l.b16 %v61
  %v258 = vunpack.c.h.b16 %v61
  %v259 = vunpack.c.l.b16 %v62
  %v260 = vunpack.c.l.b16 %v63
  %v261 = vunpack.c.h.b16 %v63
  %v262 = vunpack.c.l.b16 %v64
  %v263 = vunpack.c.h.b16 %v64
  %v264 = vunpack.c.l.b16 %v65
  %v265 = vunpack.c.h.b16 %v65
  %v266 = vunpack.c.l.b16 %v66
  %v267 = vpack.c.b16 %v218, %v211
  %v268 = vpack.c.b16 %v219, %v212
  %v269 = vpack.c.b16 %v220, %v213
  %v270 = vpack.c.b16 %v221, %v214
  %v271 = vpack.c.b16 %v222, %v215
  %v272 = vpack.c.b16 %v223, %v216
  %v273 = vpack.c.b16 %v224, %v217
  %v274 = vpack.c.b16 %v232, %v225
  %v275 = vpack.c.b16 %v233, %v226
  %v276 = vpack.c.b16 %v234, %v227
  %v277 = vpack.c.b16 %v235, %v228
  %v278 = vpack.c.b16 %v236, %v229
  %v279 = vpack.c.b16 %v237, %v230
  %v280 = vpack.c.b16 %v238, %v231
  %v281 = vpack.c.b16 %v246, %v239
  %v282 = vpack.c.b16 %v247, %v240
  %v283 = vpack.c.b16 %v248, %v241
  %v284 = vpack.c.b16 %v249, %v242
  %v285 = vpack.c.b16 %v250, %v243
  %v286 = vpack.c.b16 %v251, %v244
  %v287 = vpack.c.b16 %v252, %v245
  %v288 = vpack.c.b16 %v260, %v253
  %v289 = vpack.c.b16 %v261, %v254
  %v290 = vpack.c.b16 %v262, %v255
  %v291 = vpack.c.b16 %v263, %v256
  %v292 = vpack.c.b16 %v264, %v257
  %v293 = vpack.c.b16 %v265, %v258
  %v294 = vpack.c.b16 %v266, %v259
  %v435 = vunpack.c.l.b16 %v67
  %v436 = vunpack.c.l.b16 %v68
  %v437 = vunpack.c.l.b16 %v69
  %v438 = vunpack.c.l.b16 %v70
  %v439 = vunpack.c.l.b16 %v71
  %v440 = vunpack.c.l.b16 %v72
  %v441 = vunpack.c.l.b16 %v73
  %v442 = vunpack.c.l.b16 %v74
  %v443 = vunpack.c.l.b16 %v75
  %v444 = vunpack.c.l.b16 %v76
  %v445 = vunpack.c.l.b16 %v77
  %v446 = vunpack.c.l.b16 %v78
  %v447 = vunpack.c.l.b16 %v79
  %v448 = vunpack.c.l.b16 %v80
  %v449 = vunpack.c.l.b16 %v81
  %v450 = vunpack.c.l.b16 %v82
  %v451 = vunpack.c.l.b16 %v83
  %v452 = vunpack.c.l.b16 %v84
  %v453 = vunpack.c.l.b16 %v85
  %v454 = vunpack.c.l.b16 %v86
  %v455 = vunpack.c.l.b16 %v87
  %v456 = vunpack.c.l.b16 %v88
  %v457 = vunpack.c.l.b16 %v89
  %v458 = vunpack.c.l.b16 %v90
  %v459 = vunpack.c.l.b16 %v91
  %v460 = vunpack.c.l.b16 %v92
  %v461 = vunpack.c.l.b16 %v93
  %v462 = vunpack.c.l.b16 %v94
  %v463 = vunpack.c.l.b16 %v95
  %v464 = vunpack.c.l.b16 %v96
  %v465 = vunpack.c.l.b16 %v97
  %v466 = vunpack.c.l.b16 %v98
  %v467 = vunpack.c.l.b16 %v99
  %v468 = vunpack.c.l.b16 %v100
  %v469 = vunpack.c.l.b16 %v101
  %v470 = vunpack.c.l.b16 %v102
  %v471 = vunpack.c.l.b16 %v103
  %v472 = vunpack.c.l.b16 %v104
  %v473 = vunpack.c.l.b16 %v105
  %v474 = vunpack.c.l.b16 %v106
  %v475 = vunpack.c.l.b16 %v107
  %v476 = vunpack.c.l.b16 %v108
  %v477 = vunpack.c.l.b16 %v109
  %v478 = vunpack.c.l.b16 %v110
  %v479 = vunpack.c.l.b16 %v111
  %v480 = vunpack.c.l.b16 %v112
  %v481 = vunpack.c.l.b16 %v113
  %v482 = vunpack.c.l.b16 %v114
  %v483 = vunpack.c.l.b16 %v115
  %v484 = vunpack.c.l.b16 %v116
  %v485 = vunpack.c.l.b16 %v117
  %v486 = vunpack.c.l.b16 %v118
  %v487 = vunpack.c.l.b16 %v119
  %v488 = vunpack.c.l.b16 %v120
  %v489 = vunpack.c.l.b16 %v121
  %v490 = vunpack.c.l.b16 %v122
  %v491 = vunpack.c.l.b16 %v123
  %v492 = vunpack.c.l.b16 %v124
  %v493 = vunpack.c.l.b16 %v125
  %v494 = vunpack.c.l.b16 %v126
  %v495 = vunpack.c.l.b16 %v127
  %v496 = vunpack.c.l.b16 %v128
  %v497 = vunpack.c.l.b16 %v129
  %v498 = vunpack.c.l.b16 %v130
  %v499 = vunpack.c.l.b16 %v131
  %v500 = vunpack.c.l.b16 %v132
  %v501 = vunpack.c.l.b16 %v133
  %v502 = vunpack.c.l.b16 %v134
  %v503 = vunpack.c.l.b16 %v135
  %v504 = vunpack.c.l.b16 %v136
  %v505 = vunpack.c.l.b16 %v137
  %v506 = vunpack.c.l.b16 %v138
  %v507 = vunpack.c.l.b16 %v139
  %v508 = vunpack.c.l.b16 %v140
  %v509 = vunpack.c.l.b16 %v141
  %v510 = vunpack.c.l.b16 %v142
  %v511 = vunpack.c.l.b16 %v143
  %v512 = vunpack.c.l.b16 %v144
  %v513 = vunpack.c.l.b16 %v145
  %v514 = vunpack.c.l.b16 %v146
  %v515 = vunpack.c.l.b16 %v147
  %v516 = vunpack.c.l.b16 %v148
  %v517 = vunpack.c.l.b16 %v149
  %v518 = vunpack.c.l.b16 %v150
  %v519 = vunpack.c.l.b16 %v151
  %v520 = vunpack.c.l.b16 %v152
  %v521 = vunpack.c.l.b16 %v153
  %v522 = vunpack.c.l.b16 %v154
  %v523 = vunpack.c.l.b16 %v155
  %v524 = vunpack.c.l.b16 %v156
  %v525 = vunpack.c.l.b16 %v157
  %v526 = vunpack.c.l.b16 %v158
  %v527 = vunpack.c.l.b16 %v159
  %v528 = vunpack.c.l.b16 %v160
  %v529 = vunpack.c.l.b16 %v161
  %v530 = vunpack.c.l.b16 %v162
  %v531 = vunpack.c.l.b16 %v163
  %v532 = vunpack.c.l.b16 %v164
  %v533 = vunpack.c.l.b16 %v165
  %v534 = vunpack.c.l.b16 %v166
  %v535 = vunpack.c.l.b16 %v167
  %v536 = vunpack.c.l.b16 %v168
  %v537 = vunpack.c.l.b16 %v169
  %v538 = vunpack.c.l.b16 %v170
  %v539 = vunpack.c.l.b16 %v171
  %v540 = vunpack.c.l.b16 %v172
  %v541 = vunpack.c.l.b16 %v173
  %v542 = vunpack.c.l.b16 %v174
  %v543 = vunpack.c.l.b16 %v175
  %v544 = vunpack.c.l.b16 %v176
  %v545 = vunpack.c.l.b16 %v177
  %v546 = vunpack.c.l.b16 %v178
  %v547 = vpack.c.b16 %v436, %v435
  %v548 = vpack.c.b16 %v438, %v437
  %v549 = vpack.c.b16 %v440, %v439
  %v550 = vpack.c.b16 %v442, %v441
  %v551 = vpack.c.b16 %v444, %v443
  %v552 = vpack.c.b16 %v446, %v445
  %v553 = vpack.c.b16 %v448, %v447
  %v554 = vpack.c.b16 %v450, %v449
  %v555 = vpack.c.b16 %v452, %v451
  %v556 = vpack.c.b16 %v454, %v453
  %v557 = vpack.c.b16 %v456, %v455
  %v558 = vpack.c.b16 %v458, %v457
  %v559 = vpack.c.b16 %v460, %v459
  %v560 = vpack.c.b16 %v462, %v461
  %v561 = vpack.c.b16 %v464, %v463
  %v562 = vpack.c.b16 %v466, %v465
  %v563 = vpack.c.b16 %v468, %v467
  %v564 = vpack.c.b16 %v470, %v469
  %v565 = vpack.c.b16 %v472, %v471
  %v566 = vpack.c.b16 %v474, %v473
  %v567 = vpack.c.b16 %v476, %v475
  %v568 = vpack.c.b16 %v478, %v477
  %v569 = vpack.c.b16 %v480, %v479
  %v570 = vpack.c.b16 %v482, %v481
  %v571 = vpack.c.b16 %v484, %v483
  %v572 = vpack.c.b16 %v486, %v485
  %v573 = vpack.c.b16 %v488, %v487
  %v574 = vpack.c.b16 %v490, %v489
  %v575 = vpack.c.b16 %v492, %v491
  %v576 = vpack.c.b16 %v494, %v493
  %v577 = vpack.c.b16 %v496, %v495
  %v578 = vpack.c.b16 %v498, %v497
  %v579 = vpack.c.b16 %v500, %v499
  %v580 = vpack.c.b16 %v502, %v501
  %v581 = vpack.c.b16 %v504, %v503
  %v582 = vpack.c.b16 %v506, %v505
  %v583 = vpack.c.b16 %v508, %v507
  %v584 = vpack.c.b16 %v510, %v509
  %v585 = vpack.c.b16 %v512, %v511
  %v586 = vpack.c.b16 %v514, %v513
  %v587 = vpack.c.b16 %v516, %v515
  %v588 = vpack.c.b16 %v518, %v517
  %v589 = vpack.c.b16 %v520, %v519
  %v590 = vpack.c.b16 %v522, %v521
  %v591 = vpack.c.b16 %v524, %v523
  %v592 = vpack.c.b16 %v526, %v525
  %v593 = vpack.c.b16 %v528, %v527
  %v594 = vpack.c.b16 %v530, %v529
  %v595 = vpack.c.b16 %v532, %v531
  %v596 = vpack.c.b16 %v534, %v533
  %v597 = vpack.c.b16 %v536, %v535
  %v598 = vpack.c.b16 %v538, %v537
  %v599 = vpack.c.b16 %v540, %v539
  %v600 = vpack.c.b16 %v542, %v541
  %v601 = vpack.c.b16 %v544, %v543
  %v602 = vpack.c.b16 %v546, %v545
  %659 = vmatprep.subr.bf16.mxu0 0
  %660 = vmatpush1.bf16.msra.mxu0 %v547
  %661 = vmatprep.subr.bf16.mxu0 0
  %662 = vmatpush1.bf16.msra.mxu0 %v548
  %663 = vmatprep.subr.bf16.mxu0 0
  %664 = vmatpush1.bf16.msra.mxu0 %v549
  %665 = vmatprep.subr.bf16.mxu0 0
  %666 = vmatpush1.bf16.msra.mxu0 %v550
  %667 = vmatprep.subr.bf16.mxu0 0
  %668 = vmatpush1.bf16.msra.mxu0 %v551
  %669 = vmatprep.subr.bf16.mxu0 0
  %670 = vmatpush1.bf16.msra.mxu0 %v552
  %671 = vmatprep.subr.bf16.mxu0 0
  %672 = vmatpush1.bf16.msra.mxu0 %v553
  %673 = vmatprep.subr.bf16.mxu0 0
  %674 = vmatpush1.bf16.msra.mxu0 %v554
  %675 = vmatprep.subr.bf16.mxu0 0
  %676 = vmatpush1.bf16.msra.mxu0 %v555
  %677 = vmatprep.subr.bf16.mxu0 0
  %678 = vmatpush1.bf16.msra.mxu0 %v556
  %679 = vmatprep.subr.bf16.mxu0 0
  %680 = vmatpush1.bf16.msra.mxu0 %v557
  %681 = vmatprep.subr.bf16.mxu0 0
  %682 = vmatpush1.bf16.msra.mxu0 %v558
  %683 = vmatprep.subr.bf16.mxu0 0
  %684 = vmatpush1.bf16.msra.mxu0 %v559
  %685 = vmatprep.subr.bf16.mxu0 0
  %686 = vmatpush1.bf16.msra.mxu0 %v560
  %687 = vmatprep.subr.bf16.mxu0 0
  %688 = vmatpush1.bf16.msra.mxu0 %v561
  %689 = vmatprep.subr.bf16.mxu0 0
  %690 = vmatpush1.bf16.msra.mxu0 %v562
  %691 = vmatprep.mubr.bf16.mxu0 %v268
  %692 = vmatmul.mubr.bf16.gmra.mrb[0].mxu0 %v267
  %v693 = vpop.f32.mrb[0].mxu0
  %v694 = vadd.f32 0.0, %v693
  %v695 = vpop.f32.mrb[0].mxu0
  %v696 = vpop.f32.mrb[0].mxu0
  %v697 = vadd.f32 0.0, %v696
  %v698 = vpop.f32.mrb[0].mxu0
  %699 = vmatprep.mubr.bf16.mxu0 %v275
  %700 = vmatmul.mubr.bf16.gmra.mrb[0].mxu0 %v274
  %v701 = vpop.f32.mrb[0].mxu0
  %v702 = vadd.f32 0.0, %v701
  %v703 = vpop.f32.mrb[0].mxu0
  %v704 = vpop.f32.mrb[0].mxu0
  %v705 = vadd.f32 0.0, %v704
  %v706 = vpop.f32.mrb[0].mxu0
  %707 = vmatprep.mubr.bf16.mxu0 %v282
  %708 = vmatmul.mubr.bf16.gmra.mrb[0].mxu0 %v281
  %v709 = vpop.f32.mrb[0].mxu0
  %v710 = vadd.f32 0.0, %v709
  %v711 = vpop.f32.mrb[0].mxu0
  %v712 = vpop.f32.mrb[0].mxu0
  %v713 = vadd.f32 0.0, %v712
  %v714 = vpop.f32.mrb[0].mxu0
  %715 = vmatprep.mubr.bf16.mxu0 %v289
  %716 = vmatmul.mubr.bf16.gmra.mrb[0].mxu0 %v288
  %v717 = vpop.f32.mrb[0].mxu0
  %v718 = vadd.f32 0.0, %v717
  %v719 = vpop.f32.mrb[0].mxu0
  %v720 = vpop.f32.mrb[0].mxu0
  %v721 = vadd.f32 0.0, %v720
  %v722 = vpop.f32.mrb[0].mxu0
  %723 = vdwg.mxu0
  %724 = vmatprep.subr.bf16.mxu0 0
  %725 = vmatpush1.bf16.msra.mxu0 %v563
  %726 = vmatprep.subr.bf16.mxu0 0
  %727 = vmatpush1.bf16.msra.mxu0 %v564
  %728 = vmatprep.subr.bf16.mxu0 0
  %729 = vmatpush1.bf16.msra.mxu0 %v565
  %730 = vmatprep.subr.bf16.mxu0 0
  %731 = vmatpush1.bf16.msra.mxu0 %v566
  %732 = vmatprep.subr.bf16.mxu0 0
  %733 = vmatpush1.bf16.msra.mxu0 %v567
  %734 = vmatprep.subr.bf16.mxu0 0
  %735 = vmatpush1.bf16.msra.mxu0 %v568
  %736 = vmatprep.subr.bf16.mxu0 0
  %737 = vmatpush1.bf16.msra.mxu0 %v569
  %738 = vmatprep.subr.bf16.mxu0 0
  %739 = vmatpush1.bf16.msra.mxu0 %v570
  %740 = vmatprep.subr.bf16.mxu0 0
  %741 = vmatpush1.bf16.msra.mxu0 %v571
  %742 = vmatprep.subr.bf16.mxu0 0
  %743 = vmatpush1.bf16.msra.mxu0 %v572
  %744 = vmatprep.subr.bf16.mxu0 0
  %745 = vmatpush1.bf16.msra.mxu0 %v573
  %746 = vmatprep.subr.bf16.mxu0 0
  %747 = vmatpush1.bf16.msra.mxu0 %v574
  %748 = vmatprep.subr.bf16.mxu0 0
  %749 = vmatpush1.bf16.msra.mxu0 %v575
  %750 = vmatprep.subr.bf16.mxu0 0
  %751 = vmatpush1.bf16.msra.mxu0 %v576
  %752 = vmatprep.subr.bf16.mxu0 0
  %753 = vmatpush1.bf16.msra.mxu0 %v577
  %754 = vmatprep.subr.bf16.mxu0 0
  %755 = vmatpush1.bf16.msra.mxu0 %v578
  %756 = vmatprep.mubr.bf16.mxu0 %v270
  %757 = vmatmul.mubr.bf16.gmra.mrb[0].mxu0 %v269
  %v758 = vpop.f32.mrb[0].mxu0
  %v759 = vadd.f32 %v694, %v758
  %v760 = vpop.f32.mrb[0].mxu0
  %v761 = vpop.f32.mrb[0].mxu0
  %v762 = vadd.f32 %v697, %v761
  %v763 = vpop.f32.mrb[0].mxu0
  %764 = vmatprep.mubr.bf16.mxu0 %v277
  %765 = vmatmul.mubr.bf16.gmra.mrb[0].mxu0 %v276
  %v766 = vpop.f32.mrb[0].mxu0
  %v767 = vadd.f32 %v702, %v766
  %v768 = vpop.f32.mrb[0].mxu0
  %v769 = vpop.f32.mrb[0].mxu0
  %v770 = vadd.f32 %v705, %v769
  %v771 = vpop.f32.mrb[0].mxu0
  %772 = vmatprep.mubr.bf16.mxu0 %v284
  %773 = vmatmul.mubr.bf16.gmra.mrb[0].mxu0 %v283
  %v774 = vpop.f32.mrb[0].mxu0
  %v775 = vadd.f32 %v710, %v774
  %v776 = vpop.f32.mrb[0].mxu0
  %v777 = vpop.f32.mrb[0].mxu0
  %v778 = vadd.f32 %v713, %v777
  %v779 = vpop.f32.mrb[0].mxu0
  %780 = vmatprep.mubr.bf16.mxu0 %v291
  %781 = vmatmul.mubr.bf16.gmra.mrb[0].mxu0 %v290
  %v782 = vpop.f32.mrb[0].mxu0
  %v783 = vadd.f32 %v718, %v782
  %v784 = vpop.f32.mrb[0].mxu0
  %v785 = vpop.f32.mrb[0].mxu0
  %v786 = vadd.f32 %v721, %v785
  %v787 = vpop.f32.mrb[0].mxu0
  %788 = vdwg.mxu0
  %789 = vmatprep.subr.bf16.mxu0 0
  %790 = vmatpush1.bf16.msra.mxu0 %v579
  %791 = vmatprep.subr.bf16.mxu0 0
  %792 = vmatpush1.bf16.msra.mxu0 %v580
  %793 = vmatprep.subr.bf16.mxu0 0
  %794 = vmatpush1.bf16.msra.mxu0 %v581
  %795 = vmatprep.subr.bf16.mxu0 0
  %796 = vmatpush1.bf16.msra.mxu0 %v582
  %797 = vmatprep.subr.bf16.mxu0 0
  %798 = vmatpush1.bf16.msra.mxu0 %v583
  %799 = vmatprep.subr.bf16.mxu0 0
  %800 = vmatpush1.bf16.msra.mxu0 %v584
  %801 = vmatprep.subr.bf16.mxu0 0
  %802 = vmatpush1.bf16.msra.mxu0 %v585
  %803 = vmatprep.subr.bf16.mxu0 0
  %804 = vmatpush1.bf16.msra.mxu0 %v586
  %805 = vmatprep.subr.bf16.mxu0 0
  %806 = vmatpush1.bf16.msra.mxu0 %v587
  %807 = vmatprep.subr.bf16.mxu0 0
  %808 = vmatpush1.bf16.msra.mxu0 %v588
  %809 = vmatprep.subr.bf16.mxu0 0
  %810 = vmatpush1.bf16.msra.mxu0 %v589
  %811 = vmatprep.subr.bf16.mxu0 0
  %812 = vmatpush1.bf16.msra.mxu0 %v590
  %813 = vmatprep.subr.bf16.mxu0 0
  %814 = vmatpush1.bf16.msra.mxu0 %v591
  %815 = vmatprep.subr.bf16.mxu0 0
  %816 = vmatpush1.bf16.msra.mxu0 %v592
  %817 = vmatprep.subr.bf16.mxu0 0
  %818 = vmatpush1.bf16.msra.mxu0 %v593
  %819 = vmatprep.subr.bf16.mxu0 0
  %820 = vmatpush1.bf16.msra.mxu0 %v594
  %821 = vmatprep.mubr.bf16.mxu0 %v272
  %822 = vmatmul.mubr.bf16.gmra.mrb[0].mxu0 %v271
  %v823 = vpop.f32.mrb[0].mxu0
  %v824 = vadd.f32 %v759, %v823
  %v825 = vpop.f32.mrb[0].mxu0
  %v826 = vpop.f32.mrb[0].mxu0
  %v827 = vadd.f32 %v762, %v826
  %v828 = vpop.f32.mrb[0].mxu0
  %829 = vmatprep.mubr.bf16.mxu0 %v279
  %830 = vmatmul.mubr.bf16.gmra.mrb[0].mxu0 %v278
  %v831 = vpop.f32.mrb[0].mxu0
  %v832 = vadd.f32 %v767, %v831
  %v833 = vpop.f32.mrb[0].mxu0
  %v834 = vpop.f32.mrb[0].mxu0
  %v835 = vadd.f32 %v770, %v834
  %v836 = vpop.f32.mrb[0].mxu0
  %837 = vmatprep.mubr.bf16.mxu0 %v286
  %838 = vmatmul.mubr.bf16.gmra.mrb[0].mxu0 %v285
  %v839 = vpop.f32.mrb[0].mxu0
  %v840 = vadd.f32 %v775, %v839
  %v841 = vpop.f32.mrb[0].mxu0
  %v842 = vpop.f32.mrb[0].mxu0
  %v843 = vadd.f32 %v778, %v842
  %v844 = vpop.f32.mrb[0].mxu0
  %845 = vmatprep.mubr.bf16.mxu0 %v293
  %846 = vmatmul.mubr.bf16.gmra.mrb[0].mxu0 %v292
  %v847 = vpop.f32.mrb[0].mxu0
  %v848 = vadd.f32 %v783, %v847
  %v849 = vpop.f32.mrb[0].mxu0
  %v850 = vpop.f32.mrb[0].mxu0
  %v851 = vadd.f32 %v786, %v850
  %v852 = vpop.f32.mrb[0].mxu0
  %853 = vdwg.mxu0
  %854 = vmatprep.subr.bf16.mxu0 0
  %855 = vmatpush1.bf16.msra.mxu0 %v595
  %856 = vmatprep.subr.bf16.mxu0 0
  %857 = vmatpush1.bf16.msra.mxu0 %v596
  %858 = vmatprep.subr.bf16.mxu0 0
  %859 = vmatpush1.bf16.msra.mxu0 %v597
  %860 = vmatprep.subr.bf16.mxu0 0
  %861 = vmatpush1.bf16.msra.mxu0 %v598
  %862 = vmatprep.subr.bf16.mxu0 0
  %863 = vmatpush1.bf16.msra.mxu0 %v599
  %864 = vmatprep.subr.bf16.mxu0 0
  %865 = vmatpush1.bf16.msra.mxu0 %v600
  %866 = vmatprep.subr.bf16.mxu0 0
  %867 = vmatpush1.bf16.msra.mxu0 %v601
  %868 = vmatprep.subr.bf16.mxu0 0
  %869 = vmatpush1.bf16.msra.mxu0 %v602
  %870 = vmatprep.subr.bf16.mxu0 0
  %871 = vmatpush1.bf16.msra.mxu0 0
  %872 = vmatprep.subr.bf16.mxu0 0
  %873 = vmatpush1.bf16.msra.mxu0 0
  %874 = vmatprep.subr.bf16.mxu0 0
  %875 = vmatpush1.bf16.msra.mxu0 0
  %876 = vmatprep.subr.bf16.mxu0 0
  %877 = vmatpush1.bf16.msra.mxu0 0
  %878 = vmatprep.subr.bf16.mxu0 0
  %879 = vmatpush1.bf16.msra.mxu0 0
  %880 = vmatprep.subr.bf16.mxu0 0
  %881 = vmatpush1.bf16.msra.mxu0 0
  %882 = vmatprep.subr.bf16.mxu0 0
  %883 = vmatpush1.bf16.msra.mxu0 0
  %884 = vmatprep.subr.bf16.mxu0 0
  %885 = vmatpush1.bf16.msra.mxu0 0
  %886 = vmatprep.mubr.bf16.mxu0 0
  %887 = vmatmul.mubr.bf16.gmra.mrb[0].mxu0 %v273
  %v888 = vpop.f32.mrb[0].mxu0
  %v889 = vadd.f32 %v824, %v888
  %v890 = vpop.f32.mrb[0].mxu0
  %v891 = vpop.f32.mrb[0].mxu0
  %v892 = vadd.f32 %v827, %v891
  %v893 = vpop.f32.mrb[0].mxu0
  %894 = vmatprep.mubr.bf16.mxu0 0
  %895 = vmatmul.mubr.bf16.gmra.mrb[0].mxu0 %v280
  %v896 = vpop.f32.mrb[0].mxu0
  %v897 = vadd.f32 %v832, %v896
  %v898 = vpop.f32.mrb[0].mxu0
  %v899 = vpop.f32.mrb[0].mxu0
  %v900 = vadd.f32 %v835, %v899
  %v901 = vpop.f32.mrb[0].mxu0
  %902 = vmatprep.mubr.bf16.mxu0 0
  %903 = vmatmul.mubr.bf16.gmra.mrb[0].mxu0 %v287
  %v904 = vpop.f32.mrb[0].mxu0
  %v905 = vadd.f32 %v840, %v904
  %v906 = vpop.f32.mrb[0].mxu0
  %v907 = vpop.f32.mrb[0].mxu0
  %v908 = vadd.f32 %v843, %v907
  %v909 = vpop.f32.mrb[0].mxu0
  %910 = vmatprep.mubr.bf16.mxu0 0
  %911 = vmatmul.mubr.bf16.gmra.mrb[0].mxu0 %v294
  %v912 = vpop.f32.mrb[0].mxu0
  %v913 = vadd.f32 %v848, %v912
  %v914 = vpop.f32.mrb[0].mxu0
  %v915 = vpop.f32.mrb[0].mxu0
  %v916 = vadd.f32 %v851, %v915
  %v917 = vpop.f32.mrb[0].mxu0
  %918 = vdwg.mxu0
  %v919 = vadd.f32 %v27, %v889
  %v920 = vadd.f32 %v28, %v892
  %v921 = vadd.f32 %v29, %v897
  %v922 = vadd.f32 %v30, %v900
  %v923 = vadd.f32 %v31, %v905
  %v924 = vadd.f32 %v32, %v908
  %v925 = vadd.f32 %v33, %v913
  %v926 = vadd.f32 %v34, %v916
  %927 = vst [vmem:[#allocation2] sm:$0xff] %v919
  %928 = vst [vmem:[#allocation2 + $0x8] sm:$0xff] %v920
  %929 = vst [vmem:[#allocation2 + $0x10] sm:$0xff] %v921
  %930 = vst [vmem:[#allocation2 + $0x18] sm:$0xff] %v922
  %931 = vst [vmem:[#allocation2 + $0x20] sm:$0xff] %v923
  %932 = vst [vmem:[#allocation2 + $0x28] sm:$0xff] %v924
  %933 = vst [vmem:[#allocation2 + $0x30] sm:$0xff] %v925
  %934 = vst [vmem:[#allocation2 + $0x38] sm:$0xff] %v926
  // Predicated region
  $region18: #{mrcnn_forward.11} parent=0 // pred_check
    %p935 = pneg %p15
  $region19: #{mrcnn_forward.11} parent=0 // pred_check_branch
    %937 = sbr.rel (%p935) target = $region21
  $region20: #{mrcnn_forward.11} parent=0 // pred_region
    %v938 = vld [vmem:[#allocation2] sm:$0xff]
    %v939 = vld [vmem:[#allocation2 + $0x8] sm:$0xff]
    %v940 = vld [vmem:[#allocation2 + $0x10] sm:$0xff]
    %v941 = vld [vmem:[#allocation2 + $0x18] sm:$0xff]
    %v942 = vld [vmem:[#allocation2 + $0x20] sm:$0xff]
    %v943 = vld [vmem:[#allocation2 + $0x28] sm:$0xff]
    %v944 = vld [vmem:[#allocation2 + $0x30] sm:$0xff]
    %v945 = vld [vmem:[#allocation2 + $0x38] sm:$0xff]
    %v946 = vld [vmem:[%s2] sm:$0x1]
    %v948 = vlaneseq
    %v949 = vshrl.u32 %v948, 7
    %v950 = vsub.s32 0, %v949
    %v951 = vrot.slane %v946, %v950
    %v953 = vadd.f32 %v938, %v951
    %v954 = vadd.f32 %v939, %v951
    %v955 = vadd.f32 %v940, %v951
    %v956 = vadd.f32 %v941, %v951
    %v957 = vadd.f32 %v942, %v951
    %v958 = vadd.f32 %v943, %v951
    %v959 = vadd.f32 %v944, %v951
    %v960 = vadd.f32 %v945, %v951
    %961 = vst [vmem:[%s3] sm:$0xff] %v953
    %962 = vst [vmem:[%s3 + $0x8] sm:$0xff] %v954
    %963 = vst [vmem:[%s3 + $0x10] sm:$0xff] %v955
    %964 = vst [vmem:[%s3 + $0x18] sm:$0xff] %v956
    %965 = vst [vmem:[%s3 + $0x20] sm:$0xff] %v957
    %966 = vst [vmem:[%s3 + $0x28] sm:$0xff] %v958
    %967 = vst [vmem:[%s3 + $0x30] sm:$0xff] %v959
    %968 = vst [vmem:[%s3 + $0x38] sm:$0xff] %v960
  $region21: #{mrcnn_forward.11} parent=0 // pred_fallthru
    _
  // Predicated region
  $region22: #{mrcnn_forward.11} parent=0 // pred_check
    _
  $region23: #{mrcnn_forward.11} parent=0 // pred_check_branch
    %970 = sbr.rel (0) target = $region25
  $region24: #{mrcnn_forward.11} parent=0 // pred_region
    _
  $region25: #{mrcnn_forward.11} parent=0 // pred_fallthru
    _
  // Predicated region
  $region26: #{mrcnn_forward.11} parent=0 // pred_check
    _
  $region27: #{mrcnn_forward.11} parent=0 // pred_check_branch
    %972 = sbr.rel (0) target = $region29
  $region28: #{mrcnn_forward.11} parent=0 // pred_region
    _
  $region29: #{mrcnn_forward.11} parent=0 // pred_fallthru
    _

// kernel: mrcnn_forward.6
$region0: #{mrcnn_forward.6}
  #allocation0 [shape = 'u32[]', space=smem, size = 0x4, offset = 0x4, fixed_abs, tag = 'smem constant byte address 0x4 - core index']
  #allocation1 [shape = 'u32[144,128]{1,0:T(1,128)}', space=vmem, size = 0x12000, scoped, tag = 'internal scratch']
  #allocation2 [shape = 'f32[256,128]{1,0:T(8,128)}', space=vmem, size = 0x20000, scoped, tag = 'scratch operand']
  %s0 = inlined_call_operand.vmem [shape: bf16[1024,128], index: 0, kind: input, shape index: {}]
  %s1 = inlined_call_operand.vmem [shape: bf16[128,128], index: 1, kind: input, shape index: {}]
  %s2 = inlined_call_operand.vmem [shape: f32[1,128], index: 2, kind: input, shape index: {}]
  %s3 = inlined_call_operand.vmem [shape: f32[1024,128], index: 3, kind: output, shape index: {}]
  %s4 = sld [smem:[#allocation0]]
  $region53: #{mrcnn_forward.6} parent=0
    _
  %s6 = ssub.s32 1, %s4
  %s7 = scalar_select 0, %s6, %s4
  loop: start=0, step=1, limit=6
  $region2: #{mrcnn_forward.6} parent=0 // loop_pre_header
    _
  $region3: #{mrcnn_forward.6} parent=0 // loop_header
    %s9 = sphi 0, %s13
    %p10 = scmp.ge.s32.totalorder %s9, 6
    %s16 = sphi 0, %s35
    %s17 = sphi 0, %s31
    %s18 = sphi 0, %s27
    %s19 = sphi 0, %s16
    %s20 = sphi 0, %s17
    %s21 = sphi 0, %s18
    %s22 = sphi 0, %s19
    %s23 = sphi 0, %s20
    %s24 = sphi 0, %s21
    %s40 = sphi 0, %s42
    %s43 = sphi 0, %s40
    %s44 = sphi 0, %s43
    %s60 = sphi 0, %s44
    %s68 = sphi 0, %s70
    %s71 = sphi 0, %s68
    %s72 = sphi 0, %s71
    %s88 = sphi 0, %s72
    %s94 = sphi 0, %s96
    %s97 = sphi 0, %s94
    %s98 = sphi 0, %s97
    %s114 = sphi 0, %s98
    %s122 = sphi 0, %s124
    %s125 = sphi 0, %s122
    %s126 = sphi 0, %s125
    %s142 = sphi 0, %s126
  $region4: #{mrcnn_forward.6} parent=0 // loop_header_branch
    %12 = sbr.rel (%p10) target = $region8
  $region5: #{mrcnn_forward.6} parent=0 // loop_body
    %s14 = ssub.s32 %s9, 1
    %s15 = ssub.s32 %s9, 2
    %s25 = sadd.s32 1, %s18
    %p26 = scmp.ge.s32.totalorder %s25, 1
    %s27 = scalar_select %p26, 0, %s25
    %s28 = sadd.s32 1, %s17
    %s29 = scalar_select %p26, %s28, %s17
    %p30 = scmp.ge.s32.totalorder %s29, 1
    %s31 = scalar_select %p30, 0, %s29
    %s32 = sadd.s32 1, %s16
    %s33 = scalar_select %p30, %s32, %s16
    %p34 = scmp.ge.s32.totalorder %s33, 4
    %s35 = scalar_select %p34, 0, %s33
    %s36 = ssub.s32 %s16, %s35
    %s37 = ssub.s32 %s18, %s27
    %s38 = sor.u32 %s36, %s37
    %p39 = scmp.eq.s32.totalorder %s38, 0
    %s41 = sadd.s32 %s40, 1
    %s42 = scalar_select %p39, %s40, %s41
    %p45 = pneg %p39
    %p46 = scmp.eq.s32.totalorder %s9, 3
    %p47 = por %p45, %p46
    %p48 = scmp.ne.s32.totalorder %s40, %s43
    %p49 = scmp.eq.s32.totalorder %s9, 0
    %p50 = por %p48, %p49
    %p51 = scmp.ne.s32.totalorder %s40, %s43
    %p52 = scmp.eq.s32.totalorder %s14, 3
    %p53 = por %p51, %p52
    %p54 = scmp.ne.s32.totalorder %s43, %s44
    %p55 = scmp.eq.s32.totalorder %s14, 0
    %p56 = por %p54, %p55
    %p57 = scmp.ne.s32.totalorder %s43, %s44
    %p58 = scmp.eq.s32.totalorder %s15, 3
    %p59 = por %p57, %p58
    %p61 = scmp.ne.s32.totalorder %s44, %s60
    %p62 = scmp.eq.s32.totalorder %s15, 0
    %p63 = por %p61, %p62
    %s64 = ssub.s32 %s18, %s27
    %s65 = ssub.s32 %s17, %s31
    %s66 = sor.u32 %s64, %s65
    %p67 = scmp.eq.s32.totalorder %s66, 0
    %s69 = sadd.s32 %s68, 1
    %s70 = scalar_select %p67, %s68, %s69
    %p73 = pneg %p67
    %p74 = scmp.eq.s32.totalorder %s9, 3
    %p75 = por %p73, %p74
    %p76 = scmp.ne.s32.totalorder %s68, %s71
    %p77 = scmp.eq.s32.totalorder %s9, 0
    %p78 = por %p76, %p77
    %p79 = scmp.ne.s32.totalorder %s68, %s71
    %p80 = scmp.eq.s32.totalorder %s14, 3
    %p81 = por %p79, %p80
    %p82 = scmp.ne.s32.totalorder %s71, %s72
    %p83 = scmp.eq.s32.totalorder %s14, 0
    %p84 = por %p82, %p83
    %p85 = scmp.ne.s32.totalorder %s71, %s72
    %p86 = scmp.eq.s32.totalorder %s15, 3
    %p87 = por %p85, %p86
    %p89 = scmp.ne.s32.totalorder %s72, %s88
    %p90 = scmp.eq.s32.totalorder %s15, 0
    %p91 = por %p89, %p90
    %s92 = ssub.s32 %s17, %s31
    %p93 = scmp.eq.s32.totalorder %s92, 0
    %s95 = sadd.s32 %s94, 1
    %s96 = scalar_select %p93, %s94, %s95
    %p99 = pneg %p93
    %p100 = scmp.eq.s32.totalorder %s9, 3
    %p101 = por %p99, %p100
    %p102 = scmp.ne.s32.totalorder %s94, %s97
    %p103 = scmp.eq.s32.totalorder %s9, 0
    %p104 = por %p102, %p103
    %p105 = scmp.ne.s32.totalorder %s94, %s97
    %p106 = scmp.eq.s32.totalorder %s14, 3
    %p107 = por %p105, %p106
    %p108 = scmp.ne.s32.totalorder %s97, %s98
    %p109 = scmp.eq.s32.totalorder %s14, 0
    %p110 = por %p108, %p109
    %p111 = scmp.ne.s32.totalorder %s97, %s98
    %p112 = scmp.eq.s32.totalorder %s15, 3
    %p113 = por %p111, %p112
    %p115 = scmp.ne.s32.totalorder %s98, %s114
    %p116 = scmp.eq.s32.totalorder %s15, 0
    %p117 = por %p115, %p116
    %s118 = ssub.s32 %s16, %s35
    %s119 = ssub.s32 %s17, %s31
    %s120 = sor.u32 %s118, %s119
    %p121 = scmp.eq.s32.totalorder %s120, 0
    %s123 = sadd.s32 %s122, 1
    %s124 = scalar_select %p121, %s122, %s123
    %p127 = pneg %p121
    %p128 = scmp.eq.s32.totalorder %s9, 3
    %p129 = por %p127, %p128
    %p130 = scmp.ne.s32.totalorder %s122, %s125
    %p131 = scmp.eq.s32.totalorder %s9, 0
    %p132 = por %p130, %p131
    %p133 = scmp.ne.s32.totalorder %s122, %s125
    %p134 = scmp.eq.s32.totalorder %s14, 3
    %p135 = por %p133, %p134
    %p136 = scmp.ne.s32.totalorder %s125, %s126
    %p137 = scmp.eq.s32.totalorder %s14, 0
    %p138 = por %p136, %p137
    %p139 = scmp.ne.s32.totalorder %s125, %s126
    %p140 = scmp.eq.s32.totalorder %s15, 3
    %p141 = por %p139, %p140
    %p143 = scmp.ne.s32.totalorder %s126, %s142
    %p144 = scmp.eq.s32.totalorder %s15, 0
    %p145 = por %p143, %p144
    %p146 = scmp.le.s32.totalorder 1, %s9
    %p147 = scmp.lt.s32.totalorder %s9, 5
    %p148 = pnand %p146, %p147
    %p149 = pneg %p148
    // Predicated region
    $region9: #{mrcnn_forward.6} parent=5 // pred_check
      _
    $region10: #{mrcnn_forward.6} parent=5 // pred_check_branch
      %151 = sbr.rel (%p148) target = $region12
    $region11: #{mrcnn_forward.6} parent=5 // pred_region
      %s152 = ssub.s32 %s9, 1
      // Predicated region
      $region13: #{mrcnn_forward.6} parent=11 // pred_check
        %p153 = pneg %p84
      $region14: #{mrcnn_forward.6} parent=11 // pred_check_branch
        %155 = sbr.rel (%p153) target = $region16
      $region15: #{mrcnn_forward.6} parent=11 // pred_region
        %s156 = smul.u32 16, %s21
        %p157 = scmp.lt.s32.totalorder %s156, 15
        %s158 = scalar_select %p157, %s156, 15
        %p159 = scmp.lt.s32.totalorder %s20, 0
        %s160 = scalar_select %p159, %s20, 0
        %s161 = sadd.s32 %s160, %s158
        %s162 = smul.addr %s161, 4
        %s163 = scalar_lea.vmem %s1, %s162
        %s164 = smul.u32 16, %s21
      $region16: #{mrcnn_forward.6} parent=11 // pred_fallthru
        _
      // Predicated region
      $region17: #{mrcnn_forward.6} parent=11 // pred_check
        %p165 = pneg %p110
      $region18: #{mrcnn_forward.6} parent=11 // pred_check_branch
        %167 = sbr.rel (%p165) target = $region20
      $region19: #{mrcnn_forward.6} parent=11 // pred_region
        %p168 = scmp.lt.s32.totalorder %s20, 0
        %s169 = scalar_select %p168, %s20, 0
        %s170 = scalar_lea.vmem %s2, %s169
      $region20: #{mrcnn_forward.6} parent=11 // pred_fallthru
        _
    $region12: #{mrcnn_forward.6} parent=5 // pred_fallthru
      _
    %p171 = scmp.lt.s32.totalorder %s9, 4
    // Predicated region
    $region21: #{mrcnn_forward.6} parent=5 // pred_check
      %p172 = pneg %p171
    $region22: #{mrcnn_forward.6} parent=5 // pred_check_branch
      %174 = sbr.rel (%p172) target = $region24
    $region23: #{mrcnn_forward.6} parent=5 // pred_region
      // Predicated region
      $region25: #{mrcnn_forward.6} parent=23 // pred_check
        %p175 = pneg %p50
      $region26: #{mrcnn_forward.6} parent=23 // pred_check_branch
        %177 = sbr.rel (%p175) target = $region28
      $region27: #{mrcnn_forward.6} parent=23 // pred_region
        %s178 = smul.u32 32, %s16
        %p179 = scmp.lt.s32.totalorder %s178, 127
        %s180 = scalar_select %p179, %s178, 127
        %p181 = scmp.lt.s32.totalorder %s18, 0
        %s182 = scalar_select %p181, %s18, 0
        %s183 = sadd.s32 %s182, %s180
        %s184 = smul.addr %s183, 4
        %s185 = scalar_lea.vmem %s0, %s184
        %s186 = smul.u32 32, %s16
      $region28: #{mrcnn_forward.6} parent=23 // pred_fallthru
        _
    $region24: #{mrcnn_forward.6} parent=5 // pred_fallthru
      _
    %p187 = scmp.le.s32.totalorder 1, %s9
    %p188 = scmp.lt.s32.totalorder %s9, 5
    %p189 = pnand %p187, %p188
    %p190 = pneg %p189
    // Predicated region
    $region29: #{mrcnn_forward.6} parent=5 // pred_check
      _
    $region30: #{mrcnn_forward.6} parent=5 // pred_check_branch
      %192 = sbr.rel (%p189) target = $region32
    $region31: #{mrcnn_forward.6} parent=5 // pred_region
      %s193 = ssub.s32 %s9, 1
      %s194 = smul.u32 32, %s19
      %p195 = scmp.lt.s32.totalorder %s194, 127
      %s196 = scalar_select %p195, %s194, 127
      %p197 = scmp.lt.s32.totalorder %s21, 0
      %s198 = scalar_select %p197, %s21, 0
      %s199 = sadd.s32 %s198, %s196
      %s200 = smul.addr %s199, 4
      %s201 = scalar_lea.vmem %s0, %s200
      %p202 = pneg %p56
      %p203 = pneg %p53
      %s204 = smul.u32 16, %s21
      %p205 = scmp.lt.s32.totalorder %s204, 15
      %s206 = scalar_select %p205, %s204, 15
      %p207 = scmp.lt.s32.totalorder %s20, 0
      %s208 = scalar_select %p207, %s20, 0
      %s209 = sadd.s32 %s208, %s206
      %s210 = smul.addr %s209, 4
      %s211 = scalar_lea.vmem %s1, %s210
      %p212 = pneg %p84
      %p213 = pneg %p81
      %p214 = scmp.lt.s32.totalorder %s20, 0
      %s215 = scalar_select %p214, %s20, 0
      %s216 = scalar_lea.vmem %s2, %s215
      %p217 = pneg %p110
      %p218 = pneg %p107
      %p219 = pneg %p138
      %p220 = pneg %p135
      %s221 = smul.u32 32, %s19
      %p222 = scmp.lt.s32.totalorder %s221, 127
      %s223 = scalar_select %p222, %s221, 127
      %p224 = scmp.lt.s32.totalorder %s20, 0
      %s225 = scalar_select %p224, %s20, 0
      %s226 = sadd.s32 %s225, %s223
      %s227 = smul.addr %s226, 8
      %s228 = scalar_lea.vmem %s3, %s227
      %s229 = smul.u32 32, %s19
      %p230 = scmp.lt.s32.totalorder %s229, 127
      %s231 = scalar_select %p230, %s229, 127
      %p232 = scmp.lt.s32.totalorder %s21, 0
      %s233 = scalar_select %p232, %s21, 0
      %s234 = sadd.s32 %s233, %s231
      %s235 = smul.addr %s234, 4
      %s236 = scalar_lea.vmem %s0, %s235
      %s237 = smul.u32 32, %s19
      %s238 = smul.u32 16, %s21
      %p239 = scmp.lt.s32.totalorder %s238, 15
      %s240 = scalar_select %p239, %s238, 15
      %p241 = scmp.lt.s32.totalorder %s20, 0
      %s242 = scalar_select %p241, %s20, 0
      %s243 = sadd.s32 %s242, %s240
      %s244 = smul.addr %s243, 4
      %s245 = scalar_lea.vmem %s1, %s244
      %s246 = smul.u32 16, %s21
      %p247 = scmp.lt.s32.totalorder %s20, 0
      %s248 = scalar_select %p247, %s20, 0
      %s249 = scalar_lea.vmem %s2, %s248
      %s250 = smul.u32 32, %s19
      %p251 = scmp.lt.s32.totalorder %s250, 127
      %s252 = scalar_select %p251, %s250, 127
      %p253 = scmp.lt.s32.totalorder %s20, 0
      %s254 = scalar_select %p253, %s20, 0
      %s255 = sadd.s32 %s254, %s252
      %s256 = smul.addr %s255, 8
      %s257 = scalar_lea.vmem %s3, %s256
      %s258 = smul.u32 32, %s19
      %p260 = scmp.eq.s32.totalorder %s21, 0
      // Predicated region
      $region33: #{mrcnn_forward.6} parent=31 // pred_check
        %p261 = pneg %p260
      $region34: #{mrcnn_forward.6} parent=31 // pred_check_branch
        %263 = sbr.rel (%p261) target = $region36
      $region35: #{mrcnn_forward.6} parent=31 // pred_region
        %264 = vst [vmem:[#allocation2] sm:$0xff] 0.0
        %265 = vst [vmem:[#allocation2 + $0x8] sm:$0xff] 0.0
        %266 = vst [vmem:[#allocation2 + $0x10] sm:$0xff] 0.0
        %267 = vst [vmem:[#allocation2 + $0x18] sm:$0xff] 0.0
        %268 = vst [vmem:[#allocation2 + $0x20] sm:$0xff] 0.0
        %269 = vst [vmem:[#allocation2 + $0x28] sm:$0xff] 0.0
        %270 = vst [vmem:[#allocation2 + $0x30] sm:$0xff] 0.0
        %271 = vst [vmem:[#allocation2 + $0x38] sm:$0xff] 0.0
        %272 = vst [vmem:[#allocation2 + $0x40] sm:$0xff] 0.0
        %273 = vst [vmem:[#allocation2 + $0x48] sm:$0xff] 0.0
        %274 = vst [vmem:[#allocation2 + $0x50] sm:$0xff] 0.0
        %275 = vst [vmem:[#allocation2 + $0x58] sm:$0xff] 0.0
        %276 = vst [vmem:[#allocation2 + $0x60] sm:$0xff] 0.0
        %277 = vst [vmem:[#allocation2 + $0x68] sm:$0xff] 0.0
        %278 = vst [vmem:[#allocation2 + $0x70] sm:$0xff] 0.0
        %279 = vst [vmem:[#allocation2 + $0x78] sm:$0xff] 0.0
        %280 = vst [vmem:[#allocation2 + $0x80] sm:$0xff] 0.0
        %281 = vst [vmem:[#allocation2 + $0x88] sm:$0xff] 0.0
        %282 = vst [vmem:[#allocation2 + $0x90] sm:$0xff] 0.0
        %283 = vst [vmem:[#allocation2 + $0x98] sm:$0xff] 0.0
        %284 = vst [vmem:[#allocation2 + $0xa0] sm:$0xff] 0.0
        %285 = vst [vmem:[#allocation2 + $0xa8] sm:$0xff] 0.0
        %286 = vst [vmem:[#allocation2 + $0xb0] sm:$0xff] 0.0
        %287 = vst [vmem:[#allocation2 + $0xb8] sm:$0xff] 0.0
        %288 = vst [vmem:[#allocation2 + $0xc0] sm:$0xff] 0.0
        %289 = vst [vmem:[#allocation2 + $0xc8] sm:$0xff] 0.0
        %290 = vst [vmem:[#allocation2 + $0xd0] sm:$0xff] 0.0
        %291 = vst [vmem:[#allocation2 + $0xd8] sm:$0xff] 0.0
        %292 = vst [vmem:[#allocation2 + $0xe0] sm:$0xff] 0.0
        %293 = vst [vmem:[#allocation2 + $0xe8] sm:$0xff] 0.0
        %294 = vst [vmem:[#allocation2 + $0xf0] sm:$0xff] 0.0
        %295 = vst [vmem:[#allocation2 + $0xf8] sm:$0xff] 0.0
      $region36: #{mrcnn_forward.6} parent=31 // pred_fallthru
        _
      %v296 = vld [vmem:[#allocation2] sm:$0xff]
      %v297 = vld [vmem:[#allocation2 + $0x8] sm:$0xff]
      %v298 = vld [vmem:[#allocation2 + $0x10] sm:$0xff]
      %v299 = vld [vmem:[#allocation2 + $0x18] sm:$0xff]
      %v300 = vld [vmem:[#allocation2 + $0x20] sm:$0xff]
      %v301 = vld [vmem:[#allocation2 + $0x28] sm:$0xff]
      %v302 = vld [vmem:[#allocation2 + $0x30] sm:$0xff]
      %v303 = vld [vmem:[#allocation2 + $0x38] sm:$0xff]
      %v304 = vld [vmem:[#allocation2 + $0x40] sm:$0xff]
      %v305 = vld [vmem:[#allocation2 + $0x48] sm:$0xff]
      %v306 = vld [vmem:[#allocation2 + $0x50] sm:$0xff]
      %v307 = vld [vmem:[#allocation2 + $0x58] sm:$0xff]
      %v308 = vld [vmem:[#allocation2 + $0x60] sm:$0xff]
      %v309 = vld [vmem:[#allocation2 + $0x68] sm:$0xff]
      %v310 = vld [vmem:[#allocation2 + $0x70] sm:$0xff]
      %v311 = vld [vmem:[#allocation2 + $0x78] sm:$0xff]
      %v312 = vld [vmem:[#allocation2 + $0x80] sm:$0xff]
      %v313 = vld [vmem:[#allocation2 + $0x88] sm:$0xff]
      %v314 = vld [vmem:[#allocation2 + $0x90] sm:$0xff]
      %v315 = vld [vmem:[#allocation2 + $0x98] sm:$0xff]
      %v316 = vld [vmem:[#allocation2 + $0xa0] sm:$0xff]
      %v317 = vld [vmem:[#allocation2 + $0xa8] sm:$0xff]
      %v318 = vld [vmem:[#allocation2 + $0xb0] sm:$0xff]
      %v319 = vld [vmem:[#allocation2 + $0xb8] sm:$0xff]
      %v320 = vld [vmem:[#allocation2 + $0xc0] sm:$0xff]
      %v321 = vld [vmem:[#allocation2 + $0xc8] sm:$0xff]
      %v322 = vld [vmem:[#allocation2 + $0xd0] sm:$0xff]
      %v323 = vld [vmem:[#allocation2 + $0xd8] sm:$0xff]
      %v324 = vld [vmem:[#allocation2 + $0xe0] sm:$0xff]
      %v325 = vld [vmem:[#allocation2 + $0xe8] sm:$0xff]
      %v326 = vld [vmem:[#allocation2 + $0xf0] sm:$0xff]
      %v327 = vld [vmem:[#allocation2 + $0xf8] sm:$0xff]
      %v328 = vld [vmem:[%s236] sm:$0xf]
      %v329 = vld [vmem:[%s236 + $0x4] sm:$0xf]
      %v330 = vld [vmem:[%s236 + $0x8] sm:$0xf]
      %v331 = vld [vmem:[%s236 + $0xc] sm:$0xf]
      %v332 = vld [vmem:[%s236 + $0x10] sm:$0xf]
      %v333 = vld [vmem:[%s236 + $0x14] sm:$0xf]
      %v334 = vld [vmem:[%s236 + $0x18] sm:$0xf]
      %v335 = vld [vmem:[%s236 + $0x1c] sm:$0xf]
      %v336 = vld [vmem:[%s236 + $0x20] sm:$0xf]
      %v337 = vld [vmem:[%s236 + $0x24] sm:$0xf]
      %v338 = vld [vmem:[%s236 + $0x28] sm:$0xf]
      %v339 = vld [vmem:[%s236 + $0x2c] sm:$0xf]
      %v340 = vld [vmem:[%s236 + $0x30] sm:$0xf]
      %v341 = vld [vmem:[%s236 + $0x34] sm:$0xf]
      %v342 = vld [vmem:[%s236 + $0x38] sm:$0xf]
      %v343 = vld [vmem:[%s236 + $0x3c] sm:$0xf]
      %v344 = vld [vmem:[%s236 + $0x40] sm:$0xf]
      %v345 = vld [vmem:[%s236 + $0x44] sm:$0xf]
      %v346 = vld [vmem:[%s236 + $0x48] sm:$0xf]
      %v347 = vld [vmem:[%s236 + $0x4c] sm:$0xf]
      %v348 = vld [vmem:[%s236 + $0x50] sm:$0xf]
      %v349 = vld [vmem:[%s236 + $0x54] sm:$0xf]
      %v350 = vld [vmem:[%s236 + $0x58] sm:$0xf]
      %v351 = vld [vmem:[%s236 + $0x5c] sm:$0xf]
      %v352 = vld [vmem:[%s236 + $0x60] sm:$0xf]
      %v353 = vld [vmem:[%s236 + $0x64] sm:$0xf]
      %v354 = vld [vmem:[%s236 + $0x68] sm:$0xf]
      %v355 = vld [vmem:[%s236 + $0x6c] sm:$0xf]
      %v356 = vld [vmem:[%s236 + $0x70] sm:$0xf]
      %v357 = vld [vmem:[%s236 + $0x74] sm:$0xf]
      %v358 = vld [vmem:[%s236 + $0x78] sm:$0xf]
      %v359 = vld [vmem:[%s236 + $0x7c] sm:$0xf]
      %v360 = vld [vmem:[%s245] sm:$0xf]
      %v361 = vld [vmem:[%s245 + $0x4] sm:$0xf]
      %v362 = vld [vmem:[%s245 + $0x8] sm:$0xf]
      %v363 = vld [vmem:[%s245 + $0xc] sm:$0xf]
      %v364 = vld [vmem:[%s245 + $0x10] sm:$0xf]
      %v365 = vld [vmem:[%s245 + $0x14] sm:$0xf]
      %v366 = vld [vmem:[%s245 + $0x18] sm:$0xf]
      %v367 = vld [vmem:[%s245 + $0x1c] sm:$0xf]
      %v368 = vld [vmem:[%s245 + $0x20] sm:$0xf]
      %v369 = vld [vmem:[%s245 + $0x24] sm:$0xf]
      %v370 = vld [vmem:[%s245 + $0x28] sm:$0xf]
      %v371 = vld [vmem:[%s245 + $0x2c] sm:$0xf]
      %v372 = vld [vmem:[%s245 + $0x30] sm:$0xf]
      %v373 = vld [vmem:[%s245 + $0x34] sm:$0xf]
      %v374 = vld [vmem:[%s245 + $0x38] sm:$0xf]
      %v375 = vld [vmem:[%s245 + $0x3c] sm:$0xf]
      %v408 = vunpack.c.l.b16 %v328
      %v409 = vunpack.c.l.b16 %v329
      %v410 = vunpack.c.l.b16 %v330
      %v411 = vunpack.c.l.b16 %v331
      %v412 = vunpack.c.l.b16 %v332
      %v413 = vunpack.c.l.b16 %v333
      %v414 = vunpack.c.l.b16 %v334
      %v415 = vunpack.c.l.b16 %v335
      %v416 = vunpack.c.l.b16 %v336
      %v417 = vunpack.c.l.b16 %v337
      %v418 = vunpack.c.l.b16 %v338
      %v419 = vunpack.c.l.b16 %v339
      %v420 = vunpack.c.l.b16 %v340
      %v421 = vunpack.c.l.b16 %v341
      %v422 = vunpack.c.l.b16 %v342
      %v423 = vunpack.c.l.b16 %v343
      %v424 = vunpack.c.l.b16 %v344
      %v425 = vunpack.c.l.b16 %v345
      %v426 = vunpack.c.l.b16 %v346
      %v427 = vunpack.c.l.b16 %v347
      %v428 = vunpack.c.l.b16 %v348
      %v429 = vunpack.c.l.b16 %v349
      %v430 = vunpack.c.l.b16 %v350
      %v431 = vunpack.c.l.b16 %v351
      %v432 = vunpack.c.l.b16 %v352
      %v433 = vunpack.c.l.b16 %v353
      %v434 = vunpack.c.l.b16 %v354
      %v435 = vunpack.c.l.b16 %v355
      %v436 = vunpack.c.l.b16 %v356
      %v437 = vunpack.c.l.b16 %v357
      %v438 = vunpack.c.l.b16 %v358
      %v439 = vunpack.c.l.b16 %v359
      %v440 = vpack.c.b16 %v409, %v408
      %v441 = vpack.c.b16 %v411, %v410
      %v442 = vpack.c.b16 %v413, %v412
      %v443 = vpack.c.b16 %v415, %v414
      %v444 = vpack.c.b16 %v417, %v416
      %v445 = vpack.c.b16 %v419, %v418
      %v446 = vpack.c.b16 %v421, %v420
      %v447 = vpack.c.b16 %v423, %v422
      %v448 = vpack.c.b16 %v425, %v424
      %v449 = vpack.c.b16 %v427, %v426
      %v450 = vpack.c.b16 %v429, %v428
      %v451 = vpack.c.b16 %v431, %v430
      %v452 = vpack.c.b16 %v433, %v432
      %v453 = vpack.c.b16 %v435, %v434
      %v454 = vpack.c.b16 %v437, %v436
      %v455 = vpack.c.b16 %v439, %v438
      %v488 = vunpack.c.l.b16 %v360
      %v489 = vunpack.c.l.b16 %v361
      %v490 = vunpack.c.l.b16 %v362
      %v491 = vunpack.c.l.b16 %v363
      %v492 = vunpack.c.l.b16 %v364
      %v493 = vunpack.c.l.b16 %v365
      %v494 = vunpack.c.l.b16 %v366
      %v495 = vunpack.c.l.b16 %v367
      %v496 = vunpack.c.l.b16 %v368
      %v497 = vunpack.c.l.b16 %v369
      %v498 = vunpack.c.l.b16 %v370
      %v499 = vunpack.c.l.b16 %v371
      %v500 = vunpack.c.l.b16 %v372
      %v501 = vunpack.c.l.b16 %v373
      %v502 = vunpack.c.l.b16 %v374
      %v503 = vunpack.c.l.b16 %v375
      %v504 = vpack.c.b16 %v489, %v488
      %v505 = vpack.c.b16 %v491, %v490
      %v506 = vpack.c.b16 %v493, %v492
      %v507 = vpack.c.b16 %v495, %v494
      %v508 = vpack.c.b16 %v497, %v496
      %v509 = vpack.c.b16 %v499, %v498
      %v510 = vpack.c.b16 %v501, %v500
      %v511 = vpack.c.b16 %v503, %v502
      %520 = vmatprep.subr.bf16.mxu0 0
      %521 = vmatpush1.bf16.msra.mxu0 %v504
      %522 = vmatprep.subr.bf16.mxu0 0
      %523 = vmatpush1.bf16.msra.mxu0 %v505
      %524 = vmatprep.subr.bf16.mxu0 0
      %525 = vmatpush1.bf16.msra.mxu0 %v506
      %526 = vmatprep.subr.bf16.mxu0 0
      %527 = vmatpush1.bf16.msra.mxu0 %v507
      %528 = vmatprep.subr.bf16.mxu0 0
      %529 = vmatpush1.bf16.msra.mxu0 %v508
      %530 = vmatprep.subr.bf16.mxu0 0
      %531 = vmatpush1.bf16.msra.mxu0 %v509
      %532 = vmatprep.subr.bf16.mxu0 0
      %533 = vmatpush1.bf16.msra.mxu0 %v510
      %534 = vmatprep.subr.bf16.mxu0 0
      %535 = vmatpush1.bf16.msra.mxu0 %v511
      %536 = vmatprep.subr.bf16.mxu0 0
      %537 = vmatpush1.bf16.msra.mxu0 0
      %538 = vmatprep.subr.bf16.mxu0 0
      %539 = vmatpush1.bf16.msra.mxu0 0
      %540 = vmatprep.subr.bf16.mxu0 0
      %541 = vmatpush1.bf16.msra.mxu0 0
      %542 = vmatprep.subr.bf16.mxu0 0
      %543 = vmatpush1.bf16.msra.mxu0 0
      %544 = vmatprep.subr.bf16.mxu0 0
      %545 = vmatpush1.bf16.msra.mxu0 0
      %546 = vmatprep.subr.bf16.mxu0 0
      %547 = vmatpush1.bf16.msra.mxu0 0
      %548 = vmatprep.subr.bf16.mxu0 0
      %549 = vmatpush1.bf16.msra.mxu0 0
      %550 = vmatprep.subr.bf16.mxu0 0
      %551 = vmatpush1.bf16.msra.mxu0 0
      %552 = vmatprep.mubr.bf16.mxu0 0
      %553 = vmatmul.mubr.bf16.gmra.mrb[0].mxu0 %v440
      %v554 = vpop.f32.mrb[0].mxu0
      %v555 = vadd.f32 0.0, %v554
      %v556 = vpop.f32.mrb[0].mxu0
      %v557 = vpop.f32.mrb[0].mxu0
      %v558 = vadd.f32 0.0, %v557
      %v559 = vpop.f32.mrb[0].mxu0
      %560 = vmatprep.mubr.bf16.mxu0 0
      %561 = vmatmul.mubr.bf16.gmra.mrb[0].mxu0 %v441
      %v562 = vpop.f32.mrb[0].mxu0
      %v563 = vadd.f32 0.0, %v562
      %v564 = vpop.f32.mrb[0].mxu0
      %v565 = vpop.f32.mrb[0].mxu0
      %v566 = vadd.f32 0.0, %v565
      %v567 = vpop.f32.mrb[0].mxu0
      %568 = vmatprep.mubr.bf16.mxu0 0
      %569 = vmatmul.mubr.bf16.gmra.mrb[0].mxu0 %v442
      %v570 = vpop.f32.mrb[0].mxu0
      %v571 = vadd.f32 0.0, %v570
      %v572 = vpop.f32.mrb[0].mxu0
      %v573 = vpop.f32.mrb[0].mxu0
      %v574 = vadd.f32 0.0, %v573
      %v575 = vpop.f32.mrb[0].mxu0
      %576 = vmatprep.mubr.bf16.mxu0 0
      %577 = vmatmul.mubr.bf16.gmra.mrb[0].mxu0 %v443
      %v578 = vpop.f32.mrb[0].mxu0
      %v579 = vadd.f32 0.0, %v578
      %v580 = vpop.f32.mrb[0].mxu0
      %v581 = vpop.f32.mrb[0].mxu0
      %v582 = vadd.f32 0.0, %v581
      %v583 = vpop.f32.mrb[0].mxu0
      %584 = vmatprep.mubr.bf16.mxu0 0
      %585 = vmatmul.mubr.bf16.gmra.mrb[0].mxu0 %v444
      %v586 = vpop.f32.mrb[0].mxu0
      %v587 = vadd.f32 0.0, %v586
      %v588 = vpop.f32.mrb[0].mxu0
      %v589 = vpop.f32.mrb[0].mxu0
      %v590 = vadd.f32 0.0, %v589
      %v591 = vpop.f32.mrb[0].mxu0
      %592 = vmatprep.mubr.bf16.mxu0 0
      %593 = vmatmul.mubr.bf16.gmra.mrb[0].mxu0 %v445
      %v594 = vpop.f32.mrb[0].mxu0
      %v595 = vadd.f32 0.0, %v594
      %v596 = vpop.f32.mrb[0].mxu0
      %v597 = vpop.f32.mrb[0].mxu0
      %v598 = vadd.f32 0.0, %v597
      %v599 = vpop.f32.mrb[0].mxu0
      %600 = vmatprep.mubr.bf16.mxu0 0
      %601 = vmatmul.mubr.bf16.gmra.mrb[0].mxu0 %v446
      %v602 = vpop.f32.mrb[0].mxu0
      %v603 = vadd.f32 0.0, %v602
      %v604 = vpop.f32.mrb[0].mxu0
      %v605 = vpop.f32.mrb[0].mxu0
      %v606 = vadd.f32 0.0, %v605
      %v607 = vpop.f32.mrb[0].mxu0
      %608 = vmatprep.mubr.bf16.mxu0 0
      %609 = vmatmul.mubr.bf16.gmra.mrb[0].mxu0 %v447
      %v610 = vpop.f32.mrb[0].mxu0
      %v611 = vadd.f32 0.0, %v610
      %v612 = vpop.f32.mrb[0].mxu0
      %v613 = vpop.f32.mrb[0].mxu0
      %v614 = vadd.f32 0.0, %v613
      %v615 = vpop.f32.mrb[0].mxu0
      %616 = vmatprep.mubr.bf16.mxu0 0
      %617 = vmatmul.mubr.bf16.gmra.mrb[0].mxu0 %v448
      %v618 = vpop.f32.mrb[0].mxu0
      %v619 = vadd.f32 0.0, %v618
      %v620 = vpop.f32.mrb[0].mxu0
      %v621 = vpop.f32.mrb[0].mxu0
      %v622 = vadd.f32 0.0, %v621
      %v623 = vpop.f32.mrb[0].mxu0
      %624 = vmatprep.mubr.bf16.mxu0 0
      %625 = vmatmul.mubr.bf16.gmra.mrb[0].mxu0 %v449
      %v626 = vpop.f32.mrb[0].mxu0
      %v627 = vadd.f32 0.0, %v626
      %v628 = vpop.f32.mrb[0].mxu0
      %v629 = vpop.f32.mrb[0].mxu0
      %v630 = vadd.f32 0.0, %v629
      %v631 = vpop.f32.mrb[0].mxu0
      %632 = vmatprep.mubr.bf16.mxu0 0
      %633 = vmatmul.mubr.bf16.gmra.mrb[0].mxu0 %v450
      %v634 = vpop.f32.mrb[0].mxu0
      %v635 = vadd.f32 0.0, %v634
      %v636 = vpop.f32.mrb[0].mxu0
      %v637 = vpop.f32.mrb[0].mxu0
      %v638 = vadd.f32 0.0, %v637
      %v639 = vpop.f32.mrb[0].mxu0
      %640 = vmatprep.mubr.bf16.mxu0 0
      %641 = vmatmul.mubr.bf16.gmra.mrb[0].mxu0 %v451
      %v642 = vpop.f32.mrb[0].mxu0
      %v643 = vadd.f32 0.0, %v642
      %v644 = vpop.f32.mrb[0].mxu0
      %v645 = vpop.f32.mrb[0].mxu0
      %v646 = vadd.f32 0.0, %v645
      %v647 = vpop.f32.mrb[0].mxu0
      %648 = vmatprep.mubr.bf16.mxu0 0
      %649 = vmatmul.mubr.bf16.gmra.mrb[0].mxu0 %v452
      %v650 = vpop.f32.mrb[0].mxu0
      %v651 = vadd.f32 0.0, %v650
      %v652 = vpop.f32.mrb[0].mxu0
      %v653 = vpop.f32.mrb[0].mxu0
      %v654 = vadd.f32 0.0, %v653
      %v655 = vpop.f32.mrb[0].mxu0
      %656 = vmatprep.mubr.bf16.mxu0 0
      %657 = vmatmul.mubr.bf16.gmra.mrb[0].mxu0 %v453
      %v658 = vpop.f32.mrb[0].mxu0
      %v659 = vadd.f32 0.0, %v658
      %v660 = vpop.f32.mrb[0].mxu0
      %v661 = vpop.f32.mrb[0].mxu0
      %v662 = vadd.f32 0.0, %v661
      %v663 = vpop.f32.mrb[0].mxu0
      %664 = vmatprep.mubr.bf16.mxu0 0
      %665 = vmatmul.mubr.bf16.gmra.mrb[0].mxu0 %v454
      %v666 = vpop.f32.mrb[0].mxu0
      %v667 = vadd.f32 0.0, %v666
      %v668 = vpop.f32.mrb[0].mxu0
      %v669 = vpop.f32.mrb[0].mxu0
      %v670 = vadd.f32 0.0, %v669
      %v671 = vpop.f32.mrb[0].mxu0
      %672 = vmatprep.mubr.bf16.mxu0 0
      %673 = vmatmul.mubr.bf16.gmra.mrb[0].mxu0 %v455
      %v674 = vpop.f32.mrb[0].mxu0
      %v675 = vadd.f32 0.0, %v674
      %v676 = vpop.f32.mrb[0].mxu0
      %v677 = vpop.f32.mrb[0].mxu0
      %v678 = vadd.f32 0.0, %v677
      %v679 = vpop.f32.mrb[0].mxu0
      %680 = vdwg.mxu0
      %v681 = vadd.f32 %v296, %v555
      %v682 = vadd.f32 %v297, %v558
      %v683 = vadd.f32 %v298, %v563
      %v684 = vadd.f32 %v299, %v566
      %v685 = vadd.f32 %v300, %v571
      %v686 = vadd.f32 %v301, %v574
      %v687 = vadd.f32 %v302, %v579
      %v688 = vadd.f32 %v303, %v582
      %v689 = vadd.f32 %v304, %v587
      %v690 = vadd.f32 %v305, %v590
      %v691 = vadd.f32 %v306, %v595
      %v692 = vadd.f32 %v307, %v598
      %v693 = vadd.f32 %v308, %v603
      %v694 = vadd.f32 %v309, %v606
      %v695 = vadd.f32 %v310, %v611
      %v696 = vadd.f32 %v311, %v614
      %v697 = vadd.f32 %v312, %v619
      %v698 = vadd.f32 %v313, %v622
      %v699 = vadd.f32 %v314, %v627
      %v700 = vadd.f32 %v315, %v630
      %v701 = vadd.f32 %v316, %v635
      %v702 = vadd.f32 %v317, %v638
      %v703 = vadd.f32 %v318, %v643
      %v704 = vadd.f32 %v319, %v646
      %v705 = vadd.f32 %v320, %v651
      %v706 = vadd.f32 %v321, %v654
      %v707 = vadd.f32 %v322, %v659
      %v708 = vadd.f32 %v323, %v662
      %v709 = vadd.f32 %v324, %v667
      %v710 = vadd.f32 %v325, %v670
      %v711 = vadd.f32 %v326, %v675
      %v712 = vadd.f32 %v327, %v678
      %713 = vst [vmem:[#allocation2] sm:$0xff] %v681
      %714 = vst [vmem:[#allocation2 + $0x8] sm:$0xff] %v682
      %715 = vst [vmem:[#allocation2 + $0x10] sm:$0xff] %v683
      %716 = vst [vmem:[#allocation2 + $0x18] sm:$0xff] %v684
      %717 = vst [vmem:[#allocation2 + $0x20] sm:$0xff] %v685
      %718 = vst [vmem:[#allocation2 + $0x28] sm:$0xff] %v686
      %719 = vst [vmem:[#allocation2 + $0x30] sm:$0xff] %v687
      %720 = vst [vmem:[#allocation2 + $0x38] sm:$0xff] %v688
      %721 = vst [vmem:[#allocation2 + $0x40] sm:$0xff] %v689
      %722 = vst [vmem:[#allocation2 + $0x48] sm:$0xff] %v690
      %723 = vst [vmem:[#allocation2 + $0x50] sm:$0xff] %v691
      %724 = vst [vmem:[#allocation2 + $0x58] sm:$0xff] %v692
      %725 = vst [vmem:[#allocation2 + $0x60] sm:$0xff] %v693
      %726 = vst [vmem:[#allocation2 + $0x68] sm:$0xff] %v694
      %727 = vst [vmem:[#allocation2 + $0x70] sm:$0xff] %v695
      %728 = vst [vmem:[#allocation2 + $0x78] sm:$0xff] %v696
      %729 = vst [vmem:[#allocation2 + $0x80] sm:$0xff] %v697
      %730 = vst [vmem:[#allocation2 + $0x88] sm:$0xff] %v698
      %731 = vst [vmem:[#allocation2 + $0x90] sm:$0xff] %v699
      %732 = vst [vmem:[#allocation2 + $0x98] sm:$0xff] %v700
      %733 = vst [vmem:[#allocation2 + $0xa0] sm:$0xff] %v701
      %734 = vst [vmem:[#allocation2 + $0xa8] sm:$0xff] %v702
      %735 = vst [vmem:[#allocation2 + $0xb0] sm:$0xff] %v703
      %736 = vst [vmem:[#allocation2 + $0xb8] sm:$0xff] %v704
      %737 = vst [vmem:[#allocation2 + $0xc0] sm:$0xff] %v705
      %738 = vst [vmem:[#allocation2 + $0xc8] sm:$0xff] %v706
      %739 = vst [vmem:[#allocation2 + $0xd0] sm:$0xff] %v707
      %740 = vst [vmem:[#allocation2 + $0xd8] sm:$0xff] %v708
      %741 = vst [vmem:[#allocation2 + $0xe0] sm:$0xff] %v709
      %742 = vst [vmem:[#allocation2 + $0xe8] sm:$0xff] %v710
      %743 = vst [vmem:[#allocation2 + $0xf0] sm:$0xff] %v711
      %744 = vst [vmem:[#allocation2 + $0xf8] sm:$0xff] %v712
      // Predicated region
      $region37: #{mrcnn_forward.6} parent=31 // pred_check
        %p745 = pneg %p260
      $region38: #{mrcnn_forward.6} parent=31 // pred_check_branch
        %747 = sbr.rel (%p745) target = $region40
      $region39: #{mrcnn_forward.6} parent=31 // pred_region
        %v748 = vld [vmem:[#allocation2] sm:$0xff]
        %v749 = vld [vmem:[#allocation2 + $0x8] sm:$0xff]
        %v750 = vld [vmem:[#allocation2 + $0x10] sm:$0xff]
        %v751 = vld [vmem:[#allocation2 + $0x18] sm:$0xff]
        %v752 = vld [vmem:[#allocation2 + $0x20] sm:$0xff]
        %v753 = vld [vmem:[#allocation2 + $0x28] sm:$0xff]
        %v754 = vld [vmem:[#allocation2 + $0x30] sm:$0xff]
        %v755 = vld [vmem:[#allocation2 + $0x38] sm:$0xff]
        %v756 = vld [vmem:[#allocation2 + $0x40] sm:$0xff]
        %v757 = vld [vmem:[#allocation2 + $0x48] sm:$0xff]
        %v758 = vld [vmem:[#allocation2 + $0x50] sm:$0xff]
        %v759 = vld [vmem:[#allocation2 + $0x58] sm:$0xff]
        %v760 = vld [vmem:[#allocation2 + $0x60] sm:$0xff]
        %v761 = vld [vmem:[#allocation2 + $0x68] sm:$0xff]
        %v762 = vld [vmem:[#allocation2 + $0x70] sm:$0xff]
        %v763 = vld [vmem:[#allocation2 + $0x78] sm:$0xff]
        %v764 = vld [vmem:[#allocation2 + $0x80] sm:$0xff]
        %v765 = vld [vmem:[#allocation2 + $0x88] sm:$0xff]
        %v766 = vld [vmem:[#allocation2 + $0x90] sm:$0xff]
        %v767 = vld [vmem:[#allocation2 + $0x98] sm:$0xff]
        %v768 = vld [vmem:[#allocation2 + $0xa0] sm:$0xff]
        %v769 = vld [vmem:[#allocation2 + $0xa8] sm:$0xff]
        %v770 = vld [vmem:[#allocation2 + $0xb0] sm:$0xff]
        %v771 = vld [vmem:[#allocation2 + $0xb8] sm:$0xff]
        %v772 = vld [vmem:[#allocation2 + $0xc0] sm:$0xff]
        %v773 = vld [vmem:[#allocation2 + $0xc8] sm:$0xff]
        %v774 = vld [vmem:[#allocation2 + $0xd0] sm:$0xff]
        %v775 = vld [vmem:[#allocation2 + $0xd8] sm:$0xff]
        %v776 = vld [vmem:[#allocation2 + $0xe0] sm:$0xff]
        %v777 = vld [vmem:[#allocation2 + $0xe8] sm:$0xff]
        %v778 = vld [vmem:[#allocation2 + $0xf0] sm:$0xff]
        %v779 = vld [vmem:[#allocation2 + $0xf8] sm:$0xff]
        %v780 = vld [vmem:[%s249] sm:$0x1]
        %v782 = vlaneseq
        %v783 = vshrl.u32 %v782, 7
        %v784 = vsub.s32 0, %v783
        %v785 = vrot.slane %v780, %v784
        %v787 = vadd.f32 %v748, %v785
        %v788 = vadd.f32 %v749, %v785
        %v789 = vadd.f32 %v750, %v785
        %v790 = vadd.f32 %v751, %v785
        %v791 = vadd.f32 %v752, %v785
        %v792 = vadd.f32 %v753, %v785
        %v793 = vadd.f32 %v754, %v785
        %v794 = vadd.f32 %v755, %v785
        %v795 = vadd.f32 %v756, %v785
        %v796 = vadd.f32 %v757, %v785
        %v797 = vadd.f32 %v758, %v785
        %v798 = vadd.f32 %v759, %v785
        %v799 = vadd.f32 %v760, %v785
        %v800 = vadd.f32 %v761, %v785
        %v801 = vadd.f32 %v762, %v785
        %v802 = vadd.f32 %v763, %v785
        %v803 = vadd.f32 %v764, %v785
        %v804 = vadd.f32 %v765, %v785
        %v805 = vadd.f32 %v766, %v785
        %v806 = vadd.f32 %v767, %v785
        %v807 = vadd.f32 %v768, %v785
        %v808 = vadd.f32 %v769, %v785
        %v809 = vadd.f32 %v770, %v785
        %v810 = vadd.f32 %v771, %v785
        %v811 = vadd.f32 %v772, %v785
        %v812 = vadd.f32 %v773, %v785
        %v813 = vadd.f32 %v774, %v785
        %v814 = vadd.f32 %v775, %v785
        %v815 = vadd.f32 %v776, %v785
        %v816 = vadd.f32 %v777, %v785
        %v817 = vadd.f32 %v778, %v785
        %v818 = vadd.f32 %v779, %v785
        %819 = vst [vmem:[%s257] sm:$0xff] %v787
        %820 = vst [vmem:[%s257 + $0x8] sm:$0xff] %v788
        %821 = vst [vmem:[%s257 + $0x10] sm:$0xff] %v789
        %822 = vst [vmem:[%s257 + $0x18] sm:$0xff] %v790
        %823 = vst [vmem:[%s257 + $0x20] sm:$0xff] %v791
        %824 = vst [vmem:[%s257 + $0x28] sm:$0xff] %v792
        %825 = vst [vmem:[%s257 + $0x30] sm:$0xff] %v793
        %826 = vst [vmem:[%s257 + $0x38] sm:$0xff] %v794
        %827 = vst [vmem:[%s257 + $0x40] sm:$0xff] %v795
        %828 = vst [vmem:[%s257 + $0x48] sm:$0xff] %v796
        %829 = vst [vmem:[%s257 + $0x50] sm:$0xff] %v797
        %830 = vst [vmem:[%s257 + $0x58] sm:$0xff] %v798
        %831 = vst [vmem:[%s257 + $0x60] sm:$0xff] %v799
        %832 = vst [vmem:[%s257 + $0x68] sm:$0xff] %v800
        %833 = vst [vmem:[%s257 + $0x70] sm:$0xff] %v801
        %834 = vst [vmem:[%s257 + $0x78] sm:$0xff] %v802
        %835 = vst [vmem:[%s257 + $0x80] sm:$0xff] %v803
        %836 = vst [vmem:[%s257 + $0x88] sm:$0xff] %v804
        %837 = vst [vmem:[%s257 + $0x90] sm:$0xff] %v805
        %838 = vst [vmem:[%s257 + $0x98] sm:$0xff] %v806
        %839 = vst [vmem:[%s257 + $0xa0] sm:$0xff] %v807
        %840 = vst [vmem:[%s257 + $0xa8] sm:$0xff] %v808
        %841 = vst [vmem:[%s257 + $0xb0] sm:$0xff] %v809
        %842 = vst [vmem:[%s257 + $0xb8] sm:$0xff] %v810
        %843 = vst [vmem:[%s257 + $0xc0] sm:$0xff] %v811
        %844 = vst [vmem:[%s257 + $0xc8] sm:$0xff] %v812
        %845 = vst [vmem:[%s257 + $0xd0] sm:$0xff] %v813
        %846 = vst [vmem:[%s257 + $0xd8] sm:$0xff] %v814
        %847 = vst [vmem:[%s257 + $0xe0] sm:$0xff] %v815
        %848 = vst [vmem:[%s257 + $0xe8] sm:$0xff] %v816
        %849 = vst [vmem:[%s257 + $0xf0] sm:$0xff] %v817
        %850 = vst [vmem:[%s257 + $0xf8] sm:$0xff] %v818
      $region40: #{mrcnn_forward.6} parent=31 // pred_fallthru
        _
      %s851 = smul.u32 32, %s19
      %p852 = scmp.lt.s32.totalorder %s851, 127
      %s853 = scalar_select %p852, %s851, 127
      %p854 = scmp.lt.s32.totalorder %s20, 0
      %s855 = scalar_select %p854, %s20, 0
      %s856 = sadd.s32 %s855, %s853
      %s857 = smul.addr %s856, 8
      %s858 = scalar_lea.vmem %s3, %s857
      // Predicated region
      $region41: #{mrcnn_forward.6} parent=31 // pred_check
        %p859 = pneg %p135
      $region42: #{mrcnn_forward.6} parent=31 // pred_check_branch
        %861 = sbr.rel (%p859) target = $region44
      $region43: #{mrcnn_forward.6} parent=31 // pred_region
        %s862 = smul.u32 32, %s19
      $region44: #{mrcnn_forward.6} parent=31 // pred_fallthru
        _
    $region32: #{mrcnn_forward.6} parent=5 // pred_fallthru
      _
    %p863 = scmp.le.s32.totalorder 2, %s9
    // Predicated region
    $region45: #{mrcnn_forward.6} parent=5 // pred_check
      %p864 = pneg %p863
    $region46: #{mrcnn_forward.6} parent=5 // pred_check_branch
      %866 = sbr.rel (%p864) target = $region48
    $region47: #{mrcnn_forward.6} parent=5 // pred_region
      %s867 = ssub.s32 %s9, 2
      // Predicated region
      $region49: #{mrcnn_forward.6} parent=47 // pred_check
        %p868 = pneg %p141
      $region50: #{mrcnn_forward.6} parent=47 // pred_check_branch
        %870 = sbr.rel (%p868) target = $region52
      $region51: #{mrcnn_forward.6} parent=47 // pred_region
        %s871 = smul.u32 32, %s22
        %p872 = scmp.lt.s32.totalorder %s871, 127
        %s873 = scalar_select %p872, %s871, 127
        %p874 = scmp.lt.s32.totalorder %s23, 0
        %s875 = scalar_select %p874, %s23, 0
        %s876 = sadd.s32 %s875, %s873
        %s877 = smul.addr %s876, 8
        %s878 = scalar_lea.vmem %s3, %s877
      $region52: #{mrcnn_forward.6} parent=47 // pred_fallthru
        _
    $region48: #{mrcnn_forward.6} parent=5 // pred_fallthru
      _
  $region6: #{mrcnn_forward.6} parent=0 // loop_footer
    %s13 = sadd.s32 1, %s9
  $region7: #{mrcnn_forward.6} parent=0 // loop_footer_branch
    %8 = sbr.rel target = $region3
  $region8: #{mrcnn_forward.6} parent=0 // loop_exit
    _

// kernel: mrcnn_forward.7
$region0: #{mrcnn_forward.7}
  #allocation0 [shape = 'u32[]', space=smem, size = 0x4, offset = 0x4, fixed_abs, tag = 'smem constant byte address 0x4 - core index']
  #allocation1 [shape = 'u32[144,128]{1,0:T(1,128)}', space=vmem, size = 0x12000, scoped, tag = 'internal scratch']
  #allocation2 [shape = 'f32[256,128]{1,0:T(8,128)}', space=vmem, size = 0x20000, scoped, tag = 'scratch operand']
  %s0 = inlined_call_operand.vmem [shape: bf16[512,512], index: 0, kind: input, shape index: {}]
  %s1 = inlined_call_operand.vmem [shape: bf16[512,128], index: 1, kind: input, shape index: {}]
  %s2 = inlined_call_operand.vmem [shape: f32[1,128], index: 2, kind: input, shape index: {}]
  %s3 = inlined_call_operand.vmem [shape: f32[512,128], index: 3, kind: output, shape index: {}]
  %s4 = sld [smem:[#allocation0]]
  $region53: #{mrcnn_forward.7} parent=0
    _
  %s6 = ssub.s32 1, %s4
  %s7 = scalar_select 0, %s6, %s4
  loop: start=0, step=1, limit=4
  $region2: #{mrcnn_forward.7} parent=0 // loop_pre_header
    _
  $region3: #{mrcnn_forward.7} parent=0 // loop_header
    %s9 = sphi 0, %s13
    %p10 = scmp.ge.s32.totalorder %s9, 4
    %s16 = sphi 0, %s35
    %s17 = sphi 0, %s31
    %s18 = sphi 0, %s27
    %s19 = sphi 0, %s16
    %s20 = sphi 0, %s17
    %s21 = sphi 0, %s18
    %s22 = sphi 0, %s19
    %s23 = sphi 0, %s20
    %s24 = sphi 0, %s21
    %s40 = sphi 0, %s42
    %s43 = sphi 0, %s40
    %s44 = sphi 0, %s43
    %s60 = sphi 0, %s44
    %s68 = sphi 0, %s70
    %s71 = sphi 0, %s68
    %s72 = sphi 0, %s71
    %s88 = sphi 0, %s72
    %s94 = sphi 0, %s96
    %s97 = sphi 0, %s94
    %s98 = sphi 0, %s97
    %s114 = sphi 0, %s98
    %s122 = sphi 0, %s124
    %s125 = sphi 0, %s122
    %s126 = sphi 0, %s125
    %s142 = sphi 0, %s126
  $region4: #{mrcnn_forward.7} parent=0 // loop_header_branch
    %12 = sbr.rel (%p10) target = $region8
  $region5: #{mrcnn_forward.7} parent=0 // loop_body
    %s14 = ssub.s32 %s9, 1
    %s15 = ssub.s32 %s9, 2
    %s25 = sadd.s32 1, %s18
    %p26 = scmp.ge.s32.totalorder %s25, 1
    %s27 = scalar_select %p26, 0, %s25
    %s28 = sadd.s32 1, %s17
    %s29 = scalar_select %p26, %s28, %s17
    %p30 = scmp.ge.s32.totalorder %s29, 1
    %s31 = scalar_select %p30, 0, %s29
    %s32 = sadd.s32 1, %s16
    %s33 = scalar_select %p30, %s32, %s16
    %p34 = scmp.ge.s32.totalorder %s33, 2
    %s35 = scalar_select %p34, 0, %s33
    %s36 = ssub.s32 %s16, %s35
    %s37 = ssub.s32 %s18, %s27
    %s38 = sor.u32 %s36, %s37
    %p39 = scmp.eq.s32.totalorder %s38, 0
    %s41 = sadd.s32 %s40, 1
    %s42 = scalar_select %p39, %s40, %s41
    %p45 = pneg %p39
    %p46 = scmp.eq.s32.totalorder %s9, 1
    %p47 = por %p45, %p46
    %p48 = scmp.ne.s32.totalorder %s40, %s43
    %p49 = scmp.eq.s32.totalorder %s9, 0
    %p50 = por %p48, %p49
    %p51 = scmp.ne.s32.totalorder %s40, %s43
    %p52 = scmp.eq.s32.totalorder %s14, 1
    %p53 = por %p51, %p52
    %p54 = scmp.ne.s32.totalorder %s43, %s44
    %p55 = scmp.eq.s32.totalorder %s14, 0
    %p56 = por %p54, %p55
    %p57 = scmp.ne.s32.totalorder %s43, %s44
    %p58 = scmp.eq.s32.totalorder %s15, 1
    %p59 = por %p57, %p58
    %p61 = scmp.ne.s32.totalorder %s44, %s60
    %p62 = scmp.eq.s32.totalorder %s15, 0
    %p63 = por %p61, %p62
    %s64 = ssub.s32 %s18, %s27
    %s65 = ssub.s32 %s17, %s31
    %s66 = sor.u32 %s64, %s65
    %p67 = scmp.eq.s32.totalorder %s66, 0
    %s69 = sadd.s32 %s68, 1
    %s70 = scalar_select %p67, %s68, %s69
    %p73 = pneg %p67
    %p74 = scmp.eq.s32.totalorder %s9, 1
    %p75 = por %p73, %p74
    %p76 = scmp.ne.s32.totalorder %s68, %s71
    %p77 = scmp.eq.s32.totalorder %s9, 0
    %p78 = por %p76, %p77
    %p79 = scmp.ne.s32.totalorder %s68, %s71
    %p80 = scmp.eq.s32.totalorder %s14, 1
    %p81 = por %p79, %p80
    %p82 = scmp.ne.s32.totalorder %s71, %s72
    %p83 = scmp.eq.s32.totalorder %s14, 0
    %p84 = por %p82, %p83
    %p85 = scmp.ne.s32.totalorder %s71, %s72
    %p86 = scmp.eq.s32.totalorder %s15, 1
    %p87 = por %p85, %p86
    %p89 = scmp.ne.s32.totalorder %s72, %s88
    %p90 = scmp.eq.s32.totalorder %s15, 0
    %p91 = por %p89, %p90
    %s92 = ssub.s32 %s17, %s31
    %p93 = scmp.eq.s32.totalorder %s92, 0
    %s95 = sadd.s32 %s94, 1
    %s96 = scalar_select %p93, %s94, %s95
    %p99 = pneg %p93
    %p100 = scmp.eq.s32.totalorder %s9, 1
    %p101 = por %p99, %p100
    %p102 = scmp.ne.s32.totalorder %s94, %s97
    %p103 = scmp.eq.s32.totalorder %s9, 0
    %p104 = por %p102, %p103
    %p105 = scmp.ne.s32.totalorder %s94, %s97
    %p106 = scmp.eq.s32.totalorder %s14, 1
    %p107 = por %p105, %p106
    %p108 = scmp.ne.s32.totalorder %s97, %s98
    %p109 = scmp.eq.s32.totalorder %s14, 0
    %p110 = por %p108, %p109
    %p111 = scmp.ne.s32.totalorder %s97, %s98
    %p112 = scmp.eq.s32.totalorder %s15, 1
    %p113 = por %p111, %p112
    %p115 = scmp.ne.s32.totalorder %s98, %s114
    %p116 = scmp.eq.s32.totalorder %s15, 0
    %p117 = por %p115, %p116
    %s118 = ssub.s32 %s16, %s35
    %s119 = ssub.s32 %s17, %s31
    %s120 = sor.u32 %s118, %s119
    %p121 = scmp.eq.s32.totalorder %s120, 0
    %s123 = sadd.s32 %s122, 1
    %s124 = scalar_select %p121, %s122, %s123
    %p127 = pneg %p121
    %p128 = scmp.eq.s32.totalorder %s9, 1
    %p129 = por %p127, %p128
    %p130 = scmp.ne.s32.totalorder %s122, %s125
    %p131 = scmp.eq.s32.totalorder %s9, 0
    %p132 = por %p130, %p131
    %p133 = scmp.ne.s32.totalorder %s122, %s125
    %p134 = scmp.eq.s32.totalorder %s14, 1
    %p135 = por %p133, %p134
    %p136 = scmp.ne.s32.totalorder %s125, %s126
    %p137 = scmp.eq.s32.totalorder %s14, 0
    %p138 = por %p136, %p137
    %p139 = scmp.ne.s32.totalorder %s125, %s126
    %p140 = scmp.eq.s32.totalorder %s15, 1
    %p141 = por %p139, %p140
    %p143 = scmp.ne.s32.totalorder %s126, %s142
    %p144 = scmp.eq.s32.totalorder %s15, 0
    %p145 = por %p143, %p144
    %p146 = scmp.le.s32.totalorder 1, %s9
    %p147 = scmp.lt.s32.totalorder %s9, 3
    %p148 = pnand %p146, %p147
    %p149 = pneg %p148
    // Predicated region
    $region9: #{mrcnn_forward.7} parent=5 // pred_check
      _
    $region10: #{mrcnn_forward.7} parent=5 // pred_check_branch
      %151 = sbr.rel (%p148) target = $region12
    $region11: #{mrcnn_forward.7} parent=5 // pred_region
      %s152 = ssub.s32 %s9, 1
      // Predicated region
      $region13: #{mrcnn_forward.7} parent=11 // pred_check
        %p153 = pneg %p84
      $region14: #{mrcnn_forward.7} parent=11 // pred_check_branch
        %155 = sbr.rel (%p153) target = $region16
      $region15: #{mrcnn_forward.7} parent=11 // pred_region
        %s156 = smul.u32 64, %s21
        %p157 = scmp.lt.s32.totalorder %s156, 63
        %s158 = scalar_select %p157, %s156, 63
        %p159 = scmp.lt.s32.totalorder %s20, 0
        %s160 = scalar_select %p159, %s20, 0
        %s161 = sadd.s32 %s160, %s158
        %s162 = smul.addr %s161, 4
        %s163 = scalar_lea.vmem %s1, %s162
        %s164 = smul.u32 64, %s21
      $region16: #{mrcnn_forward.7} parent=11 // pred_fallthru
        _
      // Predicated region
      $region17: #{mrcnn_forward.7} parent=11 // pred_check
        %p165 = pneg %p110
      $region18: #{mrcnn_forward.7} parent=11 // pred_check_branch
        %167 = sbr.rel (%p165) target = $region20
      $region19: #{mrcnn_forward.7} parent=11 // pred_region
        %p168 = scmp.lt.s32.totalorder %s20, 0
        %s169 = scalar_select %p168, %s20, 0
        %s170 = scalar_lea.vmem %s2, %s169
      $region20: #{mrcnn_forward.7} parent=11 // pred_fallthru
        _
    $region12: #{mrcnn_forward.7} parent=5 // pred_fallthru
      _
    %p171 = scmp.lt.s32.totalorder %s9, 2
    // Predicated region
    $region21: #{mrcnn_forward.7} parent=5 // pred_check
      %p172 = pneg %p171
    $region22: #{mrcnn_forward.7} parent=5 // pred_check_branch
      %174 = sbr.rel (%p172) target = $region24
    $region23: #{mrcnn_forward.7} parent=5 // pred_region
      // Predicated region
      $region25: #{mrcnn_forward.7} parent=23 // pred_check
        %p175 = pneg %p50
      $region26: #{mrcnn_forward.7} parent=23 // pred_check_branch
        %177 = sbr.rel (%p175) target = $region28
      $region27: #{mrcnn_forward.7} parent=23 // pred_region
        %s178 = smul.u32 32, %s16
        %s179 = smul.u32 4, %s18
        %p180 = scmp.lt.s32.totalorder %s178, 63
        %s181 = scalar_select %p180, %s178, 63
        %p182 = scmp.lt.s32.totalorder %s179, 3
        %s183 = scalar_select %p182, %s179, 3
        %s184 = smul.addr %s181, 4
        %s185 = sadd.s32 %s183, %s184
        %s186 = smul.addr %s185, 4
        %s187 = scalar_lea.vmem %s0, %s186
        %s188 = smul.u32 32, %s16
        %s189 = smul.u32 4, %s18
      $region28: #{mrcnn_forward.7} parent=23 // pred_fallthru
        _
    $region24: #{mrcnn_forward.7} parent=5 // pred_fallthru
      _
    %p190 = scmp.le.s32.totalorder 1, %s9
    %p191 = scmp.lt.s32.totalorder %s9, 3
    %p192 = pnand %p190, %p191
    %p193 = pneg %p192
    // Predicated region
    $region29: #{mrcnn_forward.7} parent=5 // pred_check
      _
    $region30: #{mrcnn_forward.7} parent=5 // pred_check_branch
      %195 = sbr.rel (%p192) target = $region32
    $region31: #{mrcnn_forward.7} parent=5 // pred_region
      %s196 = ssub.s32 %s9, 1
      %s197 = smul.u32 32, %s19
      %s198 = smul.u32 4, %s21
      %p199 = scmp.lt.s32.totalorder %s197, 63
      %s200 = scalar_select %p199, %s197, 63
      %p201 = scmp.lt.s32.totalorder %s198, 3
      %s202 = scalar_select %p201, %s198, 3
      %s203 = smul.addr %s200, 4
      %s204 = sadd.s32 %s202, %s203
      %s205 = smul.addr %s204, 4
      %s206 = scalar_lea.vmem %s0, %s205
      %p207 = pneg %p56
      %p208 = pneg %p53
      %s209 = smul.u32 64, %s21
      %p210 = scmp.lt.s32.totalorder %s209, 63
      %s211 = scalar_select %p210, %s209, 63
      %p212 = scmp.lt.s32.totalorder %s20, 0
      %s213 = scalar_select %p212, %s20, 0
      %s214 = sadd.s32 %s213, %s211
      %s215 = smul.addr %s214, 4
      %s216 = scalar_lea.vmem %s1, %s215
      %p217 = pneg %p84
      %p218 = pneg %p81
      %p219 = scmp.lt.s32.totalorder %s20, 0
      %s220 = scalar_select %p219, %s20, 0
      %s221 = scalar_lea.vmem %s2, %s220
      %p222 = pneg %p110
      %p223 = pneg %p107
      %p224 = pneg %p138
      %p225 = pneg %p135
      %s226 = smul.u32 32, %s19
      %p227 = scmp.lt.s32.totalorder %s226, 63
      %s228 = scalar_select %p227, %s226, 63
      %p229 = scmp.lt.s32.totalorder %s20, 0
      %s230 = scalar_select %p229, %s20, 0
      %s231 = sadd.s32 %s230, %s228
      %s232 = smul.addr %s231, 8
      %s233 = scalar_lea.vmem %s3, %s232
      %s234 = smul.u32 32, %s19
      %s235 = smul.u32 4, %s21
      %p236 = scmp.lt.s32.totalorder %s234, 63
      %s237 = scalar_select %p236, %s234, 63
      %p238 = scmp.lt.s32.totalorder %s235, 3
      %s239 = scalar_select %p238, %s235, 3
      %s240 = smul.addr %s237, 4
      %s241 = sadd.s32 %s239, %s240
      %s242 = smul.addr %s241, 4
      %s243 = scalar_lea.vmem %s0, %s242
      %s244 = smul.u32 32, %s19
      %s245 = smul.u32 4, %s21
      %s246 = smul.u32 64, %s21
      %p247 = scmp.lt.s32.totalorder %s246, 63
      %s248 = scalar_select %p247, %s246, 63
      %p249 = scmp.lt.s32.totalorder %s20, 0
      %s250 = scalar_select %p249, %s20, 0
      %s251 = sadd.s32 %s250, %s248
      %s252 = smul.addr %s251, 4
      %s253 = scalar_lea.vmem %s1, %s252
      %s254 = smul.u32 64, %s21
      %p255 = scmp.lt.s32.totalorder %s20, 0
      %s256 = scalar_select %p255, %s20, 0
      %s257 = scalar_lea.vmem %s2, %s256
      %s258 = smul.u32 32, %s19
      %p259 = scmp.lt.s32.totalorder %s258, 63
      %s260 = scalar_select %p259, %s258, 63
      %p261 = scmp.lt.s32.totalorder %s20, 0
      %s262 = scalar_select %p261, %s20, 0
      %s263 = sadd.s32 %s262, %s260
      %s264 = smul.addr %s263, 8
      %s265 = scalar_lea.vmem %s3, %s264
      %s266 = smul.u32 32, %s19
      %p268 = scmp.eq.s32.totalorder %s21, 0
      // Predicated region
      $region33: #{mrcnn_forward.7} parent=31 // pred_check
        %p269 = pneg %p268
      $region34: #{mrcnn_forward.7} parent=31 // pred_check_branch
        %271 = sbr.rel (%p269) target = $region36
      $region35: #{mrcnn_forward.7} parent=31 // pred_region
        %272 = vst [vmem:[#allocation2] sm:$0xff] 0.0
        %273 = vst [vmem:[#allocation2 + $0x8] sm:$0xff] 0.0
        %274 = vst [vmem:[#allocation2 + $0x10] sm:$0xff] 0.0
        %275 = vst [vmem:[#allocation2 + $0x18] sm:$0xff] 0.0
        %276 = vst [vmem:[#allocation2 + $0x20] sm:$0xff] 0.0
        %277 = vst [vmem:[#allocation2 + $0x28] sm:$0xff] 0.0
        %278 = vst [vmem:[#allocation2 + $0x30] sm:$0xff] 0.0
        %279 = vst [vmem:[#allocation2 + $0x38] sm:$0xff] 0.0
        %280 = vst [vmem:[#allocation2 + $0x40] sm:$0xff] 0.0
        %281 = vst [vmem:[#allocation2 + $0x48] sm:$0xff] 0.0
        %282 = vst [vmem:[#allocation2 + $0x50] sm:$0xff] 0.0
        %283 = vst [vmem:[#allocation2 + $0x58] sm:$0xff] 0.0
        %284 = vst [vmem:[#allocation2 + $0x60] sm:$0xff] 0.0
        %285 = vst [vmem:[#allocation2 + $0x68] sm:$0xff] 0.0
        %286 = vst [vmem:[#allocation2 + $0x70] sm:$0xff] 0.0
        %287 = vst [vmem:[#allocation2 + $0x78] sm:$0xff] 0.0
        %288 = vst [vmem:[#allocation2 + $0x80] sm:$0xff] 0.0
        %289 = vst [vmem:[#allocation2 + $0x88] sm:$0xff] 0.0
        %290 = vst [vmem:[#allocation2 + $0x90] sm:$0xff] 0.0
        %291 = vst [vmem:[#allocation2 + $0x98] sm:$0xff] 0.0
        %292 = vst [vmem:[#allocation2 + $0xa0] sm:$0xff] 0.0
        %293 = vst [vmem:[#allocation2 + $0xa8] sm:$0xff] 0.0
        %294 = vst [vmem:[#allocation2 + $0xb0] sm:$0xff] 0.0
        %295 = vst [vmem:[#allocation2 + $0xb8] sm:$0xff] 0.0
        %296 = vst [vmem:[#allocation2 + $0xc0] sm:$0xff] 0.0
        %297 = vst [vmem:[#allocation2 + $0xc8] sm:$0xff] 0.0
        %298 = vst [vmem:[#allocation2 + $0xd0] sm:$0xff] 0.0
        %299 = vst [vmem:[#allocation2 + $0xd8] sm:$0xff] 0.0
        %300 = vst [vmem:[#allocation2 + $0xe0] sm:$0xff] 0.0
        %301 = vst [vmem:[#allocation2 + $0xe8] sm:$0xff] 0.0
        %302 = vst [vmem:[#allocation2 + $0xf0] sm:$0xff] 0.0
        %303 = vst [vmem:[#allocation2 + $0xf8] sm:$0xff] 0.0
      $region36: #{mrcnn_forward.7} parent=31 // pred_fallthru
        _
      %v304 = vld [vmem:[#allocation2] sm:$0xff]
      %v305 = vld [vmem:[#allocation2 + $0x8] sm:$0xff]
      %v306 = vld [vmem:[#allocation2 + $0x10] sm:$0xff]
      %v307 = vld [vmem:[#allocation2 + $0x18] sm:$0xff]
      %v308 = vld [vmem:[#allocation2 + $0x20] sm:$0xff]
      %v309 = vld [vmem:[#allocation2 + $0x28] sm:$0xff]
      %v310 = vld [vmem:[#allocation2 + $0x30] sm:$0xff]
      %v311 = vld [vmem:[#allocation2 + $0x38] sm:$0xff]
      %v312 = vld [vmem:[#allocation2 + $0x40] sm:$0xff]
      %v313 = vld [vmem:[#allocation2 + $0x48] sm:$0xff]
      %v314 = vld [vmem:[#allocation2 + $0x50] sm:$0xff]
      %v315 = vld [vmem:[#allocation2 + $0x58] sm:$0xff]
      %v316 = vld [vmem:[#allocation2 + $0x60] sm:$0xff]
      %v317 = vld [vmem:[#allocation2 + $0x68] sm:$0xff]
      %v318 = vld [vmem:[#allocation2 + $0x70] sm:$0xff]
      %v319 = vld [vmem:[#allocation2 + $0x78] sm:$0xff]
      %v320 = vld [vmem:[#allocation2 + $0x80] sm:$0xff]
      %v321 = vld [vmem:[#allocation2 + $0x88] sm:$0xff]
      %v322 = vld [vmem:[#allocation2 + $0x90] sm:$0xff]
      %v323 = vld [vmem:[#allocation2 + $0x98] sm:$0xff]
      %v324 = vld [vmem:[#allocation2 + $0xa0] sm:$0xff]
      %v325 = vld [vmem:[#allocation2 + $0xa8] sm:$0xff]
      %v326 = vld [vmem:[#allocation2 + $0xb0] sm:$0xff]
      %v327 = vld [vmem:[#allocation2 + $0xb8] sm:$0xff]
      %v328 = vld [vmem:[#allocation2 + $0xc0] sm:$0xff]
      %v329 = vld [vmem:[#allocation2 + $0xc8] sm:$0xff]
      %v330 = vld [vmem:[#allocation2 + $0xd0] sm:$0xff]
      %v331 = vld [vmem:[#allocation2 + $0xd8] sm:$0xff]
      %v332 = vld [vmem:[#allocation2 + $0xe0] sm:$0xff]
      %v333 = vld [vmem:[#allocation2 + $0xe8] sm:$0xff]
      %v334 = vld [vmem:[#allocation2 + $0xf0] sm:$0xff]
      %v335 = vld [vmem:[#allocation2 + $0xf8] sm:$0xff]
      %v336 = vld [vmem:[%s243] sm:$0xff]
      %v337 = vld [vmem:[%s243 + $0x8] sm:$0xff]
      %v338 = vld [vmem:[%s243 + $0x10] sm:$0xff]
      %v339 = vld [vmem:[%s243 + $0x18] sm:$0xff]
      %v340 = vld [vmem:[%s243 + $0x20] sm:$0xff]
      %v341 = vld [vmem:[%s243 + $0x28] sm:$0xff]
      %v342 = vld [vmem:[%s243 + $0x30] sm:$0xff]
      %v343 = vld [vmem:[%s243 + $0x38] sm:$0xff]
      %v344 = vld [vmem:[%s243 + $0x40] sm:$0xff]
      %v345 = vld [vmem:[%s243 + $0x48] sm:$0xff]
      %v346 = vld [vmem:[%s243 + $0x50] sm:$0xff]
      %v347 = vld [vmem:[%s243 + $0x58] sm:$0xff]
      %v348 = vld [vmem:[%s243 + $0x60] sm:$0xff]
      %v349 = vld [vmem:[%s243 + $0x68] sm:$0xff]
      %v350 = vld [vmem:[%s243 + $0x70] sm:$0xff]
      %v351 = vld [vmem:[%s243 + $0x78] sm:$0xff]
      %v352 = vld [vmem:[%s243 + $0x80] sm:$0xff]
      %v353 = vld [vmem:[%s243 + $0x88] sm:$0xff]
      %v354 = vld [vmem:[%s243 + $0x90] sm:$0xff]
      %v355 = vld [vmem:[%s243 + $0x98] sm:$0xff]
      %v356 = vld [vmem:[%s243 + $0xa0] sm:$0xff]
      %v357 = vld [vmem:[%s243 + $0xa8] sm:$0xff]
      %v358 = vld [vmem:[%s243 + $0xb0] sm:$0xff]
      %v359 = vld [vmem:[%s243 + $0xb8] sm:$0xff]
      %v360 = vld [vmem:[%s243 + $0xc0] sm:$0xff]
      %v361 = vld [vmem:[%s243 + $0xc8] sm:$0xff]
      %v362 = vld [vmem:[%s243 + $0xd0] sm:$0xff]
      %v363 = vld [vmem:[%s243 + $0xd8] sm:$0xff]
      %v364 = vld [vmem:[%s243 + $0xe0] sm:$0xff]
      %v365 = vld [vmem:[%s243 + $0xe8] sm:$0xff]
      %v366 = vld [vmem:[%s243 + $0xf0] sm:$0xff]
      %v367 = vld [vmem:[%s243 + $0xf8] sm:$0xff]
      %v368 = vld [vmem:[%s243 + $0x100] sm:$0xff]
      %v369 = vld [vmem:[%s243 + $0x108] sm:$0xff]
      %v370 = vld [vmem:[%s243 + $0x110] sm:$0xff]
      %v371 = vld [vmem:[%s243 + $0x118] sm:$0xff]
      %v372 = vld [vmem:[%s243 + $0x120] sm:$0xff]
      %v373 = vld [vmem:[%s243 + $0x128] sm:$0xff]
      %v374 = vld [vmem:[%s243 + $0x130] sm:$0xff]
      %v375 = vld [vmem:[%s243 + $0x138] sm:$0xff]
      %v376 = vld [vmem:[%s243 + $0x140] sm:$0xff]
      %v377 = vld [vmem:[%s243 + $0x148] sm:$0xff]
      %v378 = vld [vmem:[%s243 + $0x150] sm:$0xff]
      %v379 = vld [vmem:[%s243 + $0x158] sm:$0xff]
      %v380 = vld [vmem:[%s243 + $0x160] sm:$0xff]
      %v381 = vld [vmem:[%s243 + $0x168] sm:$0xff]
      %v382 = vld [vmem:[%s243 + $0x170] sm:$0xff]
      %v383 = vld [vmem:[%s243 + $0x178] sm:$0xff]
      %v384 = vld [vmem:[%s243 + $0x180] sm:$0xff]
      %v385 = vld [vmem:[%s243 + $0x188] sm:$0xff]
      %v386 = vld [vmem:[%s243 + $0x190] sm:$0xff]
      %v387 = vld [vmem:[%s243 + $0x198] sm:$0xff]
      %v388 = vld [vmem:[%s243 + $0x1a0] sm:$0xff]
      %v389 = vld [vmem:[%s243 + $0x1a8] sm:$0xff]
      %v390 = vld [vmem:[%s243 + $0x1b0] sm:$0xff]
      %v391 = vld [vmem:[%s243 + $0x1b8] sm:$0xff]
      %v392 = vld [vmem:[%s243 + $0x1c0] sm:$0xff]
      %v393 = vld [vmem:[%s243 + $0x1c8] sm:$0xff]
      %v394 = vld [vmem:[%s243 + $0x1d0] sm:$0xff]
      %v395 = vld [vmem:[%s243 + $0x1d8] sm:$0xff]
      %v396 = vld [vmem:[%s243 + $0x1e0] sm:$0xff]
      %v397 = vld [vmem:[%s243 + $0x1e8] sm:$0xff]
      %v398 = vld [vmem:[%s243 + $0x1f0] sm:$0xff]
      %v399 = vld [vmem:[%s243 + $0x1f8] sm:$0xff]
      %v400 = vld [vmem:[%s253] sm:$0xf]
      %v401 = vld [vmem:[%s253 + $0x4] sm:$0xf]
      %v402 = vld [vmem:[%s253 + $0x8] sm:$0xf]
      %v403 = vld [vmem:[%s253 + $0xc] sm:$0xf]
      %v404 = vld [vmem:[%s253 + $0x10] sm:$0xf]
      %v405 = vld [vmem:[%s253 + $0x14] sm:$0xf]
      %v406 = vld [vmem:[%s253 + $0x18] sm:$0xf]
      %v407 = vld [vmem:[%s253 + $0x1c] sm:$0xf]
      %v408 = vld [vmem:[%s253 + $0x20] sm:$0xf]
      %v409 = vld [vmem:[%s253 + $0x24] sm:$0xf]
      %v410 = vld [vmem:[%s253 + $0x28] sm:$0xf]
      %v411 = vld [vmem:[%s253 + $0x2c] sm:$0xf]
      %v412 = vld [vmem:[%s253 + $0x30] sm:$0xf]
      %v413 = vld [vmem:[%s253 + $0x34] sm:$0xf]
      %v414 = vld [vmem:[%s253 + $0x38] sm:$0xf]
      %v415 = vld [vmem:[%s253 + $0x3c] sm:$0xf]
      %v416 = vld [vmem:[%s253 + $0x40] sm:$0xf]
      %v417 = vld [vmem:[%s253 + $0x44] sm:$0xf]
      %v418 = vld [vmem:[%s253 + $0x48] sm:$0xf]
      %v419 = vld [vmem:[%s253 + $0x4c] sm:$0xf]
      %v420 = vld [vmem:[%s253 + $0x50] sm:$0xf]
      %v421 = vld [vmem:[%s253 + $0x54] sm:$0xf]
      %v422 = vld [vmem:[%s253 + $0x58] sm:$0xf]
      %v423 = vld [vmem:[%s253 + $0x5c] sm:$0xf]
      %v424 = vld [vmem:[%s253 + $0x60] sm:$0xf]
      %v425 = vld [vmem:[%s253 + $0x64] sm:$0xf]
      %v426 = vld [vmem:[%s253 + $0x68] sm:$0xf]
      %v427 = vld [vmem:[%s253 + $0x6c] sm:$0xf]
      %v428 = vld [vmem:[%s253 + $0x70] sm:$0xf]
      %v429 = vld [vmem:[%s253 + $0x74] sm:$0xf]
      %v430 = vld [vmem:[%s253 + $0x78] sm:$0xf]
      %v431 = vld [vmem:[%s253 + $0x7c] sm:$0xf]
      %v432 = vld [vmem:[%s253 + $0x80] sm:$0xf]
      %v433 = vld [vmem:[%s253 + $0x84] sm:$0xf]
      %v434 = vld [vmem:[%s253 + $0x88] sm:$0xf]
      %v435 = vld [vmem:[%s253 + $0x8c] sm:$0xf]
      %v436 = vld [vmem:[%s253 + $0x90] sm:$0xf]
      %v437 = vld [vmem:[%s253 + $0x94] sm:$0xf]
      %v438 = vld [vmem:[%s253 + $0x98] sm:$0xf]
      %v439 = vld [vmem:[%s253 + $0x9c] sm:$0xf]
      %v440 = vld [vmem:[%s253 + $0xa0] sm:$0xf]
      %v441 = vld [vmem:[%s253 + $0xa4] sm:$0xf]
      %v442 = vld [vmem:[%s253 + $0xa8] sm:$0xf]
      %v443 = vld [vmem:[%s253 + $0xac] sm:$0xf]
      %v444 = vld [vmem:[%s253 + $0xb0] sm:$0xf]
      %v445 = vld [vmem:[%s253 + $0xb4] sm:$0xf]
      %v446 = vld [vmem:[%s253 + $0xb8] sm:$0xf]
      %v447 = vld [vmem:[%s253 + $0xbc] sm:$0xf]
      %v448 = vld [vmem:[%s253 + $0xc0] sm:$0xf]
      %v449 = vld [vmem:[%s253 + $0xc4] sm:$0xf]
      %v450 = vld [vmem:[%s253 + $0xc8] sm:$0xf]
      %v451 = vld [vmem:[%s253 + $0xcc] sm:$0xf]
      %v452 = vld [vmem:[%s253 + $0xd0] sm:$0xf]
      %v453 = vld [vmem:[%s253 + $0xd4] sm:$0xf]
      %v454 = vld [vmem:[%s253 + $0xd8] sm:$0xf]
      %v455 = vld [vmem:[%s253 + $0xdc] sm:$0xf]
      %v456 = vld [vmem:[%s253 + $0xe0] sm:$0xf]
      %v457 = vld [vmem:[%s253 + $0xe4] sm:$0xf]
      %v458 = vld [vmem:[%s253 + $0xe8] sm:$0xf]
      %v459 = vld [vmem:[%s253 + $0xec] sm:$0xf]
      %v460 = vld [vmem:[%s253 + $0xf0] sm:$0xf]
      %v461 = vld [vmem:[%s253 + $0xf4] sm:$0xf]
      %v462 = vld [vmem:[%s253 + $0xf8] sm:$0xf]
      %v463 = vld [vmem:[%s253 + $0xfc] sm:$0xf]
      %v528 = vunpack.c.l.b16 %v336
      %v529 = vunpack.c.h.b16 %v336
      %v530 = vunpack.c.l.b16 %v337
      %v531 = vunpack.c.h.b16 %v337
      %v532 = vunpack.c.l.b16 %v338
      %v533 = vunpack.c.h.b16 %v338
      %v534 = vunpack.c.l.b16 %v339
      %v535 = vunpack.c.h.b16 %v339
      %v536 = vunpack.c.l.b16 %v340
      %v537 = vunpack.c.h.b16 %v340
      %v538 = vunpack.c.l.b16 %v341
      %v539 = vunpack.c.h.b16 %v341
      %v540 = vunpack.c.l.b16 %v342
      %v541 = vunpack.c.h.b16 %v342
      %v542 = vunpack.c.l.b16 %v343
      %v543 = vunpack.c.h.b16 %v343
      %v544 = vunpack.c.l.b16 %v344
      %v545 = vunpack.c.h.b16 %v344
      %v546 = vunpack.c.l.b16 %v345
      %v547 = vunpack.c.h.b16 %v345
      %v548 = vunpack.c.l.b16 %v346
      %v549 = vunpack.c.h.b16 %v346
      %v550 = vunpack.c.l.b16 %v347
      %v551 = vunpack.c.h.b16 %v347
      %v552 = vunpack.c.l.b16 %v348
      %v553 = vunpack.c.h.b16 %v348
      %v554 = vunpack.c.l.b16 %v349
      %v555 = vunpack.c.h.b16 %v349
      %v556 = vunpack.c.l.b16 %v350
      %v557 = vunpack.c.h.b16 %v350
      %v558 = vunpack.c.l.b16 %v351
      %v559 = vunpack.c.h.b16 %v351
      %v560 = vunpack.c.l.b16 %v352
      %v561 = vunpack.c.h.b16 %v352
      %v562 = vunpack.c.l.b16 %v353
      %v563 = vunpack.c.h.b16 %v353
      %v564 = vunpack.c.l.b16 %v354
      %v565 = vunpack.c.h.b16 %v354
      %v566 = vunpack.c.l.b16 %v355
      %v567 = vunpack.c.h.b16 %v355
      %v568 = vunpack.c.l.b16 %v356
      %v569 = vunpack.c.h.b16 %v356
      %v570 = vunpack.c.l.b16 %v357
      %v571 = vunpack.c.h.b16 %v357
      %v572 = vunpack.c.l.b16 %v358
      %v573 = vunpack.c.h.b16 %v358
      %v574 = vunpack.c.l.b16 %v359
      %v575 = vunpack.c.h.b16 %v359
      %v576 = vunpack.c.l.b16 %v360
      %v577 = vunpack.c.h.b16 %v360
      %v578 = vunpack.c.l.b16 %v361
      %v579 = vunpack.c.h.b16 %v361
      %v580 = vunpack.c.l.b16 %v362
      %v581 = vunpack.c.h.b16 %v362
      %v582 = vunpack.c.l.b16 %v363
      %v583 = vunpack.c.h.b16 %v363
      %v584 = vunpack.c.l.b16 %v364
      %v585 = vunpack.c.h.b16 %v364
      %v586 = vunpack.c.l.b16 %v365
      %v587 = vunpack.c.h.b16 %v365
      %v588 = vunpack.c.l.b16 %v366
      %v589 = vunpack.c.h.b16 %v366
      %v590 = vunpack.c.l.b16 %v367
      %v591 = vunpack.c.h.b16 %v367
      %v592 = vunpack.c.l.b16 %v368
      %v593 = vunpack.c.h.b16 %v368
      %v594 = vunpack.c.l.b16 %v369
      %v595 = vunpack.c.h.b16 %v369
      %v596 = vunpack.c.l.b16 %v370
      %v597 = vunpack.c.h.b16 %v370
      %v598 = vunpack.c.l.b16 %v371
      %v599 = vunpack.c.h.b16 %v371
      %v600 = vunpack.c.l.b16 %v372
      %v601 = vunpack.c.h.b16 %v372
      %v602 = vunpack.c.l.b16 %v373
      %v603 = vunpack.c.h.b16 %v373
      %v604 = vunpack.c.l.b16 %v374
      %v605 = vunpack.c.h.b16 %v374
      %v606 = vunpack.c.l.b16 %v375
      %v607 = vunpack.c.h.b16 %v375
      %v608 = vunpack.c.l.b16 %v376
      %v609 = vunpack.c.h.b16 %v376
      %v610 = vunpack.c.l.b16 %v377
      %v611 = vunpack.c.h.b16 %v377
      %v612 = vunpack.c.l.b16 %v378
      %v613 = vunpack.c.h.b16 %v378
      %v614 = vunpack.c.l.b16 %v379
      %v615 = vunpack.c.h.b16 %v379
      %v616 = vunpack.c.l.b16 %v380
      %v617 = vunpack.c.h.b16 %v380
      %v618 = vunpack.c.l.b16 %v381
      %v619 = vunpack.c.h.b16 %v381
      %v620 = vunpack.c.l.b16 %v382
      %v621 = vunpack.c.h.b16 %v382
      %v622 = vunpack.c.l.b16 %v383
      %v623 = vunpack.c.h.b16 %v383
      %v624 = vunpack.c.l.b16 %v384
      %v625 = vunpack.c.h.b16 %v384
      %v626 = vunpack.c.l.b16 %v385
      %v627 = vunpack.c.h.b16 %v385
      %v628 = vunpack.c.l.b16 %v386
      %v629 = vunpack.c.h.b16 %v386
      %v630 = vunpack.c.l.b16 %v387
      %v631 = vunpack.c.h.b16 %v387
      %v632 = vunpack.c.l.b16 %v388
      %v633 = vunpack.c.h.b16 %v388
      %v634 = vunpack.c.l.b16 %v389
      %v635 = vunpack.c.h.b16 %v389
      %v636 = vunpack.c.l.b16 %v390
      %v637 = vunpack.c.h.b16 %v390
      %v638 = vunpack.c.l.b16 %v391
      %v639 = vunpack.c.h.b16 %v391
      %v640 = vunpack.c.l.b16 %v392
      %v641 = vunpack.c.h.b16 %v392
      %v642 = vunpack.c.l.b16 %v393
      %v643 = vunpack.c.h.b16 %v393
      %v644 = vunpack.c.l.b16 %v394
      %v645 = vunpack.c.h.b16 %v394
      %v646 = vunpack.c.l.b16 %v395
      %v647 = vunpack.c.h.b16 %v395
      %v648 = vunpack.c.l.b16 %v396
      %v649 = vunpack.c.h.b16 %v396
      %v650 = vunpack.c.l.b16 %v397
      %v651 = vunpack.c.h.b16 %v397
      %v652 = vunpack.c.l.b16 %v398
      %v653 = vunpack.c.h.b16 %v398
      %v654 = vunpack.c.l.b16 %v399
      %v655 = vunpack.c.h.b16 %v399
      %v656 = vpack.c.b16 %v532, %v528
      %v657 = vpack.c.b16 %v533, %v529
      %v658 = vpack.c.b16 %v534, %v530
      %v659 = vpack.c.b16 %v535, %v531
      %v660 = vpack.c.b16 %v540, %v536
      %v661 = vpack.c.b16 %v541, %v537
      %v662 = vpack.c.b16 %v542, %v538
      %v663 = vpack.c.b16 %v543, %v539
      %v664 = vpack.c.b16 %v548, %v544
      %v665 = vpack.c.b16 %v549, %v545
      %v666 = vpack.c.b16 %v550, %v546
      %v667 = vpack.c.b16 %v551, %v547
      %v668 = vpack.c.b16 %v556, %v552
      %v669 = vpack.c.b16 %v557, %v553
      %v670 = vpack.c.b16 %v558, %v554
      %v671 = vpack.c.b16 %v559, %v555
      %v672 = vpack.c.b16 %v564, %v560
      %v673 = vpack.c.b16 %v565, %v561
      %v674 = vpack.c.b16 %v566, %v562
      %v675 = vpack.c.b16 %v567, %v563
      %v676 = vpack.c.b16 %v572, %v568
      %v677 = vpack.c.b16 %v573, %v569
      %v678 = vpack.c.b16 %v574, %v570
      %v679 = vpack.c.b16 %v575, %v571
      %v680 = vpack.c.b16 %v580, %v576
      %v681 = vpack.c.b16 %v581, %v577
      %v682 = vpack.c.b16 %v582, %v578
      %v683 = vpack.c.b16 %v583, %v579
      %v684 = vpack.c.b16 %v588, %v584
      %v685 = vpack.c.b16 %v589, %v585
      %v686 = vpack.c.b16 %v590, %v586
      %v687 = vpack.c.b16 %v591, %v587
      %v688 = vpack.c.b16 %v596, %v592
      %v689 = vpack.c.b16 %v597, %v593
      %v690 = vpack.c.b16 %v598, %v594
      %v691 = vpack.c.b16 %v599, %v595
      %v692 = vpack.c.b16 %v604, %v600
      %v693 = vpack.c.b16 %v605, %v601
      %v694 = vpack.c.b16 %v606, %v602
      %v695 = vpack.c.b16 %v607, %v603
      %v696 = vpack.c.b16 %v612, %v608
      %v697 = vpack.c.b16 %v613, %v609
      %v698 = vpack.c.b16 %v614, %v610
      %v699 = vpack.c.b16 %v615, %v611
      %v700 = vpack.c.b16 %v620, %v616
      %v701 = vpack.c.b16 %v621, %v617
      %v702 = vpack.c.b16 %v622, %v618
      %v703 = vpack.c.b16 %v623, %v619
      %v704 = vpack.c.b16 %v628, %v624
      %v705 = vpack.c.b16 %v629, %v625
      %v706 = vpack.c.b16 %v630, %v626
      %v707 = vpack.c.b16 %v631, %v627
      %v708 = vpack.c.b16 %v636, %v632
      %v709 = vpack.c.b16 %v637, %v633
      %v710 = vpack.c.b16 %v638, %v634
      %v711 = vpack.c.b16 %v639, %v635
      %v712 = vpack.c.b16 %v644, %v640
      %v713 = vpack.c.b16 %v645, %v641
      %v714 = vpack.c.b16 %v646, %v642
      %v715 = vpack.c.b16 %v647, %v643
      %v716 = vpack.c.b16 %v652, %v648
      %v717 = vpack.c.b16 %v653, %v649
      %v718 = vpack.c.b16 %v654, %v650
      %v719 = vpack.c.b16 %v655, %v651
      %v848 = vunpack.c.l.b16 %v400
      %v849 = vunpack.c.l.b16 %v401
      %v850 = vunpack.c.l.b16 %v402
      %v851 = vunpack.c.l.b16 %v403
      %v852 = vunpack.c.l.b16 %v404
      %v853 = vunpack.c.l.b16 %v405
      %v854 = vunpack.c.l.b16 %v406
      %v855 = vunpack.c.l.b16 %v407
      %v856 = vunpack.c.l.b16 %v408
      %v857 = vunpack.c.l.b16 %v409
      %v858 = vunpack.c.l.b16 %v410
      %v859 = vunpack.c.l.b16 %v411
      %v860 = vunpack.c.l.b16 %v412
      %v861 = vunpack.c.l.b16 %v413
      %v862 = vunpack.c.l.b16 %v414
      %v863 = vunpack.c.l.b16 %v415
      %v864 = vunpack.c.l.b16 %v416
      %v865 = vunpack.c.l.b16 %v417
      %v866 = vunpack.c.l.b16 %v418
      %v867 = vunpack.c.l.b16 %v419
      %v868 = vunpack.c.l.b16 %v420
      %v869 = vunpack.c.l.b16 %v421
      %v870 = vunpack.c.l.b16 %v422
      %v871 = vunpack.c.l.b16 %v423
      %v872 = vunpack.c.l.b16 %v424
      %v873 = vunpack.c.l.b16 %v425
      %v874 = vunpack.c.l.b16 %v426
      %v875 = vunpack.c.l.b16 %v427
      %v876 = vunpack.c.l.b16 %v428
      %v877 = vunpack.c.l.b16 %v429
      %v878 = vunpack.c.l.b16 %v430
      %v879 = vunpack.c.l.b16 %v431
      %v880 = vunpack.c.l.b16 %v432
      %v881 = vunpack.c.l.b16 %v433
      %v882 = vunpack.c.l.b16 %v434
      %v883 = vunpack.c.l.b16 %v435
      %v884 = vunpack.c.l.b16 %v436
      %v885 = vunpack.c.l.b16 %v437
      %v886 = vunpack.c.l.b16 %v438
      %v887 = vunpack.c.l.b16 %v439
      %v888 = vunpack.c.l.b16 %v440
      %v889 = vunpack.c.l.b16 %v441
      %v890 = vunpack.c.l.b16 %v442
      %v891 = vunpack.c.l.b16 %v443
      %v892 = vunpack.c.l.b16 %v444
      %v893 = vunpack.c.l.b16 %v445
      %v894 = vunpack.c.l.b16 %v446
      %v895 = vunpack.c.l.b16 %v447
      %v896 = vunpack.c.l.b16 %v448
      %v897 = vunpack.c.l.b16 %v449
      %v898 = vunpack.c.l.b16 %v450
      %v899 = vunpack.c.l.b16 %v451
      %v900 = vunpack.c.l.b16 %v452
      %v901 = vunpack.c.l.b16 %v453
      %v902 = vunpack.c.l.b16 %v454
      %v903 = vunpack.c.l.b16 %v455
      %v904 = vunpack.c.l.b16 %v456
      %v905 = vunpack.c.l.b16 %v457
      %v906 = vunpack.c.l.b16 %v458
      %v907 = vunpack.c.l.b16 %v459
      %v908 = vunpack.c.l.b16 %v460
      %v909 = vunpack.c.l.b16 %v461
      %v910 = vunpack.c.l.b16 %v462
      %v911 = vunpack.c.l.b16 %v463
      %v912 = vpack.c.b16 %v849, %v848
      %v913 = vpack.c.b16 %v851, %v850
      %v914 = vpack.c.b16 %v853, %v852
      %v915 = vpack.c.b16 %v855, %v854
      %v916 = vpack.c.b16 %v857, %v856
      %v917 = vpack.c.b16 %v859, %v858
      %v918 = vpack.c.b16 %v861, %v860
      %v919 = vpack.c.b16 %v863, %v862
      %v920 = vpack.c.b16 %v865, %v864
      %v921 = vpack.c.b16 %v867, %v866
      %v922 = vpack.c.b16 %v869, %v868
      %v923 = vpack.c.b16 %v871, %v870
      %v924 = vpack.c.b16 %v873, %v872
      %v925 = vpack.c.b16 %v875, %v874
      %v926 = vpack.c.b16 %v877, %v876
      %v927 = vpack.c.b16 %v879, %v878
      %v928 = vpack.c.b16 %v881, %v880
      %v929 = vpack.c.b16 %v883, %v882
      %v930 = vpack.c.b16 %v885, %v884
      %v931 = vpack.c.b16 %v887, %v886
      %v932 = vpack.c.b16 %v889, %v888
      %v933 = vpack.c.b16 %v891, %v890
      %v934 = vpack.c.b16 %v893, %v892
      %v935 = vpack.c.b16 %v895, %v894
      %v936 = vpack.c.b16 %v897, %v896
      %v937 = vpack.c.b16 %v899, %v898
      %v938 = vpack.c.b16 %v901, %v900
      %v939 = vpack.c.b16 %v903, %v902
      %v940 = vpack.c.b16 %v905, %v904
      %v941 = vpack.c.b16 %v907, %v906
      %v942 = vpack.c.b16 %v909, %v908
      %v943 = vpack.c.b16 %v911, %v910
      %976 = vmatprep.subr.bf16.mxu0 0
      %977 = vmatpush1.bf16.msra.mxu0 %v912
      %978 = vmatprep.subr.bf16.mxu0 0
      %979 = vmatpush1.bf16.msra.mxu0 %v913
      %980 = vmatprep.subr.bf16.mxu0 0
      %981 = vmatpush1.bf16.msra.mxu0 %v914
      %982 = vmatprep.subr.bf16.mxu0 0
      %983 = vmatpush1.bf16.msra.mxu0 %v915
      %984 = vmatprep.subr.bf16.mxu0 0
      %985 = vmatpush1.bf16.msra.mxu0 %v916
      %986 = vmatprep.subr.bf16.mxu0 0
      %987 = vmatpush1.bf16.msra.mxu0 %v917
      %988 = vmatprep.subr.bf16.mxu0 0
      %989 = vmatpush1.bf16.msra.mxu0 %v918
      %990 = vmatprep.subr.bf16.mxu0 0
      %991 = vmatpush1.bf16.msra.mxu0 %v919
      %992 = vmatprep.subr.bf16.mxu0 0
      %993 = vmatpush1.bf16.msra.mxu0 %v920
      %994 = vmatprep.subr.bf16.mxu0 0
      %995 = vmatpush1.bf16.msra.mxu0 %v921
      %996 = vmatprep.subr.bf16.mxu0 0
      %997 = vmatpush1.bf16.msra.mxu0 %v922
      %998 = vmatprep.subr.bf16.mxu0 0
      %999 = vmatpush1.bf16.msra.mxu0 %v923
      %1000 = vmatprep.subr.bf16.mxu0 0
      %1001 = vmatpush1.bf16.msra.mxu0 %v924
      %1002 = vmatprep.subr.bf16.mxu0 0
      %1003 = vmatpush1.bf16.msra.mxu0 %v925
      %1004 = vmatprep.subr.bf16.mxu0 0
      %1005 = vmatpush1.bf16.msra.mxu0 %v926
      %1006 = vmatprep.subr.bf16.mxu0 0
      %1007 = vmatpush1.bf16.msra.mxu0 %v927
      %1008 = vmatprep.mubr.bf16.mxu0 %v657
      %1009 = vmatmul.mubr.bf16.gmra.mrb[0].mxu0 %v656
      %v1010 = vpop.f32.mrb[0].mxu0
      %v1011 = vadd.f32 0.0, %v1010
      %v1012 = vpop.f32.mrb[0].mxu0
      %v1013 = vpop.f32.mrb[0].mxu0
      %v1014 = vadd.f32 0.0, %v1013
      %v1015 = vpop.f32.mrb[0].mxu0
      %1016 = vmatprep.mubr.bf16.mxu0 %v661
      %1017 = vmatmul.mubr.bf16.gmra.mrb[0].mxu0 %v660
      %v1018 = vpop.f32.mrb[0].mxu0
      %v1019 = vadd.f32 0.0, %v1018
      %v1020 = vpop.f32.mrb[0].mxu0
      %v1021 = vpop.f32.mrb[0].mxu0
      %v1022 = vadd.f32 0.0, %v1021
      %v1023 = vpop.f32.mrb[0].mxu0
      %1024 = vmatprep.mubr.bf16.mxu0 %v665
      %1025 = vmatmul.mubr.bf16.gmra.mrb[0].mxu0 %v664
      %v1026 = vpop.f32.mrb[0].mxu0
      %v1027 = vadd.f32 0.0, %v1026
      %v1028 = vpop.f32.mrb[0].mxu0
      %v1029 = vpop.f32.mrb[0].mxu0
      %v1030 = vadd.f32 0.0, %v1029
      %v1031 = vpop.f32.mrb[0].mxu0
      %1032 = vmatprep.mubr.bf16.mxu0 %v669
      %1033 = vmatmul.mubr.bf16.gmra.mrb[0].mxu0 %v668
      %v1034 = vpop.f32.mrb[0].mxu0
      %v1035 = vadd.f32 0.0, %v1034
      %v1036 = vpop.f32.mrb[0].mxu0
      %v1037 = vpop.f32.mrb[0].mxu0
      %v1038 = vadd.f32 0.0, %v1037
      %v1039 = vpop.f32.mrb[0].mxu0
      %1040 = vmatprep.mubr.bf16.mxu0 %v673
      %1041 = vmatmul.mubr.bf16.gmra.mrb[0].mxu0 %v672
      %v1042 = vpop.f32.mrb[0].mxu0
      %v1043 = vadd.f32 0.0, %v1042
      %v1044 = vpop.f32.mrb[0].mxu0
      %v1045 = vpop.f32.mrb[0].mxu0
      %v1046 = vadd.f32 0.0, %v1045
      %v1047 = vpop.f32.mrb[0].mxu0
      %1048 = vmatprep.mubr.bf16.mxu0 %v677
      %1049 = vmatmul.mubr.bf16.gmra.mrb[0].mxu0 %v676
      %v1050 = vpop.f32.mrb[0].mxu0
      %v1051 = vadd.f32 0.0, %v1050
      %v1052 = vpop.f32.mrb[0].mxu0
      %v1053 = vpop.f32.mrb[0].mxu0
      %v1054 = vadd.f32 0.0, %v1053
      %v1055 = vpop.f32.mrb[0].mxu0
      %1056 = vmatprep.mubr.bf16.mxu0 %v681
      %1057 = vmatmul.mubr.bf16.gmra.mrb[0].mxu0 %v680
      %v1058 = vpop.f32.mrb[0].mxu0
      %v1059 = vadd.f32 0.0, %v1058
      %v1060 = vpop.f32.mrb[0].mxu0
      %v1061 = vpop.f32.mrb[0].mxu0
      %v1062 = vadd.f32 0.0, %v1061
      %v1063 = vpop.f32.mrb[0].mxu0
      %1064 = vmatprep.mubr.bf16.mxu0 %v685
      %1065 = vmatmul.mubr.bf16.gmra.mrb[0].mxu0 %v684
      %v1066 = vpop.f32.mrb[0].mxu0
      %v1067 = vadd.f32 0.0, %v1066
      %v1068 = vpop.f32.mrb[0].mxu0
      %v1069 = vpop.f32.mrb[0].mxu0
      %v1070 = vadd.f32 0.0, %v1069
      %v1071 = vpop.f32.mrb[0].mxu0
      %1072 = vmatprep.mubr.bf16.mxu0 %v689
      %1073 = vmatmul.mubr.bf16.gmra.mrb[0].mxu0 %v688
      %v1074 = vpop.f32.mrb[0].mxu0
      %v1075 = vadd.f32 0.0, %v1074
      %v1076 = vpop.f32.mrb[0].mxu0
      %v1077 = vpop.f32.mrb[0].mxu0
      %v1078 = vadd.f32 0.0, %v1077
      %v1079 = vpop.f32.mrb[0].mxu0
      %1080 = vmatprep.mubr.bf16.mxu0 %v693
      %1081 = vmatmul.mubr.bf16.gmra.mrb[0].mxu0 %v692
      %v1082 = vpop.f32.mrb[0].mxu0
      %v1083 = vadd.f32 0.0, %v1082
      %v1084 = vpop.f32.mrb[0].mxu0
      %v1085 = vpop.f32.mrb[0].mxu0
      %v1086 = vadd.f32 0.0, %v1085
      %v1087 = vpop.f32.mrb[0].mxu0
      %1088 = vmatprep.mubr.bf16.mxu0 %v697
      %1089 = vmatmul.mubr.bf16.gmra.mrb[0].mxu0 %v696
      %v1090 = vpop.f32.mrb[0].mxu0
      %v1091 = vadd.f32 0.0, %v1090
      %v1092 = vpop.f32.mrb[0].mxu0
      %v1093 = vpop.f32.mrb[0].mxu0
      %v1094 = vadd.f32 0.0, %v1093
      %v1095 = vpop.f32.mrb[0].mxu0
      %1096 = vmatprep.mubr.bf16.mxu0 %v701
      %1097 = vmatmul.mubr.bf16.gmra.mrb[0].mxu0 %v700
      %v1098 = vpop.f32.mrb[0].mxu0
      %v1099 = vadd.f32 0.0, %v1098
      %v1100 = vpop.f32.mrb[0].mxu0
      %v1101 = vpop.f32.mrb[0].mxu0
      %v1102 = vadd.f32 0.0, %v1101
      %v1103 = vpop.f32.mrb[0].mxu0
      %1104 = vmatprep.mubr.bf16.mxu0 %v705
      %1105 = vmatmul.mubr.bf16.gmra.mrb[0].mxu0 %v704
      %v1106 = vpop.f32.mrb[0].mxu0
      %v1107 = vadd.f32 0.0, %v1106
      %v1108 = vpop.f32.mrb[0].mxu0
      %v1109 = vpop.f32.mrb[0].mxu0
      %v1110 = vadd.f32 0.0, %v1109
      %v1111 = vpop.f32.mrb[0].mxu0
      %1112 = vmatprep.mubr.bf16.mxu0 %v709
      %1113 = vmatmul.mubr.bf16.gmra.mrb[0].mxu0 %v708
      %v1114 = vpop.f32.mrb[0].mxu0
      %v1115 = vadd.f32 0.0, %v1114
      %v1116 = vpop.f32.mrb[0].mxu0
      %v1117 = vpop.f32.mrb[0].mxu0
      %v1118 = vadd.f32 0.0, %v1117
      %v1119 = vpop.f32.mrb[0].mxu0
      %1120 = vmatprep.mubr.bf16.mxu0 %v713
      %1121 = vmatmul.mubr.bf16.gmra.mrb[0].mxu0 %v712
      %v1122 = vpop.f32.mrb[0].mxu0
      %v1123 = vadd.f32 0.0, %v1122
      %v1124 = vpop.f32.mrb[0].mxu0
      %v1125 = vpop.f32.mrb[0].mxu0
      %v1126 = vadd.f32 0.0, %v1125
      %v1127 = vpop.f32.mrb[0].mxu0
      %1128 = vmatprep.mubr.bf16.mxu0 %v717
      %1129 = vmatmul.mubr.bf16.gmra.mrb[0].mxu0 %v716
      %v1130 = vpop.f32.mrb[0].mxu0
      %v1131 = vadd.f32 0.0, %v1130
      %v1132 = vpop.f32.mrb[0].mxu0
      %v1133 = vpop.f32.mrb[0].mxu0
      %v1134 = vadd.f32 0.0, %v1133
      %v1135 = vpop.f32.mrb[0].mxu0
      %1136 = vdwg.mxu0
      %1137 = vmatprep.subr.bf16.mxu0 0
      %1138 = vmatpush1.bf16.msra.mxu0 %v928
      %1139 = vmatprep.subr.bf16.mxu0 0
      %1140 = vmatpush1.bf16.msra.mxu0 %v929
      %1141 = vmatprep.subr.bf16.mxu0 0
      %1142 = vmatpush1.bf16.msra.mxu0 %v930
      %1143 = vmatprep.subr.bf16.mxu0 0
      %1144 = vmatpush1.bf16.msra.mxu0 %v931
      %1145 = vmatprep.subr.bf16.mxu0 0
      %1146 = vmatpush1.bf16.msra.mxu0 %v932
      %1147 = vmatprep.subr.bf16.mxu0 0
      %1148 = vmatpush1.bf16.msra.mxu0 %v933
      %1149 = vmatprep.subr.bf16.mxu0 0
      %1150 = vmatpush1.bf16.msra.mxu0 %v934
      %1151 = vmatprep.subr.bf16.mxu0 0
      %1152 = vmatpush1.bf16.msra.mxu0 %v935
      %1153 = vmatprep.subr.bf16.mxu0 0
      %1154 = vmatpush1.bf16.msra.mxu0 %v936
      %1155 = vmatprep.subr.bf16.mxu0 0
      %1156 = vmatpush1.bf16.msra.mxu0 %v937
      %1157 = vmatprep.subr.bf16.mxu0 0
      %1158 = vmatpush1.bf16.msra.mxu0 %v938
      %1159 = vmatprep.subr.bf16.mxu0 0
      %1160 = vmatpush1.bf16.msra.mxu0 %v939
      %1161 = vmatprep.subr.bf16.mxu0 0
      %1162 = vmatpush1.bf16.msra.mxu0 %v940
      %1163 = vmatprep.subr.bf16.mxu0 0
      %1164 = vmatpush1.bf16.msra.mxu0 %v941
      %1165 = vmatprep.subr.bf16.mxu0 0
      %1166 = vmatpush1.bf16.msra.mxu0 %v942
      %1167 = vmatprep.subr.bf16.mxu0 0
      %1168 = vmatpush1.bf16.msra.mxu0 %v943
      %1169 = vmatprep.mubr.bf16.mxu0 %v659
      %1170 = vmatmul.mubr.bf16.gmra.mrb[0].mxu0 %v658
      %v1171 = vpop.f32.mrb[0].mxu0
      %v1172 = vadd.f32 %v1011, %v1171
      %v1173 = vpop.f32.mrb[0].mxu0
      %v1174 = vpop.f32.mrb[0].mxu0
      %v1175 = vadd.f32 %v1014, %v1174
      %v1176 = vpop.f32.mrb[0].mxu0
      %1177 = vmatprep.mubr.bf16.mxu0 %v663
      %1178 = vmatmul.mubr.bf16.gmra.mrb[0].mxu0 %v662
      %v1179 = vpop.f32.mrb[0].mxu0
      %v1180 = vadd.f32 %v1019, %v1179
      %v1181 = vpop.f32.mrb[0].mxu0
      %v1182 = vpop.f32.mrb[0].mxu0
      %v1183 = vadd.f32 %v1022, %v1182
      %v1184 = vpop.f32.mrb[0].mxu0
      %1185 = vmatprep.mubr.bf16.mxu0 %v667
      %1186 = vmatmul.mubr.bf16.gmra.mrb[0].mxu0 %v666
      %v1187 = vpop.f32.mrb[0].mxu0
      %v1188 = vadd.f32 %v1027, %v1187
      %v1189 = vpop.f32.mrb[0].mxu0
      %v1190 = vpop.f32.mrb[0].mxu0
      %v1191 = vadd.f32 %v1030, %v1190
      %v1192 = vpop.f32.mrb[0].mxu0
      %1193 = vmatprep.mubr.bf16.mxu0 %v671
      %1194 = vmatmul.mubr.bf16.gmra.mrb[0].mxu0 %v670
      %v1195 = vpop.f32.mrb[0].mxu0
      %v1196 = vadd.f32 %v1035, %v1195
      %v1197 = vpop.f32.mrb[0].mxu0
      %v1198 = vpop.f32.mrb[0].mxu0
      %v1199 = vadd.f32 %v1038, %v1198
      %v1200 = vpop.f32.mrb[0].mxu0
      %1201 = vmatprep.mubr.bf16.mxu0 %v675
      %1202 = vmatmul.mubr.bf16.gmra.mrb[0].mxu0 %v674
      %v1203 = vpop.f32.mrb[0].mxu0
      %v1204 = vadd.f32 %v1043, %v1203
      %v1205 = vpop.f32.mrb[0].mxu0
      %v1206 = vpop.f32.mrb[0].mxu0
      %v1207 = vadd.f32 %v1046, %v1206
      %v1208 = vpop.f32.mrb[0].mxu0
      %1209 = vmatprep.mubr.bf16.mxu0 %v679
      %1210 = vmatmul.mubr.bf16.gmra.mrb[0].mxu0 %v678
      %v1211 = vpop.f32.mrb[0].mxu0
      %v1212 = vadd.f32 %v1051, %v1211
      %v1213 = vpop.f32.mrb[0].mxu0
      %v1214 = vpop.f32.mrb[0].mxu0
      %v1215 = vadd.f32 %v1054, %v1214
      %v1216 = vpop.f32.mrb[0].mxu0
      %1217 = vmatprep.mubr.bf16.mxu0 %v683
      %1218 = vmatmul.mubr.bf16.gmra.mrb[0].mxu0 %v682
      %v1219 = vpop.f32.mrb[0].mxu0
      %v1220 = vadd.f32 %v1059, %v1219
      %v1221 = vpop.f32.mrb[0].mxu0
      %v1222 = vpop.f32.mrb[0].mxu0
      %v1223 = vadd.f32 %v1062, %v1222
      %v1224 = vpop.f32.mrb[0].mxu0
      %1225 = vmatprep.mubr.bf16.mxu0 %v687
      %1226 = vmatmul.mubr.bf16.gmra.mrb[0].mxu0 %v686
      %v1227 = vpop.f32.mrb[0].mxu0
      %v1228 = vadd.f32 %v1067, %v1227
      %v1229 = vpop.f32.mrb[0].mxu0
      %v1230 = vpop.f32.mrb[0].mxu0
      %v1231 = vadd.f32 %v1070, %v1230
      %v1232 = vpop.f32.mrb[0].mxu0
      %1233 = vmatprep.mubr.bf16.mxu0 %v691
      %1234 = vmatmul.mubr.bf16.gmra.mrb[0].mxu0 %v690
      %v1235 = vpop.f32.mrb[0].mxu0
      %v1236 = vadd.f32 %v1075, %v1235
      %v1237 = vpop.f32.mrb[0].mxu0
      %v1238 = vpop.f32.mrb[0].mxu0
      %v1239 = vadd.f32 %v1078, %v1238
      %v1240 = vpop.f32.mrb[0].mxu0
      %1241 = vmatprep.mubr.bf16.mxu0 %v695
      %1242 = vmatmul.mubr.bf16.gmra.mrb[0].mxu0 %v694
      %v1243 = vpop.f32.mrb[0].mxu0
      %v1244 = vadd.f32 %v1083, %v1243
      %v1245 = vpop.f32.mrb[0].mxu0
      %v1246 = vpop.f32.mrb[0].mxu0
      %v1247 = vadd.f32 %v1086, %v1246
      %v1248 = vpop.f32.mrb[0].mxu0
      %1249 = vmatprep.mubr.bf16.mxu0 %v699
      %1250 = vmatmul.mubr.bf16.gmra.mrb[0].mxu0 %v698
      %v1251 = vpop.f32.mrb[0].mxu0
      %v1252 = vadd.f32 %v1091, %v1251
      %v1253 = vpop.f32.mrb[0].mxu0
      %v1254 = vpop.f32.mrb[0].mxu0
      %v1255 = vadd.f32 %v1094, %v1254
      %v1256 = vpop.f32.mrb[0].mxu0
      %1257 = vmatprep.mubr.bf16.mxu0 %v703
      %1258 = vmatmul.mubr.bf16.gmra.mrb[0].mxu0 %v702
      %v1259 = vpop.f32.mrb[0].mxu0
      %v1260 = vadd.f32 %v1099, %v1259
      %v1261 = vpop.f32.mrb[0].mxu0
      %v1262 = vpop.f32.mrb[0].mxu0
      %v1263 = vadd.f32 %v1102, %v1262
      %v1264 = vpop.f32.mrb[0].mxu0
      %1265 = vmatprep.mubr.bf16.mxu0 %v707
      %1266 = vmatmul.mubr.bf16.gmra.mrb[0].mxu0 %v706
      %v1267 = vpop.f32.mrb[0].mxu0
      %v1268 = vadd.f32 %v1107, %v1267
      %v1269 = vpop.f32.mrb[0].mxu0
      %v1270 = vpop.f32.mrb[0].mxu0
      %v1271 = vadd.f32 %v1110, %v1270
      %v1272 = vpop.f32.mrb[0].mxu0
      %1273 = vmatprep.mubr.bf16.mxu0 %v711
      %1274 = vmatmul.mubr.bf16.gmra.mrb[0].mxu0 %v710
      %v1275 = vpop.f32.mrb[0].mxu0
      %v1276 = vadd.f32 %v1115, %v1275
      %v1277 = vpop.f32.mrb[0].mxu0
      %v1278 = vpop.f32.mrb[0].mxu0
      %v1279 = vadd.f32 %v1118, %v1278
      %v1280 = vpop.f32.mrb[0].mxu0
      %1281 = vmatprep.mubr.bf16.mxu0 %v715
      %1282 = vmatmul.mubr.bf16.gmra.mrb[0].mxu0 %v714
      %v1283 = vpop.f32.mrb[0].mxu0
      %v1284 = vadd.f32 %v1123, %v1283
      %v1285 = vpop.f32.mrb[0].mxu0
      %v1286 = vpop.f32.mrb[0].mxu0
      %v1287 = vadd.f32 %v1126, %v1286
      %v1288 = vpop.f32.mrb[0].mxu0
      %1289 = vmatprep.mubr.bf16.mxu0 %v719
      %1290 = vmatmul.mubr.bf16.gmra.mrb[0].mxu0 %v718
      %v1291 = vpop.f32.mrb[0].mxu0
      %v1292 = vadd.f32 %v1131, %v1291
      %v1293 = vpop.f32.mrb[0].mxu0
      %v1294 = vpop.f32.mrb[0].mxu0
      %v1295 = vadd.f32 %v1134, %v1294
      %v1296 = vpop.f32.mrb[0].mxu0
      %1297 = vdwg.mxu0
      %v1298 = vadd.f32 %v304, %v1172
      %v1299 = vadd.f32 %v305, %v1175
      %v1300 = vadd.f32 %v306, %v1180
      %v1301 = vadd.f32 %v307, %v1183
      %v1302 = vadd.f32 %v308, %v1188
      %v1303 = vadd.f32 %v309, %v1191
      %v1304 = vadd.f32 %v310, %v1196
      %v1305 = vadd.f32 %v311, %v1199
      %v1306 = vadd.f32 %v312, %v1204
      %v1307 = vadd.f32 %v313, %v1207
      %v1308 = vadd.f32 %v314, %v1212
      %v1309 = vadd.f32 %v315, %v1215
      %v1310 = vadd.f32 %v316, %v1220
      %v1311 = vadd.f32 %v317, %v1223
      %v1312 = vadd.f32 %v318, %v1228
      %v1313 = vadd.f32 %v319, %v1231
      %v1314 = vadd.f32 %v320, %v1236
      %v1315 = vadd.f32 %v321, %v1239
      %v1316 = vadd.f32 %v322, %v1244
      %v1317 = vadd.f32 %v323, %v1247
      %v1318 = vadd.f32 %v324, %v1252
      %v1319 = vadd.f32 %v325, %v1255
      %v1320 = vadd.f32 %v326, %v1260
      %v1321 = vadd.f32 %v327, %v1263
      %v1322 = vadd.f32 %v328, %v1268
      %v1323 = vadd.f32 %v329, %v1271
      %v1324 = vadd.f32 %v330, %v1276
      %v1325 = vadd.f32 %v331, %v1279
      %v1326 = vadd.f32 %v332, %v1284
      %v1327 = vadd.f32 %v333, %v1287
      %v1328 = vadd.f32 %v334, %v1292
      %v1329 = vadd.f32 %v335, %v1295
      %1330 = vst [vmem:[#allocation2] sm:$0xff] %v1298
      %1331 = vst [vmem:[#allocation2 + $0x8] sm:$0xff] %v1299
      %1332 = vst [vmem:[#allocation2 + $0x10] sm:$0xff] %v1300
      %1333 = vst [vmem:[#allocation2 + $0x18] sm:$0xff] %v1301
      %1334 = vst [vmem:[#allocation2 + $0x20] sm:$0xff] %v1302
      %1335 = vst [vmem:[#allocation2 + $0x28] sm:$0xff] %v1303
      %1336 = vst [vmem:[#allocation2 + $0x30] sm:$0xff] %v1304
      %1337 = vst [vmem:[#allocation2 + $0x38] sm:$0xff] %v1305
      %1338 = vst [vmem:[#allocation2 + $0x40] sm:$0xff] %v1306
      %1339 = vst [vmem:[#allocation2 + $0x48] sm:$0xff] %v1307
      %1340 = vst [vmem:[#allocation2 + $0x50] sm:$0xff] %v1308
      %1341 = vst [vmem:[#allocation2 + $0x58] sm:$0xff] %v1309
      %1342 = vst [vmem:[#allocation2 + $0x60] sm:$0xff] %v1310
      %1343 = vst [vmem:[#allocation2 + $0x68] sm:$0xff] %v1311
      %1344 = vst [vmem:[#allocation2 + $0x70] sm:$0xff] %v1312
      %1345 = vst [vmem:[#allocation2 + $0x78] sm:$0xff] %v1313
      %1346 = vst [vmem:[#allocation2 + $0x80] sm:$0xff] %v1314
      %1347 = vst [vmem:[#allocation2 + $0x88] sm:$0xff] %v1315
      %1348 = vst [vmem:[#allocation2 + $0x90] sm:$0xff] %v1316
      %1349 = vst [vmem:[#allocation2 + $0x98] sm:$0xff] %v1317
      %1350 = vst [vmem:[#allocation2 + $0xa0] sm:$0xff] %v1318
      %1351 = vst [vmem:[#allocation2 + $0xa8] sm:$0xff] %v1319
      %1352 = vst [vmem:[#allocation2 + $0xb0] sm:$0xff] %v1320
      %1353 = vst [vmem:[#allocation2 + $0xb8] sm:$0xff] %v1321
      %1354 = vst [vmem:[#allocation2 + $0xc0] sm:$0xff] %v1322
      %1355 = vst [vmem:[#allocation2 + $0xc8] sm:$0xff] %v1323
      %1356 = vst [vmem:[#allocation2 + $0xd0] sm:$0xff] %v1324
      %1357 = vst [vmem:[#allocation2 + $0xd8] sm:$0xff] %v1325
      %1358 = vst [vmem:[#allocation2 + $0xe0] sm:$0xff] %v1326
      %1359 = vst [vmem:[#allocation2 + $0xe8] sm:$0xff] %v1327
      %1360 = vst [vmem:[#allocation2 + $0xf0] sm:$0xff] %v1328
      %1361 = vst [vmem:[#allocation2 + $0xf8] sm:$0xff] %v1329
      // Predicated region
      $region37: #{mrcnn_forward.7} parent=31 // pred_check
        %p1362 = pneg %p268
      $region38: #{mrcnn_forward.7} parent=31 // pred_check_branch
        %1364 = sbr.rel (%p1362) target = $region40
      $region39: #{mrcnn_forward.7} parent=31 // pred_region
        %v1365 = vld [vmem:[#allocation2] sm:$0xff]
        %v1366 = vld [vmem:[#allocation2 + $0x8] sm:$0xff]
        %v1367 = vld [vmem:[#allocation2 + $0x10] sm:$0xff]
        %v1368 = vld [vmem:[#allocation2 + $0x18] sm:$0xff]
        %v1369 = vld [vmem:[#allocation2 + $0x20] sm:$0xff]
        %v1370 = vld [vmem:[#allocation2 + $0x28] sm:$0xff]
        %v1371 = vld [vmem:[#allocation2 + $0x30] sm:$0xff]
        %v1372 = vld [vmem:[#allocation2 + $0x38] sm:$0xff]
        %v1373 = vld [vmem:[#allocation2 + $0x40] sm:$0xff]
        %v1374 = vld [vmem:[#allocation2 + $0x48] sm:$0xff]
        %v1375 = vld [vmem:[#allocation2 + $0x50] sm:$0xff]
        %v1376 = vld [vmem:[#allocation2 + $0x58] sm:$0xff]
        %v1377 = vld [vmem:[#allocation2 + $0x60] sm:$0xff]
        %v1378 = vld [vmem:[#allocation2 + $0x68] sm:$0xff]
        %v1379 = vld [vmem:[#allocation2 + $0x70] sm:$0xff]
        %v1380 = vld [vmem:[#allocation2 + $0x78] sm:$0xff]
        %v1381 = vld [vmem:[#allocation2 + $0x80] sm:$0xff]
        %v1382 = vld [vmem:[#allocation2 + $0x88] sm:$0xff]
        %v1383 = vld [vmem:[#allocation2 + $0x90] sm:$0xff]
        %v1384 = vld [vmem:[#allocation2 + $0x98] sm:$0xff]
        %v1385 = vld [vmem:[#allocation2 + $0xa0] sm:$0xff]
        %v1386 = vld [vmem:[#allocation2 + $0xa8] sm:$0xff]
        %v1387 = vld [vmem:[#allocation2 + $0xb0] sm:$0xff]
        %v1388 = vld [vmem:[#allocation2 + $0xb8] sm:$0xff]
        %v1389 = vld [vmem:[#allocation2 + $0xc0] sm:$0xff]
        %v1390 = vld [vmem:[#allocation2 + $0xc8] sm:$0xff]
        %v1391 = vld [vmem:[#allocation2 + $0xd0] sm:$0xff]
        %v1392 = vld [vmem:[#allocation2 + $0xd8] sm:$0xff]
        %v1393 = vld [vmem:[#allocation2 + $0xe0] sm:$0xff]
        %v1394 = vld [vmem:[#allocation2 + $0xe8] sm:$0xff]
        %v1395 = vld [vmem:[#allocation2 + $0xf0] sm:$0xff]
        %v1396 = vld [vmem:[#allocation2 + $0xf8] sm:$0xff]
        %v1397 = vld [vmem:[%s257] sm:$0x1]
        %v1399 = vlaneseq
        %v1400 = vshrl.u32 %v1399, 7
        %v1401 = vsub.s32 0, %v1400
        %v1402 = vrot.slane %v1397, %v1401
        %v1404 = vadd.f32 %v1365, %v1402
        %v1405 = vadd.f32 %v1366, %v1402
        %v1406 = vadd.f32 %v1367, %v1402
        %v1407 = vadd.f32 %v1368, %v1402
        %v1408 = vadd.f32 %v1369, %v1402
        %v1409 = vadd.f32 %v1370, %v1402
        %v1410 = vadd.f32 %v1371, %v1402
        %v1411 = vadd.f32 %v1372, %v1402
        %v1412 = vadd.f32 %v1373, %v1402
        %v1413 = vadd.f32 %v1374, %v1402
        %v1414 = vadd.f32 %v1375, %v1402
        %v1415 = vadd.f32 %v1376, %v1402
        %v1416 = vadd.f32 %v1377, %v1402
        %v1417 = vadd.f32 %v1378, %v1402
        %v1418 = vadd.f32 %v1379, %v1402
        %v1419 = vadd.f32 %v1380, %v1402
        %v1420 = vadd.f32 %v1381, %v1402
        %v1421 = vadd.f32 %v1382, %v1402
        %v1422 = vadd.f32 %v1383, %v1402
        %v1423 = vadd.f32 %v1384, %v1402
        %v1424 = vadd.f32 %v1385, %v1402
        %v1425 = vadd.f32 %v1386, %v1402
        %v1426 = vadd.f32 %v1387, %v1402
        %v1427 = vadd.f32 %v1388, %v1402
        %v1428 = vadd.f32 %v1389, %v1402
        %v1429 = vadd.f32 %v1390, %v1402
        %v1430 = vadd.f32 %v1391, %v1402
        %v1431 = vadd.f32 %v1392, %v1402
        %v1432 = vadd.f32 %v1393, %v1402
        %v1433 = vadd.f32 %v1394, %v1402
        %v1434 = vadd.f32 %v1395, %v1402
        %v1435 = vadd.f32 %v1396, %v1402
        %1436 = vst [vmem:[%s265] sm:$0xff] %v1404
        %1437 = vst [vmem:[%s265 + $0x8] sm:$0xff] %v1405
        %1438 = vst [vmem:[%s265 + $0x10] sm:$0xff] %v1406
        %1439 = vst [vmem:[%s265 + $0x18] sm:$0xff] %v1407
        %1440 = vst [vmem:[%s265 + $0x20] sm:$0xff] %v1408
        %1441 = vst [vmem:[%s265 + $0x28] sm:$0xff] %v1409
        %1442 = vst [vmem:[%s265 + $0x30] sm:$0xff] %v1410
        %1443 = vst [vmem:[%s265 + $0x38] sm:$0xff] %v1411
        %1444 = vst [vmem:[%s265 + $0x40] sm:$0xff] %v1412
        %1445 = vst [vmem:[%s265 + $0x48] sm:$0xff] %v1413
        %1446 = vst [vmem:[%s265 + $0x50] sm:$0xff] %v1414
        %1447 = vst [vmem:[%s265 + $0x58] sm:$0xff] %v1415
        %1448 = vst [vmem:[%s265 + $0x60] sm:$0xff] %v1416
        %1449 = vst [vmem:[%s265 + $0x68] sm:$0xff] %v1417
        %1450 = vst [vmem:[%s265 + $0x70] sm:$0xff] %v1418
        %1451 = vst [vmem:[%s265 + $0x78] sm:$0xff] %v1419
        %1452 = vst [vmem:[%s265 + $0x80] sm:$0xff] %v1420
        %1453 = vst [vmem:[%s265 + $0x88] sm:$0xff] %v1421
        %1454 = vst [vmem:[%s265 + $0x90] sm:$0xff] %v1422
        %1455 = vst [vmem:[%s265 + $0x98] sm:$0xff] %v1423
        %1456 = vst [vmem:[%s265 + $0xa0] sm:$0xff] %v1424
        %1457 = vst [vmem:[%s265 + $0xa8] sm:$0xff] %v1425
        %1458 = vst [vmem:[%s265 + $0xb0] sm:$0xff] %v1426
        %1459 = vst [vmem:[%s265 + $0xb8] sm:$0xff] %v1427
        %1460 = vst [vmem:[%s265 + $0xc0] sm:$0xff] %v1428
        %1461 = vst [vmem:[%s265 + $0xc8] sm:$0xff] %v1429
        %1462 = vst [vmem:[%s265 + $0xd0] sm:$0xff] %v1430
        %1463 = vst [vmem:[%s265 + $0xd8] sm:$0xff] %v1431
        %1464 = vst [vmem:[%s265 + $0xe0] sm:$0xff] %v1432
        %1465 = vst [vmem:[%s265 + $0xe8] sm:$0xff] %v1433
        %1466 = vst [vmem:[%s265 + $0xf0] sm:$0xff] %v1434
        %1467 = vst [vmem:[%s265 + $0xf8] sm:$0xff] %v1435
      $region40: #{mrcnn_forward.7} parent=31 // pred_fallthru
        _
      %s1468 = smul.u32 32, %s19
      %p1469 = scmp.lt.s32.totalorder %s1468, 63
      %s1470 = scalar_select %p1469, %s1468, 63
      %p1471 = scmp.lt.s32.totalorder %s20, 0
      %s1472 = scalar_select %p1471, %s20, 0
      %s1473 = sadd.s32 %s1472, %s1470
      %s1474 = smul.addr %s1473, 8
      %s1475 = scalar_lea.vmem %s3, %s1474
      // Predicated region
      $region41: #{mrcnn_forward.7} parent=31 // pred_check
        %p1476 = pneg %p135
      $region42: #{mrcnn_forward.7} parent=31 // pred_check_branch
        %1478 = sbr.rel (%p1476) target = $region44
      $region43: #{mrcnn_forward.7} parent=31 // pred_region
        %s1479 = smul.u32 32, %s19
      $region44: #{mrcnn_forward.7} parent=31 // pred_fallthru
        _
    $region32: #{mrcnn_forward.7} parent=5 // pred_fallthru
      _
    %p1480 = scmp.le.s32.totalorder 2, %s9
    // Predicated region
    $region45: #{mrcnn_forward.7} parent=5 // pred_check
      %p1481 = pneg %p1480
    $region46: #{mrcnn_forward.7} parent=5 // pred_check_branch
      %1483 = sbr.rel (%p1481) target = $region48
    $region47: #{mrcnn_forward.7} parent=5 // pred_region
      %s1484 = ssub.s32 %s9, 2
      // Predicated region
      $region49: #{mrcnn_forward.7} parent=47 // pred_check
        %p1485 = pneg %p141
      $region50: #{mrcnn_forward.7} parent=47 // pred_check_branch
        %1487 = sbr.rel (%p1485) target = $region52
      $region51: #{mrcnn_forward.7} parent=47 // pred_region
        %s1488 = smul.u32 32, %s22
        %p1489 = scmp.lt.s32.totalorder %s1488, 63
        %s1490 = scalar_select %p1489, %s1488, 63
        %p1491 = scmp.lt.s32.totalorder %s23, 0
        %s1492 = scalar_select %p1491, %s23, 0
        %s1493 = sadd.s32 %s1492, %s1490
        %s1494 = smul.addr %s1493, 8
        %s1495 = scalar_lea.vmem %s3, %s1494
      $region52: #{mrcnn_forward.7} parent=47 // pred_fallthru
        _
    $region48: #{mrcnn_forward.7} parent=5 // pred_fallthru
      _
  $region6: #{mrcnn_forward.7} parent=0 // loop_footer
    %s13 = sadd.s32 1, %s9
  $region7: #{mrcnn_forward.7} parent=0 // loop_footer_branch
    %8 = sbr.rel target = $region3
  $region8: #{mrcnn_forward.7} parent=0 // loop_exit
    _

// kernel: mrcnn_forward.8
$region0: #{mrcnn_forward.8}
  #allocation0 [shape = 'u32[]', space=smem, size = 0x4, offset = 0x4, fixed_abs, tag = 'smem constant byte address 0x4 - core index']
  #allocation1 [shape = 'u32[144,128]{1,0:T(1,128)}', space=vmem, size = 0x12000, scoped, tag = 'internal scratch']
  #allocation2 [shape = 'f32[256,128]{1,0:T(8,128)}', space=vmem, size = 0x20000, scoped, tag = 'scratch operand']
  %s0 = inlined_call_operand.vmem [shape: bf16[512,1024], index: 0, kind: input, shape index: {}]
  %s1 = inlined_call_operand.vmem [shape: bf16[1024,128], index: 1, kind: input, shape index: {}]
  %s2 = inlined_call_operand.vmem [shape: f32[1,128], index: 2, kind: input, shape index: {}]
  %s3 = inlined_call_operand.vmem [shape: f32[512,128], index: 3, kind: output, shape index: {}]
  %s4 = sld [smem:[#allocation0]]
  $region53: #{mrcnn_forward.8} parent=0
    _
  %s6 = ssub.s32 1, %s4
  %s7 = scalar_select 0, %s6, %s4
  loop: start=0, step=1, limit=4
  $region2: #{mrcnn_forward.8} parent=0 // loop_pre_header
    _
  $region3: #{mrcnn_forward.8} parent=0 // loop_header
    %s9 = sphi 0, %s13
    %p10 = scmp.ge.s32.totalorder %s9, 4
    %s16 = sphi 0, %s35
    %s17 = sphi 0, %s31
    %s18 = sphi 0, %s27
    %s19 = sphi 0, %s16
    %s20 = sphi 0, %s17
    %s21 = sphi 0, %s18
    %s22 = sphi 0, %s19
    %s23 = sphi 0, %s20
    %s24 = sphi 0, %s21
    %s40 = sphi 0, %s42
    %s43 = sphi 0, %s40
    %s44 = sphi 0, %s43
    %s60 = sphi 0, %s44
    %s68 = sphi 0, %s70
    %s71 = sphi 0, %s68
    %s72 = sphi 0, %s71
    %s88 = sphi 0, %s72
    %s94 = sphi 0, %s96
    %s97 = sphi 0, %s94
    %s98 = sphi 0, %s97
    %s114 = sphi 0, %s98
    %s122 = sphi 0, %s124
    %s125 = sphi 0, %s122
    %s126 = sphi 0, %s125
    %s142 = sphi 0, %s126
  $region4: #{mrcnn_forward.8} parent=0 // loop_header_branch
    %12 = sbr.rel (%p10) target = $region8
  $region5: #{mrcnn_forward.8} parent=0 // loop_body
    %s14 = ssub.s32 %s9, 1
    %s15 = ssub.s32 %s9, 2
    %s25 = sadd.s32 1, %s18
    %p26 = scmp.ge.s32.totalorder %s25, 1
    %s27 = scalar_select %p26, 0, %s25
    %s28 = sadd.s32 1, %s17
    %s29 = scalar_select %p26, %s28, %s17
    %p30 = scmp.ge.s32.totalorder %s29, 1
    %s31 = scalar_select %p30, 0, %s29
    %s32 = sadd.s32 1, %s16
    %s33 = scalar_select %p30, %s32, %s16
    %p34 = scmp.ge.s32.totalorder %s33, 2
    %s35 = scalar_select %p34, 0, %s33
    %s36 = ssub.s32 %s16, %s35
    %s37 = ssub.s32 %s18, %s27
    %s38 = sor.u32 %s36, %s37
    %p39 = scmp.eq.s32.totalorder %s38, 0
    %s41 = sadd.s32 %s40, 1
    %s42 = scalar_select %p39, %s40, %s41
    %p45 = pneg %p39
    %p46 = scmp.eq.s32.totalorder %s9, 1
    %p47 = por %p45, %p46
    %p48 = scmp.ne.s32.totalorder %s40, %s43
    %p49 = scmp.eq.s32.totalorder %s9, 0
    %p50 = por %p48, %p49
    %p51 = scmp.ne.s32.totalorder %s40, %s43
    %p52 = scmp.eq.s32.totalorder %s14, 1
    %p53 = por %p51, %p52
    %p54 = scmp.ne.s32.totalorder %s43, %s44
    %p55 = scmp.eq.s32.totalorder %s14, 0
    %p56 = por %p54, %p55
    %p57 = scmp.ne.s32.totalorder %s43, %s44
    %p58 = scmp.eq.s32.totalorder %s15, 1
    %p59 = por %p57, %p58
    %p61 = scmp.ne.s32.totalorder %s44, %s60
    %p62 = scmp.eq.s32.totalorder %s15, 0
    %p63 = por %p61, %p62
    %s64 = ssub.s32 %s18, %s27
    %s65 = ssub.s32 %s17, %s31
    %s66 = sor.u32 %s64, %s65
    %p67 = scmp.eq.s32.totalorder %s66, 0
    %s69 = sadd.s32 %s68, 1
    %s70 = scalar_select %p67, %s68, %s69
    %p73 = pneg %p67
    %p74 = scmp.eq.s32.totalorder %s9, 1
    %p75 = por %p73, %p74
    %p76 = scmp.ne.s32.totalorder %s68, %s71
    %p77 = scmp.eq.s32.totalorder %s9, 0
    %p78 = por %p76, %p77
    %p79 = scmp.ne.s32.totalorder %s68, %s71
    %p80 = scmp.eq.s32.totalorder %s14, 1
    %p81 = por %p79, %p80
    %p82 = scmp.ne.s32.totalorder %s71, %s72
    %p83 = scmp.eq.s32.totalorder %s14, 0
    %p84 = por %p82, %p83
    %p85 = scmp.ne.s32.totalorder %s71, %s72
    %p86 = scmp.eq.s32.totalorder %s15, 1
    %p87 = por %p85, %p86
    %p89 = scmp.ne.s32.totalorder %s72, %s88
    %p90 = scmp.eq.s32.totalorder %s15, 0
    %p91 = por %p89, %p90
    %s92 = ssub.s32 %s17, %s31
    %p93 = scmp.eq.s32.totalorder %s92, 0
    %s95 = sadd.s32 %s94, 1
    %s96 = scalar_select %p93, %s94, %s95
    %p99 = pneg %p93
    %p100 = scmp.eq.s32.totalorder %s9, 1
    %p101 = por %p99, %p100
    %p102 = scmp.ne.s32.totalorder %s94, %s97
    %p103 = scmp.eq.s32.totalorder %s9, 0
    %p104 = por %p102, %p103
    %p105 = scmp.ne.s32.totalorder %s94, %s97
    %p106 = scmp.eq.s32.totalorder %s14, 1
    %p107 = por %p105, %p106
    %p108 = scmp.ne.s32.totalorder %s97, %s98
    %p109 = scmp.eq.s32.totalorder %s14, 0
    %p110 = por %p108, %p109
    %p111 = scmp.ne.s32.totalorder %s97, %s98
    %p112 = scmp.eq.s32.totalorder %s15, 1
    %p113 = por %p111, %p112
    %p115 = scmp.ne.s32.totalorder %s98, %s114
    %p116 = scmp.eq.s32.totalorder %s15, 0
    %p117 = por %p115, %p116
    %s118 = ssub.s32 %s16, %s35
    %s119 = ssub.s32 %s17, %s31
    %s120 = sor.u32 %s118, %s119
    %p121 = scmp.eq.s32.totalorder %s120, 0
    %s123 = sadd.s32 %s122, 1
    %s124 = scalar_select %p121, %s122, %s123
    %p127 = pneg %p121
    %p128 = scmp.eq.s32.totalorder %s9, 1
    %p129 = por %p127, %p128
    %p130 = scmp.ne.s32.totalorder %s122, %s125
    %p131 = scmp.eq.s32.totalorder %s9, 0
    %p132 = por %p130, %p131
    %p133 = scmp.ne.s32.totalorder %s122, %s125
    %p134 = scmp.eq.s32.totalorder %s14, 1
    %p135 = por %p133, %p134
    %p136 = scmp.ne.s32.totalorder %s125, %s126
    %p137 = scmp.eq.s32.totalorder %s14, 0
    %p138 = por %p136, %p137
    %p139 = scmp.ne.s32.totalorder %s125, %s126
    %p140 = scmp.eq.s32.totalorder %s15, 1
    %p141 = por %p139, %p140
    %p143 = scmp.ne.s32.totalorder %s126, %s142
    %p144 = scmp.eq.s32.totalorder %s15, 0
    %p145 = por %p143, %p144
    %p146 = scmp.le.s32.totalorder 1, %s9
    %p147 = scmp.lt.s32.totalorder %s9, 3
    %p148 = pnand %p146, %p147
    %p149 = pneg %p148
    // Predicated region
    $region9: #{mrcnn_forward.8} parent=5 // pred_check
      _
    $region10: #{mrcnn_forward.8} parent=5 // pred_check_branch
      %151 = sbr.rel (%p148) target = $region12
    $region11: #{mrcnn_forward.8} parent=5 // pred_region
      %s152 = ssub.s32 %s9, 1
      // Predicated region
      $region13: #{mrcnn_forward.8} parent=11 // pred_check
        %p153 = pneg %p84
      $region14: #{mrcnn_forward.8} parent=11 // pred_check_branch
        %155 = sbr.rel (%p153) target = $region16
      $region15: #{mrcnn_forward.8} parent=11 // pred_region
        %s156 = smul.u32 128, %s21
        %p157 = scmp.lt.s32.totalorder %s156, 127
        %s158 = scalar_select %p157, %s156, 127
        %p159 = scmp.lt.s32.totalorder %s20, 0
        %s160 = scalar_select %p159, %s20, 0
        %s161 = sadd.s32 %s160, %s158
        %s162 = smul.addr %s161, 4
        %s163 = scalar_lea.vmem %s1, %s162
        %s164 = smul.u32 128, %s21
      $region16: #{mrcnn_forward.8} parent=11 // pred_fallthru
        _
      // Predicated region
      $region17: #{mrcnn_forward.8} parent=11 // pred_check
        %p165 = pneg %p110
      $region18: #{mrcnn_forward.8} parent=11 // pred_check_branch
        %167 = sbr.rel (%p165) target = $region20
      $region19: #{mrcnn_forward.8} parent=11 // pred_region
        %p168 = scmp.lt.s32.totalorder %s20, 0
        %s169 = scalar_select %p168, %s20, 0
        %s170 = scalar_lea.vmem %s2, %s169
      $region20: #{mrcnn_forward.8} parent=11 // pred_fallthru
        _
    $region12: #{mrcnn_forward.8} parent=5 // pred_fallthru
      _
    %p171 = scmp.lt.s32.totalorder %s9, 2
    // Predicated region
    $region21: #{mrcnn_forward.8} parent=5 // pred_check
      %p172 = pneg %p171
    $region22: #{mrcnn_forward.8} parent=5 // pred_check_branch
      %174 = sbr.rel (%p172) target = $region24
    $region23: #{mrcnn_forward.8} parent=5 // pred_region
      // Predicated region
      $region25: #{mrcnn_forward.8} parent=23 // pred_check
        %p175 = pneg %p50
      $region26: #{mrcnn_forward.8} parent=23 // pred_check_branch
        %177 = sbr.rel (%p175) target = $region28
      $region27: #{mrcnn_forward.8} parent=23 // pred_region
        %s178 = smul.u32 32, %s16
        %s179 = smul.u32 8, %s18
        %p180 = scmp.lt.s32.totalorder %s178, 63
        %s181 = scalar_select %p180, %s178, 63
        %p182 = scmp.lt.s32.totalorder %s179, 7
        %s183 = scalar_select %p182, %s179, 7
        %s184 = smul.addr %s181, 8
        %s185 = sadd.s32 %s183, %s184
        %s186 = smul.addr %s185, 4
        %s187 = scalar_lea.vmem %s0, %s186
        %s188 = smul.u32 32, %s16
        %s189 = smul.u32 8, %s18
      $region28: #{mrcnn_forward.8} parent=23 // pred_fallthru
        _
    $region24: #{mrcnn_forward.8} parent=5 // pred_fallthru
      _
    %p190 = scmp.le.s32.totalorder 1, %s9
    %p191 = scmp.lt.s32.totalorder %s9, 3
    %p192 = pnand %p190, %p191
    %p193 = pneg %p192
    // Predicated region
    $region29: #{mrcnn_forward.8} parent=5 // pred_check
      _
    $region30: #{mrcnn_forward.8} parent=5 // pred_check_branch
      %195 = sbr.rel (%p192) target = $region32
    $region31: #{mrcnn_forward.8} parent=5 // pred_region
      %s196 = ssub.s32 %s9, 1
      %s197 = smul.u32 32, %s19
      %s198 = smul.u32 8, %s21
      %p199 = scmp.lt.s32.totalorder %s197, 63
      %s200 = scalar_select %p199, %s197, 63
      %p201 = scmp.lt.s32.totalorder %s198, 7
      %s202 = scalar_select %p201, %s198, 7
      %s203 = smul.addr %s200, 8
      %s204 = sadd.s32 %s202, %s203
      %s205 = smul.addr %s204, 4
      %s206 = scalar_lea.vmem %s0, %s205
      %p207 = pneg %p56
      %p208 = pneg %p53
      %s209 = smul.u32 128, %s21
      %p210 = scmp.lt.s32.totalorder %s209, 127
      %s211 = scalar_select %p210, %s209, 127
      %p212 = scmp.lt.s32.totalorder %s20, 0
      %s213 = scalar_select %p212, %s20, 0
      %s214 = sadd.s32 %s213, %s211
      %s215 = smul.addr %s214, 4
      %s216 = scalar_lea.vmem %s1, %s215
      %p217 = pneg %p84
      %p218 = pneg %p81
      %p219 = scmp.lt.s32.totalorder %s20, 0
      %s220 = scalar_select %p219, %s20, 0
      %s221 = scalar_lea.vmem %s2, %s220
      %p222 = pneg %p110
      %p223 = pneg %p107
      %p224 = pneg %p138
      %p225 = pneg %p135
      %s226 = smul.u32 32, %s19
      %p227 = scmp.lt.s32.totalorder %s226, 63
      %s228 = scalar_select %p227, %s226, 63
      %p229 = scmp.lt.s32.totalorder %s20, 0
      %s230 = scalar_select %p229, %s20, 0
      %s231 = sadd.s32 %s230, %s228
      %s232 = smul.addr %s231, 8
      %s233 = scalar_lea.vmem %s3, %s232
      %s234 = smul.u32 32, %s19
      %s235 = smul.u32 8, %s21
      %p236 = scmp.lt.s32.totalorder %s234, 63
      %s237 = scalar_select %p236, %s234, 63
      %p238 = scmp.lt.s32.totalorder %s235, 7
      %s239 = scalar_select %p238, %s235, 7
      %s240 = smul.addr %s237, 8
      %s241 = sadd.s32 %s239, %s240
      %s242 = smul.addr %s241, 4
      %s243 = scalar_lea.vmem %s0, %s242
      %s244 = smul.u32 32, %s19
      %s245 = smul.u32 8, %s21
      %s246 = smul.u32 128, %s21
      %p247 = scmp.lt.s32.totalorder %s246, 127
      %s248 = scalar_select %p247, %s246, 127
      %p249 = scmp.lt.s32.totalorder %s20, 0
      %s250 = scalar_select %p249, %s20, 0
      %s251 = sadd.s32 %s250, %s248
      %s252 = smul.addr %s251, 4
      %s253 = scalar_lea.vmem %s1, %s252
      %s254 = smul.u32 128, %s21
      %p255 = scmp.lt.s32.totalorder %s20, 0
      %s256 = scalar_select %p255, %s20, 0
      %s257 = scalar_lea.vmem %s2, %s256
      %s258 = smul.u32 32, %s19
      %p259 = scmp.lt.s32.totalorder %s258, 63
      %s260 = scalar_select %p259, %s258, 63
      %p261 = scmp.lt.s32.totalorder %s20, 0
      %s262 = scalar_select %p261, %s20, 0
      %s263 = sadd.s32 %s262, %s260
      %s264 = smul.addr %s263, 8
      %s265 = scalar_lea.vmem %s3, %s264
      %s266 = smul.u32 32, %s19
      %p268 = scmp.eq.s32.totalorder %s21, 0
      // Predicated region
      $region33: #{mrcnn_forward.8} parent=31 // pred_check
        %p269 = pneg %p268
      $region34: #{mrcnn_forward.8} parent=31 // pred_check_branch
        %271 = sbr.rel (%p269) target = $region36
      $region35: #{mrcnn_forward.8} parent=31 // pred_region
        %272 = vst [vmem:[#allocation2] sm:$0xff] 0.0
        %273 = vst [vmem:[#allocation2 + $0x8] sm:$0xff] 0.0
        %274 = vst [vmem:[#allocation2 + $0x10] sm:$0xff] 0.0
        %275 = vst [vmem:[#allocation2 + $0x18] sm:$0xff] 0.0
        %276 = vst [vmem:[#allocation2 + $0x20] sm:$0xff] 0.0
        %277 = vst [vmem:[#allocation2 + $0x28] sm:$0xff] 0.0
        %278 = vst [vmem:[#allocation2 + $0x30] sm:$0xff] 0.0
        %279 = vst [vmem:[#allocation2 + $0x38] sm:$0xff] 0.0
        %280 = vst [vmem:[#allocation2 + $0x40] sm:$0xff] 0.0
        %281 = vst [vmem:[#allocation2 + $0x48] sm:$0xff] 0.0
        %282 = vst [vmem:[#allocation2 + $0x50] sm:$0xff] 0.0
        %283 = vst [vmem:[#allocation2 + $0x58] sm:$0xff] 0.0
        %284 = vst [vmem:[#allocation2 + $0x60] sm:$0xff] 0.0
        %285 = vst [vmem:[#allocation2 + $0x68] sm:$0xff] 0.0
        %286 = vst [vmem:[#allocation2 + $0x70] sm:$0xff] 0.0
        %287 = vst [vmem:[#allocation2 + $0x78] sm:$0xff] 0.0
        %288 = vst [vmem:[#allocation2 + $0x80] sm:$0xff] 0.0
        %289 = vst [vmem:[#allocation2 + $0x88] sm:$0xff] 0.0
        %290 = vst [vmem:[#allocation2 + $0x90] sm:$0xff] 0.0
        %291 = vst [vmem:[#allocation2 + $0x98] sm:$0xff] 0.0
        %292 = vst [vmem:[#allocation2 + $0xa0] sm:$0xff] 0.0
        %293 = vst [vmem:[#allocation2 + $0xa8] sm:$0xff] 0.0
        %294 = vst [vmem:[#allocation2 + $0xb0] sm:$0xff] 0.0
        %295 = vst [vmem:[#allocation2 + $0xb8] sm:$0xff] 0.0
        %296 = vst [vmem:[#allocation2 + $0xc0] sm:$0xff] 0.0
        %297 = vst [vmem:[#allocation2 + $0xc8] sm:$0xff] 0.0
        %298 = vst [vmem:[#allocation2 + $0xd0] sm:$0xff] 0.0
        %299 = vst [vmem:[#allocation2 + $0xd8] sm:$0xff] 0.0
        %300 = vst [vmem:[#allocation2 + $0xe0] sm:$0xff] 0.0
        %301 = vst [vmem:[#allocation2 + $0xe8] sm:$0xff] 0.0
        %302 = vst [vmem:[#allocation2 + $0xf0] sm:$0xff] 0.0
        %303 = vst [vmem:[#allocation2 + $0xf8] sm:$0xff] 0.0
      $region36: #{mrcnn_forward.8} parent=31 // pred_fallthru
        _
      %v304 = vld [vmem:[#allocation2] sm:$0xff]
      %v305 = vld [vmem:[#allocation2 + $0x8] sm:$0xff]
      %v306 = vld [vmem:[#allocation2 + $0x10] sm:$0xff]
      %v307 = vld [vmem:[#allocation2 + $0x18] sm:$0xff]
      %v308 = vld [vmem:[#allocation2 + $0x20] sm:$0xff]
      %v309 = vld [vmem:[#allocation2 + $0x28] sm:$0xff]
      %v310 = vld [vmem:[#allocation2 + $0x30] sm:$0xff]
      %v311 = vld [vmem:[#allocation2 + $0x38] sm:$0xff]
      %v312 = vld [vmem:[#allocation2 + $0x40] sm:$0xff]
      %v313 = vld [vmem:[#allocation2 + $0x48] sm:$0xff]
      %v314 = vld [vmem:[#allocation2 + $0x50] sm:$0xff]
      %v315 = vld [vmem:[#allocation2 + $0x58] sm:$0xff]
      %v316 = vld [vmem:[#allocation2 + $0x60] sm:$0xff]
      %v317 = vld [vmem:[#allocation2 + $0x68] sm:$0xff]
      %v318 = vld [vmem:[#allocation2 + $0x70] sm:$0xff]
      %v319 = vld [vmem:[#allocation2 + $0x78] sm:$0xff]
      %v320 = vld [vmem:[#allocation2 + $0x80] sm:$0xff]
      %v321 = vld [vmem:[#allocation2 + $0x88] sm:$0xff]
      %v322 = vld [vmem:[#allocation2 + $0x90] sm:$0xff]
      %v323 = vld [vmem:[#allocation2 + $0x98] sm:$0xff]
      %v324 = vld [vmem:[#allocation2 + $0xa0] sm:$0xff]
      %v325 = vld [vmem:[#allocation2 + $0xa8] sm:$0xff]
      %v326 = vld [vmem:[#allocation2 + $0xb0] sm:$0xff]
      %v327 = vld [vmem:[#allocation2 + $0xb8] sm:$0xff]
      %v328 = vld [vmem:[#allocation2 + $0xc0] sm:$0xff]
      %v329 = vld [vmem:[#allocation2 + $0xc8] sm:$0xff]
      %v330 = vld [vmem:[#allocation2 + $0xd0] sm:$0xff]
      %v331 = vld [vmem:[#allocation2 + $0xd8] sm:$0xff]
      %v332 = vld [vmem:[#allocation2 + $0xe0] sm:$0xff]
      %v333 = vld [vmem:[#allocation2 + $0xe8] sm:$0xff]
      %v334 = vld [vmem:[#allocation2 + $0xf0] sm:$0xff]
      %v335 = vld [vmem:[#allocation2 + $0xf8] sm:$0xff]
      %v336 = vld [vmem:[%s243] sm:$0xff]
      %v337 = vld [vmem:[%s243 + $0x8] sm:$0xff]
      %v338 = vld [vmem:[%s243 + $0x10] sm:$0xff]
      %v339 = vld [vmem:[%s243 + $0x18] sm:$0xff]
      %v340 = vld [vmem:[%s243 + $0x20] sm:$0xff]
      %v341 = vld [vmem:[%s243 + $0x28] sm:$0xff]
      %v342 = vld [vmem:[%s243 + $0x30] sm:$0xff]
      %v343 = vld [vmem:[%s243 + $0x38] sm:$0xff]
      %v344 = vld [vmem:[%s243 + $0x40] sm:$0xff]
      %v345 = vld [vmem:[%s243 + $0x48] sm:$0xff]
      %v346 = vld [vmem:[%s243 + $0x50] sm:$0xff]
      %v347 = vld [vmem:[%s243 + $0x58] sm:$0xff]
      %v348 = vld [vmem:[%s243 + $0x60] sm:$0xff]
      %v349 = vld [vmem:[%s243 + $0x68] sm:$0xff]
      %v350 = vld [vmem:[%s243 + $0x70] sm:$0xff]
      %v351 = vld [vmem:[%s243 + $0x78] sm:$0xff]
      %v352 = vld [vmem:[%s243 + $0x80] sm:$0xff]
      %v353 = vld [vmem:[%s243 + $0x88] sm:$0xff]
      %v354 = vld [vmem:[%s243 + $0x90] sm:$0xff]
      %v355 = vld [vmem:[%s243 + $0x98] sm:$0xff]
      %v356 = vld [vmem:[%s243 + $0xa0] sm:$0xff]
      %v357 = vld [vmem:[%s243 + $0xa8] sm:$0xff]
      %v358 = vld [vmem:[%s243 + $0xb0] sm:$0xff]
      %v359 = vld [vmem:[%s243 + $0xb8] sm:$0xff]
      %v360 = vld [vmem:[%s243 + $0xc0] sm:$0xff]
      %v361 = vld [vmem:[%s243 + $0xc8] sm:$0xff]
      %v362 = vld [vmem:[%s243 + $0xd0] sm:$0xff]
      %v363 = vld [vmem:[%s243 + $0xd8] sm:$0xff]
      %v364 = vld [vmem:[%s243 + $0xe0] sm:$0xff]
      %v365 = vld [vmem:[%s243 + $0xe8] sm:$0xff]
      %v366 = vld [vmem:[%s243 + $0xf0] sm:$0xff]
      %v367 = vld [vmem:[%s243 + $0xf8] sm:$0xff]
      %v368 = vld [vmem:[%s243 + $0x100] sm:$0xff]
      %v369 = vld [vmem:[%s243 + $0x108] sm:$0xff]
      %v370 = vld [vmem:[%s243 + $0x110] sm:$0xff]
      %v371 = vld [vmem:[%s243 + $0x118] sm:$0xff]
      %v372 = vld [vmem:[%s243 + $0x120] sm:$0xff]
      %v373 = vld [vmem:[%s243 + $0x128] sm:$0xff]
      %v374 = vld [vmem:[%s243 + $0x130] sm:$0xff]
      %v375 = vld [vmem:[%s243 + $0x138] sm:$0xff]
      %v376 = vld [vmem:[%s243 + $0x140] sm:$0xff]
      %v377 = vld [vmem:[%s243 + $0x148] sm:$0xff]
      %v378 = vld [vmem:[%s243 + $0x150] sm:$0xff]
      %v379 = vld [vmem:[%s243 + $0x158] sm:$0xff]
      %v380 = vld [vmem:[%s243 + $0x160] sm:$0xff]
      %v381 = vld [vmem:[%s243 + $0x168] sm:$0xff]
      %v382 = vld [vmem:[%s243 + $0x170] sm:$0xff]
      %v383 = vld [vmem:[%s243 + $0x178] sm:$0xff]
      %v384 = vld [vmem:[%s243 + $0x180] sm:$0xff]
      %v385 = vld [vmem:[%s243 + $0x188] sm:$0xff]
      %v386 = vld [vmem:[%s243 + $0x190] sm:$0xff]
      %v387 = vld [vmem:[%s243 + $0x198] sm:$0xff]
      %v388 = vld [vmem:[%s243 + $0x1a0] sm:$0xff]
      %v389 = vld [vmem:[%s243 + $0x1a8] sm:$0xff]
      %v390 = vld [vmem:[%s243 + $0x1b0] sm:$0xff]
      %v391 = vld [vmem:[%s243 + $0x1b8] sm:$0xff]
      %v392 = vld [vmem:[%s243 + $0x1c0] sm:$0xff]
      %v393 = vld [vmem:[%s243 + $0x1c8] sm:$0xff]
      %v394 = vld [vmem:[%s243 + $0x1d0] sm:$0xff]
      %v395 = vld [vmem:[%s243 + $0x1d8] sm:$0xff]
      %v396 = vld [vmem:[%s243 + $0x1e0] sm:$0xff]
      %v397 = vld [vmem:[%s243 + $0x1e8] sm:$0xff]
      %v398 = vld [vmem:[%s243 + $0x1f0] sm:$0xff]
      %v399 = vld [vmem:[%s243 + $0x1f8] sm:$0xff]
      %v400 = vld [vmem:[%s243 + $0x200] sm:$0xff]
      %v401 = vld [vmem:[%s243 + $0x208] sm:$0xff]
      %v402 = vld [vmem:[%s243 + $0x210] sm:$0xff]
      %v403 = vld [vmem:[%s243 + $0x218] sm:$0xff]
      %v404 = vld [vmem:[%s243 + $0x220] sm:$0xff]
      %v405 = vld [vmem:[%s243 + $0x228] sm:$0xff]
      %v406 = vld [vmem:[%s243 + $0x230] sm:$0xff]
      %v407 = vld [vmem:[%s243 + $0x238] sm:$0xff]
      %v408 = vld [vmem:[%s243 + $0x240] sm:$0xff]
      %v409 = vld [vmem:[%s243 + $0x248] sm:$0xff]
      %v410 = vld [vmem:[%s243 + $0x250] sm:$0xff]
      %v411 = vld [vmem:[%s243 + $0x258] sm:$0xff]
      %v412 = vld [vmem:[%s243 + $0x260] sm:$0xff]
      %v413 = vld [vmem:[%s243 + $0x268] sm:$0xff]
      %v414 = vld [vmem:[%s243 + $0x270] sm:$0xff]
      %v415 = vld [vmem:[%s243 + $0x278] sm:$0xff]
      %v416 = vld [vmem:[%s243 + $0x280] sm:$0xff]
      %v417 = vld [vmem:[%s243 + $0x288] sm:$0xff]
      %v418 = vld [vmem:[%s243 + $0x290] sm:$0xff]
      %v419 = vld [vmem:[%s243 + $0x298] sm:$0xff]
      %v420 = vld [vmem:[%s243 + $0x2a0] sm:$0xff]
      %v421 = vld [vmem:[%s243 + $0x2a8] sm:$0xff]
      %v422 = vld [vmem:[%s243 + $0x2b0] sm:$0xff]
      %v423 = vld [vmem:[%s243 + $0x2b8] sm:$0xff]
      %v424 = vld [vmem:[%s243 + $0x2c0] sm:$0xff]
      %v425 = vld [vmem:[%s243 + $0x2c8] sm:$0xff]
      %v426 = vld [vmem:[%s243 + $0x2d0] sm:$0xff]
      %v427 = vld [vmem:[%s243 + $0x2d8] sm:$0xff]
      %v428 = vld [vmem:[%s243 + $0x2e0] sm:$0xff]
      %v429 = vld [vmem:[%s243 + $0x2e8] sm:$0xff]
      %v430 = vld [vmem:[%s243 + $0x2f0] sm:$0xff]
      %v431 = vld [vmem:[%s243 + $0x2f8] sm:$0xff]
      %v432 = vld [vmem:[%s243 + $0x300] sm:$0xff]
      %v433 = vld [vmem:[%s243 + $0x308] sm:$0xff]
      %v434 = vld [vmem:[%s243 + $0x310] sm:$0xff]
      %v435 = vld [vmem:[%s243 + $0x318] sm:$0xff]
      %v436 = vld [vmem:[%s243 + $0x320] sm:$0xff]
      %v437 = vld [vmem:[%s243 + $0x328] sm:$0xff]
      %v438 = vld [vmem:[%s243 + $0x330] sm:$0xff]
      %v439 = vld [vmem:[%s243 + $0x338] sm:$0xff]
      %v440 = vld [vmem:[%s243 + $0x340] sm:$0xff]
      %v441 = vld [vmem:[%s243 + $0x348] sm:$0xff]
      %v442 = vld [vmem:[%s243 + $0x350] sm:$0xff]
      %v443 = vld [vmem:[%s243 + $0x358] sm:$0xff]
      %v444 = vld [vmem:[%s243 + $0x360] sm:$0xff]
      %v445 = vld [vmem:[%s243 + $0x368] sm:$0xff]
      %v446 = vld [vmem:[%s243 + $0x370] sm:$0xff]
      %v447 = vld [vmem:[%s243 + $0x378] sm:$0xff]
      %v448 = vld [vmem:[%s243 + $0x380] sm:$0xff]
      %v449 = vld [vmem:[%s243 + $0x388] sm:$0xff]
      %v450 = vld [vmem:[%s243 + $0x390] sm:$0xff]
      %v451 = vld [vmem:[%s243 + $0x398] sm:$0xff]
      %v452 = vld [vmem:[%s243 + $0x3a0] sm:$0xff]
      %v453 = vld [vmem:[%s243 + $0x3a8] sm:$0xff]
      %v454 = vld [vmem:[%s243 + $0x3b0] sm:$0xff]
      %v455 = vld [vmem:[%s243 + $0x3b8] sm:$0xff]
      %v456 = vld [vmem:[%s243 + $0x3c0] sm:$0xff]
      %v457 = vld [vmem:[%s243 + $0x3c8] sm:$0xff]
      %v458 = vld [vmem:[%s243 + $0x3d0] sm:$0xff]
      %v459 = vld [vmem:[%s243 + $0x3d8] sm:$0xff]
      %v460 = vld [vmem:[%s243 + $0x3e0] sm:$0xff]
      %v461 = vld [vmem:[%s243 + $0x3e8] sm:$0xff]
      %v462 = vld [vmem:[%s243 + $0x3f0] sm:$0xff]
      %v463 = vld [vmem:[%s243 + $0x3f8] sm:$0xff]
      %v464 = vld [vmem:[%s253] sm:$0xf]
      %v465 = vld [vmem:[%s253 + $0x4] sm:$0xf]
      %v466 = vld [vmem:[%s253 + $0x8] sm:$0xf]
      %v467 = vld [vmem:[%s253 + $0xc] sm:$0xf]
      %v468 = vld [vmem:[%s253 + $0x10] sm:$0xf]
      %v469 = vld [vmem:[%s253 + $0x14] sm:$0xf]
      %v470 = vld [vmem:[%s253 + $0x18] sm:$0xf]
      %v471 = vld [vmem:[%s253 + $0x1c] sm:$0xf]
      %v472 = vld [vmem:[%s253 + $0x20] sm:$0xf]
      %v473 = vld [vmem:[%s253 + $0x24] sm:$0xf]
      %v474 = vld [vmem:[%s253 + $0x28] sm:$0xf]
      %v475 = vld [vmem:[%s253 + $0x2c] sm:$0xf]
      %v476 = vld [vmem:[%s253 + $0x30] sm:$0xf]
      %v477 = vld [vmem:[%s253 + $0x34] sm:$0xf]
      %v478 = vld [vmem:[%s253 + $0x38] sm:$0xf]
      %v479 = vld [vmem:[%s253 + $0x3c] sm:$0xf]
      %v480 = vld [vmem:[%s253 + $0x40] sm:$0xf]
      %v481 = vld [vmem:[%s253 + $0x44] sm:$0xf]
      %v482 = vld [vmem:[%s253 + $0x48] sm:$0xf]
      %v483 = vld [vmem:[%s253 + $0x4c] sm:$0xf]
      %v484 = vld [vmem:[%s253 + $0x50] sm:$0xf]
      %v485 = vld [vmem:[%s253 + $0x54] sm:$0xf]
      %v486 = vld [vmem:[%s253 + $0x58] sm:$0xf]
      %v487 = vld [vmem:[%s253 + $0x5c] sm:$0xf]
      %v488 = vld [vmem:[%s253 + $0x60] sm:$0xf]
      %v489 = vld [vmem:[%s253 + $0x64] sm:$0xf]
      %v490 = vld [vmem:[%s253 + $0x68] sm:$0xf]
      %v491 = vld [vmem:[%s253 + $0x6c] sm:$0xf]
      %v492 = vld [vmem:[%s253 + $0x70] sm:$0xf]
      %v493 = vld [vmem:[%s253 + $0x74] sm:$0xf]
      %v494 = vld [vmem:[%s253 + $0x78] sm:$0xf]
      %v495 = vld [vmem:[%s253 + $0x7c] sm:$0xf]
      %v496 = vld [vmem:[%s253 + $0x80] sm:$0xf]
      %v497 = vld [vmem:[%s253 + $0x84] sm:$0xf]
      %v498 = vld [vmem:[%s253 + $0x88] sm:$0xf]
      %v499 = vld [vmem:[%s253 + $0x8c] sm:$0xf]
      %v500 = vld [vmem:[%s253 + $0x90] sm:$0xf]
      %v501 = vld [vmem:[%s253 + $0x94] sm:$0xf]
      %v502 = vld [vmem:[%s253 + $0x98] sm:$0xf]
      %v503 = vld [vmem:[%s253 + $0x9c] sm:$0xf]
      %v504 = vld [vmem:[%s253 + $0xa0] sm:$0xf]
      %v505 = vld [vmem:[%s253 + $0xa4] sm:$0xf]
      %v506 = vld [vmem:[%s253 + $0xa8] sm:$0xf]
      %v507 = vld [vmem:[%s253 + $0xac] sm:$0xf]
      %v508 = vld [vmem:[%s253 + $0xb0] sm:$0xf]
      %v509 = vld [vmem:[%s253 + $0xb4] sm:$0xf]
      %v510 = vld [vmem:[%s253 + $0xb8] sm:$0xf]
      %v511 = vld [vmem:[%s253 + $0xbc] sm:$0xf]
      %v512 = vld [vmem:[%s253 + $0xc0] sm:$0xf]
      %v513 = vld [vmem:[%s253 + $0xc4] sm:$0xf]
      %v514 = vld [vmem:[%s253 + $0xc8] sm:$0xf]
      %v515 = vld [vmem:[%s253 + $0xcc] sm:$0xf]
      %v516 = vld [vmem:[%s253 + $0xd0] sm:$0xf]
      %v517 = vld [vmem:[%s253 + $0xd4] sm:$0xf]
      %v518 = vld [vmem:[%s253 + $0xd8] sm:$0xf]
      %v519 = vld [vmem:[%s253 + $0xdc] sm:$0xf]
      %v520 = vld [vmem:[%s253 + $0xe0] sm:$0xf]
      %v521 = vld [vmem:[%s253 + $0xe4] sm:$0xf]
      %v522 = vld [vmem:[%s253 + $0xe8] sm:$0xf]
      %v523 = vld [vmem:[%s253 + $0xec] sm:$0xf]
      %v524 = vld [vmem:[%s253 + $0xf0] sm:$0xf]
      %v525 = vld [vmem:[%s253 + $0xf4] sm:$0xf]
      %v526 = vld [vmem:[%s253 + $0xf8] sm:$0xf]
      %v527 = vld [vmem:[%s253 + $0xfc] sm:$0xf]
      %v528 = vld [vmem:[%s253 + $0x100] sm:$0xf]
      %v529 = vld [vmem:[%s253 + $0x104] sm:$0xf]
      %v530 = vld [vmem:[%s253 + $0x108] sm:$0xf]
      %v531 = vld [vmem:[%s253 + $0x10c] sm:$0xf]
      %v532 = vld [vmem:[%s253 + $0x110] sm:$0xf]
      %v533 = vld [vmem:[%s253 + $0x114] sm:$0xf]
      %v534 = vld [vmem:[%s253 + $0x118] sm:$0xf]
      %v535 = vld [vmem:[%s253 + $0x11c] sm:$0xf]
      %v536 = vld [vmem:[%s253 + $0x120] sm:$0xf]
      %v537 = vld [vmem:[%s253 + $0x124] sm:$0xf]
      %v538 = vld [vmem:[%s253 + $0x128] sm:$0xf]
      %v539 = vld [vmem:[%s253 + $0x12c] sm:$0xf]
      %v540 = vld [vmem:[%s253 + $0x130] sm:$0xf]
      %v541 = vld [vmem:[%s253 + $0x134] sm:$0xf]
      %v542 = vld [vmem:[%s253 + $0x138] sm:$0xf]
      %v543 = vld [vmem:[%s253 + $0x13c] sm:$0xf]
      %v544 = vld [vmem:[%s253 + $0x140] sm:$0xf]
      %v545 = vld [vmem:[%s253 + $0x144] sm:$0xf]
      %v546 = vld [vmem:[%s253 + $0x148] sm:$0xf]
      %v547 = vld [vmem:[%s253 + $0x14c] sm:$0xf]
      %v548 = vld [vmem:[%s253 + $0x150] sm:$0xf]
      %v549 = vld [vmem:[%s253 + $0x154] sm:$0xf]
      %v550 = vld [vmem:[%s253 + $0x158] sm:$0xf]
      %v551 = vld [vmem:[%s253 + $0x15c] sm:$0xf]
      %v552 = vld [vmem:[%s253 + $0x160] sm:$0xf]
      %v553 = vld [vmem:[%s253 + $0x164] sm:$0xf]
      %v554 = vld [vmem:[%s253 + $0x168] sm:$0xf]
      %v555 = vld [vmem:[%s253 + $0x16c] sm:$0xf]
      %v556 = vld [vmem:[%s253 + $0x170] sm:$0xf]
      %v557 = vld [vmem:[%s253 + $0x174] sm:$0xf]
      %v558 = vld [vmem:[%s253 + $0x178] sm:$0xf]
      %v559 = vld [vmem:[%s253 + $0x17c] sm:$0xf]
      %v560 = vld [vmem:[%s253 + $0x180] sm:$0xf]
      %v561 = vld [vmem:[%s253 + $0x184] sm:$0xf]
      %v562 = vld [vmem:[%s253 + $0x188] sm:$0xf]
      %v563 = vld [vmem:[%s253 + $0x18c] sm:$0xf]
      %v564 = vld [vmem:[%s253 + $0x190] sm:$0xf]
      %v565 = vld [vmem:[%s253 + $0x194] sm:$0xf]
      %v566 = vld [vmem:[%s253 + $0x198] sm:$0xf]
      %v567 = vld [vmem:[%s253 + $0x19c] sm:$0xf]
      %v568 = vld [vmem:[%s253 + $0x1a0] sm:$0xf]
      %v569 = vld [vmem:[%s253 + $0x1a4] sm:$0xf]
      %v570 = vld [vmem:[%s253 + $0x1a8] sm:$0xf]
      %v571 = vld [vmem:[%s253 + $0x1ac] sm:$0xf]
      %v572 = vld [vmem:[%s253 + $0x1b0] sm:$0xf]
      %v573 = vld [vmem:[%s253 + $0x1b4] sm:$0xf]
      %v574 = vld [vmem:[%s253 + $0x1b8] sm:$0xf]
      %v575 = vld [vmem:[%s253 + $0x1bc] sm:$0xf]
      %v576 = vld [vmem:[%s253 + $0x1c0] sm:$0xf]
      %v577 = vld [vmem:[%s253 + $0x1c4] sm:$0xf]
      %v578 = vld [vmem:[%s253 + $0x1c8] sm:$0xf]
      %v579 = vld [vmem:[%s253 + $0x1cc] sm:$0xf]
      %v580 = vld [vmem:[%s253 + $0x1d0] sm:$0xf]
      %v581 = vld [vmem:[%s253 + $0x1d4] sm:$0xf]
      %v582 = vld [vmem:[%s253 + $0x1d8] sm:$0xf]
      %v583 = vld [vmem:[%s253 + $0x1dc] sm:$0xf]
      %v584 = vld [vmem:[%s253 + $0x1e0] sm:$0xf]
      %v585 = vld [vmem:[%s253 + $0x1e4] sm:$0xf]
      %v586 = vld [vmem:[%s253 + $0x1e8] sm:$0xf]
      %v587 = vld [vmem:[%s253 + $0x1ec] sm:$0xf]
      %v588 = vld [vmem:[%s253 + $0x1f0] sm:$0xf]
      %v589 = vld [vmem:[%s253 + $0x1f4] sm:$0xf]
      %v590 = vld [vmem:[%s253 + $0x1f8] sm:$0xf]
      %v591 = vld [vmem:[%s253 + $0x1fc] sm:$0xf]
      %v720 = vunpack.c.l.b16 %v336
      %v721 = vunpack.c.h.b16 %v336
      %v722 = vunpack.c.l.b16 %v337
      %v723 = vunpack.c.h.b16 %v337
      %v724 = vunpack.c.l.b16 %v338
      %v725 = vunpack.c.h.b16 %v338
      %v726 = vunpack.c.l.b16 %v339
      %v727 = vunpack.c.h.b16 %v339
      %v728 = vunpack.c.l.b16 %v340
      %v729 = vunpack.c.h.b16 %v340
      %v730 = vunpack.c.l.b16 %v341
      %v731 = vunpack.c.h.b16 %v341
      %v732 = vunpack.c.l.b16 %v342
      %v733 = vunpack.c.h.b16 %v342
      %v734 = vunpack.c.l.b16 %v343
      %v735 = vunpack.c.h.b16 %v343
      %v736 = vunpack.c.l.b16 %v344
      %v737 = vunpack.c.h.b16 %v344
      %v738 = vunpack.c.l.b16 %v345
      %v739 = vunpack.c.h.b16 %v345
      %v740 = vunpack.c.l.b16 %v346
      %v741 = vunpack.c.h.b16 %v346
      %v742 = vunpack.c.l.b16 %v347
      %v743 = vunpack.c.h.b16 %v347
      %v744 = vunpack.c.l.b16 %v348
      %v745 = vunpack.c.h.b16 %v348
      %v746 = vunpack.c.l.b16 %v349
      %v747 = vunpack.c.h.b16 %v349
      %v748 = vunpack.c.l.b16 %v350
      %v749 = vunpack.c.h.b16 %v350
      %v750 = vunpack.c.l.b16 %v351
      %v751 = vunpack.c.h.b16 %v351
      %v752 = vunpack.c.l.b16 %v352
      %v753 = vunpack.c.h.b16 %v352
      %v754 = vunpack.c.l.b16 %v353
      %v755 = vunpack.c.h.b16 %v353
      %v756 = vunpack.c.l.b16 %v354
      %v757 = vunpack.c.h.b16 %v354
      %v758 = vunpack.c.l.b16 %v355
      %v759 = vunpack.c.h.b16 %v355
      %v760 = vunpack.c.l.b16 %v356
      %v761 = vunpack.c.h.b16 %v356
      %v762 = vunpack.c.l.b16 %v357
      %v763 = vunpack.c.h.b16 %v357
      %v764 = vunpack.c.l.b16 %v358
      %v765 = vunpack.c.h.b16 %v358
      %v766 = vunpack.c.l.b16 %v359
      %v767 = vunpack.c.h.b16 %v359
      %v768 = vunpack.c.l.b16 %v360
      %v769 = vunpack.c.h.b16 %v360
      %v770 = vunpack.c.l.b16 %v361
      %v771 = vunpack.c.h.b16 %v361
      %v772 = vunpack.c.l.b16 %v362
      %v773 = vunpack.c.h.b16 %v362
      %v774 = vunpack.c.l.b16 %v363
      %v775 = vunpack.c.h.b16 %v363
      %v776 = vunpack.c.l.b16 %v364
      %v777 = vunpack.c.h.b16 %v364
      %v778 = vunpack.c.l.b16 %v365
      %v779 = vunpack.c.h.b16 %v365
      %v780 = vunpack.c.l.b16 %v366
      %v781 = vunpack.c.h.b16 %v366
      %v782 = vunpack.c.l.b16 %v367
      %v783 = vunpack.c.h.b16 %v367
      %v784 = vunpack.c.l.b16 %v368
      %v785 = vunpack.c.h.b16 %v368
      %v786 = vunpack.c.l.b16 %v369
      %v787 = vunpack.c.h.b16 %v369
      %v788 = vunpack.c.l.b16 %v370
      %v789 = vunpack.c.h.b16 %v370
      %v790 = vunpack.c.l.b16 %v371
      %v791 = vunpack.c.h.b16 %v371
      %v792 = vunpack.c.l.b16 %v372
      %v793 = vunpack.c.h.b16 %v372
      %v794 = vunpack.c.l.b16 %v373
      %v795 = vunpack.c.h.b16 %v373
      %v796 = vunpack.c.l.b16 %v374
      %v797 = vunpack.c.h.b16 %v374
      %v798 = vunpack.c.l.b16 %v375
      %v799 = vunpack.c.h.b16 %v375
      %v800 = vunpack.c.l.b16 %v376
      %v801 = vunpack.c.h.b16 %v376
      %v802 = vunpack.c.l.b16 %v377
      %v803 = vunpack.c.h.b16 %v377
      %v804 = vunpack.c.l.b16 %v378
      %v805 = vunpack.c.h.b16 %v378
      %v806 = vunpack.c.l.b16 %v379
      %v807 = vunpack.c.h.b16 %v379
      %v808 = vunpack.c.l.b16 %v380
      %v809 = vunpack.c.h.b16 %v380
      %v810 = vunpack.c.l.b16 %v381
      %v811 = vunpack.c.h.b16 %v381
      %v812 = vunpack.c.l.b16 %v382
      %v813 = vunpack.c.h.b16 %v382
      %v814 = vunpack.c.l.b16 %v383
      %v815 = vunpack.c.h.b16 %v383
      %v816 = vunpack.c.l.b16 %v384
      %v817 = vunpack.c.h.b16 %v384
      %v818 = vunpack.c.l.b16 %v385
      %v819 = vunpack.c.h.b16 %v385
      %v820 = vunpack.c.l.b16 %v386
      %v821 = vunpack.c.h.b16 %v386
      %v822 = vunpack.c.l.b16 %v387
      %v823 = vunpack.c.h.b16 %v387
      %v824 = vunpack.c.l.b16 %v388
      %v825 = vunpack.c.h.b16 %v388
      %v826 = vunpack.c.l.b16 %v389
      %v827 = vunpack.c.h.b16 %v389
      %v828 = vunpack.c.l.b16 %v390
      %v829 = vunpack.c.h.b16 %v390
      %v830 = vunpack.c.l.b16 %v391
      %v831 = vunpack.c.h.b16 %v391
      %v832 = vunpack.c.l.b16 %v392
      %v833 = vunpack.c.h.b16 %v392
      %v834 = vunpack.c.l.b16 %v393
      %v835 = vunpack.c.h.b16 %v393
      %v836 = vunpack.c.l.b16 %v394
      %v837 = vunpack.c.h.b16 %v394
      %v838 = vunpack.c.l.b16 %v395
      %v839 = vunpack.c.h.b16 %v395
      %v840 = vunpack.c.l.b16 %v396
      %v841 = vunpack.c.h.b16 %v396
      %v842 = vunpack.c.l.b16 %v397
      %v843 = vunpack.c.h.b16 %v397
      %v844 = vunpack.c.l.b16 %v398
      %v845 = vunpack.c.h.b16 %v398
      %v846 = vunpack.c.l.b16 %v399
      %v847 = vunpack.c.h.b16 %v399
      %v848 = vunpack.c.l.b16 %v400
      %v849 = vunpack.c.h.b16 %v400
      %v850 = vunpack.c.l.b16 %v401
      %v851 = vunpack.c.h.b16 %v401
      %v852 = vunpack.c.l.b16 %v402
      %v853 = vunpack.c.h.b16 %v402
      %v854 = vunpack.c.l.b16 %v403
      %v855 = vunpack.c.h.b16 %v403
      %v856 = vunpack.c.l.b16 %v404
      %v857 = vunpack.c.h.b16 %v404
      %v858 = vunpack.c.l.b16 %v405
      %v859 = vunpack.c.h.b16 %v405
      %v860 = vunpack.c.l.b16 %v406
      %v861 = vunpack.c.h.b16 %v406
      %v862 = vunpack.c.l.b16 %v407
      %v863 = vunpack.c.h.b16 %v407
      %v864 = vunpack.c.l.b16 %v408
      %v865 = vunpack.c.h.b16 %v408
      %v866 = vunpack.c.l.b16 %v409
      %v867 = vunpack.c.h.b16 %v409
      %v868 = vunpack.c.l.b16 %v410
      %v869 = vunpack.c.h.b16 %v410
      %v870 = vunpack.c.l.b16 %v411
      %v871 = vunpack.c.h.b16 %v411
      %v872 = vunpack.c.l.b16 %v412
      %v873 = vunpack.c.h.b16 %v412
      %v874 = vunpack.c.l.b16 %v413
      %v875 = vunpack.c.h.b16 %v413
      %v876 = vunpack.c.l.b16 %v414
      %v877 = vunpack.c.h.b16 %v414
      %v878 = vunpack.c.l.b16 %v415
      %v879 = vunpack.c.h.b16 %v415
      %v880 = vunpack.c.l.b16 %v416
      %v881 = vunpack.c.h.b16 %v416
      %v882 = vunpack.c.l.b16 %v417
      %v883 = vunpack.c.h.b16 %v417
      %v884 = vunpack.c.l.b16 %v418
      %v885 = vunpack.c.h.b16 %v418
      %v886 = vunpack.c.l.b16 %v419
      %v887 = vunpack.c.h.b16 %v419
      %v888 = vunpack.c.l.b16 %v420
      %v889 = vunpack.c.h.b16 %v420
      %v890 = vunpack.c.l.b16 %v421
      %v891 = vunpack.c.h.b16 %v421
      %v892 = vunpack.c.l.b16 %v422
      %v893 = vunpack.c.h.b16 %v422
      %v894 = vunpack.c.l.b16 %v423
      %v895 = vunpack.c.h.b16 %v423
      %v896 = vunpack.c.l.b16 %v424
      %v897 = vunpack.c.h.b16 %v424
      %v898 = vunpack.c.l.b16 %v425
      %v899 = vunpack.c.h.b16 %v425
      %v900 = vunpack.c.l.b16 %v426
      %v901 = vunpack.c.h.b16 %v426
      %v902 = vunpack.c.l.b16 %v427
      %v903 = vunpack.c.h.b16 %v427
      %v904 = vunpack.c.l.b16 %v428
      %v905 = vunpack.c.h.b16 %v428
      %v906 = vunpack.c.l.b16 %v429
      %v907 = vunpack.c.h.b16 %v429
      %v908 = vunpack.c.l.b16 %v430
      %v909 = vunpack.c.h.b16 %v430
      %v910 = vunpack.c.l.b16 %v431
      %v911 = vunpack.c.h.b16 %v431
      %v912 = vunpack.c.l.b16 %v432
      %v913 = vunpack.c.h.b16 %v432
      %v914 = vunpack.c.l.b16 %v433
      %v915 = vunpack.c.h.b16 %v433
      %v916 = vunpack.c.l.b16 %v434
      %v917 = vunpack.c.h.b16 %v434
      %v918 = vunpack.c.l.b16 %v435
      %v919 = vunpack.c.h.b16 %v435
      %v920 = vunpack.c.l.b16 %v436
      %v921 = vunpack.c.h.b16 %v436
      %v922 = vunpack.c.l.b16 %v437
      %v923 = vunpack.c.h.b16 %v437
      %v924 = vunpack.c.l.b16 %v438
      %v925 = vunpack.c.h.b16 %v438
      %v926 = vunpack.c.l.b16 %v439
      %v927 = vunpack.c.h.b16 %v439
      %v928 = vunpack.c.l.b16 %v440
      %v929 = vunpack.c.h.b16 %v440
      %v930 = vunpack.c.l.b16 %v441
      %v931 = vunpack.c.h.b16 %v441
      %v932 = vunpack.c.l.b16 %v442
      %v933 = vunpack.c.h.b16 %v442
      %v934 = vunpack.c.l.b16 %v443
      %v935 = vunpack.c.h.b16 %v443
      %v936 = vunpack.c.l.b16 %v444
      %v937 = vunpack.c.h.b16 %v444
      %v938 = vunpack.c.l.b16 %v445
      %v939 = vunpack.c.h.b16 %v445
      %v940 = vunpack.c.l.b16 %v446
      %v941 = vunpack.c.h.b16 %v446
      %v942 = vunpack.c.l.b16 %v447
      %v943 = vunpack.c.h.b16 %v447
      %v944 = vunpack.c.l.b16 %v448
      %v945 = vunpack.c.h.b16 %v448
      %v946 = vunpack.c.l.b16 %v449
      %v947 = vunpack.c.h.b16 %v449
      %v948 = vunpack.c.l.b16 %v450
      %v949 = vunpack.c.h.b16 %v450
      %v950 = vunpack.c.l.b16 %v451
      %v951 = vunpack.c.h.b16 %v451
      %v952 = vunpack.c.l.b16 %v452
      %v953 = vunpack.c.h.b16 %v452
      %v954 = vunpack.c.l.b16 %v453
      %v955 = vunpack.c.h.b16 %v453
      %v956 = vunpack.c.l.b16 %v454
      %v957 = vunpack.c.h.b16 %v454
      %v958 = vunpack.c.l.b16 %v455
      %v959 = vunpack.c.h.b16 %v455
      %v960 = vunpack.c.l.b16 %v456
      %v961 = vunpack.c.h.b16 %v456
      %v962 = vunpack.c.l.b16 %v457
      %v963 = vunpack.c.h.b16 %v457
      %v964 = vunpack.c.l.b16 %v458
      %v965 = vunpack.c.h.b16 %v458
      %v966 = vunpack.c.l.b16 %v459
      %v967 = vunpack.c.h.b16 %v459
      %v968 = vunpack.c.l.b16 %v460
      %v969 = vunpack.c.h.b16 %v460
      %v970 = vunpack.c.l.b16 %v461
      %v971 = vunpack.c.h.b16 %v461
      %v972 = vunpack.c.l.b16 %v462
      %v973 = vunpack.c.h.b16 %v462
      %v974 = vunpack.c.l.b16 %v463
      %v975 = vunpack.c.h.b16 %v463
      %v976 = vpack.c.b16 %v728, %v720
      %v977 = vpack.c.b16 %v729, %v721
      %v978 = vpack.c.b16 %v730, %v722
      %v979 = vpack.c.b16 %v731, %v723
      %v980 = vpack.c.b16 %v732, %v724
      %v981 = vpack.c.b16 %v733, %v725
      %v982 = vpack.c.b16 %v734, %v726
      %v983 = vpack.c.b16 %v735, %v727
      %v984 = vpack.c.b16 %v744, %v736
      %v985 = vpack.c.b16 %v745, %v737
      %v986 = vpack.c.b16 %v746, %v738
      %v987 = vpack.c.b16 %v747, %v739
      %v988 = vpack.c.b16 %v748, %v740
      %v989 = vpack.c.b16 %v749, %v741
      %v990 = vpack.c.b16 %v750, %v742
      %v991 = vpack.c.b16 %v751, %v743
      %v992 = vpack.c.b16 %v760, %v752
      %v993 = vpack.c.b16 %v761, %v753
      %v994 = vpack.c.b16 %v762, %v754
      %v995 = vpack.c.b16 %v763, %v755
      %v996 = vpack.c.b16 %v764, %v756
      %v997 = vpack.c.b16 %v765, %v757
      %v998 = vpack.c.b16 %v766, %v758
      %v999 = vpack.c.b16 %v767, %v759
      %v1000 = vpack.c.b16 %v776, %v768
      %v1001 = vpack.c.b16 %v777, %v769
      %v1002 = vpack.c.b16 %v778, %v770
      %v1003 = vpack.c.b16 %v779, %v771
      %v1004 = vpack.c.b16 %v780, %v772
      %v1005 = vpack.c.b16 %v781, %v773
      %v1006 = vpack.c.b16 %v782, %v774
      %v1007 = vpack.c.b16 %v783, %v775
      %v1008 = vpack.c.b16 %v792, %v784
      %v1009 = vpack.c.b16 %v793, %v785
      %v1010 = vpack.c.b16 %v794, %v786
      %v1011 = vpack.c.b16 %v795, %v787
      %v1012 = vpack.c.b16 %v796, %v788
      %v1013 = vpack.c.b16 %v797, %v789
      %v1014 = vpack.c.b16 %v798, %v790
      %v1015 = vpack.c.b16 %v799, %v791
      %v1016 = vpack.c.b16 %v808, %v800
      %v1017 = vpack.c.b16 %v809, %v801
      %v1018 = vpack.c.b16 %v810, %v802
      %v1019 = vpack.c.b16 %v811, %v803
      %v1020 = vpack.c.b16 %v812, %v804
      %v1021 = vpack.c.b16 %v813, %v805
      %v1022 = vpack.c.b16 %v814, %v806
      %v1023 = vpack.c.b16 %v815, %v807
      %v1024 = vpack.c.b16 %v824, %v816
      %v1025 = vpack.c.b16 %v825, %v817
      %v1026 = vpack.c.b16 %v826, %v818
      %v1027 = vpack.c.b16 %v827, %v819
      %v1028 = vpack.c.b16 %v828, %v820
      %v1029 = vpack.c.b16 %v829, %v821
      %v1030 = vpack.c.b16 %v830, %v822
      %v1031 = vpack.c.b16 %v831, %v823
      %v1032 = vpack.c.b16 %v840, %v832
      %v1033 = vpack.c.b16 %v841, %v833
      %v1034 = vpack.c.b16 %v842, %v834
      %v1035 = vpack.c.b16 %v843, %v835
      %v1036 = vpack.c.b16 %v844, %v836
      %v1037 = vpack.c.b16 %v845, %v837
      %v1038 = vpack.c.b16 %v846, %v838
      %v1039 = vpack.c.b16 %v847, %v839
      %v1040 = vpack.c.b16 %v856, %v848
      %v1041 = vpack.c.b16 %v857, %v849
      %v1042 = vpack.c.b16 %v858, %v850
      %v1043 = vpack.c.b16 %v859, %v851
      %v1044 = vpack.c.b16 %v860, %v852
      %v1045 = vpack.c.b16 %v861, %v853
      %v1046 = vpack.c.b16 %v862, %v854
      %v1047 = vpack.c.b16 %v863, %v855
      %v1048 = vpack.c.b16 %v872, %v864
      %v1049 = vpack.c.b16 %v873, %v865
      %v1050 = vpack.c.b16 %v874, %v866
      %v1051 = vpack.c.b16 %v875, %v867
      %v1052 = vpack.c.b16 %v876, %v868
      %v1053 = vpack.c.b16 %v877, %v869
      %v1054 = vpack.c.b16 %v878, %v870
      %v1055 = vpack.c.b16 %v879, %v871
      %v1056 = vpack.c.b16 %v888, %v880
      %v1057 = vpack.c.b16 %v889, %v881
      %v1058 = vpack.c.b16 %v890, %v882
      %v1059 = vpack.c.b16 %v891, %v883
      %v1060 = vpack.c.b16 %v892, %v884
      %v1061 = vpack.c.b16 %v893, %v885
      %v1062 = vpack.c.b16 %v894, %v886
      %v1063 = vpack.c.b16 %v895, %v887
      %v1064 = vpack.c.b16 %v904, %v896
      %v1065 = vpack.c.b16 %v905, %v897
      %v1066 = vpack.c.b16 %v906, %v898
      %v1067 = vpack.c.b16 %v907, %v899
      %v1068 = vpack.c.b16 %v908, %v900
      %v1069 = vpack.c.b16 %v909, %v901
      %v1070 = vpack.c.b16 %v910, %v902
      %v1071 = vpack.c.b16 %v911, %v903
      %v1072 = vpack.c.b16 %v920, %v912
      %v1073 = vpack.c.b16 %v921, %v913
      %v1074 = vpack.c.b16 %v922, %v914
      %v1075 = vpack.c.b16 %v923, %v915
      %v1076 = vpack.c.b16 %v924, %v916
      %v1077 = vpack.c.b16 %v925, %v917
      %v1078 = vpack.c.b16 %v926, %v918
      %v1079 = vpack.c.b16 %v927, %v919
      %v1080 = vpack.c.b16 %v936, %v928
      %v1081 = vpack.c.b16 %v937, %v929
      %v1082 = vpack.c.b16 %v938, %v930
      %v1083 = vpack.c.b16 %v939, %v931
      %v1084 = vpack.c.b16 %v940, %v932
      %v1085 = vpack.c.b16 %v941, %v933
      %v1086 = vpack.c.b16 %v942, %v934
      %v1087 = vpack.c.b16 %v943, %v935
      %v1088 = vpack.c.b16 %v952, %v944
      %v1089 = vpack.c.b16 %v953, %v945
      %v1090 = vpack.c.b16 %v954, %v946
      %v1091 = vpack.c.b16 %v955, %v947
      %v1092 = vpack.c.b16 %v956, %v948
      %v1093 = vpack.c.b16 %v957, %v949
      %v1094 = vpack.c.b16 %v958, %v950
      %v1095 = vpack.c.b16 %v959, %v951
      %v1096 = vpack.c.b16 %v968, %v960
      %v1097 = vpack.c.b16 %v969, %v961
      %v1098 = vpack.c.b16 %v970, %v962
      %v1099 = vpack.c.b16 %v971, %v963
      %v1100 = vpack.c.b16 %v972, %v964
      %v1101 = vpack.c.b16 %v973, %v965
      %v1102 = vpack.c.b16 %v974, %v966
      %v1103 = vpack.c.b16 %v975, %v967
      %v1360 = vunpack.c.l.b16 %v464
      %v1361 = vunpack.c.l.b16 %v465
      %v1362 = vunpack.c.l.b16 %v466
      %v1363 = vunpack.c.l.b16 %v467
      %v1364 = vunpack.c.l.b16 %v468
      %v1365 = vunpack.c.l.b16 %v469
      %v1366 = vunpack.c.l.b16 %v470
      %v1367 = vunpack.c.l.b16 %v471
      %v1368 = vunpack.c.l.b16 %v472
      %v1369 = vunpack.c.l.b16 %v473
      %v1370 = vunpack.c.l.b16 %v474
      %v1371 = vunpack.c.l.b16 %v475
      %v1372 = vunpack.c.l.b16 %v476
      %v1373 = vunpack.c.l.b16 %v477
      %v1374 = vunpack.c.l.b16 %v478
      %v1375 = vunpack.c.l.b16 %v479
      %v1376 = vunpack.c.l.b16 %v480
      %v1377 = vunpack.c.l.b16 %v481
      %v1378 = vunpack.c.l.b16 %v482
      %v1379 = vunpack.c.l.b16 %v483
      %v1380 = vunpack.c.l.b16 %v484
      %v1381 = vunpack.c.l.b16 %v485
      %v1382 = vunpack.c.l.b16 %v486
      %v1383 = vunpack.c.l.b16 %v487
      %v1384 = vunpack.c.l.b16 %v488
      %v1385 = vunpack.c.l.b16 %v489
      %v1386 = vunpack.c.l.b16 %v490
      %v1387 = vunpack.c.l.b16 %v491
      %v1388 = vunpack.c.l.b16 %v492
      %v1389 = vunpack.c.l.b16 %v493
      %v1390 = vunpack.c.l.b16 %v494
      %v1391 = vunpack.c.l.b16 %v495
      %v1392 = vunpack.c.l.b16 %v496
      %v1393 = vunpack.c.l.b16 %v497
      %v1394 = vunpack.c.l.b16 %v498
      %v1395 = vunpack.c.l.b16 %v499
      %v1396 = vunpack.c.l.b16 %v500
      %v1397 = vunpack.c.l.b16 %v501
      %v1398 = vunpack.c.l.b16 %v502
      %v1399 = vunpack.c.l.b16 %v503
      %v1400 = vunpack.c.l.b16 %v504
      %v1401 = vunpack.c.l.b16 %v505
      %v1402 = vunpack.c.l.b16 %v506
      %v1403 = vunpack.c.l.b16 %v507
      %v1404 = vunpack.c.l.b16 %v508
      %v1405 = vunpack.c.l.b16 %v509
      %v1406 = vunpack.c.l.b16 %v510
      %v1407 = vunpack.c.l.b16 %v511
      %v1408 = vunpack.c.l.b16 %v512
      %v1409 = vunpack.c.l.b16 %v513
      %v1410 = vunpack.c.l.b16 %v514
      %v1411 = vunpack.c.l.b16 %v515
      %v1412 = vunpack.c.l.b16 %v516
      %v1413 = vunpack.c.l.b16 %v517
      %v1414 = vunpack.c.l.b16 %v518
      %v1415 = vunpack.c.l.b16 %v519
      %v1416 = vunpack.c.l.b16 %v520
      %v1417 = vunpack.c.l.b16 %v521
      %v1418 = vunpack.c.l.b16 %v522
      %v1419 = vunpack.c.l.b16 %v523
      %v1420 = vunpack.c.l.b16 %v524
      %v1421 = vunpack.c.l.b16 %v525
      %v1422 = vunpack.c.l.b16 %v526
      %v1423 = vunpack.c.l.b16 %v527
      %v1424 = vunpack.c.l.b16 %v528
      %v1425 = vunpack.c.l.b16 %v529
      %v1426 = vunpack.c.l.b16 %v530
      %v1427 = vunpack.c.l.b16 %v531
      %v1428 = vunpack.c.l.b16 %v532
      %v1429 = vunpack.c.l.b16 %v533
      %v1430 = vunpack.c.l.b16 %v534
      %v1431 = vunpack.c.l.b16 %v535
      %v1432 = vunpack.c.l.b16 %v536
      %v1433 = vunpack.c.l.b16 %v537
      %v1434 = vunpack.c.l.b16 %v538
      %v1435 = vunpack.c.l.b16 %v539
      %v1436 = vunpack.c.l.b16 %v540
      %v1437 = vunpack.c.l.b16 %v541
      %v1438 = vunpack.c.l.b16 %v542
      %v1439 = vunpack.c.l.b16 %v543
      %v1440 = vunpack.c.l.b16 %v544
      %v1441 = vunpack.c.l.b16 %v545
      %v1442 = vunpack.c.l.b16 %v546
      %v1443 = vunpack.c.l.b16 %v547
      %v1444 = vunpack.c.l.b16 %v548
      %v1445 = vunpack.c.l.b16 %v549
      %v1446 = vunpack.c.l.b16 %v550
      %v1447 = vunpack.c.l.b16 %v551
      %v1448 = vunpack.c.l.b16 %v552
      %v1449 = vunpack.c.l.b16 %v553
      %v1450 = vunpack.c.l.b16 %v554
      %v1451 = vunpack.c.l.b16 %v555
      %v1452 = vunpack.c.l.b16 %v556
      %v1453 = vunpack.c.l.b16 %v557
      %v1454 = vunpack.c.l.b16 %v558
      %v1455 = vunpack.c.l.b16 %v559
      %v1456 = vunpack.c.l.b16 %v560
      %v1457 = vunpack.c.l.b16 %v561
      %v1458 = vunpack.c.l.b16 %v562
      %v1459 = vunpack.c.l.b16 %v563
      %v1460 = vunpack.c.l.b16 %v564
      %v1461 = vunpack.c.l.b16 %v565
      %v1462 = vunpack.c.l.b16 %v566
      %v1463 = vunpack.c.l.b16 %v567
      %v1464 = vunpack.c.l.b16 %v568
      %v1465 = vunpack.c.l.b16 %v569
      %v1466 = vunpack.c.l.b16 %v570
      %v1467 = vunpack.c.l.b16 %v571
      %v1468 = vunpack.c.l.b16 %v572
      %v1469 = vunpack.c.l.b16 %v573
      %v1470 = vunpack.c.l.b16 %v574
      %v1471 = vunpack.c.l.b16 %v575
      %v1472 = vunpack.c.l.b16 %v576
      %v1473 = vunpack.c.l.b16 %v577
      %v1474 = vunpack.c.l.b16 %v578
      %v1475 = vunpack.c.l.b16 %v579
      %v1476 = vunpack.c.l.b16 %v580
      %v1477 = vunpack.c.l.b16 %v581
      %v1478 = vunpack.c.l.b16 %v582
      %v1479 = vunpack.c.l.b16 %v583
      %v1480 = vunpack.c.l.b16 %v584
      %v1481 = vunpack.c.l.b16 %v585
      %v1482 = vunpack.c.l.b16 %v586
      %v1483 = vunpack.c.l.b16 %v587
      %v1484 = vunpack.c.l.b16 %v588
      %v1485 = vunpack.c.l.b16 %v589
      %v1486 = vunpack.c.l.b16 %v590
      %v1487 = vunpack.c.l.b16 %v591
      %v1488 = vpack.c.b16 %v1361, %v1360
      %v1489 = vpack.c.b16 %v1363, %v1362
      %v1490 = vpack.c.b16 %v1365, %v1364
      %v1491 = vpack.c.b16 %v1367, %v1366
      %v1492 = vpack.c.b16 %v1369, %v1368
      %v1493 = vpack.c.b16 %v1371, %v1370
      %v1494 = vpack.c.b16 %v1373, %v1372
      %v1495 = vpack.c.b16 %v1375, %v1374
      %v1496 = vpack.c.b16 %v1377, %v1376
      %v1497 = vpack.c.b16 %v1379, %v1378
      %v1498 = vpack.c.b16 %v1381, %v1380
      %v1499 = vpack.c.b16 %v1383, %v1382
      %v1500 = vpack.c.b16 %v1385, %v1384
      %v1501 = vpack.c.b16 %v1387, %v1386
      %v1502 = vpack.c.b16 %v1389, %v1388
      %v1503 = vpack.c.b16 %v1391, %v1390
      %v1504 = vpack.c.b16 %v1393, %v1392
      %v1505 = vpack.c.b16 %v1395, %v1394
      %v1506 = vpack.c.b16 %v1397, %v1396
      %v1507 = vpack.c.b16 %v1399, %v1398
      %v1508 = vpack.c.b16 %v1401, %v1400
      %v1509 = vpack.c.b16 %v1403, %v1402
      %v1510 = vpack.c.b16 %v1405, %v1404
      %v1511 = vpack.c.b16 %v1407, %v1406
      %v1512 = vpack.c.b16 %v1409, %v1408
      %v1513 = vpack.c.b16 %v1411, %v1410
      %v1514 = vpack.c.b16 %v1413, %v1412
      %v1515 = vpack.c.b16 %v1415, %v1414
      %v1516 = vpack.c.b16 %v1417, %v1416
      %v1517 = vpack.c.b16 %v1419, %v1418
      %v1518 = vpack.c.b16 %v1421, %v1420
      %v1519 = vpack.c.b16 %v1423, %v1422
      %v1520 = vpack.c.b16 %v1425, %v1424
      %v1521 = vpack.c.b16 %v1427, %v1426
      %v1522 = vpack.c.b16 %v1429, %v1428
      %v1523 = vpack.c.b16 %v1431, %v1430
      %v1524 = vpack.c.b16 %v1433, %v1432
      %v1525 = vpack.c.b16 %v1435, %v1434
      %v1526 = vpack.c.b16 %v1437, %v1436
      %v1527 = vpack.c.b16 %v1439, %v1438
      %v1528 = vpack.c.b16 %v1441, %v1440
      %v1529 = vpack.c.b16 %v1443, %v1442
      %v1530 = vpack.c.b16 %v1445, %v1444
      %v1531 = vpack.c.b16 %v1447, %v1446
      %v1532 = vpack.c.b16 %v1449, %v1448
      %v1533 = vpack.c.b16 %v1451, %v1450
      %v1534 = vpack.c.b16 %v1453, %v1452
      %v1535 = vpack.c.b16 %v1455, %v1454
      %v1536 = vpack.c.b16 %v1457, %v1456
      %v1537 = vpack.c.b16 %v1459, %v1458
      %v1538 = vpack.c.b16 %v1461, %v1460
      %v1539 = vpack.c.b16 %v1463, %v1462
      %v1540 = vpack.c.b16 %v1465, %v1464
      %v1541 = vpack.c.b16 %v1467, %v1466
      %v1542 = vpack.c.b16 %v1469, %v1468
      %v1543 = vpack.c.b16 %v1471, %v1470
      %v1544 = vpack.c.b16 %v1473, %v1472
      %v1545 = vpack.c.b16 %v1475, %v1474
      %v1546 = vpack.c.b16 %v1477, %v1476
      %v1547 = vpack.c.b16 %v1479, %v1478
      %v1548 = vpack.c.b16 %v1481, %v1480
      %v1549 = vpack.c.b16 %v1483, %v1482
      %v1550 = vpack.c.b16 %v1485, %v1484
      %v1551 = vpack.c.b16 %v1487, %v1486
      %1616 = vmatprep.subr.bf16.mxu0 0
      %1617 = vmatpush1.bf16.msra.mxu0 %v1488
      %1618 = vmatprep.subr.bf16.mxu0 0
      %1619 = vmatpush1.bf16.msra.mxu0 %v1489
      %1620 = vmatprep.subr.bf16.mxu0 0
      %1621 = vmatpush1.bf16.msra.mxu0 %v1490
      %1622 = vmatprep.subr.bf16.mxu0 0
      %1623 = vmatpush1.bf16.msra.mxu0 %v1491
      %1624 = vmatprep.subr.bf16.mxu0 0
      %1625 = vmatpush1.bf16.msra.mxu0 %v1492
      %1626 = vmatprep.subr.bf16.mxu0 0
      %1627 = vmatpush1.bf16.msra.mxu0 %v1493
      %1628 = vmatprep.subr.bf16.mxu0 0
      %1629 = vmatpush1.bf16.msra.mxu0 %v1494
      %1630 = vmatprep.subr.bf16.mxu0 0
      %1631 = vmatpush1.bf16.msra.mxu0 %v1495
      %1632 = vmatprep.subr.bf16.mxu0 0
      %1633 = vmatpush1.bf16.msra.mxu0 %v1496
      %1634 = vmatprep.subr.bf16.mxu0 0
      %1635 = vmatpush1.bf16.msra.mxu0 %v1497
      %1636 = vmatprep.subr.bf16.mxu0 0
      %1637 = vmatpush1.bf16.msra.mxu0 %v1498
      %1638 = vmatprep.subr.bf16.mxu0 0
      %1639 = vmatpush1.bf16.msra.mxu0 %v1499
      %1640 = vmatprep.subr.bf16.mxu0 0
      %1641 = vmatpush1.bf16.msra.mxu0 %v1500
      %1642 = vmatprep.subr.bf16.mxu0 0
      %1643 = vmatpush1.bf16.msra.mxu0 %v1501
      %1644 = vmatprep.subr.bf16.mxu0 0
      %1645 = vmatpush1.bf16.msra.mxu0 %v1502
      %1646 = vmatprep.subr.bf16.mxu0 0
      %1647 = vmatpush1.bf16.msra.mxu0 %v1503
      %1648 = vmatprep.mubr.bf16.mxu0 %v977
      %1649 = vmatmul.mubr.bf16.gmra.mrb[0].mxu0 %v976
      %v1650 = vpop.f32.mrb[0].mxu0
      %v1651 = vadd.f32 0.0, %v1650
      %v1652 = vpop.f32.mrb[0].mxu0
      %v1653 = vpop.f32.mrb[0].mxu0
      %v1654 = vadd.f32 0.0, %v1653
      %v1655 = vpop.f32.mrb[0].mxu0
      %1656 = vmatprep.mubr.bf16.mxu0 %v985
      %1657 = vmatmul.mubr.bf16.gmra.mrb[0].mxu0 %v984
      %v1658 = vpop.f32.mrb[0].mxu0
      %v1659 = vadd.f32 0.0, %v1658
      %v1660 = vpop.f32.mrb[0].mxu0
      %v1661 = vpop.f32.mrb[0].mxu0
      %v1662 = vadd.f32 0.0, %v1661
      %v1663 = vpop.f32.mrb[0].mxu0
      %1664 = vmatprep.mubr.bf16.mxu0 %v993
      %1665 = vmatmul.mubr.bf16.gmra.mrb[0].mxu0 %v992
      %v1666 = vpop.f32.mrb[0].mxu0
      %v1667 = vadd.f32 0.0, %v1666
      %v1668 = vpop.f32.mrb[0].mxu0
      %v1669 = vpop.f32.mrb[0].mxu0
      %v1670 = vadd.f32 0.0, %v1669
      %v1671 = vpop.f32.mrb[0].mxu0
      %1672 = vmatprep.mubr.bf16.mxu0 %v1001
      %1673 = vmatmul.mubr.bf16.gmra.mrb[0].mxu0 %v1000
      %v1674 = vpop.f32.mrb[0].mxu0
      %v1675 = vadd.f32 0.0, %v1674
      %v1676 = vpop.f32.mrb[0].mxu0
      %v1677 = vpop.f32.mrb[0].mxu0
      %v1678 = vadd.f32 0.0, %v1677
      %v1679 = vpop.f32.mrb[0].mxu0
      %1680 = vmatprep.mubr.bf16.mxu0 %v1009
      %1681 = vmatmul.mubr.bf16.gmra.mrb[0].mxu0 %v1008
      %v1682 = vpop.f32.mrb[0].mxu0
      %v1683 = vadd.f32 0.0, %v1682
      %v1684 = vpop.f32.mrb[0].mxu0
      %v1685 = vpop.f32.mrb[0].mxu0
      %v1686 = vadd.f32 0.0, %v1685
      %v1687 = vpop.f32.mrb[0].mxu0
      %1688 = vmatprep.mubr.bf16.mxu0 %v1017
      %1689 = vmatmul.mubr.bf16.gmra.mrb[0].mxu0 %v1016
      %v1690 = vpop.f32.mrb[0].mxu0
      %v1691 = vadd.f32 0.0, %v1690
      %v1692 = vpop.f32.mrb[0].mxu0
      %v1693 = vpop.f32.mrb[0].mxu0
      %v1694 = vadd.f32 0.0, %v1693
      %v1695 = vpop.f32.mrb[0].mxu0
      %1696 = vmatprep.mubr.bf16.mxu0 %v1025
      %1697 = vmatmul.mubr.bf16.gmra.mrb[0].mxu0 %v1024
      %v1698 = vpop.f32.mrb[0].mxu0
      %v1699 = vadd.f32 0.0, %v1698
      %v1700 = vpop.f32.mrb[0].mxu0
      %v1701 = vpop.f32.mrb[0].mxu0
      %v1702 = vadd.f32 0.0, %v1701
      %v1703 = vpop.f32.mrb[0].mxu0
      %1704 = vmatprep.mubr.bf16.mxu0 %v1033
      %1705 = vmatmul.mubr.bf16.gmra.mrb[0].mxu0 %v1032
      %v1706 = vpop.f32.mrb[0].mxu0
      %v1707 = vadd.f32 0.0, %v1706
      %v1708 = vpop.f32.mrb[0].mxu0
      %v1709 = vpop.f32.mrb[0].mxu0
      %v1710 = vadd.f32 0.0, %v1709
      %v1711 = vpop.f32.mrb[0].mxu0
      %1712 = vmatprep.mubr.bf16.mxu0 %v1041
      %1713 = vmatmul.mubr.bf16.gmra.mrb[0].mxu0 %v1040
      %v1714 = vpop.f32.mrb[0].mxu0
      %v1715 = vadd.f32 0.0, %v1714
      %v1716 = vpop.f32.mrb[0].mxu0
      %v1717 = vpop.f32.mrb[0].mxu0
      %v1718 = vadd.f32 0.0, %v1717
      %v1719 = vpop.f32.mrb[0].mxu0
      %1720 = vmatprep.mubr.bf16.mxu0 %v1049
      %1721 = vmatmul.mubr.bf16.gmra.mrb[0].mxu0 %v1048
      %v1722 = vpop.f32.mrb[0].mxu0
      %v1723 = vadd.f32 0.0, %v1722
      %v1724 = vpop.f32.mrb[0].mxu0
      %v1725 = vpop.f32.mrb[0].mxu0
      %v1726 = vadd.f32 0.0, %v1725
      %v1727 = vpop.f32.mrb[0].mxu0
      %1728 = vmatprep.mubr.bf16.mxu0 %v1057
      %1729 = vmatmul.mubr.bf16.gmra.mrb[0].mxu0 %v1056
      %v1730 = vpop.f32.mrb[0].mxu0
      %v1731 = vadd.f32 0.0, %v1730
      %v1732 = vpop.f32.mrb[0].mxu0
      %v1733 = vpop.f32.mrb[0].mxu0
      %v1734 = vadd.f32 0.0, %v1733
      %v1735 = vpop.f32.mrb[0].mxu0
      %1736 = vmatprep.mubr.bf16.mxu0 %v1065
      %1737 = vmatmul.mubr.bf16.gmra.mrb[0].mxu0 %v1064
      %v1738 = vpop.f32.mrb[0].mxu0
      %v1739 = vadd.f32 0.0, %v1738
      %v1740 = vpop.f32.mrb[0].mxu0
      %v1741 = vpop.f32.mrb[0].mxu0
      %v1742 = vadd.f32 0.0, %v1741
      %v1743 = vpop.f32.mrb[0].mxu0
      %1744 = vmatprep.mubr.bf16.mxu0 %v1073
      %1745 = vmatmul.mubr.bf16.gmra.mrb[0].mxu0 %v1072
      %v1746 = vpop.f32.mrb[0].mxu0
      %v1747 = vadd.f32 0.0, %v1746
      %v1748 = vpop.f32.mrb[0].mxu0
      %v1749 = vpop.f32.mrb[0].mxu0
      %v1750 = vadd.f32 0.0, %v1749
      %v1751 = vpop.f32.mrb[0].mxu0
      %1752 = vmatprep.mubr.bf16.mxu0 %v1081
      %1753 = vmatmul.mubr.bf16.gmra.mrb[0].mxu0 %v1080
      %v1754 = vpop.f32.mrb[0].mxu0
      %v1755 = vadd.f32 0.0, %v1754
      %v1756 = vpop.f32.mrb[0].mxu0
      %v1757 = vpop.f32.mrb[0].mxu0
      %v1758 = vadd.f32 0.0, %v1757
      %v1759 = vpop.f32.mrb[0].mxu0
      %1760 = vmatprep.mubr.bf16.mxu0 %v1089
      %1761 = vmatmul.mubr.bf16.gmra.mrb[0].mxu0 %v1088
      %v1762 = vpop.f32.mrb[0].mxu0
      %v1763 = vadd.f32 0.0, %v1762
      %v1764 = vpop.f32.mrb[0].mxu0
      %v1765 = vpop.f32.mrb[0].mxu0
      %v1766 = vadd.f32 0.0, %v1765
      %v1767 = vpop.f32.mrb[0].mxu0
      %1768 = vmatprep.mubr.bf16.mxu0 %v1097
      %1769 = vmatmul.mubr.bf16.gmra.mrb[0].mxu0 %v1096
      %v1770 = vpop.f32.mrb[0].mxu0
      %v1771 = vadd.f32 0.0, %v1770
      %v1772 = vpop.f32.mrb[0].mxu0
      %v1773 = vpop.f32.mrb[0].mxu0
      %v1774 = vadd.f32 0.0, %v1773
      %v1775 = vpop.f32.mrb[0].mxu0
      %1776 = vdwg.mxu0
      %1777 = vmatprep.subr.bf16.mxu0 0
      %1778 = vmatpush1.bf16.msra.mxu0 %v1504
      %1779 = vmatprep.subr.bf16.mxu0 0
      %1780 = vmatpush1.bf16.msra.mxu0 %v1505
      %1781 = vmatprep.subr.bf16.mxu0 0
      %1782 = vmatpush1.bf16.msra.mxu0 %v1506
      %1783 = vmatprep.subr.bf16.mxu0 0
      %1784 = vmatpush1.bf16.msra.mxu0 %v1507
      %1785 = vmatprep.subr.bf16.mxu0 0
      %1786 = vmatpush1.bf16.msra.mxu0 %v1508
      %1787 = vmatprep.subr.bf16.mxu0 0
      %1788 = vmatpush1.bf16.msra.mxu0 %v1509
      %1789 = vmatprep.subr.bf16.mxu0 0
      %1790 = vmatpush1.bf16.msra.mxu0 %v1510
      %1791 = vmatprep.subr.bf16.mxu0 0
      %1792 = vmatpush1.bf16.msra.mxu0 %v1511
      %1793 = vmatprep.subr.bf16.mxu0 0
      %1794 = vmatpush1.bf16.msra.mxu0 %v1512
      %1795 = vmatprep.subr.bf16.mxu0 0
      %1796 = vmatpush1.bf16.msra.mxu0 %v1513
      %1797 = vmatprep.subr.bf16.mxu0 0
      %1798 = vmatpush1.bf16.msra.mxu0 %v1514
      %1799 = vmatprep.subr.bf16.mxu0 0
      %1800 = vmatpush1.bf16.msra.mxu0 %v1515
      %1801 = vmatprep.subr.bf16.mxu0 0
      %1802 = vmatpush1.bf16.msra.mxu0 %v1516
      %1803 = vmatprep.subr.bf16.mxu0 0
      %1804 = vmatpush1.bf16.msra.mxu0 %v1517
      %1805 = vmatprep.subr.bf16.mxu0 0
      %1806 = vmatpush1.bf16.msra.mxu0 %v1518
      %1807 = vmatprep.subr.bf16.mxu0 0
      %1808 = vmatpush1.bf16.msra.mxu0 %v1519
      %1809 = vmatprep.mubr.bf16.mxu0 %v979
      %1810 = vmatmul.mubr.bf16.gmra.mrb[0].mxu0 %v978
      %v1811 = vpop.f32.mrb[0].mxu0
      %v1812 = vadd.f32 %v1651, %v1811
      %v1813 = vpop.f32.mrb[0].mxu0
      %v1814 = vpop.f32.mrb[0].mxu0
      %v1815 = vadd.f32 %v1654, %v1814
      %v1816 = vpop.f32.mrb[0].mxu0
      %1817 = vmatprep.mubr.bf16.mxu0 %v987
      %1818 = vmatmul.mubr.bf16.gmra.mrb[0].mxu0 %v986
      %v1819 = vpop.f32.mrb[0].mxu0
      %v1820 = vadd.f32 %v1659, %v1819
      %v1821 = vpop.f32.mrb[0].mxu0
      %v1822 = vpop.f32.mrb[0].mxu0
      %v1823 = vadd.f32 %v1662, %v1822
      %v1824 = vpop.f32.mrb[0].mxu0
      %1825 = vmatprep.mubr.bf16.mxu0 %v995
      %1826 = vmatmul.mubr.bf16.gmra.mrb[0].mxu0 %v994
      %v1827 = vpop.f32.mrb[0].mxu0
      %v1828 = vadd.f32 %v1667, %v1827
      %v1829 = vpop.f32.mrb[0].mxu0
      %v1830 = vpop.f32.mrb[0].mxu0
      %v1831 = vadd.f32 %v1670, %v1830
      %v1832 = vpop.f32.mrb[0].mxu0
      %1833 = vmatprep.mubr.bf16.mxu0 %v1003
      %1834 = vmatmul.mubr.bf16.gmra.mrb[0].mxu0 %v1002
      %v1835 = vpop.f32.mrb[0].mxu0
      %v1836 = vadd.f32 %v1675, %v1835
      %v1837 = vpop.f32.mrb[0].mxu0
      %v1838 = vpop.f32.mrb[0].mxu0
      %v1839 = vadd.f32 %v1678, %v1838
      %v1840 = vpop.f32.mrb[0].mxu0
      %1841 = vmatprep.mubr.bf16.mxu0 %v1011
      %1842 = vmatmul.mubr.bf16.gmra.mrb[0].mxu0 %v1010
      %v1843 = vpop.f32.mrb[0].mxu0
      %v1844 = vadd.f32 %v1683, %v1843
      %v1845 = vpop.f32.mrb[0].mxu0
      %v1846 = vpop.f32.mrb[0].mxu0
      %v1847 = vadd.f32 %v1686, %v1846
      %v1848 = vpop.f32.mrb[0].mxu0
      %1849 = vmatprep.mubr.bf16.mxu0 %v1019
      %1850 = vmatmul.mubr.bf16.gmra.mrb[0].mxu0 %v1018
      %v1851 = vpop.f32.mrb[0].mxu0
      %v1852 = vadd.f32 %v1691, %v1851
      %v1853 = vpop.f32.mrb[0].mxu0
      %v1854 = vpop.f32.mrb[0].mxu0
      %v1855 = vadd.f32 %v1694, %v1854
      %v1856 = vpop.f32.mrb[0].mxu0
      %1857 = vmatprep.mubr.bf16.mxu0 %v1027
      %1858 = vmatmul.mubr.bf16.gmra.mrb[0].mxu0 %v1026
      %v1859 = vpop.f32.mrb[0].mxu0
      %v1860 = vadd.f32 %v1699, %v1859
      %v1861 = vpop.f32.mrb[0].mxu0
      %v1862 = vpop.f32.mrb[0].mxu0
      %v1863 = vadd.f32 %v1702, %v1862
      %v1864 = vpop.f32.mrb[0].mxu0
      %1865 = vmatprep.mubr.bf16.mxu0 %v1035
      %1866 = vmatmul.mubr.bf16.gmra.mrb[0].mxu0 %v1034
      %v1867 = vpop.f32.mrb[0].mxu0
      %v1868 = vadd.f32 %v1707, %v1867
      %v1869 = vpop.f32.mrb[0].mxu0
      %v1870 = vpop.f32.mrb[0].mxu0
      %v1871 = vadd.f32 %v1710, %v1870
      %v1872 = vpop.f32.mrb[0].mxu0
      %1873 = vmatprep.mubr.bf16.mxu0 %v1043
      %1874 = vmatmul.mubr.bf16.gmra.mrb[0].mxu0 %v1042
      %v1875 = vpop.f32.mrb[0].mxu0
      %v1876 = vadd.f32 %v1715, %v1875
      %v1877 = vpop.f32.mrb[0].mxu0
      %v1878 = vpop.f32.mrb[0].mxu0
      %v1879 = vadd.f32 %v1718, %v1878
      %v1880 = vpop.f32.mrb[0].mxu0
      %1881 = vmatprep.mubr.bf16.mxu0 %v1051
      %1882 = vmatmul.mubr.bf16.gmra.mrb[0].mxu0 %v1050
      %v1883 = vpop.f32.mrb[0].mxu0
      %v1884 = vadd.f32 %v1723, %v1883
      %v1885 = vpop.f32.mrb[0].mxu0
      %v1886 = vpop.f32.mrb[0].mxu0
      %v1887 = vadd.f32 %v1726, %v1886
      %v1888 = vpop.f32.mrb[0].mxu0
      %1889 = vmatprep.mubr.bf16.mxu0 %v1059
      %1890 = vmatmul.mubr.bf16.gmra.mrb[0].mxu0 %v1058
      %v1891 = vpop.f32.mrb[0].mxu0
      %v1892 = vadd.f32 %v1731, %v1891
      %v1893 = vpop.f32.mrb[0].mxu0
      %v1894 = vpop.f32.mrb[0].mxu0
      %v1895 = vadd.f32 %v1734, %v1894
      %v1896 = vpop.f32.mrb[0].mxu0
      %1897 = vmatprep.mubr.bf16.mxu0 %v1067
      %1898 = vmatmul.mubr.bf16.gmra.mrb[0].mxu0 %v1066
      %v1899 = vpop.f32.mrb[0].mxu0
      %v1900 = vadd.f32 %v1739, %v1899
      %v1901 = vpop.f32.mrb[0].mxu0
      %v1902 = vpop.f32.mrb[0].mxu0
      %v1903 = vadd.f32 %v1742, %v1902
      %v1904 = vpop.f32.mrb[0].mxu0
      %1905 = vmatprep.mubr.bf16.mxu0 %v1075
      %1906 = vmatmul.mubr.bf16.gmra.mrb[0].mxu0 %v1074
      %v1907 = vpop.f32.mrb[0].mxu0
      %v1908 = vadd.f32 %v1747, %v1907
      %v1909 = vpop.f32.mrb[0].mxu0
      %v1910 = vpop.f32.mrb[0].mxu0
      %v1911 = vadd.f32 %v1750, %v1910
      %v1912 = vpop.f32.mrb[0].mxu0
      %1913 = vmatprep.mubr.bf16.mxu0 %v1083
      %1914 = vmatmul.mubr.bf16.gmra.mrb[0].mxu0 %v1082
      %v1915 = vpop.f32.mrb[0].mxu0
      %v1916 = vadd.f32 %v1755, %v1915
      %v1917 = vpop.f32.mrb[0].mxu0
      %v1918 = vpop.f32.mrb[0].mxu0
      %v1919 = vadd.f32 %v1758, %v1918
      %v1920 = vpop.f32.mrb[0].mxu0
      %1921 = vmatprep.mubr.bf16.mxu0 %v1091
      %1922 = vmatmul.mubr.bf16.gmra.mrb[0].mxu0 %v1090
      %v1923 = vpop.f32.mrb[0].mxu0
      %v1924 = vadd.f32 %v1763, %v1923
      %v1925 = vpop.f32.mrb[0].mxu0
      %v1926 = vpop.f32.mrb[0].mxu0
      %v1927 = vadd.f32 %v1766, %v1926
      %v1928 = vpop.f32.mrb[0].mxu0
      %1929 = vmatprep.mubr.bf16.mxu0 %v1099
      %1930 = vmatmul.mubr.bf16.gmra.mrb[0].mxu0 %v1098
      %v1931 = vpop.f32.mrb[0].mxu0
      %v1932 = vadd.f32 %v1771, %v1931
      %v1933 = vpop.f32.mrb[0].mxu0
      %v1934 = vpop.f32.mrb[0].mxu0
      %v1935 = vadd.f32 %v1774, %v1934
      %v1936 = vpop.f32.mrb[0].mxu0
      %1937 = vdwg.mxu0
      %1938 = vmatprep.subr.bf16.mxu0 0
      %1939 = vmatpush1.bf16.msra.mxu0 %v1520
      %1940 = vmatprep.subr.bf16.mxu0 0
      %1941 = vmatpush1.bf16.msra.mxu0 %v1521
      %1942 = vmatprep.subr.bf16.mxu0 0
      %1943 = vmatpush1.bf16.msra.mxu0 %v1522
      %1944 = vmatprep.subr.bf16.mxu0 0
      %1945 = vmatpush1.bf16.msra.mxu0 %v1523
      %1946 = vmatprep.subr.bf16.mxu0 0
      %1947 = vmatpush1.bf16.msra.mxu0 %v1524
      %1948 = vmatprep.subr.bf16.mxu0 0
      %1949 = vmatpush1.bf16.msra.mxu0 %v1525
      %1950 = vmatprep.subr.bf16.mxu0 0
      %1951 = vmatpush1.bf16.msra.mxu0 %v1526
      %1952 = vmatprep.subr.bf16.mxu0 0
      %1953 = vmatpush1.bf16.msra.mxu0 %v1527
      %1954 = vmatprep.subr.bf16.mxu0 0
      %1955 = vmatpush1.bf16.msra.mxu0 %v1528
      %1956 = vmatprep.subr.bf16.mxu0 0
      %1957 = vmatpush1.bf16.msra.mxu0 %v1529
      %1958 = vmatprep.subr.bf16.mxu0 0
      %1959 = vmatpush1.bf16.msra.mxu0 %v1530
      %1960 = vmatprep.subr.bf16.mxu0 0
      %1961 = vmatpush1.bf16.msra.mxu0 %v1531
      %1962 = vmatprep.subr.bf16.mxu0 0
      %1963 = vmatpush1.bf16.msra.mxu0 %v1532
      %1964 = vmatprep.subr.bf16.mxu0 0
      %1965 = vmatpush1.bf16.msra.mxu0 %v1533
      %1966 = vmatprep.subr.bf16.mxu0 0
      %1967 = vmatpush1.bf16.msra.mxu0 %v1534
      %1968 = vmatprep.subr.bf16.mxu0 0
      %1969 = vmatpush1.bf16.msra.mxu0 %v1535
      %1970 = vmatprep.mubr.bf16.mxu0 %v981
      %1971 = vmatmul.mubr.bf16.gmra.mrb[0].mxu0 %v980
      %v1972 = vpop.f32.mrb[0].mxu0
      %v1973 = vadd.f32 %v1812, %v1972
      %v1974 = vpop.f32.mrb[0].mxu0
      %v1975 = vpop.f32.mrb[0].mxu0
      %v1976 = vadd.f32 %v1815, %v1975
      %v1977 = vpop.f32.mrb[0].mxu0
      %1978 = vmatprep.mubr.bf16.mxu0 %v989
      %1979 = vmatmul.mubr.bf16.gmra.mrb[0].mxu0 %v988
      %v1980 = vpop.f32.mrb[0].mxu0
      %v1981 = vadd.f32 %v1820, %v1980
      %v1982 = vpop.f32.mrb[0].mxu0
      %v1983 = vpop.f32.mrb[0].mxu0
      %v1984 = vadd.f32 %v1823, %v1983
      %v1985 = vpop.f32.mrb[0].mxu0
      %1986 = vmatprep.mubr.bf16.mxu0 %v997
      %1987 = vmatmul.mubr.bf16.gmra.mrb[0].mxu0 %v996
      %v1988 = vpop.f32.mrb[0].mxu0
      %v1989 = vadd.f32 %v1828, %v1988
      %v1990 = vpop.f32.mrb[0].mxu0
      %v1991 = vpop.f32.mrb[0].mxu0
      %v1992 = vadd.f32 %v1831, %v1991
      %v1993 = vpop.f32.mrb[0].mxu0
      %1994 = vmatprep.mubr.bf16.mxu0 %v1005
      %1995 = vmatmul.mubr.bf16.gmra.mrb[0].mxu0 %v1004
      %v1996 = vpop.f32.mrb[0].mxu0
      %v1997 = vadd.f32 %v1836, %v1996
      %v1998 = vpop.f32.mrb[0].mxu0
      %v1999 = vpop.f32.mrb[0].mxu0
      %v2000 = vadd.f32 %v1839, %v1999
      %v2001 = vpop.f32.mrb[0].mxu0
      %2002 = vmatprep.mubr.bf16.mxu0 %v1013
      %2003 = vmatmul.mubr.bf16.gmra.mrb[0].mxu0 %v1012
      %v2004 = vpop.f32.mrb[0].mxu0
      %v2005 = vadd.f32 %v1844, %v2004
      %v2006 = vpop.f32.mrb[0].mxu0
      %v2007 = vpop.f32.mrb[0].mxu0
      %v2008 = vadd.f32 %v1847, %v2007
      %v2009 = vpop.f32.mrb[0].mxu0
      %2010 = vmatprep.mubr.bf16.mxu0 %v1021
      %2011 = vmatmul.mubr.bf16.gmra.mrb[0].mxu0 %v1020
      %v2012 = vpop.f32.mrb[0].mxu0
      %v2013 = vadd.f32 %v1852, %v2012
      %v2014 = vpop.f32.mrb[0].mxu0
      %v2015 = vpop.f32.mrb[0].mxu0
      %v2016 = vadd.f32 %v1855, %v2015
      %v2017 = vpop.f32.mrb[0].mxu0
      %2018 = vmatprep.mubr.bf16.mxu0 %v1029
      %2019 = vmatmul.mubr.bf16.gmra.mrb[0].mxu0 %v1028
      %v2020 = vpop.f32.mrb[0].mxu0
      %v2021 = vadd.f32 %v1860, %v2020
      %v2022 = vpop.f32.mrb[0].mxu0
      %v2023 = vpop.f32.mrb[0].mxu0
      %v2024 = vadd.f32 %v1863, %v2023
      %v2025 = vpop.f32.mrb[0].mxu0
      %2026 = vmatprep.mubr.bf16.mxu0 %v1037
      %2027 = vmatmul.mubr.bf16.gmra.mrb[0].mxu0 %v1036
      %v2028 = vpop.f32.mrb[0].mxu0
      %v2029 = vadd.f32 %v1868, %v2028
      %v2030 = vpop.f32.mrb[0].mxu0
      %v2031 = vpop.f32.mrb[0].mxu0
      %v2032 = vadd.f32 %v1871, %v2031
      %v2033 = vpop.f32.mrb[0].mxu0
      %2034 = vmatprep.mubr.bf16.mxu0 %v1045
      %2035 = vmatmul.mubr.bf16.gmra.mrb[0].mxu0 %v1044
      %v2036 = vpop.f32.mrb[0].mxu0
      %v2037 = vadd.f32 %v1876, %v2036
      %v2038 = vpop.f32.mrb[0].mxu0
      %v2039 = vpop.f32.mrb[0].mxu0
      %v2040 = vadd.f32 %v1879, %v2039
      %v2041 = vpop.f32.mrb[0].mxu0
      %2042 = vmatprep.mubr.bf16.mxu0 %v1053
      %2043 = vmatmul.mubr.bf16.gmra.mrb[0].mxu0 %v1052
      %v2044 = vpop.f32.mrb[0].mxu0
      %v2045 = vadd.f32 %v1884, %v2044
      %v2046 = vpop.f32.mrb[0].mxu0
      %v2047 = vpop.f32.mrb[0].mxu0
      %v2048 = vadd.f32 %v1887, %v2047
      %v2049 = vpop.f32.mrb[0].mxu0
      %2050 = vmatprep.mubr.bf16.mxu0 %v1061
      %2051 = vmatmul.mubr.bf16.gmra.mrb[0].mxu0 %v1060
      %v2052 = vpop.f32.mrb[0].mxu0
      %v2053 = vadd.f32 %v1892, %v2052
      %v2054 = vpop.f32.mrb[0].mxu0
      %v2055 = vpop.f32.mrb[0].mxu0
      %v2056 = vadd.f32 %v1895, %v2055
      %v2057 = vpop.f32.mrb[0].mxu0
      %2058 = vmatprep.mubr.bf16.mxu0 %v1069
      %2059 = vmatmul.mubr.bf16.gmra.mrb[0].mxu0 %v1068
      %v2060 = vpop.f32.mrb[0].mxu0
      %v2061 = vadd.f32 %v1900, %v2060
      %v2062 = vpop.f32.mrb[0].mxu0
      %v2063 = vpop.f32.mrb[0].mxu0
      %v2064 = vadd.f32 %v1903, %v2063
      %v2065 = vpop.f32.mrb[0].mxu0
      %2066 = vmatprep.mubr.bf16.mxu0 %v1077
      %2067 = vmatmul.mubr.bf16.gmra.mrb[0].mxu0 %v1076
      %v2068 = vpop.f32.mrb[0].mxu0
      %v2069 = vadd.f32 %v1908, %v2068
      %v2070 = vpop.f32.mrb[0].mxu0
      %v2071 = vpop.f32.mrb[0].mxu0
      %v2072 = vadd.f32 %v1911, %v2071
      %v2073 = vpop.f32.mrb[0].mxu0
      %2074 = vmatprep.mubr.bf16.mxu0 %v1085
      %2075 = vmatmul.mubr.bf16.gmra.mrb[0].mxu0 %v1084
      %v2076 = vpop.f32.mrb[0].mxu0
      %v2077 = vadd.f32 %v1916, %v2076
      %v2078 = vpop.f32.mrb[0].mxu0
      %v2079 = vpop.f32.mrb[0].mxu0
      %v2080 = vadd.f32 %v1919, %v2079
      %v2081 = vpop.f32.mrb[0].mxu0
      %2082 = vmatprep.mubr.bf16.mxu0 %v1093
      %2083 = vmatmul.mubr.bf16.gmra.mrb[0].mxu0 %v1092
      %v2084 = vpop.f32.mrb[0].mxu0
      %v2085 = vadd.f32 %v1924, %v2084
      %v2086 = vpop.f32.mrb[0].mxu0
      %v2087 = vpop.f32.mrb[0].mxu0
      %v2088 = vadd.f32 %v1927, %v2087
      %v2089 = vpop.f32.mrb[0].mxu0
      %2090 = vmatprep.mubr.bf16.mxu0 %v1101
      %2091 = vmatmul.mubr.bf16.gmra.mrb[0].mxu0 %v1100
      %v2092 = vpop.f32.mrb[0].mxu0
      %v2093 = vadd.f32 %v1932, %v2092
      %v2094 = vpop.f32.mrb[0].mxu0
      %v2095 = vpop.f32.mrb[0].mxu0
      %v2096 = vadd.f32 %v1935, %v2095
      %v2097 = vpop.f32.mrb[0].mxu0
      %2098 = vdwg.mxu0
      %2099 = vmatprep.subr.bf16.mxu0 0
      %2100 = vmatpush1.bf16.msra.mxu0 %v1536
      %2101 = vmatprep.subr.bf16.mxu0 0
      %2102 = vmatpush1.bf16.msra.mxu0 %v1537
      %2103 = vmatprep.subr.bf16.mxu0 0
      %2104 = vmatpush1.bf16.msra.mxu0 %v1538
      %2105 = vmatprep.subr.bf16.mxu0 0
      %2106 = vmatpush1.bf16.msra.mxu0 %v1539
      %2107 = vmatprep.subr.bf16.mxu0 0
      %2108 = vmatpush1.bf16.msra.mxu0 %v1540
      %2109 = vmatprep.subr.bf16.mxu0 0
      %2110 = vmatpush1.bf16.msra.mxu0 %v1541
      %2111 = vmatprep.subr.bf16.mxu0 0
      %2112 = vmatpush1.bf16.msra.mxu0 %v1542
      %2113 = vmatprep.subr.bf16.mxu0 0
      %2114 = vmatpush1.bf16.msra.mxu0 %v1543
      %2115 = vmatprep.subr.bf16.mxu0 0
      %2116 = vmatpush1.bf16.msra.mxu0 %v1544
      %2117 = vmatprep.subr.bf16.mxu0 0
      %2118 = vmatpush1.bf16.msra.mxu0 %v1545
      %2119 = vmatprep.subr.bf16.mxu0 0
      %2120 = vmatpush1.bf16.msra.mxu0 %v1546
      %2121 = vmatprep.subr.bf16.mxu0 0
      %2122 = vmatpush1.bf16.msra.mxu0 %v1547
      %2123 = vmatprep.subr.bf16.mxu0 0
      %2124 = vmatpush1.bf16.msra.mxu0 %v1548
      %2125 = vmatprep.subr.bf16.mxu0 0
      %2126 = vmatpush1.bf16.msra.mxu0 %v1549
      %2127 = vmatprep.subr.bf16.mxu0 0
      %2128 = vmatpush1.bf16.msra.mxu0 %v1550
      %2129 = vmatprep.subr.bf16.mxu0 0
      %2130 = vmatpush1.bf16.msra.mxu0 %v1551
      %2131 = vmatprep.mubr.bf16.mxu0 %v983
      %2132 = vmatmul.mubr.bf16.gmra.mrb[0].mxu0 %v982
      %v2133 = vpop.f32.mrb[0].mxu0
      %v2134 = vadd.f32 %v1973, %v2133
      %v2135 = vpop.f32.mrb[0].mxu0
      %v2136 = vpop.f32.mrb[0].mxu0
      %v2137 = vadd.f32 %v1976, %v2136
      %v2138 = vpop.f32.mrb[0].mxu0
      %2139 = vmatprep.mubr.bf16.mxu0 %v991
      %2140 = vmatmul.mubr.bf16.gmra.mrb[0].mxu0 %v990
      %v2141 = vpop.f32.mrb[0].mxu0
      %v2142 = vadd.f32 %v1981, %v2141
      %v2143 = vpop.f32.mrb[0].mxu0
      %v2144 = vpop.f32.mrb[0].mxu0
      %v2145 = vadd.f32 %v1984, %v2144
      %v2146 = vpop.f32.mrb[0].mxu0
      %2147 = vmatprep.mubr.bf16.mxu0 %v999
      %2148 = vmatmul.mubr.bf16.gmra.mrb[0].mxu0 %v998
      %v2149 = vpop.f32.mrb[0].mxu0
      %v2150 = vadd.f32 %v1989, %v2149
      %v2151 = vpop.f32.mrb[0].mxu0
      %v2152 = vpop.f32.mrb[0].mxu0
      %v2153 = vadd.f32 %v1992, %v2152
      %v2154 = vpop.f32.mrb[0].mxu0
      %2155 = vmatprep.mubr.bf16.mxu0 %v1007
      %2156 = vmatmul.mubr.bf16.gmra.mrb[0].mxu0 %v1006
      %v2157 = vpop.f32.mrb[0].mxu0
      %v2158 = vadd.f32 %v1997, %v2157
      %v2159 = vpop.f32.mrb[0].mxu0
      %v2160 = vpop.f32.mrb[0].mxu0
      %v2161 = vadd.f32 %v2000, %v2160
      %v2162 = vpop.f32.mrb[0].mxu0
      %2163 = vmatprep.mubr.bf16.mxu0 %v1015
      %2164 = vmatmul.mubr.bf16.gmra.mrb[0].mxu0 %v1014
      %v2165 = vpop.f32.mrb[0].mxu0
      %v2166 = vadd.f32 %v2005, %v2165
      %v2167 = vpop.f32.mrb[0].mxu0
      %v2168 = vpop.f32.mrb[0].mxu0
      %v2169 = vadd.f32 %v2008, %v2168
      %v2170 = vpop.f32.mrb[0].mxu0
      %2171 = vmatprep.mubr.bf16.mxu0 %v1023
      %2172 = vmatmul.mubr.bf16.gmra.mrb[0].mxu0 %v1022
      %v2173 = vpop.f32.mrb[0].mxu0
      %v2174 = vadd.f32 %v2013, %v2173
      %v2175 = vpop.f32.mrb[0].mxu0
      %v2176 = vpop.f32.mrb[0].mxu0
      %v2177 = vadd.f32 %v2016, %v2176
      %v2178 = vpop.f32.mrb[0].mxu0
      %2179 = vmatprep.mubr.bf16.mxu0 %v1031
      %2180 = vmatmul.mubr.bf16.gmra.mrb[0].mxu0 %v1030
      %v2181 = vpop.f32.mrb[0].mxu0
      %v2182 = vadd.f32 %v2021, %v2181
      %v2183 = vpop.f32.mrb[0].mxu0
      %v2184 = vpop.f32.mrb[0].mxu0
      %v2185 = vadd.f32 %v2024, %v2184
      %v2186 = vpop.f32.mrb[0].mxu0
      %2187 = vmatprep.mubr.bf16.mxu0 %v1039
      %2188 = vmatmul.mubr.bf16.gmra.mrb[0].mxu0 %v1038
      %v2189 = vpop.f32.mrb[0].mxu0
      %v2190 = vadd.f32 %v2029, %v2189
      %v2191 = vpop.f32.mrb[0].mxu0
      %v2192 = vpop.f32.mrb[0].mxu0
      %v2193 = vadd.f32 %v2032, %v2192
      %v2194 = vpop.f32.mrb[0].mxu0
      %2195 = vmatprep.mubr.bf16.mxu0 %v1047
      %2196 = vmatmul.mubr.bf16.gmra.mrb[0].mxu0 %v1046
      %v2197 = vpop.f32.mrb[0].mxu0
      %v2198 = vadd.f32 %v2037, %v2197
      %v2199 = vpop.f32.mrb[0].mxu0
      %v2200 = vpop.f32.mrb[0].mxu0
      %v2201 = vadd.f32 %v2040, %v2200
      %v2202 = vpop.f32.mrb[0].mxu0
      %2203 = vmatprep.mubr.bf16.mxu0 %v1055
      %2204 = vmatmul.mubr.bf16.gmra.mrb[0].mxu0 %v1054
      %v2205 = vpop.f32.mrb[0].mxu0
      %v2206 = vadd.f32 %v2045, %v2205
      %v2207 = vpop.f32.mrb[0].mxu0
      %v2208 = vpop.f32.mrb[0].mxu0
      %v2209 = vadd.f32 %v2048, %v2208
      %v2210 = vpop.f32.mrb[0].mxu0
      %2211 = vmatprep.mubr.bf16.mxu0 %v1063
      %2212 = vmatmul.mubr.bf16.gmra.mrb[0].mxu0 %v1062
      %v2213 = vpop.f32.mrb[0].mxu0
      %v2214 = vadd.f32 %v2053, %v2213
      %v2215 = vpop.f32.mrb[0].mxu0
      %v2216 = vpop.f32.mrb[0].mxu0
      %v2217 = vadd.f32 %v2056, %v2216
      %v2218 = vpop.f32.mrb[0].mxu0
      %2219 = vmatprep.mubr.bf16.mxu0 %v1071
      %2220 = vmatmul.mubr.bf16.gmra.mrb[0].mxu0 %v1070
      %v2221 = vpop.f32.mrb[0].mxu0
      %v2222 = vadd.f32 %v2061, %v2221
      %v2223 = vpop.f32.mrb[0].mxu0
      %v2224 = vpop.f32.mrb[0].mxu0
      %v2225 = vadd.f32 %v2064, %v2224
      %v2226 = vpop.f32.mrb[0].mxu0
      %2227 = vmatprep.mubr.bf16.mxu0 %v1079
      %2228 = vmatmul.mubr.bf16.gmra.mrb[0].mxu0 %v1078
      %v2229 = vpop.f32.mrb[0].mxu0
      %v2230 = vadd.f32 %v2069, %v2229
      %v2231 = vpop.f32.mrb[0].mxu0
      %v2232 = vpop.f32.mrb[0].mxu0
      %v2233 = vadd.f32 %v2072, %v2232
      %v2234 = vpop.f32.mrb[0].mxu0
      %2235 = vmatprep.mubr.bf16.mxu0 %v1087
      %2236 = vmatmul.mubr.bf16.gmra.mrb[0].mxu0 %v1086
      %v2237 = vpop.f32.mrb[0].mxu0
      %v2238 = vadd.f32 %v2077, %v2237
      %v2239 = vpop.f32.mrb[0].mxu0
      %v2240 = vpop.f32.mrb[0].mxu0
      %v2241 = vadd.f32 %v2080, %v2240
      %v2242 = vpop.f32.mrb[0].mxu0
      %2243 = vmatprep.mubr.bf16.mxu0 %v1095
      %2244 = vmatmul.mubr.bf16.gmra.mrb[0].mxu0 %v1094
      %v2245 = vpop.f32.mrb[0].mxu0
      %v2246 = vadd.f32 %v2085, %v2245
      %v2247 = vpop.f32.mrb[0].mxu0
      %v2248 = vpop.f32.mrb[0].mxu0
      %v2249 = vadd.f32 %v2088, %v2248
      %v2250 = vpop.f32.mrb[0].mxu0
      %2251 = vmatprep.mubr.bf16.mxu0 %v1103
      %2252 = vmatmul.mubr.bf16.gmra.mrb[0].mxu0 %v1102
      %v2253 = vpop.f32.mrb[0].mxu0
      %v2254 = vadd.f32 %v2093, %v2253
      %v2255 = vpop.f32.mrb[0].mxu0
      %v2256 = vpop.f32.mrb[0].mxu0
      %v2257 = vadd.f32 %v2096, %v2256
      %v2258 = vpop.f32.mrb[0].mxu0
      %2259 = vdwg.mxu0
      %v2260 = vadd.f32 %v304, %v2134
      %v2261 = vadd.f32 %v305, %v2137
      %v2262 = vadd.f32 %v306, %v2142
      %v2263 = vadd.f32 %v307, %v2145
      %v2264 = vadd.f32 %v308, %v2150
      %v2265 = vadd.f32 %v309, %v2153
      %v2266 = vadd.f32 %v310, %v2158
      %v2267 = vadd.f32 %v311, %v2161
      %v2268 = vadd.f32 %v312, %v2166
      %v2269 = vadd.f32 %v313, %v2169
      %v2270 = vadd.f32 %v314, %v2174
      %v2271 = vadd.f32 %v315, %v2177
      %v2272 = vadd.f32 %v316, %v2182
      %v2273 = vadd.f32 %v317, %v2185
      %v2274 = vadd.f32 %v318, %v2190
      %v2275 = vadd.f32 %v319, %v2193
      %v2276 = vadd.f32 %v320, %v2198
      %v2277 = vadd.f32 %v321, %v2201
      %v2278 = vadd.f32 %v322, %v2206
      %v2279 = vadd.f32 %v323, %v2209
      %v2280 = vadd.f32 %v324, %v2214
      %v2281 = vadd.f32 %v325, %v2217
      %v2282 = vadd.f32 %v326, %v2222
      %v2283 = vadd.f32 %v327, %v2225
      %v2284 = vadd.f32 %v328, %v2230
      %v2285 = vadd.f32 %v329, %v2233
      %v2286 = vadd.f32 %v330, %v2238
      %v2287 = vadd.f32 %v331, %v2241
      %v2288 = vadd.f32 %v332, %v2246
      %v2289 = vadd.f32 %v333, %v2249
      %v2290 = vadd.f32 %v334, %v2254
      %v2291 = vadd.f32 %v335, %v2257
      %2292 = vst [vmem:[#allocation2] sm:$0xff] %v2260
      %2293 = vst [vmem:[#allocation2 + $0x8] sm:$0xff] %v2261
      %2294 = vst [vmem:[#allocation2 + $0x10] sm:$0xff] %v2262
      %2295 = vst [vmem:[#allocation2 + $0x18] sm:$0xff] %v2263
      %2296 = vst [vmem:[#allocation2 + $0x20] sm:$0xff] %v2264
      %2297 = vst [vmem:[#allocation2 + $0x28] sm:$0xff] %v2265
      %2298 = vst [vmem:[#allocation2 + $0x30] sm:$0xff] %v2266
      %2299 = vst [vmem:[#allocation2 + $0x38] sm:$0xff] %v2267
      %2300 = vst [vmem:[#allocation2 + $0x40] sm:$0xff] %v2268
      %2301 = vst [vmem:[#allocation2 + $0x48] sm:$0xff] %v2269
      %2302 = vst [vmem:[#allocation2 + $0x50] sm:$0xff] %v2270
      %2303 = vst [vmem:[#allocation2 + $0x58] sm:$0xff] %v2271
      %2304 = vst [vmem:[#allocation2 + $0x60] sm:$0xff] %v2272
      %2305 = vst [vmem:[#allocation2 + $0x68] sm:$0xff] %v2273
      %2306 = vst [vmem:[#allocation2 + $0x70] sm:$0xff] %v2274
      %2307 = vst [vmem:[#allocation2 + $0x78] sm:$0xff] %v2275
      %2308 = vst [vmem:[#allocation2 + $0x80] sm:$0xff] %v2276
      %2309 = vst [vmem:[#allocation2 + $0x88] sm:$0xff] %v2277
      %2310 = vst [vmem:[#allocation2 + $0x90] sm:$0xff] %v2278
      %2311 = vst [vmem:[#allocation2 + $0x98] sm:$0xff] %v2279
      %2312 = vst [vmem:[#allocation2 + $0xa0] sm:$0xff] %v2280
      %2313 = vst [vmem:[#allocation2 + $0xa8] sm:$0xff] %v2281
      %2314 = vst [vmem:[#allocation2 + $0xb0] sm:$0xff] %v2282
      %2315 = vst [vmem:[#allocation2 + $0xb8] sm:$0xff] %v2283
      %2316 = vst [vmem:[#allocation2 + $0xc0] sm:$0xff] %v2284
      %2317 = vst [vmem:[#allocation2 + $0xc8] sm:$0xff] %v2285
      %2318 = vst [vmem:[#allocation2 + $0xd0] sm:$0xff] %v2286
      %2319 = vst [vmem:[#allocation2 + $0xd8] sm:$0xff] %v2287
      %2320 = vst [vmem:[#allocation2 + $0xe0] sm:$0xff] %v2288
      %2321 = vst [vmem:[#allocation2 + $0xe8] sm:$0xff] %v2289
      %2322 = vst [vmem:[#allocation2 + $0xf0] sm:$0xff] %v2290
      %2323 = vst [vmem:[#allocation2 + $0xf8] sm:$0xff] %v2291
      // Predicated region
      $region37: #{mrcnn_forward.8} parent=31 // pred_check
        %p2324 = pneg %p268
      $region38: #{mrcnn_forward.8} parent=31 // pred_check_branch
        %2326 = sbr.rel (%p2324) target = $region40
      $region39: #{mrcnn_forward.8} parent=31 // pred_region
        %v2327 = vld [vmem:[#allocation2] sm:$0xff]
        %v2328 = vld [vmem:[#allocation2 + $0x8] sm:$0xff]
        %v2329 = vld [vmem:[#allocation2 + $0x10] sm:$0xff]
        %v2330 = vld [vmem:[#allocation2 + $0x18] sm:$0xff]
        %v2331 = vld [vmem:[#allocation2 + $0x20] sm:$0xff]
        %v2332 = vld [vmem:[#allocation2 + $0x28] sm:$0xff]
        %v2333 = vld [vmem:[#allocation2 + $0x30] sm:$0xff]
        %v2334 = vld [vmem:[#allocation2 + $0x38] sm:$0xff]
        %v2335 = vld [vmem:[#allocation2 + $0x40] sm:$0xff]
        %v2336 = vld [vmem:[#allocation2 + $0x48] sm:$0xff]
        %v2337 = vld [vmem:[#allocation2 + $0x50] sm:$0xff]
        %v2338 = vld [vmem:[#allocation2 + $0x58] sm:$0xff]
        %v2339 = vld [vmem:[#allocation2 + $0x60] sm:$0xff]
        %v2340 = vld [vmem:[#allocation2 + $0x68] sm:$0xff]
        %v2341 = vld [vmem:[#allocation2 + $0x70] sm:$0xff]
        %v2342 = vld [vmem:[#allocation2 + $0x78] sm:$0xff]
        %v2343 = vld [vmem:[#allocation2 + $0x80] sm:$0xff]
        %v2344 = vld [vmem:[#allocation2 + $0x88] sm:$0xff]
        %v2345 = vld [vmem:[#allocation2 + $0x90] sm:$0xff]
        %v2346 = vld [vmem:[#allocation2 + $0x98] sm:$0xff]
        %v2347 = vld [vmem:[#allocation2 + $0xa0] sm:$0xff]
        %v2348 = vld [vmem:[#allocation2 + $0xa8] sm:$0xff]
        %v2349 = vld [vmem:[#allocation2 + $0xb0] sm:$0xff]
        %v2350 = vld [vmem:[#allocation2 + $0xb8] sm:$0xff]
        %v2351 = vld [vmem:[#allocation2 + $0xc0] sm:$0xff]
        %v2352 = vld [vmem:[#allocation2 + $0xc8] sm:$0xff]
        %v2353 = vld [vmem:[#allocation2 + $0xd0] sm:$0xff]
        %v2354 = vld [vmem:[#allocation2 + $0xd8] sm:$0xff]
        %v2355 = vld [vmem:[#allocation2 + $0xe0] sm:$0xff]
        %v2356 = vld [vmem:[#allocation2 + $0xe8] sm:$0xff]
        %v2357 = vld [vmem:[#allocation2 + $0xf0] sm:$0xff]
        %v2358 = vld [vmem:[#allocation2 + $0xf8] sm:$0xff]
        %v2359 = vld [vmem:[%s257] sm:$0x1]
        %v2361 = vlaneseq
        %v2362 = vshrl.u32 %v2361, 7
        %v2363 = vsub.s32 0, %v2362
        %v2364 = vrot.slane %v2359, %v2363
        %v2366 = vadd.f32 %v2327, %v2364
        %v2367 = vadd.f32 %v2328, %v2364
        %v2368 = vadd.f32 %v2329, %v2364
        %v2369 = vadd.f32 %v2330, %v2364
        %v2370 = vadd.f32 %v2331, %v2364
        %v2371 = vadd.f32 %v2332, %v2364
        %v2372 = vadd.f32 %v2333, %v2364
        %v2373 = vadd.f32 %v2334, %v2364
        %v2374 = vadd.f32 %v2335, %v2364
        %v2375 = vadd.f32 %v2336, %v2364
        %v2376 = vadd.f32 %v2337, %v2364
        %v2377 = vadd.f32 %v2338, %v2364
        %v2378 = vadd.f32 %v2339, %v2364
        %v2379 = vadd.f32 %v2340, %v2364
        %v2380 = vadd.f32 %v2341, %v2364
        %v2381 = vadd.f32 %v2342, %v2364
        %v2382 = vadd.f32 %v2343, %v2364
        %v2383 = vadd.f32 %v2344, %v2364
        %v2384 = vadd.f32 %v2345, %v2364
        %v2385 = vadd.f32 %v2346, %v2364
        %v2386 = vadd.f32 %v2347, %v2364
        %v2387 = vadd.f32 %v2348, %v2364
        %v2388 = vadd.f32 %v2349, %v2364
        %v2389 = vadd.f32 %v2350, %v2364
        %v2390 = vadd.f32 %v2351, %v2364
        %v2391 = vadd.f32 %v2352, %v2364
        %v2392 = vadd.f32 %v2353, %v2364
        %v2393 = vadd.f32 %v2354, %v2364
        %v2394 = vadd.f32 %v2355, %v2364
        %v2395 = vadd.f32 %v2356, %v2364
        %v2396 = vadd.f32 %v2357, %v2364
        %v2397 = vadd.f32 %v2358, %v2364
        %2398 = vst [vmem:[%s265] sm:$0xff] %v2366
        %2399 = vst [vmem:[%s265 + $0x8] sm:$0xff] %v2367
        %2400 = vst [vmem:[%s265 + $0x10] sm:$0xff] %v2368
        %2401 = vst [vmem:[%s265 + $0x18] sm:$0xff] %v2369
        %2402 = vst [vmem:[%s265 + $0x20] sm:$0xff] %v2370
        %2403 = vst [vmem:[%s265 + $0x28] sm:$0xff] %v2371
        %2404 = vst [vmem:[%s265 + $0x30] sm:$0xff] %v2372
        %2405 = vst [vmem:[%s265 + $0x38] sm:$0xff] %v2373
        %2406 = vst [vmem:[%s265 + $0x40] sm:$0xff] %v2374
        %2407 = vst [vmem:[%s265 + $0x48] sm:$0xff] %v2375
        %2408 = vst [vmem:[%s265 + $0x50] sm:$0xff] %v2376
        %2409 = vst [vmem:[%s265 + $0x58] sm:$0xff] %v2377
        %2410 = vst [vmem:[%s265 + $0x60] sm:$0xff] %v2378
        %2411 = vst [vmem:[%s265 + $0x68] sm:$0xff] %v2379
        %2412 = vst [vmem:[%s265 + $0x70] sm:$0xff] %v2380
        %2413 = vst [vmem:[%s265 + $0x78] sm:$0xff] %v2381
        %2414 = vst [vmem:[%s265 + $0x80] sm:$0xff] %v2382
        %2415 = vst [vmem:[%s265 + $0x88] sm:$0xff] %v2383
        %2416 = vst [vmem:[%s265 + $0x90] sm:$0xff] %v2384
        %2417 = vst [vmem:[%s265 + $0x98] sm:$0xff] %v2385
        %2418 = vst [vmem:[%s265 + $0xa0] sm:$0xff] %v2386
        %2419 = vst [vmem:[%s265 + $0xa8] sm:$0xff] %v2387
        %2420 = vst [vmem:[%s265 + $0xb0] sm:$0xff] %v2388
        %2421 = vst [vmem:[%s265 + $0xb8] sm:$0xff] %v2389
        %2422 = vst [vmem:[%s265 + $0xc0] sm:$0xff] %v2390
        %2423 = vst [vmem:[%s265 + $0xc8] sm:$0xff] %v2391
        %2424 = vst [vmem:[%s265 + $0xd0] sm:$0xff] %v2392
        %2425 = vst [vmem:[%s265 + $0xd8] sm:$0xff] %v2393
        %2426 = vst [vmem:[%s265 + $0xe0] sm:$0xff] %v2394
        %2427 = vst [vmem:[%s265 + $0xe8] sm:$0xff] %v2395
        %2428 = vst [vmem:[%s265 + $0xf0] sm:$0xff] %v2396
        %2429 = vst [vmem:[%s265 + $0xf8] sm:$0xff] %v2397
      $region40: #{mrcnn_forward.8} parent=31 // pred_fallthru
        _
      %s2430 = smul.u32 32, %s19
      %p2431 = scmp.lt.s32.totalorder %s2430, 63
      %s2432 = scalar_select %p2431, %s2430, 63
      %p2433 = scmp.lt.s32.totalorder %s20, 0
      %s2434 = scalar_select %p2433, %s20, 0
      %s2435 = sadd.s32 %s2434, %s2432
      %s2436 = smul.addr %s2435, 8
      %s2437 = scalar_lea.vmem %s3, %s2436
      // Predicated region
      $region41: #{mrcnn_forward.8} parent=31 // pred_check
        %p2438 = pneg %p135
      $region42: #{mrcnn_forward.8} parent=31 // pred_check_branch
        %2440 = sbr.rel (%p2438) target = $region44
      $region43: #{mrcnn_forward.8} parent=31 // pred_region
        %s2441 = smul.u32 32, %s19
      $region44: #{mrcnn_forward.8} parent=31 // pred_fallthru
        _
    $region32: #{mrcnn_forward.8} parent=5 // pred_fallthru
      _
    %p2442 = scmp.le.s32.totalorder 2, %s9
    // Predicated region
    $region45: #{mrcnn_forward.8} parent=5 // pred_check
      %p2443 = pneg %p2442
    $region46: #{mrcnn_forward.8} parent=5 // pred_check_branch
      %2445 = sbr.rel (%p2443) target = $region48
    $region47: #{mrcnn_forward.8} parent=5 // pred_region
      %s2446 = ssub.s32 %s9, 2
      // Predicated region
      $region49: #{mrcnn_forward.8} parent=47 // pred_check
        %p2447 = pneg %p141
      $region50: #{mrcnn_forward.8} parent=47 // pred_check_branch
        %2449 = sbr.rel (%p2447) target = $region52
      $region51: #{mrcnn_forward.8} parent=47 // pred_region
        %s2450 = smul.u32 32, %s22
        %p2451 = scmp.lt.s32.totalorder %s2450, 63
        %s2452 = scalar_select %p2451, %s2450, 63
        %p2453 = scmp.lt.s32.totalorder %s23, 0
        %s2454 = scalar_select %p2453, %s23, 0
        %s2455 = sadd.s32 %s2454, %s2452
        %s2456 = smul.addr %s2455, 8
        %s2457 = scalar_lea.vmem %s3, %s2456
      $region52: #{mrcnn_forward.8} parent=47 // pred_fallthru
        _
    $region48: #{mrcnn_forward.8} parent=5 // pred_fallthru
      _
  $region6: #{mrcnn_forward.8} parent=0 // loop_footer
    %s13 = sadd.s32 1, %s9
  $region7: #{mrcnn_forward.8} parent=0 // loop_footer_branch
    %8 = sbr.rel target = $region3
  $region8: #{mrcnn_forward.8} parent=0 // loop_exit
    _

</llo_original>
